<compile_context>
chip_gen: v7x
topology: tpu7x:2x2x1
jax: 0.10.0
libtpu: 0.0.40
codegen_flags: <defaults>
</compile_context>

<pallas_src>
import functools

import jax
import jax.numpy as jnp
from jax.experimental import pallas as pl
from jax.experimental.pallas import tpu as pltpu


_LANE = 128
_SUBLANE = 8
_COMPUTE_DTYPE = jnp.bfloat16


def _round_up(x, m):
    return (x + m - 1) // m * m


# ----------------------------------------------------------------------------
# Pallas kernels: flat-shift convolution (all taps accumulated in-kernel)
# ----------------------------------------------------------------------------
def _tap_accumulate(x_ref, w_ref, b_ref, *, kh, kw, wp, tile_m, single_tile):
    """acc[p, co] = sum_taps x[base + p + di*wp + dj, :] @ w[tap]  + bias."""
    if single_tile:
        base = 0
    else:
        base = pl.program_id(1) * tile_m
    coutp = w_ref.shape[2]
    acc = jnp.zeros((tile_m, coutp), jnp.float32)
    for di in range(kh):
        if single_tile:
            start = di * wp                              # static, 8-aligned
        else:
            start = pl.multiple_of(base + di * wp, _SUBLANE)
        band = x_ref[0, pl.ds(start, tile_m + _SUBLANE), :]   # aligned read
        band32 = band.astype(jnp.float32) if kw > 1 else None
        for dj in range(kw):
            if dj == 0:
                patch = band[:tile_m, :]
            else:
                # shift by dj rows on the f32 copy (safe sublane shift), then
                # back to bf16 so the MXU runs at bf16 rate.
                patch = band32[dj:dj + tile_m, :].astype(band.dtype)
            acc = acc + jnp.dot(patch, w_ref[di * kw + dj],
                                preferred_element_type=jnp.float32)
    return acc + b_ref[...].astype(jnp.float32)


def _masked_softmax(logits, n_valid, log):
    """(log_)softmax over the first n_valid lanes only (rest are padding)."""
    lane = jax.lax.broadcasted_iota(jnp.int32, logits.shape, 1)
    valid = lane < n_valid
    z = jnp.where(valid, logits, jnp.float32(-1e30))
    zmax = jnp.max(z, axis=-1, keepdims=True)
    ez = jnp.where(valid, jnp.exp(z - zmax), 0.0)
    denom = jnp.sum(ez, axis=-1, keepdims=True)
    if log:
        return jnp.where(valid, z - zmax - jnp.log(denom), 0.0)
    return ez / denom


def _conv_kernel(x_ref, w_ref, b_ref, o_ref, *, kh, kw, wp, tile_m, single_tile,
                 relu, act, n_valid):
    acc = _tap_accumulate(x_ref, w_ref, b_ref, kh=kh, kw=kw, wp=wp,
                          tile_m=tile_m, single_tile=single_tile)
    if relu:
        acc = jnp.maximum(acc, 0.0)
    if act in ("softmax", "log_softmax"):
        acc = _masked_softmax(acc, n_valid, log=(act == "log_softmax"))
    o_ref[0, :, :] = acc.astype(o_ref.dtype)


def _conv_chain_kernel(x_ref, w_ref, b_ref, w2_ref, b2_ref, o_ref, o2_ref, *,
                       kh, kw, wp, tile_m, single_tile):
    """kh x kw conv (+bias+ReLU) -> o_ref; fused 1x1 conv (+bias+ReLU) -> o2_ref."""
    y = jnp.maximum(
        _tap_accumulate(x_ref, w_ref, b_ref, kh=kh, kw=kw, wp=wp,
                        tile_m=tile_m, single_tile=single_tile), 0.0)
    o_ref[0, :, :] = y.astype(o_ref.dtype)
    y2 = jnp.dot(y.astype(w2_ref.dtype), w2_ref[0],
                 preferred_element_type=jnp.float32) + b2_ref[...]
    o2_ref[0, :, :] = jnp.maximum(y2, 0.0).astype(o2_ref.dtype)


# ----------------------------------------------------------------------------
# Host-side wrapper: stride-1 KhxKw conv (optionally chained with a 1x1 conv)
# ----------------------------------------------------------------------------
def _pallas_conv(x_nhwc, stages, *, kh, kw, pad, relu=True, act=None,
                 out_dtypes, max_tile_m=512):
    """stages = [(w_taps (kh*kw,Cin,Coutp), bias (Coutp,), cout_real), ...]
    stage 0 is the spatial conv; an optional stage 1 is a fused 1x1 follow-up.
    Returns one NHWC array per stage, cropped to (N, Ho, Wo, cout_real)."""
    N, H, W, cin = x_nhwc.shape
    Hp = H + 2 * pad
    Wp0 = W + 2 * pad
    Ho = Hp - kh + 1
    Wo = Wp0 - kw + 1
    Wp = _round_up(Wp0, _SUBLANE)          # aligned row stride -> aligned tap offsets
    M = Ho * Wp                            # flat output rows (x >= Wo cropped later)
    tile_m = min(max_tile_m, _round_up(M, _SUBLANE))
    m_tiles = -(-M // tile_m)
    M_pad = m_tiles * tile_m
    Pin = M_pad + (kh - 1) * Wp + _SUBLANE
    single_tile = (m_tiles == 1)

    # spatial zero-pad, right-pad W to the aligned row stride, flatten rows.
    xp = jnp.pad(x_nhwc, ((0, 0), (pad, pad), (pad, pad + Wp - Wp0), (0, 0)))
    xf = xp.reshape(N, Hp * Wp, cin)
    xf = jnp.pad(xf, ((0, 0), (0, Pin - Hp * Wp), (0, 0))).astype(_COMPUTE_DTYPE)

    w0, b0, c0 = stages[0]
    coutp0 = int(w0.shape[-1])
    args = [xf, w0.astype(_COMPUTE_DTYPE),
            b0.reshape(1, coutp0).astype(jnp.float32)]
    # input image + weights + bias stay VMEM-resident across the M-tile axis.
    in_specs = [
        pl.BlockSpec((1, Pin, cin), lambda n, m: (n, 0, 0)),
        pl.BlockSpec(tuple(w0.shape), lambda n, m: (0, 0, 0)),
        pl.BlockSpec((1, coutp0), lambda n, m: (0, 0)),
    ]
    grid = (N, m_tiles)
    common = dict(kh=kh, kw=kw, wp=Wp, tile_m=tile_m, single_tile=single_tile)
    cparams = pltpu.CompilerParams(
        dimension_semantics=("parallel", "parallel"))

    if len(stages) == 1:
        kernel = functools.partial(_conv_kernel, relu=relu, act=act,
                                   n_valid=c0, **common)
        out = pl.pallas_call(
            kernel,
            out_shape=jax.ShapeDtypeStruct((N, M_pad, coutp0), out_dtypes[0]),
            grid=grid,
            in_specs=in_specs,
            out_specs=pl.BlockSpec((1, tile_m, coutp0), lambda n, m: (n, m, 0)),
            compiler_params=cparams,
        )(*args)
        outs, reals = [out], [(coutp0, c0)]
    else:
        w1, b1, c1 = stages[1]
        coutp1 = int(w1.shape[-1])
        args += [w1.astype(_COMPUTE_DTYPE),
                 b1.reshape(1, coutp1).astype(jnp.float32)]
        in_specs += [
            pl.BlockSpec(tuple(w1.shape), lambda n, m: (0, 0, 0)),
            pl.BlockSpec((1, coutp1), lambda n, m: (0, 0)),
        ]
        kernel = functools.partial(_conv_chain_kernel, **common)
        out0, out1 = pl.pallas_call(
            kernel,
            out_shape=(jax.ShapeDtypeStruct((N, M_pad, coutp0), out_dtypes[0]),
                       jax.ShapeDtypeStruct((N, M_pad, coutp1), out_dtypes[1])),
            grid=grid,
            in_specs=in_specs,
            out_specs=(pl.BlockSpec((1, tile_m, coutp0), lambda n, m: (n, m, 0)),
                       pl.BlockSpec((1, tile_m, coutp1), lambda n, m: (n, m, 0))),
            compiler_params=cparams,
        )(*args)
        outs, reals = [out0, out1], [(coutp0, c0), (coutp1, c1)]

    results = []
    for o, (cp, cr) in zip(outs, reals):
        o = o[:, :Ho * Wp, :].reshape(N, Ho, Wp, cp)[:, :, :Wo, :cr]
        results.append(o)
    return results


# ----------------------------------------------------------------------------
# Conv-layer wrappers
# ----------------------------------------------------------------------------
def _pt_weight_to_taps(w_pt):
    cout, cin, kh, kw = w_pt.shape
    return jnp.transpose(w_pt, (2, 3, 1, 0)).reshape(kh * kw, cin, cout)


def _space_to_depth2(xpad):
    n, hp, wp, c = xpad.shape
    x = xpad.reshape(n, hp // 2, 2, wp // 2, 2, c)
    x = jnp.transpose(x, (0, 1, 3, 2, 4, 5))
    return x.reshape(n, hp // 2, wp // 2, 4 * c)


def _s2d_weight(w_pt):
    """3x3 stride-2 weight -> equivalent 2x2 stride-1 weight on s2d input."""
    cout, cin, _, _ = w_pt.shape
    w = jnp.transpose(w_pt, (2, 3, 1, 0))               # (3,3,Cin,Cout)
    w = jnp.pad(w, ((0, 1), (0, 1), (0, 0), (0, 0)))    # (4,4,Cin,Cout)
    w = w.reshape(2, 2, 2, 2, cin, cout)                # (a,r,b,s,Cin,Cout)
    w = jnp.transpose(w, (0, 2, 1, 3, 4, 5))            # (a,b,r,s,Cin,Cout)
    return w.reshape(4, 4 * cin, cout)                  # taps=(a,b), ch=(r,s,ci)


def conv3x3_s2_relu(x, params):
    """Conv2d(k=3, s=2, p=1) + ReLU as a 2x2 stride-1 conv on space-to-depth."""
    w_pt, b = params
    cout = int(w_pt.shape[0])
    n, h, w, _ = x.shape
    hp = _round_up(h + 2, 2)
    wp = _round_up(w + 2, 2)
    xp = jnp.pad(x, ((0, 0), (1, hp - h - 1), (1, wp - w - 1), (0, 0)))
    s2d = _space_to_depth2(xp)
    (y,) = _pallas_conv(s2d, [(_s2d_weight(w_pt), b, cout)],
                        kh=2, kw=2, pad=0, relu=True,
                        out_dtypes=[_COMPUTE_DTYPE])
    return y


def conv3x3_s1_relu(x, params):
    w_pt, b = params
    cout = int(w_pt.shape[0])
    (y,) = _pallas_conv(x, [(_pt_weight_to_taps(w_pt), b, cout)],
                        kh=3, kw=3, pad=1, relu=True,
                        out_dtypes=[_COMPUTE_DTYPE])
    return y


def conv3x3_s1_then_1x1_relu(x, params3, params1):
    """Fused enc4 (3x3+ReLU) -> enc_ppm (1x1+ReLU); two outputs, one kernel."""
    w3, b3 = params3
    w1, b1 = params1
    c3, c1 = int(w3.shape[0]), int(w1.shape[0])
    y3, y5 = _pallas_conv(
        x, [(_pt_weight_to_taps(w3), b3, c3), (_pt_weight_to_taps(w1), b1, c1)],
        kh=3, kw=3, pad=1, out_dtypes=[_COMPUTE_DTYPE, _COMPUTE_DTYPE])
    return y3, y5


def conv3x3_s1_head(x, params):
    """Decoder head conv: no ReLU, Cout lane-padded to 128 for dense stores."""
    w_pt, b = params
    cout = int(w_pt.shape[0])
    w_taps = jnp.pad(_pt_weight_to_taps(w_pt), ((0, 0), (0, 0), (0, _LANE - cout)))
    bp = jnp.pad(b, (0, _LANE - cout))
    (y,) = _pallas_conv(x, [(w_taps, bp, cout)], kh=3, kw=3, pad=1,
                        relu=False, out_dtypes=[jnp.float32])
    return y


def conv1x1_seg_head(x, params, use_softmax):
    """Seg head: 1x1 conv + (log_)softmax fused in one kernel, masked to the
    real classes (padded lanes never enter the normalization)."""
    w_pt, b = params
    nc = int(w_pt.shape[0])
    w_taps = jnp.pad(_pt_weight_to_taps(w_pt), ((0, 0), (0, 0), (0, _LANE - nc)))
    bp = jnp.pad(b, (0, _LANE - nc))
    act = "softmax" if use_softmax else "log_softmax"
    (y,) = _pallas_conv(x, [(w_taps, bp, nc)], kh=1, kw=1, pad=0,
                        relu=False, act=act, out_dtypes=[jnp.float32])
    return y


# ----------------------------------------------------------------------------
# Parameter init (kaiming_normal_, mode='fan_in', bias = 0)
# ----------------------------------------------------------------------------
def _conv_params(key, cin, cout, k):
    fan_in = cin * k * k
    std = (2.0 / fan_in) ** 0.5
    w = jax.random.normal(key, (cout, cin, k, k), jnp.float32) * std
    b = jnp.zeros((cout,), jnp.float32)
    return (w, b)


def init_scene_net_params(key, in_ch=3, c1=8, c2=8, c3=16, c4=16, c5=16,
                          ppm_ch=16, num_classes=5):
    ks = jax.random.split(key, 16)
    p = {}
    p["enc0"] = _conv_params(ks[0], in_ch, c1, 3)   # stride 2
    p["enc1"] = _conv_params(ks[1], c1, c2, 3)      # stride 2
    p["enc2"] = _conv_params(ks[2], c2, c3, 3)      # stride 2
    p["enc3"] = _conv_params(ks[3], c3, c4, 3)      # stride 1
    p["enc4"] = _conv_params(ks[4], c4, c5, 3)      # stride 1
    p["enc_ppm"] = _conv_params(ks[5], c5, ppm_ch, 1)
    p["flow2"] = _conv_params(ks[6], 2 * c3, 2, 3)
    p["flow3"] = _conv_params(ks[7], 2 * c4, 2, 3)
    p["flow4"] = _conv_params(ks[8], 2 * c5, 2, 3)
    p["disp2"] = _conv_params(ks[9], 2 * c3, 1, 3)
    p["disp3"] = _conv_params(ks[10], 2 * c4, 1, 3)
    p["disp4"] = _conv_params(ks[11], 2 * c5, 1, 3)
    p["seg"] = _conv_params(ks[12], ppm_ch, num_classes, 1)
    return p


# ----------------------------------------------------------------------------
# Encoder / decoders (every conv is one fused Pallas kernel)
# ----------------------------------------------------------------------------
def encoder(params, im_nhwc):
    x0 = conv3x3_s2_relu(im_nhwc, params["enc0"])
    x1 = conv3x3_s2_relu(x0, params["enc1"])
    x2 = conv3x3_s2_relu(x1, params["enc2"])
    x3 = conv3x3_s1_relu(x2, params["enc3"])
    # TODO(synk): folding enc3 into the chain below needs in-kernel halo
    # re-padding between two 3x3 stages; only enc4+enc_ppm are fused.
    x4, x5 = conv3x3_s1_then_1x1_relu(x3, params["enc4"], params["enc_ppm"])
    return [x0, x1, x2, x3, x4, x5]


def flow_decoder(params, cur_x, nxt_x):
    out = []
    for idx, name in zip((2, 3, 4), ("flow2", "flow3", "flow4")):
        cat = jnp.concatenate([cur_x[idx], nxt_x[idx]], axis=-1)
        out.append(conv3x3_s1_head(cat, params[name]))
    return out


def disp_decoder(params, cur_x, left_x):
    out = []
    for idx, name in zip((2, 3, 4), ("disp2", "disp3", "disp4")):
        cat = jnp.concatenate([cur_x[idx], left_x[idx]], axis=-1)
        out.append(conv3x3_s1_head(cat, params[name]))
    return out


def seg_decoder(params, feats, use_softmax=False, seg_size=None):
    # TODO(synk): segSize bilinear upsampling of the PPM decoder is omitted
    # (seg_size=None path); conv + (log_)softmax run fused in one kernel.
    return conv1x1_seg_head(feats[-1], params["seg"], use_softmax)


# ----------------------------------------------------------------------------
# SceneNet.forward equivalent
# ----------------------------------------------------------------------------
def scene_net_forward(params, cur_im, nxt_im=None, left_im=None, right_im=None,
                      reuse_first_im=True, seg_use_softmax=False, seg_size=None,
                      do_seg_every_im=False, crop_imh_for_seg=-1,
                      crop_imw_for_seg=-1, disp_with_ppm=False,
                      flow_with_ppm=False):
    del crop_imh_for_seg, crop_imw_for_seg  # unused by the reference forward
    to_nhwc = lambda x: jnp.transpose(x, (0, 2, 3, 1))

    # one batched encoder pass over every present image (shared weights).
    names, imgs = ["cur"], [to_nhwc(cur_im)]
    if nxt_im is not None:
        names.append("nxt"); imgs.append(to_nhwc(nxt_im))
    if left_im is not None:
        names.append("left"); imgs.append(to_nhwc(left_im))
    if (not reuse_first_im) and (right_im is not None):
        names.append("right"); imgs.append(to_nhwc(right_im))
    batched = imgs[0] if len(imgs) == 1 else jnp.concatenate(imgs, axis=0)
    feats = encoder(params, batched)
    assert len(feats) == 6

    pyr, off = {}, 0
    for name, im in zip(names, imgs):
        n = im.shape[0]
        pyr[name] = [f[off:off + n] for f in feats]
        off += n
    cur_x = pyr["cur"]
    nxt_x = pyr.get("nxt")
    left_x = pyr.get("left")
    right_x = pyr.get("right")

    # flow branch
    if nxt_im is not None:
        if flow_with_ppm:
            cur_x_, nxt_x_ = cur_x[:4] + [cur_x[-1]], nxt_x[:4] + [nxt_x[-1]]
        else:
            cur_x_, nxt_x_ = cur_x[:5], nxt_x[:5]
        flow_multi_scale = flow_decoder(params, cur_x_, nxt_x_)
    else:
        flow_multi_scale = None

    # disparity branch
    if left_im is not None:
        if reuse_first_im:
            a = cur_x[:4] + [cur_x[-1]] if disp_with_ppm else cur_x[:5]
            b = left_x[:4] + [left_x[-1]] if disp_with_ppm else left_x[:5]
        else:
            a = left_x[:4] + [left_x[-1]] if disp_with_ppm else left_x[:5]
            b = right_x[:4] + [right_x[-1]] if disp_with_ppm else right_x[:5]
        disp_multi_scale = disp_decoder(params, a, b)
    else:
        disp_multi_scale = None

    # segmentation branch
    if do_seg_every_im:
        assert len(cur_x) == 6
        cur_seg = seg_decoder(params, cur_x[1:4] + [cur_x[-1]],
                              seg_use_softmax, seg_size)
        nxt_seg = (seg_decoder(params, nxt_x[1:4] + [nxt_x[-1]],
                               seg_use_softmax, seg_size)
                   if nxt_im is not None else None)
        left_seg = (seg_decoder(params, left_x[1:4] + [left_x[-1]],
                                seg_use_softmax, seg_size)
                    if left_im is not None else None)
        right_seg = (seg_decoder(params, right_x[1:4] + [right_x[-1]],
                                 seg_use_softmax, seg_size)
                     if right_x is not None else None)
        seg = (cur_seg, nxt_seg, left_seg, right_seg)
    else:
        if reuse_first_im:
            assert len(cur_x) == 6
            s = seg_decoder(params, cur_x[1:4] + [cur_x[-1]],
                            seg_use_softmax, seg_size)
        else:
            assert len(left_x) == 6
            s = seg_decoder(params, left_x[1:4] + [left_x[-1]],
                            seg_use_softmax, seg_size)
        seg = (s,)

    return (flow_multi_scale, disp_multi_scale, seg)


# ----------------------------------------------------------------------------
if __name__ == "__main__":
    key = jax.random.PRNGKey(0)
    k_par, k_cur, k_nxt, k_left = jax.random.split(key, 4)

    params = init_scene_net_params(k_par)

    N, C, H, W = 2, 3, 32, 32          # small NCHW image triplet
    cur_im = jax.random.normal(k_cur, (N, C, H, W), jnp.float32)
    nxt_im = jax.random.normal(k_nxt, (N, C, H, W), jnp.float32)
    left_im = jax.random.normal(k_left, (N, C, H, W), jnp.float32)

    fwd = jax.jit(scene_net_forward)
    flow_ms, disp_ms, seg = fwd(params, cur_im, nxt_im, left_im)
    jax.block_until_ready((flow_ms, disp_ms, seg))

    # sanity checks on output structure / numerics
    assert len(flow_ms) == 3 and flow_ms[0].shape == (N, 4, 4, 2)
    assert len(disp_ms) == 3 and disp_ms[0].shape == (N, 4, 4, 1)
    assert isinstance(seg, tuple) and len(seg) == 1 and seg[0].shape == (N, 4, 4, 5)
    probs = jnp.exp(seg[0]).sum(axis=-1)        # log_softmax must normalize
    assert bool(jnp.allclose(probs, 1.0, atol=1e-3))
    assert bool(jnp.all(jnp.isfinite(flow_ms[0])))

    print("KERNEL_OK")
</pallas_src>

<mosaic_0001>
module attributes {stable_mosaic.version = 11 : i64} {
  func.func @_conv_kernel(%arg0: i32, %arg1: i32, %arg2: memref<1x416x12xbf16, #tpu.memory_space<vmem>>, %arg3: memref<4x12x8xbf16, #tpu.memory_space<vmem>>, %arg4: memref<1x8xf32, #tpu.memory_space<vmem>>, %arg5: memref<1x384x8xbf16, #tpu.memory_space<vmem>>) attributes {dimension_semantics = [#tpu.dimension_semantics<parallel>, #tpu.dimension_semantics<parallel>], iteration_bounds = array<i64: 6, 1>, scalar_prefetch = 0 : i64, scratch_operands = 0 : i64, tpu.core_type = #tpu.core_type<tc>, window_params = [{transform_indices = @transform_0, window_bounds = array<i64: 1, 416, 12>}, {pipeline_mode = #tpu.pipeline_mode<synchronous>, transform_indices = @transform_1, window_bounds = array<i64: 4, 12, 8>}, {pipeline_mode = #tpu.pipeline_mode<synchronous>, transform_indices = @transform_2, window_bounds = array<i64: 1, 8>}, {transform_indices = @transform_3, window_bounds = array<i64: 1, 384, 8>}]} {
    %cst = arith.constant 0.000000e+00 : f32
    %0 = vector.broadcast %cst : f32 to vector<384x8xf32>
    %c0 = arith.constant 0 : index
    %c0_0 = arith.constant 0 : index
    %c0_1 = arith.constant 0 : index
    %1 = vector.load %arg2[%c0, %c0_0, %c0_1] : memref<1x416x12xbf16, #tpu.memory_space<vmem>>, vector<1x392x12xbf16>
    %2 = vector.shape_cast %1 : vector<1x392x12xbf16> to vector<392x12xbf16>
    %3 = arith.extf %2 : vector<392x12xbf16> to vector<392x12xf32>
    %4 = vector.extract_strided_slice %2 {offsets = [0, 0], sizes = [384, 12], strides = [1, 1]} : vector<392x12xbf16> to vector<384x12xbf16>
    %c0_2 = arith.constant 0 : index
    %c0_3 = arith.constant 0 : index
    %c0_4 = arith.constant 0 : index
    %5 = vector.load %arg3[%c0_2, %c0_3, %c0_4] : memref<4x12x8xbf16, #tpu.memory_space<vmem>>, vector<1x12x8xbf16>
    %6 = vector.shape_cast %5 : vector<1x12x8xbf16> to vector<12x8xbf16>
    %cst_5 = arith.constant dense<0.000000e+00> : vector<384x8xf32>
    %7 = tpu.matmul %4, %6, %cst_5 {dimension_numbers = #tpu.dot_dimension_numbers<[1], [0], [0], [1], [0, 0, 1, 1], [], []>} : vector<384x12xbf16>, vector<12x8xbf16>, vector<384x8xf32> -> vector<384x8xf32>
    %8 = arith.addf %0, %7 : vector<384x8xf32>
    %9 = vector.extract_strided_slice %3 {offsets = [1, 0], sizes = [384, 12], strides = [1, 1]} : vector<392x12xf32> to vector<384x12xf32>
    %10 = arith.truncf %9 : vector<384x12xf32> to vector<384x12xbf16>
    %c1 = arith.constant 1 : index
    %c0_6 = arith.constant 0 : index
    %c0_7 = arith.constant 0 : index
    %11 = vector.load %arg3[%c1, %c0_6, %c0_7] : memref<4x12x8xbf16, #tpu.memory_space<vmem>>, vector<1x12x8xbf16>
    %12 = vector.shape_cast %11 : vector<1x12x8xbf16> to vector<12x8xbf16>
    %cst_8 = arith.constant dense<0.000000e+00> : vector<384x8xf32>
    %13 = tpu.matmul %10, %12, %cst_8 {dimension_numbers = #tpu.dot_dimension_numbers<[1], [0], [0], [1], [0, 0, 1, 1], [], []>} : vector<384x12xbf16>, vector<12x8xbf16>, vector<384x8xf32> -> vector<384x8xf32>
    %14 = arith.addf %8, %13 : vector<384x8xf32>
    %c0_9 = arith.constant 0 : index
    %c24 = arith.constant 24 : index
    %c0_10 = arith.constant 0 : index
    %15 = vector.load %arg2[%c0_9, %c24, %c0_10] : memref<1x416x12xbf16, #tpu.memory_space<vmem>>, vector<1x392x12xbf16>
    %16 = vector.shape_cast %15 : vector<1x392x12xbf16> to vector<392x12xbf16>
    %17 = arith.extf %16 : vector<392x12xbf16> to vector<392x12xf32>
    %18 = vector.extract_strided_slice %16 {offsets = [0, 0], sizes = [384, 12], strides = [1, 1]} : vector<392x12xbf16> to vector<384x12xbf16>
    %c2 = arith.constant 2 : index
    %c0_11 = arith.constant 0 : index
    %c0_12 = arith.constant 0 : index
    %19 = vector.load %arg3[%c2, %c0_11, %c0_12] : memref<4x12x8xbf16, #tpu.memory_space<vmem>>, vector<1x12x8xbf16>
    %20 = vector.shape_cast %19 : vector<1x12x8xbf16> to vector<12x8xbf16>
    %cst_13 = arith.constant dense<0.000000e+00> : vector<384x8xf32>
    %21 = tpu.matmul %18, %20, %cst_13 {dimension_numbers = #tpu.dot_dimension_numbers<[1], [0], [0], [1], [0, 0, 1, 1], [], []>} : vector<384x12xbf16>, vector<12x8xbf16>, vector<384x8xf32> -> vector<384x8xf32>
    %22 = arith.addf %14, %21 : vector<384x8xf32>
    %23 = vector.extract_strided_slice %17 {offsets = [1, 0], sizes = [384, 12], strides = [1, 1]} : vector<392x12xf32> to vector<384x12xf32>
    %24 = arith.truncf %23 : vector<384x12xf32> to vector<384x12xbf16>
    %c3 = arith.constant 3 : index
    %c0_14 = arith.constant 0 : index
    %c0_15 = arith.constant 0 : index
    %25 = vector.load %arg3[%c3, %c0_14, %c0_15] : memref<4x12x8xbf16, #tpu.memory_space<vmem>>, vector<1x12x8xbf16>
    %26 = vector.shape_cast %25 : vector<1x12x8xbf16> to vector<12x8xbf16>
    %cst_16 = arith.constant dense<0.000000e+00> : vector<384x8xf32>
    %27 = tpu.matmul %24, %26, %cst_16 {dimension_numbers = #tpu.dot_dimension_numbers<[1], [0], [0], [1], [0, 0, 1, 1], [], []>} : vector<384x12xbf16>, vector<12x8xbf16>, vector<384x8xf32> -> vector<384x8xf32>
    %28 = arith.addf %22, %27 : vector<384x8xf32>
    %c0_17 = arith.constant 0 : index
    %c0_18 = arith.constant 0 : index
    %29 = vector.load %arg4[%c0_17, %c0_18] : memref<1x8xf32, #tpu.memory_space<vmem>>, vector<1x8xf32>
    %30 = vector.broadcast %29 : vector<1x8xf32> to vector<384x8xf32>
    %31 = arith.addf %28, %30 : vector<384x8xf32>
    %cst_19 = arith.constant 0.000000e+00 : f32
    %32 = vector.broadcast %cst_19 : f32 to vector<384x8xf32>
    %33 = arith.maximumf %31, %32 : vector<384x8xf32>
    %34 = arith.truncf %33 : vector<384x8xf32> to vector<384x8xbf16>
    %c0_20 = arith.constant 0 : index
    %c0_21 = arith.constant 0 : index
    %c0_22 = arith.constant 0 : index
    %35 = vector.load %arg5[%c0_20, %c0_21, %c0_22] : memref<1x384x8xbf16, #tpu.memory_space<vmem>>, vector<1x384x8xbf16>
    %36 = vector.shape_cast %35 : vector<1x384x8xbf16> to vector<384x8xbf16>
    %37 = vector.shape_cast %34 : vector<384x8xbf16> to vector<1x384x8xbf16>
    tpu.vector_store %arg5[%c0_20, %c0_21, %c0_22], %37 {strides = array<i32>} : memref<1x384x8xbf16, #tpu.memory_space<vmem>>, vector<1x384x8xbf16>,
    return
  }
  func.func @transform_0(%arg0: i32, %arg1: i32) -> (i32, i32, i32) {
    %c0_i32 = arith.constant 0 : i32
    %c0_i32_0 = arith.constant 0 : i32
    %c0_i32_1 = arith.constant 0 : i32
    return %arg0, %c0_i32, %c0_i32_0 : i32, i32, i32
  }
  func.func @transform_1(%arg0: i32, %arg1: i32) -> (i32, i32, i32) {
    %c0_i32 = arith.constant 0 : i32
    %c0_i32_0 = arith.constant 0 : i32
    %c0_i32_1 = arith.constant 0 : i32
    %c0_i32_2 = arith.constant 0 : i32
    return %c0_i32, %c0_i32_0, %c0_i32_1 : i32, i32, i32
  }
  func.func @transform_2(%arg0: i32, %arg1: i32) -> (i32, i32) {
    %c0_i32 = arith.constant 0 : i32
    %c0_i32_0 = arith.constant 0 : i32
    %c0_i32_1 = arith.constant 0 : i32
    return %c0_i32, %c0_i32_0 : i32, i32
  }
  func.func @transform_3(%arg0: i32, %arg1: i32) -> (i32, i32, i32) {
    %c0_i32 = arith.constant 0 : i32
    %c0_i32_0 = arith.constant 0 : i32
    return %arg0, %arg1, %c0_i32 : i32, i32, i32
  }
}

module attributes {stable_mosaic.version = 11 : i64} {
  func.func @_conv_kernel(%arg0: i32, %arg1: i32, %arg2: memref<1x152x32xbf16, #tpu.memory_space<vmem>>, %arg3: memref<4x32x8xbf16, #tpu.memory_space<vmem>>, %arg4: memref<1x8xf32, #tpu.memory_space<vmem>>, %arg5: memref<1x128x8xbf16, #tpu.memory_space<vmem>>) attributes {dimension_semantics = [#tpu.dimension_semantics<parallel>, #tpu.dimension_semantics<parallel>], iteration_bounds = array<i64: 6, 1>, scalar_prefetch = 0 : i64, scratch_operands = 0 : i64, tpu.core_type = #tpu.core_type<tc>, window_params = [{transform_indices = @transform_0, window_bounds = array<i64: 1, 152, 32>}, {pipeline_mode = #tpu.pipeline_mode<synchronous>, transform_indices = @transform_1, window_bounds = array<i64: 4, 32, 8>}, {pipeline_mode = #tpu.pipeline_mode<synchronous>, transform_indices = @transform_2, window_bounds = array<i64: 1, 8>}, {transform_indices = @transform_3, window_bounds = array<i64: 1, 128, 8>}]} {
    %cst = arith.constant 0.000000e+00 : f32
    %0 = vector.broadcast %cst : f32 to vector<128x8xf32>
    %c0 = arith.constant 0 : index
    %c0_0 = arith.constant 0 : index
    %c0_1 = arith.constant 0 : index
    %1 = vector.load %arg2[%c0, %c0_0, %c0_1] : memref<1x152x32xbf16, #tpu.memory_space<vmem>>, vector<1x136x32xbf16>
    %2 = vector.shape_cast %1 : vector<1x136x32xbf16> to vector<136x32xbf16>
    %3 = arith.extf %2 : vector<136x32xbf16> to vector<136x32xf32>
    %4 = vector.extract_strided_slice %2 {offsets = [0, 0], sizes = [128, 32], strides = [1, 1]} : vector<136x32xbf16> to vector<128x32xbf16>
    %c0_2 = arith.constant 0 : index
    %c0_3 = arith.constant 0 : index
    %c0_4 = arith.constant 0 : index
    %5 = vector.load %arg3[%c0_2, %c0_3, %c0_4] : memref<4x32x8xbf16, #tpu.memory_space<vmem>>, vector<1x32x8xbf16>
    %6 = vector.shape_cast %5 : vector<1x32x8xbf16> to vector<32x8xbf16>
    %cst_5 = arith.constant dense<0.000000e+00> : vector<128x8xf32>
    %7 = tpu.matmul %4, %6, %cst_5 {dimension_numbers = #tpu.dot_dimension_numbers<[1], [0], [0], [1], [0, 0, 1, 1], [], []>} : vector<128x32xbf16>, vector<32x8xbf16>, vector<128x8xf32> -> vector<128x8xf32>
    %8 = arith.addf %0, %7 : vector<128x8xf32>
    %9 = vector.extract_strided_slice %3 {offsets = [1, 0], sizes = [128, 32], strides = [1, 1]} : vector<136x32xf32> to vector<128x32xf32>
    %10 = arith.truncf %9 : vector<128x32xf32> to vector<128x32xbf16>
    %c1 = arith.constant 1 : index
    %c0_6 = arith.constant 0 : index
    %c0_7 = arith.constant 0 : index
    %11 = vector.load %arg3[%c1, %c0_6, %c0_7] : memref<4x32x8xbf16, #tpu.memory_space<vmem>>, vector<1x32x8xbf16>
    %12 = vector.shape_cast %11 : vector<1x32x8xbf16> to vector<32x8xbf16>
    %cst_8 = arith.constant dense<0.000000e+00> : vector<128x8xf32>
    %13 = tpu.matmul %10, %12, %cst_8 {dimension_numbers = #tpu.dot_dimension_numbers<[1], [0], [0], [1], [0, 0, 1, 1], [], []>} : vector<128x32xbf16>, vector<32x8xbf16>, vector<128x8xf32> -> vector<128x8xf32>
    %14 = arith.addf %8, %13 : vector<128x8xf32>
    %c0_9 = arith.constant 0 : index
    %c16 = arith.constant 16 : index
    %c0_10 = arith.constant 0 : index
    %15 = vector.load %arg2[%c0_9, %c16, %c0_10] : memref<1x152x32xbf16, #tpu.memory_space<vmem>>, vector<1x136x32xbf16>
    %16 = vector.shape_cast %15 : vector<1x136x32xbf16> to vector<136x32xbf16>
    %17 = arith.extf %16 : vector<136x32xbf16> to vector<136x32xf32>
    %18 = vector.extract_strided_slice %16 {offsets = [0, 0], sizes = [128, 32], strides = [1, 1]} : vector<136x32xbf16> to vector<128x32xbf16>
    %c2 = arith.constant 2 : index
    %c0_11 = arith.constant 0 : index
    %c0_12 = arith.constant 0 : index
    %19 = vector.load %arg3[%c2, %c0_11, %c0_12] : memref<4x32x8xbf16, #tpu.memory_space<vmem>>, vector<1x32x8xbf16>
    %20 = vector.shape_cast %19 : vector<1x32x8xbf16> to vector<32x8xbf16>
    %cst_13 = arith.constant dense<0.000000e+00> : vector<128x8xf32>
    %21 = tpu.matmul %18, %20, %cst_13 {dimension_numbers = #tpu.dot_dimension_numbers<[1], [0], [0], [1], [0, 0, 1, 1], [], []>} : vector<128x32xbf16>, vector<32x8xbf16>, vector<128x8xf32> -> vector<128x8xf32>
    %22 = arith.addf %14, %21 : vector<128x8xf32>
    %23 = vector.extract_strided_slice %17 {offsets = [1, 0], sizes = [128, 32], strides = [1, 1]} : vector<136x32xf32> to vector<128x32xf32>
    %24 = arith.truncf %23 : vector<128x32xf32> to vector<128x32xbf16>
    %c3 = arith.constant 3 : index
    %c0_14 = arith.constant 0 : index
    %c0_15 = arith.constant 0 : index
    %25 = vector.load %arg3[%c3, %c0_14, %c0_15] : memref<4x32x8xbf16, #tpu.memory_space<vmem>>, vector<1x32x8xbf16>
    %26 = vector.shape_cast %25 : vector<1x32x8xbf16> to vector<32x8xbf16>
    %cst_16 = arith.constant dense<0.000000e+00> : vector<128x8xf32>
    %27 = tpu.matmul %24, %26, %cst_16 {dimension_numbers = #tpu.dot_dimension_numbers<[1], [0], [0], [1], [0, 0, 1, 1], [], []>} : vector<128x32xbf16>, vector<32x8xbf16>, vector<128x8xf32> -> vector<128x8xf32>
    %28 = arith.addf %22, %27 : vector<128x8xf32>
    %c0_17 = arith.constant 0 : index
    %c0_18 = arith.constant 0 : index
    %29 = vector.load %arg4[%c0_17, %c0_18] : memref<1x8xf32, #tpu.memory_space<vmem>>, vector<1x8xf32>
    %30 = vector.broadcast %29 : vector<1x8xf32> to vector<128x8xf32>
    %31 = arith.addf %28, %30 : vector<128x8xf32>
    %cst_19 = arith.constant 0.000000e+00 : f32
    %32 = vector.broadcast %cst_19 : f32 to vector<128x8xf32>
    %33 = arith.maximumf %31, %32 : vector<128x8xf32>
    %34 = arith.truncf %33 : vector<128x8xf32> to vector<128x8xbf16>
    %c0_20 = arith.constant 0 : index
    %c0_21 = arith.constant 0 : index
    %c0_22 = arith.constant 0 : index
    %35 = vector.load %arg5[%c0_20, %c0_21, %c0_22] : memref<1x128x8xbf16, #tpu.memory_space<vmem>>, vector<1x128x8xbf16>
    %36 = vector.shape_cast %35 : vector<1x128x8xbf16> to vector<128x8xbf16>
    %37 = vector.shape_cast %34 : vector<128x8xbf16> to vector<1x128x8xbf16>
    tpu.vector_store %arg5[%c0_20, %c0_21, %c0_22], %37 {strides = array<i32>} : memref<1x128x8xbf16, #tpu.memory_space<vmem>>, vector<1x128x8xbf16>,
    return
  }
  func.func @transform_0(%arg0: i32, %arg1: i32) -> (i32, i32, i32) {
    %c0_i32 = arith.constant 0 : i32
    %c0_i32_0 = arith.constant 0 : i32
    %c0_i32_1 = arith.constant 0 : i32
    return %arg0, %c0_i32, %c0_i32_0 : i32, i32, i32
  }
  func.func @transform_1(%arg0: i32, %arg1: i32) -> (i32, i32, i32) {
    %c0_i32 = arith.constant 0 : i32
    %c0_i32_0 = arith.constant 0 : i32
    %c0_i32_1 = arith.constant 0 : i32
    %c0_i32_2 = arith.constant 0 : i32
    return %c0_i32, %c0_i32_0, %c0_i32_1 : i32, i32, i32
  }
  func.func @transform_2(%arg0: i32, %arg1: i32) -> (i32, i32) {
    %c0_i32 = arith.constant 0 : i32
    %c0_i32_0 = arith.constant 0 : i32
    %c0_i32_1 = arith.constant 0 : i32
    return %c0_i32, %c0_i32_0 : i32, i32
  }
  func.func @transform_3(%arg0: i32, %arg1: i32) -> (i32, i32, i32) {
    %c0_i32 = arith.constant 0 : i32
    %c0_i32_0 = arith.constant 0 : i32
    return %arg0, %arg1, %c0_i32 : i32, i32, i32
  }
}

module attributes {stable_mosaic.version = 11 : i64} {
  func.func @_conv_kernel(%arg0: i32, %arg1: i32, %arg2: memref<1x48x32xbf16, #tpu.memory_space<vmem>>, %arg3: memref<4x32x16xbf16, #tpu.memory_space<vmem>>, %arg4: memref<1x16xf32, #tpu.memory_space<vmem>>, %arg5: memref<1x32x16xbf16, #tpu.memory_space<vmem>>) attributes {dimension_semantics = [#tpu.dimension_semantics<parallel>, #tpu.dimension_semantics<parallel>], iteration_bounds = array<i64: 6, 1>, scalar_prefetch = 0 : i64, scratch_operands = 0 : i64, tpu.core_type = #tpu.core_type<tc>, window_params = [{transform_indices = @transform_0, window_bounds = array<i64: 1, 48, 32>}, {pipeline_mode = #tpu.pipeline_mode<synchronous>, transform_indices = @transform_1, window_bounds = array<i64: 4, 32, 16>}, {pipeline_mode = #tpu.pipeline_mode<synchronous>, transform_indices = @transform_2, window_bounds = array<i64: 1, 16>}, {transform_indices = @transform_3, window_bounds = array<i64: 1, 32, 16>}]} {
    %cst = arith.constant 0.000000e+00 : f32
    %0 = vector.broadcast %cst : f32 to vector<32x16xf32>
    %c0 = arith.constant 0 : index
    %c0_0 = arith.constant 0 : index
    %c0_1 = arith.constant 0 : index
    %1 = vector.load %arg2[%c0, %c0_0, %c0_1] : memref<1x48x32xbf16, #tpu.memory_space<vmem>>, vector<1x40x32xbf16>
    %2 = vector.shape_cast %1 : vector<1x40x32xbf16> to vector<40x32xbf16>
    %3 = arith.extf %2 : vector<40x32xbf16> to vector<40x32xf32>
    %4 = vector.extract_strided_slice %2 {offsets = [0, 0], sizes = [32, 32], strides = [1, 1]} : vector<40x32xbf16> to vector<32x32xbf16>
    %c0_2 = arith.constant 0 : index
    %c0_3 = arith.constant 0 : index
    %c0_4 = arith.constant 0 : index
    %5 = vector.load %arg3[%c0_2, %c0_3, %c0_4] : memref<4x32x16xbf16, #tpu.memory_space<vmem>>, vector<1x32x16xbf16>
    %6 = vector.shape_cast %5 : vector<1x32x16xbf16> to vector<32x16xbf16>
    %cst_5 = arith.constant dense<0.000000e+00> : vector<32x16xf32>
    %7 = tpu.matmul %4, %6, %cst_5 {dimension_numbers = #tpu.dot_dimension_numbers<[1], [0], [0], [1], [0, 0, 1, 1], [], []>} : vector<32x32xbf16>, vector<32x16xbf16>, vector<32x16xf32> -> vector<32x16xf32>
    %8 = arith.addf %0, %7 : vector<32x16xf32>
    %9 = vector.extract_strided_slice %3 {offsets = [1, 0], sizes = [32, 32], strides = [1, 1]} : vector<40x32xf32> to vector<32x32xf32>
    %10 = arith.truncf %9 : vector<32x32xf32> to vector<32x32xbf16>
    %c1 = arith.constant 1 : index
    %c0_6 = arith.constant 0 : index
    %c0_7 = arith.constant 0 : index
    %11 = vector.load %arg3[%c1, %c0_6, %c0_7] : memref<4x32x16xbf16, #tpu.memory_space<vmem>>, vector<1x32x16xbf16>
    %12 = vector.shape_cast %11 : vector<1x32x16xbf16> to vector<32x16xbf16>
    %cst_8 = arith.constant dense<0.000000e+00> : vector<32x16xf32>
    %13 = tpu.matmul %10, %12, %cst_8 {dimension_numbers = #tpu.dot_dimension_numbers<[1], [0], [0], [1], [0, 0, 1, 1], [], []>} : vector<32x32xbf16>, vector<32x16xbf16>, vector<32x16xf32> -> vector<32x16xf32>
    %14 = arith.addf %8, %13 : vector<32x16xf32>
    %c0_9 = arith.constant 0 : index
    %c8 = arith.constant 8 : index
    %c0_10 = arith.constant 0 : index
    %15 = vector.load %arg2[%c0_9, %c8, %c0_10] : memref<1x48x32xbf16, #tpu.memory_space<vmem>>, vector<1x40x32xbf16>
    %16 = vector.shape_cast %15 : vector<1x40x32xbf16> to vector<40x32xbf16>
    %17 = arith.extf %16 : vector<40x32xbf16> to vector<40x32xf32>
    %18 = vector.extract_strided_slice %16 {offsets = [0, 0], sizes = [32, 32], strides = [1, 1]} : vector<40x32xbf16> to vector<32x32xbf16>
    %c2 = arith.constant 2 : index
    %c0_11 = arith.constant 0 : index
    %c0_12 = arith.constant 0 : index
    %19 = vector.load %arg3[%c2, %c0_11, %c0_12] : memref<4x32x16xbf16, #tpu.memory_space<vmem>>, vector<1x32x16xbf16>
    %20 = vector.shape_cast %19 : vector<1x32x16xbf16> to vector<32x16xbf16>
    %cst_13 = arith.constant dense<0.000000e+00> : vector<32x16xf32>
    %21 = tpu.matmul %18, %20, %cst_13 {dimension_numbers = #tpu.dot_dimension_numbers<[1], [0], [0], [1], [0, 0, 1, 1], [], []>} : vector<32x32xbf16>, vector<32x16xbf16>, vector<32x16xf32> -> vector<32x16xf32>
    %22 = arith.addf %14, %21 : vector<32x16xf32>
    %23 = vector.extract_strided_slice %17 {offsets = [1, 0], sizes = [32, 32], strides = [1, 1]} : vector<40x32xf32> to vector<32x32xf32>
    %24 = arith.truncf %23 : vector<32x32xf32> to vector<32x32xbf16>
    %c3 = arith.constant 3 : index
    %c0_14 = arith.constant 0 : index
    %c0_15 = arith.constant 0 : index
    %25 = vector.load %arg3[%c3, %c0_14, %c0_15] : memref<4x32x16xbf16, #tpu.memory_space<vmem>>, vector<1x32x16xbf16>
    %26 = vector.shape_cast %25 : vector<1x32x16xbf16> to vector<32x16xbf16>
    %cst_16 = arith.constant dense<0.000000e+00> : vector<32x16xf32>
    %27 = tpu.matmul %24, %26, %cst_16 {dimension_numbers = #tpu.dot_dimension_numbers<[1], [0], [0], [1], [0, 0, 1, 1], [], []>} : vector<32x32xbf16>, vector<32x16xbf16>, vector<32x16xf32> -> vector<32x16xf32>
    %28 = arith.addf %22, %27 : vector<32x16xf32>
    %c0_17 = arith.constant 0 : index
    %c0_18 = arith.constant 0 : index
    %29 = vector.load %arg4[%c0_17, %c0_18] : memref<1x16xf32, #tpu.memory_space<vmem>>, vector<1x16xf32>
    %30 = vector.broadcast %29 : vector<1x16xf32> to vector<32x16xf32>
    %31 = arith.addf %28, %30 : vector<32x16xf32>
    %cst_19 = arith.constant 0.000000e+00 : f32
    %32 = vector.broadcast %cst_19 : f32 to vector<32x16xf32>
    %33 = arith.maximumf %31, %32 : vector<32x16xf32>
    %34 = arith.truncf %33 : vector<32x16xf32> to vector<32x16xbf16>
    %c0_20 = arith.constant 0 : index
    %c0_21 = arith.constant 0 : index
    %c0_22 = arith.constant 0 : index
    %35 = vector.load %arg5[%c0_20, %c0_21, %c0_22] : memref<1x32x16xbf16, #tpu.memory_space<vmem>>, vector<1x32x16xbf16>
    %36 = vector.shape_cast %35 : vector<1x32x16xbf16> to vector<32x16xbf16>
    %37 = vector.shape_cast %34 : vector<32x16xbf16> to vector<1x32x16xbf16>
    tpu.vector_store %arg5[%c0_20, %c0_21, %c0_22], %37 {strides = array<i32>} : memref<1x32x16xbf16, #tpu.memory_space<vmem>>, vector<1x32x16xbf16>,
    return
  }
  func.func @transform_0(%arg0: i32, %arg1: i32) -> (i32, i32, i32) {
    %c0_i32 = arith.constant 0 : i32
    %c0_i32_0 = arith.constant 0 : i32
    %c0_i32_1 = arith.constant 0 : i32
    return %arg0, %c0_i32, %c0_i32_0 : i32, i32, i32
  }
  func.func @transform_1(%arg0: i32, %arg1: i32) -> (i32, i32, i32) {
    %c0_i32 = arith.constant 0 : i32
    %c0_i32_0 = arith.constant 0 : i32
    %c0_i32_1 = arith.constant 0 : i32
    %c0_i32_2 = arith.constant 0 : i32
    return %c0_i32, %c0_i32_0, %c0_i32_1 : i32, i32, i32
  }
  func.func @transform_2(%arg0: i32, %arg1: i32) -> (i32, i32) {
    %c0_i32 = arith.constant 0 : i32
    %c0_i32_0 = arith.constant 0 : i32
    %c0_i32_1 = arith.constant 0 : i32
    return %c0_i32, %c0_i32_0 : i32, i32
  }
  func.func @transform_3(%arg0: i32, %arg1: i32) -> (i32, i32, i32) {
    %c0_i32 = arith.constant 0 : i32
    %c0_i32_0 = arith.constant 0 : i32
    return %arg0, %arg1, %c0_i32 : i32, i32, i32
  }
}

module attributes {stable_mosaic.version = 11 : i64} {
  func.func @_conv_kernel(%arg0: i32, %arg1: i32, %arg2: memref<1x56x16xbf16, #tpu.memory_space<vmem>>, %arg3: memref<9x16x16xbf16, #tpu.memory_space<vmem>>, %arg4: memref<1x16xf32, #tpu.memory_space<vmem>>, %arg5: memref<1x32x16xbf16, #tpu.memory_space<vmem>>) attributes {dimension_semantics = [#tpu.dimension_semantics<parallel>, #tpu.dimension_semantics<parallel>], iteration_bounds = array<i64: 6, 1>, scalar_prefetch = 0 : i64, scratch_operands = 0 : i64, tpu.core_type = #tpu.core_type<tc>, window_params = [{transform_indices = @transform_0, window_bounds = array<i64: 1, 56, 16>}, {pipeline_mode = #tpu.pipeline_mode<synchronous>, transform_indices = @transform_1, window_bounds = array<i64: 9, 16, 16>}, {pipeline_mode = #tpu.pipeline_mode<synchronous>, transform_indices = @transform_2, window_bounds = array<i64: 1, 16>}, {transform_indices = @transform_3, window_bounds = array<i64: 1, 32, 16>}]} {
    %cst = arith.constant 0.000000e+00 : f32
    %0 = vector.broadcast %cst : f32 to vector<32x16xf32>
    %c0 = arith.constant 0 : index
    %c0_0 = arith.constant 0 : index
    %c0_1 = arith.constant 0 : index
    %1 = vector.load %arg2[%c0, %c0_0, %c0_1] : memref<1x56x16xbf16, #tpu.memory_space<vmem>>, vector<1x40x16xbf16>
    %2 = vector.shape_cast %1 : vector<1x40x16xbf16> to vector<40x16xbf16>
    %3 = arith.extf %2 : vector<40x16xbf16> to vector<40x16xf32>
    %4 = vector.extract_strided_slice %2 {offsets = [0, 0], sizes = [32, 16], strides = [1, 1]} : vector<40x16xbf16> to vector<32x16xbf16>
    %c0_2 = arith.constant 0 : index
    %c0_3 = arith.constant 0 : index
    %c0_4 = arith.constant 0 : index
    %5 = vector.load %arg3[%c0_2, %c0_3, %c0_4] : memref<9x16x16xbf16, #tpu.memory_space<vmem>>, vector<1x16x16xbf16>
    %6 = vector.shape_cast %5 : vector<1x16x16xbf16> to vector<16x16xbf16>
    %cst_5 = arith.constant dense<0.000000e+00> : vector<32x16xf32>
    %7 = tpu.matmul %4, %6, %cst_5 {dimension_numbers = #tpu.dot_dimension_numbers<[1], [0], [0], [1], [0, 0, 1, 1], [], []>} : vector<32x16xbf16>, vector<16x16xbf16>, vector<32x16xf32> -> vector<32x16xf32>
    %8 = arith.addf %0, %7 : vector<32x16xf32>
    %9 = vector.extract_strided_slice %3 {offsets = [1, 0], sizes = [32, 16], strides = [1, 1]} : vector<40x16xf32> to vector<32x16xf32>
    %10 = arith.truncf %9 : vector<32x16xf32> to vector<32x16xbf16>
    %c1 = arith.constant 1 : index
    %c0_6 = arith.constant 0 : index
    %c0_7 = arith.constant 0 : index
    %11 = vector.load %arg3[%c1, %c0_6, %c0_7] : memref<9x16x16xbf16, #tpu.memory_space<vmem>>, vector<1x16x16xbf16>
    %12 = vector.shape_cast %11 : vector<1x16x16xbf16> to vector<16x16xbf16>
    %cst_8 = arith.constant dense<0.000000e+00> : vector<32x16xf32>
    %13 = tpu.matmul %10, %12, %cst_8 {dimension_numbers = #tpu.dot_dimension_numbers<[1], [0], [0], [1], [0, 0, 1, 1], [], []>} : vector<32x16xbf16>, vector<16x16xbf16>, vector<32x16xf32> -> vector<32x16xf32>
    %14 = arith.addf %8, %13 : vector<32x16xf32>
    %15 = vector.extract_strided_slice %3 {offsets = [2, 0], sizes = [32, 16], strides = [1, 1]} : vector<40x16xf32> to vector<32x16xf32>
    %16 = arith.truncf %15 : vector<32x16xf32> to vector<32x16xbf16>
    %c2 = arith.constant 2 : index
    %c0_9 = arith.constant 0 : index
    %c0_10 = arith.constant 0 : index
    %17 = vector.load %arg3[%c2, %c0_9, %c0_10] : memref<9x16x16xbf16, #tpu.memory_space<vmem>>, vector<1x16x16xbf16>
    %18 = vector.shape_cast %17 : vector<1x16x16xbf16> to vector<16x16xbf16>
    %cst_11 = arith.constant dense<0.000000e+00> : vector<32x16xf32>
    %19 = tpu.matmul %16, %18, %cst_11 {dimension_numbers = #tpu.dot_dimension_numbers<[1], [0], [0], [1], [0, 0, 1, 1], [], []>} : vector<32x16xbf16>, vector<16x16xbf16>, vector<32x16xf32> -> vector<32x16xf32>
    %20 = arith.addf %14, %19 : vector<32x16xf32>
    %c0_12 = arith.constant 0 : index
    %c8 = arith.constant 8 : index
    %c0_13 = arith.constant 0 : index
    %21 = vector.load %arg2[%c0_12, %c8, %c0_13] : memref<1x56x16xbf16, #tpu.memory_space<vmem>>, vector<1x40x16xbf16>
    %22 = vector.shape_cast %21 : vector<1x40x16xbf16> to vector<40x16xbf16>
    %23 = arith.extf %22 : vector<40x16xbf16> to vector<40x16xf32>
    %24 = vector.extract_strided_slice %22 {offsets = [0, 0], sizes = [32, 16], strides = [1, 1]} : vector<40x16xbf16> to vector<32x16xbf16>
    %c3 = arith.constant 3 : index
    %c0_14 = arith.constant 0 : index
    %c0_15 = arith.constant 0 : index
    %25 = vector.load %arg3[%c3, %c0_14, %c0_15] : memref<9x16x16xbf16, #tpu.memory_space<vmem>>, vector<1x16x16xbf16>
    %26 = vector.shape_cast %25 : vector<1x16x16xbf16> to vector<16x16xbf16>
    %cst_16 = arith.constant dense<0.000000e+00> : vector<32x16xf32>
    %27 = tpu.matmul %24, %26, %cst_16 {dimension_numbers = #tpu.dot_dimension_numbers<[1], [0], [0], [1], [0, 0, 1, 1], [], []>} : vector<32x16xbf16>, vector<16x16xbf16>, vector<32x16xf32> -> vector<32x16xf32>
    %28 = arith.addf %20, %27 : vector<32x16xf32>
    %29 = vector.extract_strided_slice %23 {offsets = [1, 0], sizes = [32, 16], strides = [1, 1]} : vector<40x16xf32> to vector<32x16xf32>
    %30 = arith.truncf %29 : vector<32x16xf32> to vector<32x16xbf16>
    %c4 = arith.constant 4 : index
    %c0_17 = arith.constant 0 : index
    %c0_18 = arith.constant 0 : index
    %31 = vector.load %arg3[%c4, %c0_17, %c0_18] : memref<9x16x16xbf16, #tpu.memory_space<vmem>>, vector<1x16x16xbf16>
    %32 = vector.shape_cast %31 : vector<1x16x16xbf16> to vector<16x16xbf16>
    %cst_19 = arith.constant dense<0.000000e+00> : vector<32x16xf32>
    %33 = tpu.matmul %30, %32, %cst_19 {dimension_numbers = #tpu.dot_dimension_numbers<[1], [0], [0], [1], [0, 0, 1, 1], [], []>} : vector<32x16xbf16>, vector<16x16xbf16>, vector<32x16xf32> -> vector<32x16xf32>
    %34 = arith.addf %28, %33 : vector<32x16xf32>
    %35 = vector.extract_strided_slice %23 {offsets = [2, 0], sizes = [32, 16], strides = [1, 1]} : vector<40x16xf32> to vector<32x16xf32>
    %36 = arith.truncf %35 : vector<32x16xf32> to vector<32x16xbf16>
    %c5 = arith.constant 5 : index
    %c0_20 = arith.constant 0 : index
    %c0_21 = arith.constant 0 : index
    %37 = vector.load %arg3[%c5, %c0_20, %c0_21] : memref<9x16x16xbf16, #tpu.memory_space<vmem>>, vector<1x16x16xbf16>
    %38 = vector.shape_cast %37 : vector<1x16x16xbf16> to vector<16x16xbf16>
    %cst_22 = arith.constant dense<0.000000e+00> : vector<32x16xf32>
    %39 = tpu.matmul %36, %38, %cst_22 {dimension_numbers = #tpu.dot_dimension_numbers<[1], [0], [0], [1], [0, 0, 1, 1], [], []>} : vector<32x16xbf16>, vector<16x16xbf16>, vector<32x16xf32> -> vector<32x16xf32>
    %40 = arith.addf %34, %39 : vector<32x16xf32>
    %c0_23 = arith.constant 0 : index
    %c16 = arith.constant 16 : index
    %c0_24 = arith.constant 0 : index
    %41 = vector.load %arg2[%c0_23, %c16, %c0_24] : memref<1x56x16xbf16, #tpu.memory_space<vmem>>, vector<1x40x16xbf16>
    %42 = vector.shape_cast %41 : vector<1x40x16xbf16> to vector<40x16xbf16>
    %43 = arith.extf %42 : vector<40x16xbf16> to vector<40x16xf32>
    %44 = vector.extract_strided_slice %42 {offsets = [0, 0], sizes = [32, 16], strides = [1, 1]} : vector<40x16xbf16> to vector<32x16xbf16>
    %c6 = arith.constant 6 : index
    %c0_25 = arith.constant 0 : index
    %c0_26 = arith.constant 0 : index
    %45 = vector.load %arg3[%c6, %c0_25, %c0_26] : memref<9x16x16xbf16, #tpu.memory_space<vmem>>, vector<1x16x16xbf16>
    %46 = vector.shape_cast %45 : vector<1x16x16xbf16> to vector<16x16xbf16>
    %cst_27 = arith.constant dense<0.000000e+00> : vector<32x16xf32>
    %47 = tpu.matmul %44, %46, %cst_27 {dimension_numbers = #tpu.dot_dimension_numbers<[1], [0], [0], [1], [0, 0, 1, 1], [], []>} : vector<32x16xbf16>, vector<16x16xbf16>, vector<32x16xf32> -> vector<32x16xf32>
    %48 = arith.addf %40, %47 : vector<32x16xf32>
    %49 = vector.extract_strided_slice %43 {offsets = [1, 0], sizes = [32, 16], strides = [1, 1]} : vector<40x16xf32> to vector<32x16xf32>
    %50 = arith.truncf %49 : vector<32x16xf32> to vector<32x16xbf16>
    %c7 = arith.constant 7 : index
    %c0_28 = arith.constant 0 : index
    %c0_29 = arith.constant 0 : index
    %51 = vector.load %arg3[%c7, %c0_28, %c0_29] : memref<9x16x16xbf16, #tpu.memory_space<vmem>>, vector<1x16x16xbf16>
    %52 = vector.shape_cast %51 : vector<1x16x16xbf16> to vector<16x16xbf16>
    %cst_30 = arith.constant dense<0.000000e+00> : vector<32x16xf32>
    %53 = tpu.matmul %50, %52, %cst_30 {dimension_numbers = #tpu.dot_dimension_numbers<[1], [0], [0], [1], [0, 0, 1, 1], [], []>} : vector<32x16xbf16>, vector<16x16xbf16>, vector<32x16xf32> -> vector<32x16xf32>
    %54 = arith.addf %48, %53 : vector<32x16xf32>
    %55 = vector.extract_strided_slice %43 {offsets = [2, 0], sizes = [32, 16], strides = [1, 1]} : vector<40x16xf32> to vector<32x16xf32>
    %56 = arith.truncf %55 : vector<32x16xf32> to vector<32x16xbf16>
    %c8_31 = arith.constant 8 : index
    %c0_32 = arith.constant 0 : index
    %c0_33 = arith.constant 0 : index
    %57 = vector.load %arg3[%c8_31, %c0_32, %c0_33] : memref<9x16x16xbf16, #tpu.memory_space<vmem>>, vector<1x16x16xbf16>
    %58 = vector.shape_cast %57 : vector<1x16x16xbf16> to vector<16x16xbf16>
    %cst_34 = arith.constant dense<0.000000e+00> : vector<32x16xf32>
    %59 = tpu.matmul %56, %58, %cst_34 {dimension_numbers = #tpu.dot_dimension_numbers<[1], [0], [0], [1], [0, 0, 1, 1], [], []>} : vector<32x16xbf16>, vector<16x16xbf16>, vector<32x16xf32> -> vector<32x16xf32>
    %60 = arith.addf %54, %59 : vector<32x16xf32>
    %c0_35 = arith.constant 0 : index
    %c0_36 = arith.constant 0 : index
    %61 = vector.load %arg4[%c0_35, %c0_36] : memref<1x16xf32, #tpu.memory_space<vmem>>, vector<1x16xf32>
    %62 = vector.broadcast %61 : vector<1x16xf32> to vector<32x16xf32>
    %63 = arith.addf %60, %62 : vector<32x16xf32>
    %cst_37 = arith.constant 0.000000e+00 : f32
    %64 = vector.broadcast %cst_37 : f32 to vector<32x16xf32>
    %65 = arith.maximumf %63, %64 : vector<32x16xf32>
    %66 = arith.truncf %65 : vector<32x16xf32> to vector<32x16xbf16>
    %c0_38 = arith.constant 0 : index
    %c0_39 = arith.constant 0 : index
    %c0_40 = arith.constant 0 : index
    %67 = vector.load %arg5[%c0_38, %c0_39, %c0_40] : memref<1x32x16xbf16, #tpu.memory_space<vmem>>, vector<1x32x16xbf16>
    %68 = vector.shape_cast %67 : vector<1x32x16xbf16> to vector<32x16xbf16>
    %69 = vector.shape_cast %66 : vector<32x16xbf16> to vector<1x32x16xbf16>
    tpu.vector_store %arg5[%c0_38, %c0_39, %c0_40], %69 {strides = array<i32>} : memref<1x32x16xbf16, #tpu.memory_space<vmem>>, vector<1x32x16xbf16>,
    return
  }
  func.func @transform_0(%arg0: i32, %arg1: i32) -> (i32, i32, i32) {
    %c0_i32 = arith.constant 0 : i32
    %c0_i32_0 = arith.constant 0 : i32
    %c0_i32_1 = arith.constant 0 : i32
    return %arg0, %c0_i32, %c0_i32_0 : i32, i32, i32
  }
  func.func @transform_1(%arg0: i32, %arg1: i32) -> (i32, i32, i32) {
    %c0_i32 = arith.constant 0 : i32
    %c0_i32_0 = arith.constant 0 : i32
    %c0_i32_1 = arith.constant 0 : i32
    %c0_i32_2 = arith.constant 0 : i32
    return %c0_i32, %c0_i32_0, %c0_i32_1 : i32, i32, i32
  }
  func.func @transform_2(%arg0: i32, %arg1: i32) -> (i32, i32) {
    %c0_i32 = arith.constant 0 : i32
    %c0_i32_0 = arith.constant 0 : i32
    %c0_i32_1 = arith.constant 0 : i32
    return %c0_i32, %c0_i32_0 : i32, i32
  }
  func.func @transform_3(%arg0: i32, %arg1: i32) -> (i32, i32, i32) {
    %c0_i32 = arith.constant 0 : i32
    %c0_i32_0 = arith.constant 0 : i32
    return %arg0, %arg1, %c0_i32 : i32, i32, i32
  }
}

module attributes {stable_mosaic.version = 11 : i64} {
  func.func @_conv_chain_kernel(%arg0: i32, %arg1: i32, %arg2: memref<1x56x16xbf16, #tpu.memory_space<vmem>>, %arg3: memref<9x16x16xbf16, #tpu.memory_space<vmem>>, %arg4: memref<1x16xf32, #tpu.memory_space<vmem>>, %arg5: memref<1x16x16xbf16, #tpu.memory_space<vmem>>, %arg6: memref<1x16xf32, #tpu.memory_space<vmem>>, %arg7: memref<1x32x16xbf16, #tpu.memory_space<vmem>>, %arg8: memref<1x32x16xbf16, #tpu.memory_space<vmem>>) attributes {dimension_semantics = [#tpu.dimension_semantics<parallel>, #tpu.dimension_semantics<parallel>], iteration_bounds = array<i64: 6, 1>, scalar_prefetch = 0 : i64, scratch_operands = 0 : i64, tpu.core_type = #tpu.core_type<tc>, window_params = [{transform_indices = @transform_0, window_bounds = array<i64: 1, 56, 16>}, {pipeline_mode = #tpu.pipeline_mode<synchronous>, transform_indices = @transform_1, window_bounds = array<i64: 9, 16, 16>}, {pipeline_mode = #tpu.pipeline_mode<synchronous>, transform_indices = @transform_2, window_bounds = array<i64: 1, 16>}, {pipeline_mode = #tpu.pipeline_mode<synchronous>, transform_indices = @transform_3, window_bounds = array<i64: 1, 16, 16>}, {pipeline_mode = #tpu.pipeline_mode<synchronous>, transform_indices = @transform_4, window_bounds = array<i64: 1, 16>}, {transform_indices = @transform_5, window_bounds = array<i64: 1, 32, 16>}, {transform_indices = @transform_6, window_bounds = array<i64: 1, 32, 16>}]} {
    %cst = arith.constant 0.000000e+00 : f32
    %0 = vector.broadcast %cst : f32 to vector<32x16xf32>
    %c0 = arith.constant 0 : index
    %c0_0 = arith.constant 0 : index
    %c0_1 = arith.constant 0 : index
    %1 = vector.load %arg2[%c0, %c0_0, %c0_1] : memref<1x56x16xbf16, #tpu.memory_space<vmem>>, vector<1x40x16xbf16>
    %2 = vector.shape_cast %1 : vector<1x40x16xbf16> to vector<40x16xbf16>
    %3 = arith.extf %2 : vector<40x16xbf16> to vector<40x16xf32>
    %4 = vector.extract_strided_slice %2 {offsets = [0, 0], sizes = [32, 16], strides = [1, 1]} : vector<40x16xbf16> to vector<32x16xbf16>
    %c0_2 = arith.constant 0 : index
    %c0_3 = arith.constant 0 : index
    %c0_4 = arith.constant 0 : index
    %5 = vector.load %arg3[%c0_2, %c0_3, %c0_4] : memref<9x16x16xbf16, #tpu.memory_space<vmem>>, vector<1x16x16xbf16>
    %6 = vector.shape_cast %5 : vector<1x16x16xbf16> to vector<16x16xbf16>
    %cst_5 = arith.constant dense<0.000000e+00> : vector<32x16xf32>
    %7 = tpu.matmul %4, %6, %cst_5 {dimension_numbers = #tpu.dot_dimension_numbers<[1], [0], [0], [1], [0, 0, 1, 1], [], []>} : vector<32x16xbf16>, vector<16x16xbf16>, vector<32x16xf32> -> vector<32x16xf32>
    %8 = arith.addf %0, %7 : vector<32x16xf32>
    %9 = vector.extract_strided_slice %3 {offsets = [1, 0], sizes = [32, 16], strides = [1, 1]} : vector<40x16xf32> to vector<32x16xf32>
    %10 = arith.truncf %9 : vector<32x16xf32> to vector<32x16xbf16>
    %c1 = arith.constant 1 : index
    %c0_6 = arith.constant 0 : index
    %c0_7 = arith.constant 0 : index
    %11 = vector.load %arg3[%c1, %c0_6, %c0_7] : memref<9x16x16xbf16, #tpu.memory_space<vmem>>, vector<1x16x16xbf16>
    %12 = vector.shape_cast %11 : vector<1x16x16xbf16> to vector<16x16xbf16>
    %cst_8 = arith.constant dense<0.000000e+00> : vector<32x16xf32>
    %13 = tpu.matmul %10, %12, %cst_8 {dimension_numbers = #tpu.dot_dimension_numbers<[1], [0], [0], [1], [0, 0, 1, 1], [], []>} : vector<32x16xbf16>, vector<16x16xbf16>, vector<32x16xf32> -> vector<32x16xf32>
    %14 = arith.addf %8, %13 : vector<32x16xf32>
    %15 = vector.extract_strided_slice %3 {offsets = [2, 0], sizes = [32, 16], strides = [1, 1]} : vector<40x16xf32> to vector<32x16xf32>
    %16 = arith.truncf %15 : vector<32x16xf32> to vector<32x16xbf16>
    %c2 = arith.constant 2 : index
    %c0_9 = arith.constant 0 : index
    %c0_10 = arith.constant 0 : index
    %17 = vector.load %arg3[%c2, %c0_9, %c0_10] : memref<9x16x16xbf16, #tpu.memory_space<vmem>>, vector<1x16x16xbf16>
    %18 = vector.shape_cast %17 : vector<1x16x16xbf16> to vector<16x16xbf16>
    %cst_11 = arith.constant dense<0.000000e+00> : vector<32x16xf32>
    %19 = tpu.matmul %16, %18, %cst_11 {dimension_numbers = #tpu.dot_dimension_numbers<[1], [0], [0], [1], [0, 0, 1, 1], [], []>} : vector<32x16xbf16>, vector<16x16xbf16>, vector<32x16xf32> -> vector<32x16xf32>
    %20 = arith.addf %14, %19 : vector<32x16xf32>
    %c0_12 = arith.constant 0 : index
    %c8 = arith.constant 8 : index
    %c0_13 = arith.constant 0 : index
    %21 = vector.load %arg2[%c0_12, %c8, %c0_13] : memref<1x56x16xbf16, #tpu.memory_space<vmem>>, vector<1x40x16xbf16>
    %22 = vector.shape_cast %21 : vector<1x40x16xbf16> to vector<40x16xbf16>
    %23 = arith.extf %22 : vector<40x16xbf16> to vector<40x16xf32>
    %24 = vector.extract_strided_slice %22 {offsets = [0, 0], sizes = [32, 16], strides = [1, 1]} : vector<40x16xbf16> to vector<32x16xbf16>
    %c3 = arith.constant 3 : index
    %c0_14 = arith.constant 0 : index
    %c0_15 = arith.constant 0 : index
    %25 = vector.load %arg3[%c3, %c0_14, %c0_15] : memref<9x16x16xbf16, #tpu.memory_space<vmem>>, vector<1x16x16xbf16>
    %26 = vector.shape_cast %25 : vector<1x16x16xbf16> to vector<16x16xbf16>
    %cst_16 = arith.constant dense<0.000000e+00> : vector<32x16xf32>
    %27 = tpu.matmul %24, %26, %cst_16 {dimension_numbers = #tpu.dot_dimension_numbers<[1], [0], [0], [1], [0, 0, 1, 1], [], []>} : vector<32x16xbf16>, vector<16x16xbf16>, vector<32x16xf32> -> vector<32x16xf32>
    %28 = arith.addf %20, %27 : vector<32x16xf32>
    %29 = vector.extract_strided_slice %23 {offsets = [1, 0], sizes = [32, 16], strides = [1, 1]} : vector<40x16xf32> to vector<32x16xf32>
    %30 = arith.truncf %29 : vector<32x16xf32> to vector<32x16xbf16>
    %c4 = arith.constant 4 : index
    %c0_17 = arith.constant 0 : index
    %c0_18 = arith.constant 0 : index
    %31 = vector.load %arg3[%c4, %c0_17, %c0_18] : memref<9x16x16xbf16, #tpu.memory_space<vmem>>, vector<1x16x16xbf16>
    %32 = vector.shape_cast %31 : vector<1x16x16xbf16> to vector<16x16xbf16>
    %cst_19 = arith.constant dense<0.000000e+00> : vector<32x16xf32>
    %33 = tpu.matmul %30, %32, %cst_19 {dimension_numbers = #tpu.dot_dimension_numbers<[1], [0], [0], [1], [0, 0, 1, 1], [], []>} : vector<32x16xbf16>, vector<16x16xbf16>, vector<32x16xf32> -> vector<32x16xf32>
    %34 = arith.addf %28, %33 : vector<32x16xf32>
    %35 = vector.extract_strided_slice %23 {offsets = [2, 0], sizes = [32, 16], strides = [1, 1]} : vector<40x16xf32> to vector<32x16xf32>
    %36 = arith.truncf %35 : vector<32x16xf32> to vector<32x16xbf16>
    %c5 = arith.constant 5 : index
    %c0_20 = arith.constant 0 : index
    %c0_21 = arith.constant 0 : index
    %37 = vector.load %arg3[%c5, %c0_20, %c0_21] : memref<9x16x16xbf16, #tpu.memory_space<vmem>>, vector<1x16x16xbf16>
    %38 = vector.shape_cast %37 : vector<1x16x16xbf16> to vector<16x16xbf16>
    %cst_22 = arith.constant dense<0.000000e+00> : vector<32x16xf32>
    %39 = tpu.matmul %36, %38, %cst_22 {dimension_numbers = #tpu.dot_dimension_numbers<[1], [0], [0], [1], [0, 0, 1, 1], [], []>} : vector<32x16xbf16>, vector<16x16xbf16>, vector<32x16xf32> -> vector<32x16xf32>
    %40 = arith.addf %34, %39 : vector<32x16xf32>
    %c0_23 = arith.constant 0 : index
    %c16 = arith.constant 16 : index
    %c0_24 = arith.constant 0 : index
    %41 = vector.load %arg2[%c0_23, %c16, %c0_24] : memref<1x56x16xbf16, #tpu.memory_space<vmem>>, vector<1x40x16xbf16>
    %42 = vector.shape_cast %41 : vector<1x40x16xbf16> to vector<40x16xbf16>
    %43 = arith.extf %42 : vector<40x16xbf16> to vector<40x16xf32>
    %44 = vector.extract_strided_slice %42 {offsets = [0, 0], sizes = [32, 16], strides = [1, 1]} : vector<40x16xbf16> to vector<32x16xbf16>
    %c6 = arith.constant 6 : index
    %c0_25 = arith.constant 0 : index
    %c0_26 = arith.constant 0 : index
    %45 = vector.load %arg3[%c6, %c0_25, %c0_26] : memref<9x16x16xbf16, #tpu.memory_space<vmem>>, vector<1x16x16xbf16>
    %46 = vector.shape_cast %45 : vector<1x16x16xbf16> to vector<16x16xbf16>
    %cst_27 = arith.constant dense<0.000000e+00> : vector<32x16xf32>
    %47 = tpu.matmul %44, %46, %cst_27 {dimension_numbers = #tpu.dot_dimension_numbers<[1], [0], [0], [1], [0, 0, 1, 1], [], []>} : vector<32x16xbf16>, vector<16x16xbf16>, vector<32x16xf32> -> vector<32x16xf32>
    %48 = arith.addf %40, %47 : vector<32x16xf32>
    %49 = vector.extract_strided_slice %43 {offsets = [1, 0], sizes = [32, 16], strides = [1, 1]} : vector<40x16xf32> to vector<32x16xf32>
    %50 = arith.truncf %49 : vector<32x16xf32> to vector<32x16xbf16>
    %c7 = arith.constant 7 : index
    %c0_28 = arith.constant 0 : index
    %c0_29 = arith.constant 0 : index
    %51 = vector.load %arg3[%c7, %c0_28, %c0_29] : memref<9x16x16xbf16, #tpu.memory_space<vmem>>, vector<1x16x16xbf16>
    %52 = vector.shape_cast %51 : vector<1x16x16xbf16> to vector<16x16xbf16>
    %cst_30 = arith.constant dense<0.000000e+00> : vector<32x16xf32>
    %53 = tpu.matmul %50, %52, %cst_30 {dimension_numbers = #tpu.dot_dimension_numbers<[1], [0], [0], [1], [0, 0, 1, 1], [], []>} : vector<32x16xbf16>, vector<16x16xbf16>, vector<32x16xf32> -> vector<32x16xf32>
    %54 = arith.addf %48, %53 : vector<32x16xf32>
    %55 = vector.extract_strided_slice %43 {offsets = [2, 0], sizes = [32, 16], strides = [1, 1]} : vector<40x16xf32> to vector<32x16xf32>
    %56 = arith.truncf %55 : vector<32x16xf32> to vector<32x16xbf16>
    %c8_31 = arith.constant 8 : index
    %c0_32 = arith.constant 0 : index
    %c0_33 = arith.constant 0 : index
    %57 = vector.load %arg3[%c8_31, %c0_32, %c0_33] : memref<9x16x16xbf16, #tpu.memory_space<vmem>>, vector<1x16x16xbf16>
    %58 = vector.shape_cast %57 : vector<1x16x16xbf16> to vector<16x16xbf16>
    %cst_34 = arith.constant dense<0.000000e+00> : vector<32x16xf32>
    %59 = tpu.matmul %56, %58, %cst_34 {dimension_numbers = #tpu.dot_dimension_numbers<[1], [0], [0], [1], [0, 0, 1, 1], [], []>} : vector<32x16xbf16>, vector<16x16xbf16>, vector<32x16xf32> -> vector<32x16xf32>
    %60 = arith.addf %54, %59 : vector<32x16xf32>
    %c0_35 = arith.constant 0 : index
    %c0_36 = arith.constant 0 : index
    %61 = vector.load %arg4[%c0_35, %c0_36] : memref<1x16xf32, #tpu.memory_space<vmem>>, vector<1x16xf32>
    %62 = vector.broadcast %61 : vector<1x16xf32> to vector<32x16xf32>
    %63 = arith.addf %60, %62 : vector<32x16xf32>
    %cst_37 = arith.constant 0.000000e+00 : f32
    %64 = vector.broadcast %cst_37 : f32 to vector<32x16xf32>
    %65 = arith.maximumf %63, %64 : vector<32x16xf32>
    %66 = arith.truncf %65 : vector<32x16xf32> to vector<32x16xbf16>
    %c0_38 = arith.constant 0 : index
    %c0_39 = arith.constant 0 : index
    %c0_40 = arith.constant 0 : index
    %67 = vector.load %arg7[%c0_38, %c0_39, %c0_40] : memref<1x32x16xbf16, #tpu.memory_space<vmem>>, vector<1x32x16xbf16>
    %68 = vector.shape_cast %67 : vector<1x32x16xbf16> to vector<32x16xbf16>
    %69 = vector.shape_cast %66 : vector<32x16xbf16> to vector<1x32x16xbf16>
    tpu.vector_store %arg7[%c0_38, %c0_39, %c0_40], %69 {strides = array<i32>} : memref<1x32x16xbf16, #tpu.memory_space<vmem>>, vector<1x32x16xbf16>,
    %70 = arith.truncf %65 : vector<32x16xf32> to vector<32x16xbf16>
    %c0_41 = arith.constant 0 : index
    %c0_42 = arith.constant 0 : index
    %c0_43 = arith.constant 0 : index
    %71 = vector.load %arg5[%c0_41, %c0_42, %c0_43] : memref<1x16x16xbf16, #tpu.memory_space<vmem>>, vector<1x16x16xbf16>
    %72 = vector.shape_cast %71 : vector<1x16x16xbf16> to vector<16x16xbf16>
    %cst_44 = arith.constant dense<0.000000e+00> : vector<32x16xf32>
    %73 = tpu.matmul %70, %72, %cst_44 {dimension_numbers = #tpu.dot_dimension_numbers<[1], [0], [0], [1], [0, 0, 1, 1], [], []>} : vector<32x16xbf16>, vector<16x16xbf16>, vector<32x16xf32> -> vector<32x16xf32>
    %c0_45 = arith.constant 0 : index
    %c0_46 = arith.constant 0 : index
    %74 = vector.load %arg6[%c0_45, %c0_46] : memref<1x16xf32, #tpu.memory_space<vmem>>, vector<1x16xf32>
    %75 = vector.broadcast %74 : vector<1x16xf32> to vector<32x16xf32>
    %76 = arith.addf %73, %75 : vector<32x16xf32>
    %cst_47 = arith.constant 0.000000e+00 : f32
    %77 = vector.broadcast %cst_47 : f32 to vector<32x16xf32>
    %78 = arith.maximumf %76, %77 : vector<32x16xf32>
    %79 = arith.truncf %78 : vector<32x16xf32> to vector<32x16xbf16>
    %c0_48 = arith.constant 0 : index
    %c0_49 = arith.constant 0 : index
    %c0_50 = arith.constant 0 : index
    %80 = vector.load %arg8[%c0_48, %c0_49, %c0_50] : memref<1x32x16xbf16, #tpu.memory_space<vmem>>, vector<1x32x16xbf16>
    %81 = vector.shape_cast %80 : vector<1x32x16xbf16> to vector<32x16xbf16>
    %82 = vector.shape_cast %79 : vector<32x16xbf16> to vector<1x32x16xbf16>
    tpu.vector_store %arg8[%c0_48, %c0_49, %c0_50], %82 {strides = array<i32>} : memref<1x32x16xbf16, #tpu.memory_space<vmem>>, vector<1x32x16xbf16>,
    return
  }
  func.func @transform_0(%arg0: i32, %arg1: i32) -> (i32, i32, i32) {
    %c0_i32 = arith.constant 0 : i32
    %c0_i32_0 = arith.constant 0 : i32
    %c0_i32_1 = arith.constant 0 : i32
    return %arg0, %c0_i32, %c0_i32_0 : i32, i32, i32
  }
  func.func @transform_1(%arg0: i32, %arg1: i32) -> (i32, i32, i32) {
    %c0_i32 = arith.constant 0 : i32
    %c0_i32_0 = arith.constant 0 : i32
    %c0_i32_1 = arith.constant 0 : i32
    %c0_i32_2 = arith.constant 0 : i32
    return %c0_i32, %c0_i32_0, %c0_i32_1 : i32, i32, i32
  }
  func.func @transform_2(%arg0: i32, %arg1: i32) -> (i32, i32) {
    %c0_i32 = arith.constant 0 : i32
    %c0_i32_0 = arith.constant 0 : i32
    %c0_i32_1 = arith.constant 0 : i32
    return %c0_i32, %c0_i32_0 : i32, i32
  }
  func.func @transform_3(%arg0: i32, %arg1: i32) -> (i32, i32, i32) {
    %c0_i32 = arith.constant 0 : i32
    %c0_i32_0 = arith.constant 0 : i32
    %c0_i32_1 = arith.constant 0 : i32
    %c0_i32_2 = arith.constant 0 : i32
    return %c0_i32, %c0_i32_0, %c0_i32_1 : i32, i32, i32
  }
  func.func @transform_4(%arg0: i32, %arg1: i32) -> (i32, i32) {
    %c0_i32 = arith.constant 0 : i32
    %c0_i32_0 = arith.constant 0 : i32
    %c0_i32_1 = arith.constant 0 : i32
    return %c0_i32, %c0_i32_0 : i32, i32
  }
  func.func @transform_5(%arg0: i32, %arg1: i32) -> (i32, i32, i32) {
    %c0_i32 = arith.constant 0 : i32
    %c0_i32_0 = arith.constant 0 : i32
    return %arg0, %arg1, %c0_i32 : i32, i32, i32
  }
  func.func @transform_6(%arg0: i32, %arg1: i32) -> (i32, i32, i32) {
    %c0_i32 = arith.constant 0 : i32
    %c0_i32_0 = arith.constant 0 : i32
    return %arg0, %arg1, %c0_i32 : i32, i32, i32
  }
}

module attributes {stable_mosaic.version = 11 : i64} {
  func.func @_conv_kernel(%arg0: i32, %arg1: i32, %arg2: memref<1x56x32xbf16, #tpu.memory_space<vmem>>, %arg3: memref<9x32x128xbf16, #tpu.memory_space<vmem>>, %arg4: memref<1x128xf32, #tpu.memory_space<vmem>>, %arg5: memref<1x32x128xf32, #tpu.memory_space<vmem>>) attributes {dimension_semantics = [#tpu.dimension_semantics<parallel>, #tpu.dimension_semantics<parallel>], iteration_bounds = array<i64: 2, 1>, scalar_prefetch = 0 : i64, scratch_operands = 0 : i64, tpu.core_type = #tpu.core_type<tc>, window_params = [{transform_indices = @transform_0, window_bounds = array<i64: 1, 56, 32>}, {pipeline_mode = #tpu.pipeline_mode<synchronous>, transform_indices = @transform_1, window_bounds = array<i64: 9, 32, 128>}, {pipeline_mode = #tpu.pipeline_mode<synchronous>, transform_indices = @transform_2, window_bounds = array<i64: 1, 128>}, {transform_indices = @transform_3, window_bounds = array<i64: 1, 32, 128>}]} {
    %cst = arith.constant 0.000000e+00 : f32
    %0 = vector.broadcast %cst : f32 to vector<32x128xf32>
    %c0 = arith.constant 0 : index
    %c0_0 = arith.constant 0 : index
    %c0_1 = arith.constant 0 : index
    %1 = vector.load %arg2[%c0, %c0_0, %c0_1] : memref<1x56x32xbf16, #tpu.memory_space<vmem>>, vector<1x40x32xbf16>
    %2 = vector.shape_cast %1 : vector<1x40x32xbf16> to vector<40x32xbf16>
    %3 = arith.extf %2 : vector<40x32xbf16> to vector<40x32xf32>
    %4 = vector.extract_strided_slice %2 {offsets = [0, 0], sizes = [32, 32], strides = [1, 1]} : vector<40x32xbf16> to vector<32x32xbf16>
    %c0_2 = arith.constant 0 : index
    %c0_3 = arith.constant 0 : index
    %c0_4 = arith.constant 0 : index
    %5 = vector.load %arg3[%c0_2, %c0_3, %c0_4] : memref<9x32x128xbf16, #tpu.memory_space<vmem>>, vector<1x32x128xbf16>
    %6 = vector.shape_cast %5 : vector<1x32x128xbf16> to vector<32x128xbf16>
    %cst_5 = arith.constant dense<0.000000e+00> : vector<32x128xf32>
    %7 = tpu.matmul %4, %6, %cst_5 {dimension_numbers = #tpu.dot_dimension_numbers<[1], [0], [0], [1], [0, 0, 1, 1], [], []>} : vector<32x32xbf16>, vector<32x128xbf16>, vector<32x128xf32> -> vector<32x128xf32>
    %8 = arith.addf %0, %7 : vector<32x128xf32>
    %9 = vector.extract_strided_slice %3 {offsets = [1, 0], sizes = [32, 32], strides = [1, 1]} : vector<40x32xf32> to vector<32x32xf32>
    %10 = arith.truncf %9 : vector<32x32xf32> to vector<32x32xbf16>
    %c1 = arith.constant 1 : index
    %c0_6 = arith.constant 0 : index
    %c0_7 = arith.constant 0 : index
    %11 = vector.load %arg3[%c1, %c0_6, %c0_7] : memref<9x32x128xbf16, #tpu.memory_space<vmem>>, vector<1x32x128xbf16>
    %12 = vector.shape_cast %11 : vector<1x32x128xbf16> to vector<32x128xbf16>
    %cst_8 = arith.constant dense<0.000000e+00> : vector<32x128xf32>
    %13 = tpu.matmul %10, %12, %cst_8 {dimension_numbers = #tpu.dot_dimension_numbers<[1], [0], [0], [1], [0, 0, 1, 1], [], []>} : vector<32x32xbf16>, vector<32x128xbf16>, vector<32x128xf32> -> vector<32x128xf32>
    %14 = arith.addf %8, %13 : vector<32x128xf32>
    %15 = vector.extract_strided_slice %3 {offsets = [2, 0], sizes = [32, 32], strides = [1, 1]} : vector<40x32xf32> to vector<32x32xf32>
    %16 = arith.truncf %15 : vector<32x32xf32> to vector<32x32xbf16>
    %c2 = arith.constant 2 : index
    %c0_9 = arith.constant 0 : index
    %c0_10 = arith.constant 0 : index
    %17 = vector.load %arg3[%c2, %c0_9, %c0_10] : memref<9x32x128xbf16, #tpu.memory_space<vmem>>, vector<1x32x128xbf16>
    %18 = vector.shape_cast %17 : vector<1x32x128xbf16> to vector<32x128xbf16>
    %cst_11 = arith.constant dense<0.000000e+00> : vector<32x128xf32>
    %19 = tpu.matmul %16, %18, %cst_11 {dimension_numbers = #tpu.dot_dimension_numbers<[1], [0], [0], [1], [0, 0, 1, 1], [], []>} : vector<32x32xbf16>, vector<32x128xbf16>, vector<32x128xf32> -> vector<32x128xf32>
    %20 = arith.addf %14, %19 : vector<32x128xf32>
    %c0_12 = arith.constant 0 : index
    %c8 = arith.constant 8 : index
    %c0_13 = arith.constant 0 : index
    %21 = vector.load %arg2[%c0_12, %c8, %c0_13] : memref<1x56x32xbf16, #tpu.memory_space<vmem>>, vector<1x40x32xbf16>
    %22 = vector.shape_cast %21 : vector<1x40x32xbf16> to vector<40x32xbf16>
    %23 = arith.extf %22 : vector<40x32xbf16> to vector<40x32xf32>
    %24 = vector.extract_strided_slice %22 {offsets = [0, 0], sizes = [32, 32], strides = [1, 1]} : vector<40x32xbf16> to vector<32x32xbf16>
    %c3 = arith.constant 3 : index
    %c0_14 = arith.constant 0 : index
    %c0_15 = arith.constant 0 : index
    %25 = vector.load %arg3[%c3, %c0_14, %c0_15] : memref<9x32x128xbf16, #tpu.memory_space<vmem>>, vector<1x32x128xbf16>
    %26 = vector.shape_cast %25 : vector<1x32x128xbf16> to vector<32x128xbf16>
    %cst_16 = arith.constant dense<0.000000e+00> : vector<32x128xf32>
    %27 = tpu.matmul %24, %26, %cst_16 {dimension_numbers = #tpu.dot_dimension_numbers<[1], [0], [0], [1], [0, 0, 1, 1], [], []>} : vector<32x32xbf16>, vector<32x128xbf16>, vector<32x128xf32> -> vector<32x128xf32>
    %28 = arith.addf %20, %27 : vector<32x128xf32>
    %29 = vector.extract_strided_slice %23 {offsets = [1, 0], sizes = [32, 32], strides = [1, 1]} : vector<40x32xf32> to vector<32x32xf32>
    %30 = arith.truncf %29 : vector<32x32xf32> to vector<32x32xbf16>
    %c4 = arith.constant 4 : index
    %c0_17 = arith.constant 0 : index
    %c0_18 = arith.constant 0 : index
    %31 = vector.load %arg3[%c4, %c0_17, %c0_18] : memref<9x32x128xbf16, #tpu.memory_space<vmem>>, vector<1x32x128xbf16>
    %32 = vector.shape_cast %31 : vector<1x32x128xbf16> to vector<32x128xbf16>
    %cst_19 = arith.constant dense<0.000000e+00> : vector<32x128xf32>
    %33 = tpu.matmul %30, %32, %cst_19 {dimension_numbers = #tpu.dot_dimension_numbers<[1], [0], [0], [1], [0, 0, 1, 1], [], []>} : vector<32x32xbf16>, vector<32x128xbf16>, vector<32x128xf32> -> vector<32x128xf32>
    %34 = arith.addf %28, %33 : vector<32x128xf32>
    %35 = vector.extract_strided_slice %23 {offsets = [2, 0], sizes = [32, 32], strides = [1, 1]} : vector<40x32xf32> to vector<32x32xf32>
    %36 = arith.truncf %35 : vector<32x32xf32> to vector<32x32xbf16>
    %c5 = arith.constant 5 : index
    %c0_20 = arith.constant 0 : index
    %c0_21 = arith.constant 0 : index
    %37 = vector.load %arg3[%c5, %c0_20, %c0_21] : memref<9x32x128xbf16, #tpu.memory_space<vmem>>, vector<1x32x128xbf16>
    %38 = vector.shape_cast %37 : vector<1x32x128xbf16> to vector<32x128xbf16>
    %cst_22 = arith.constant dense<0.000000e+00> : vector<32x128xf32>
    %39 = tpu.matmul %36, %38, %cst_22 {dimension_numbers = #tpu.dot_dimension_numbers<[1], [0], [0], [1], [0, 0, 1, 1], [], []>} : vector<32x32xbf16>, vector<32x128xbf16>, vector<32x128xf32> -> vector<32x128xf32>
    %40 = arith.addf %34, %39 : vector<32x128xf32>
    %c0_23 = arith.constant 0 : index
    %c16 = arith.constant 16 : index
    %c0_24 = arith.constant 0 : index
    %41 = vector.load %arg2[%c0_23, %c16, %c0_24] : memref<1x56x32xbf16, #tpu.memory_space<vmem>>, vector<1x40x32xbf16>
    %42 = vector.shape_cast %41 : vector<1x40x32xbf16> to vector<40x32xbf16>
    %43 = arith.extf %42 : vector<40x32xbf16> to vector<40x32xf32>
    %44 = vector.extract_strided_slice %42 {offsets = [0, 0], sizes = [32, 32], strides = [1, 1]} : vector<40x32xbf16> to vector<32x32xbf16>
    %c6 = arith.constant 6 : index
    %c0_25 = arith.constant 0 : index
    %c0_26 = arith.constant 0 : index
    %45 = vector.load %arg3[%c6, %c0_25, %c0_26] : memref<9x32x128xbf16, #tpu.memory_space<vmem>>, vector<1x32x128xbf16>
    %46 = vector.shape_cast %45 : vector<1x32x128xbf16> to vector<32x128xbf16>
    %cst_27 = arith.constant dense<0.000000e+00> : vector<32x128xf32>
    %47 = tpu.matmul %44, %46, %cst_27 {dimension_numbers = #tpu.dot_dimension_numbers<[1], [0], [0], [1], [0, 0, 1, 1], [], []>} : vector<32x32xbf16>, vector<32x128xbf16>, vector<32x128xf32> -> vector<32x128xf32>
    %48 = arith.addf %40, %47 : vector<32x128xf32>
    %49 = vector.extract_strided_slice %43 {offsets = [1, 0], sizes = [32, 32], strides = [1, 1]} : vector<40x32xf32> to vector<32x32xf32>
    %50 = arith.truncf %49 : vector<32x32xf32> to vector<32x32xbf16>
    %c7 = arith.constant 7 : index
    %c0_28 = arith.constant 0 : index
    %c0_29 = arith.constant 0 : index
    %51 = vector.load %arg3[%c7, %c0_28, %c0_29] : memref<9x32x128xbf16, #tpu.memory_space<vmem>>, vector<1x32x128xbf16>
    %52 = vector.shape_cast %51 : vector<1x32x128xbf16> to vector<32x128xbf16>
    %cst_30 = arith.constant dense<0.000000e+00> : vector<32x128xf32>
    %53 = tpu.matmul %50, %52, %cst_30 {dimension_numbers = #tpu.dot_dimension_numbers<[1], [0], [0], [1], [0, 0, 1, 1], [], []>} : vector<32x32xbf16>, vector<32x128xbf16>, vector<32x128xf32> -> vector<32x128xf32>
    %54 = arith.addf %48, %53 : vector<32x128xf32>
    %55 = vector.extract_strided_slice %43 {offsets = [2, 0], sizes = [32, 32], strides = [1, 1]} : vector<40x32xf32> to vector<32x32xf32>
    %56 = arith.truncf %55 : vector<32x32xf32> to vector<32x32xbf16>
    %c8_31 = arith.constant 8 : index
    %c0_32 = arith.constant 0 : index
    %c0_33 = arith.constant 0 : index
    %57 = vector.load %arg3[%c8_31, %c0_32, %c0_33] : memref<9x32x128xbf16, #tpu.memory_space<vmem>>, vector<1x32x128xbf16>
    %58 = vector.shape_cast %57 : vector<1x32x128xbf16> to vector<32x128xbf16>
    %cst_34 = arith.constant dense<0.000000e+00> : vector<32x128xf32>
    %59 = tpu.matmul %56, %58, %cst_34 {dimension_numbers = #tpu.dot_dimension_numbers<[1], [0], [0], [1], [0, 0, 1, 1], [], []>} : vector<32x32xbf16>, vector<32x128xbf16>, vector<32x128xf32> -> vector<32x128xf32>
    %60 = arith.addf %54, %59 : vector<32x128xf32>
    %c0_35 = arith.constant 0 : index
    %c0_36 = arith.constant 0 : index
    %61 = vector.load %arg4[%c0_35, %c0_36] : memref<1x128xf32, #tpu.memory_space<vmem>>, vector<1x128xf32>
    %62 = vector.broadcast %61 : vector<1x128xf32> to vector<32x128xf32>
    %63 = arith.addf %60, %62 : vector<32x128xf32>
    %c0_37 = arith.constant 0 : index
    %c0_38 = arith.constant 0 : index
    %c0_39 = arith.constant 0 : index
    %64 = vector.load %arg5[%c0_37, %c0_38, %c0_39] : memref<1x32x128xf32, #tpu.memory_space<vmem>>, vector<1x32x128xf32>
    %65 = vector.shape_cast %64 : vector<1x32x128xf32> to vector<32x128xf32>
    %66 = vector.shape_cast %63 : vector<32x128xf32> to vector<1x32x128xf32>
    tpu.vector_store %arg5[%c0_37, %c0_38, %c0_39], %66 {strides = array<i32>} : memref<1x32x128xf32, #tpu.memory_space<vmem>>, vector<1x32x128xf32>,
    return
  }
  func.func @transform_0(%arg0: i32, %arg1: i32) -> (i32, i32, i32) {
    %c0_i32 = arith.constant 0 : i32
    %c0_i32_0 = arith.constant 0 : i32
    %c0_i32_1 = arith.constant 0 : i32
    return %arg0, %c0_i32, %c0_i32_0 : i32, i32, i32
  }
  func.func @transform_1(%arg0: i32, %arg1: i32) -> (i32, i32, i32) {
    %c0_i32 = arith.constant 0 : i32
    %c0_i32_0 = arith.constant 0 : i32
    %c0_i32_1 = arith.constant 0 : i32
    %c0_i32_2 = arith.constant 0 : i32
    return %c0_i32, %c0_i32_0, %c0_i32_1 : i32, i32, i32
  }
  func.func @transform_2(%arg0: i32, %arg1: i32) -> (i32, i32) {
    %c0_i32 = arith.constant 0 : i32
    %c0_i32_0 = arith.constant 0 : i32
    %c0_i32_1 = arith.constant 0 : i32
    return %c0_i32, %c0_i32_0 : i32, i32
  }
  func.func @transform_3(%arg0: i32, %arg1: i32) -> (i32, i32, i32) {
    %c0_i32 = arith.constant 0 : i32
    %c0_i32_0 = arith.constant 0 : i32
    return %arg0, %arg1, %c0_i32 : i32, i32, i32
  }
}

module attributes {stable_mosaic.version = 11 : i64} {
  func.func @_conv_kernel(%arg0: i32, %arg1: i32, %arg2: memref<1x40x16xbf16, #tpu.memory_space<vmem>>, %arg3: memref<1x16x128xbf16, #tpu.memory_space<vmem>>, %arg4: memref<1x128xf32, #tpu.memory_space<vmem>>, %arg5: memref<1x32x128xf32, #tpu.memory_space<vmem>>) attributes {dimension_semantics = [#tpu.dimension_semantics<parallel>, #tpu.dimension_semantics<parallel>], iteration_bounds = array<i64: 2, 1>, scalar_prefetch = 0 : i64, scratch_operands = 0 : i64, tpu.core_type = #tpu.core_type<tc>, window_params = [{transform_indices = @transform_0, window_bounds = array<i64: 1, 40, 16>}, {pipeline_mode = #tpu.pipeline_mode<synchronous>, transform_indices = @transform_1, window_bounds = array<i64: 1, 16, 128>}, {pipeline_mode = #tpu.pipeline_mode<synchronous>, transform_indices = @transform_2, window_bounds = array<i64: 1, 128>}, {transform_indices = @transform_3, window_bounds = array<i64: 1, 32, 128>}]} {
    %cst = arith.constant 0.000000e+00 : f32
    %0 = vector.broadcast %cst : f32 to vector<32x128xf32>
    %c0 = arith.constant 0 : index
    %c0_0 = arith.constant 0 : index
    %c0_1 = arith.constant 0 : index
    %1 = vector.load %arg2[%c0, %c0_0, %c0_1] : memref<1x40x16xbf16, #tpu.memory_space<vmem>>, vector<1x40x16xbf16>
    %2 = vector.shape_cast %1 : vector<1x40x16xbf16> to vector<40x16xbf16>
    %3 = vector.extract_strided_slice %2 {offsets = [0, 0], sizes = [32, 16], strides = [1, 1]} : vector<40x16xbf16> to vector<32x16xbf16>
    %c0_2 = arith.constant 0 : index
    %c0_3 = arith.constant 0 : index
    %c0_4 = arith.constant 0 : index
    %4 = vector.load %arg3[%c0_2, %c0_3, %c0_4] : memref<1x16x128xbf16, #tpu.memory_space<vmem>>, vector<1x16x128xbf16>
    %5 = vector.shape_cast %4 : vector<1x16x128xbf16> to vector<16x128xbf16>
    %cst_5 = arith.constant dense<0.000000e+00> : vector<32x128xf32>
    %6 = tpu.matmul %3, %5, %cst_5 {dimension_numbers = #tpu.dot_dimension_numbers<[1], [0], [0], [1], [0, 0, 1, 1], [], []>} : vector<32x16xbf16>, vector<16x128xbf16>, vector<32x128xf32> -> vector<32x128xf32>
    %7 = arith.addf %0, %6 : vector<32x128xf32>
    %c0_6 = arith.constant 0 : index
    %c0_7 = arith.constant 0 : index
    %8 = vector.load %arg4[%c0_6, %c0_7] : memref<1x128xf32, #tpu.memory_space<vmem>>, vector<1x128xf32>
    %9 = vector.broadcast %8 : vector<1x128xf32> to vector<32x128xf32>
    %10 = arith.addf %7, %9 : vector<32x128xf32>
    %11 = tpu.iota {dimensions = array<i32: 1>} : vector<32x128xi32>
    %c5_i32 = arith.constant 5 : i32
    %12 = vector.broadcast %c5_i32 : i32 to vector<32x128xi32>
    %13 = arith.cmpi slt, %11, %12 : vector<32x128xi32>
    %cst_8 = arith.constant -1.000000e+30 : f32
    %14 = vector.broadcast %cst_8 : f32 to vector<32x128xf32>
    %15 = arith.select %13, %10, %14 : vector<32x128xi1>, vector<32x128xf32>
    %cst_9 = arith.constant dense<0xFF800000> : vector<32xf32>
    %16 = vector.multi_reduction <maximumf>, %15, %cst_9 [1] : vector<32x128xf32> to vector<32xf32>
    %17 = vector.shape_cast %16 : vector<32xf32> to vector<32x1xf32>
    %18 = vector.broadcast %17 : vector<32x1xf32> to vector<32x128xf32>
    %19 = arith.subf %15, %18 : vector<32x128xf32>
    %20 = math.exp %19 : vector<32x128xf32>
    %cst_10 = arith.constant 0.000000e+00 : f32
    %21 = vector.broadcast %cst_10 : f32 to vector<32x128xf32>
    %22 = arith.select %13, %20, %21 : vector<32x128xi1>, vector<32x128xf32>
    %cst_11 = arith.constant dense<0.000000e+00> : vector<32xf32>
    %23 = vector.multi_reduction <add>, %22, %cst_11 [1] : vector<32x128xf32> to vector<32xf32>
    %24 = vector.shape_cast %23 : vector<32xf32> to vector<32x1xf32>
    %25 = vector.broadcast %17 : vector<32x1xf32> to vector<32x128xf32>
    %26 = arith.subf %15, %25 : vector<32x128xf32>
    %27 = math.log %24 : vector<32x1xf32>
    %28 = vector.broadcast %27 : vector<32x1xf32> to vector<32x128xf32>
    %29 = arith.subf %26, %28 : vector<32x128xf32>
    %cst_12 = arith.constant 0.000000e+00 : f32
    %30 = vector.broadcast %cst_12 : f32 to vector<32x128xf32>
    %31 = arith.select %13, %29, %30 : vector<32x128xi1>, vector<32x128xf32>
    %c0_13 = arith.constant 0 : index
    %c0_14 = arith.constant 0 : index
    %c0_15 = arith.constant 0 : index
    %32 = vector.load %arg5[%c0_13, %c0_14, %c0_15] : memref<1x32x128xf32, #tpu.memory_space<vmem>>, vector<1x32x128xf32>
    %33 = vector.shape_cast %32 : vector<1x32x128xf32> to vector<32x128xf32>
    %34 = vector.shape_cast %31 : vector<32x128xf32> to vector<1x32x128xf32>
    tpu.vector_store %arg5[%c0_13, %c0_14, %c0_15], %34 {strides = array<i32>} : memref<1x32x128xf32, #tpu.memory_space<vmem>>, vector<1x32x128xf32>,
    return
  }
  func.func @transform_0(%arg0: i32, %arg1: i32) -> (i32, i32, i32) {
    %c0_i32 = arith.constant 0 : i32
    %c0_i32_0 = arith.constant 0 : i32
    %c0_i32_1 = arith.constant 0 : i32
    return %arg0, %c0_i32, %c0_i32_0 : i32, i32, i32
  }
  func.func @transform_1(%arg0: i32, %arg1: i32) -> (i32, i32, i32) {
    %c0_i32 = arith.constant 0 : i32
    %c0_i32_0 = arith.constant 0 : i32
    %c0_i32_1 = arith.constant 0 : i32
    %c0_i32_2 = arith.constant 0 : i32
    return %c0_i32, %c0_i32_0, %c0_i32_1 : i32, i32, i32
  }
  func.func @transform_2(%arg0: i32, %arg1: i32) -> (i32, i32) {
    %c0_i32 = arith.constant 0 : i32
    %c0_i32_0 = arith.constant 0 : i32
    %c0_i32_1 = arith.constant 0 : i32
    return %c0_i32, %c0_i32_0 : i32, i32
  }
  func.func @transform_3(%arg0: i32, %arg1: i32) -> (i32, i32, i32) {
    %c0_i32 = arith.constant 0 : i32
    %c0_i32_0 = arith.constant 0 : i32
    return %arg0, %arg1, %c0_i32 : i32, i32, i32
  }
}

</mosaic_0001>

<llo_original>
// kernel: scene_net_forward.12
$region0: #{scene_net_forward.12}
  #allocation0 [shape = 'u32[]', space=smem, size = 0x4, offset = 0x4, fixed_abs, tag = 'smem constant byte address 0x4 - core index']
  #allocation1 [shape = 'u32[144,128]{1,0:T(1,128)}', space=vmem, size = 0x12000, scoped, tag = 'internal scratch']
  %s0 = inlined_call_operand.vmem [shape: bf16[6,416,12], index: 0, kind: input, shape index: {}]
  %s1 = inlined_call_operand.vmem [shape: bf16[4,12,8], index: 1, kind: input, shape index: {}]
  %s2 = inlined_call_operand.vmem [shape: f32[1,8], index: 2, kind: input, shape index: {}]
  %s3 = inlined_call_operand.vmem [shape: bf16[6,384,8], index: 3, kind: output, shape index: {}]
  %s4 = sld [smem:[#allocation0]]
  $region45: #{scene_net_forward.12} parent=0
    _
  %s6 = ssub.s32 1, %s4
  %s7 = scalar_select 0, %s6, %s4
  loop: start=0, step=1, limit=8
  $region2: #{scene_net_forward.12} parent=0 // loop_pre_header
    _
  $region3: #{scene_net_forward.12} parent=0 // loop_header
    %s9 = sphi 0, %s13
    %p10 = scmp.ge.s32.totalorder %s9, 8
    %s16 = sphi 0, %s28
    %s17 = sphi 0, %s24
    %s18 = sphi 0, %s16
    %s19 = sphi 0, %s17
    %s20 = sphi 0, %s18
    %s21 = sphi 0, %s19
    %s31 = sphi 0, %s33
    %s34 = sphi 0, %s31
    %s35 = sphi 0, %s34
    %s51 = sphi 0, %s35
    %s55 = sphi 0, %s55
    %s57 = sphi 0, %s55
    %s58 = sphi 0, %s57
    %s72 = sphi 0, %s58
    %s76 = sphi 0, %s76
    %s78 = sphi 0, %s76
    %s79 = sphi 0, %s78
    %s93 = sphi 0, %s79
    %s101 = sphi 0, %s103
    %s104 = sphi 0, %s101
    %s105 = sphi 0, %s104
    %s121 = sphi 0, %s105
  $region4: #{scene_net_forward.12} parent=0 // loop_header_branch
    %12 = sbr.rel (%p10) target = $region8
  $region5: #{scene_net_forward.12} parent=0 // loop_body
    %s14 = ssub.s32 %s9, 1
    %s15 = ssub.s32 %s9, 2
    %s22 = sadd.s32 1, %s17
    %p23 = scmp.ge.s32.totalorder %s22, 1
    %s24 = scalar_select %p23, 0, %s22
    %s25 = sadd.s32 1, %s16
    %s26 = scalar_select %p23, %s25, %s16
    %p27 = scmp.ge.s32.totalorder %s26, 6
    %s28 = scalar_select %p27, 0, %s26
    %s29 = ssub.s32 %s16, %s28
    %p30 = scmp.eq.s32.totalorder %s29, 0
    %s32 = sadd.s32 %s31, 1
    %s33 = scalar_select %p30, %s31, %s32
    %p36 = pneg %p30
    %p37 = scmp.eq.s32.totalorder %s9, 5
    %p38 = por %p36, %p37
    %p39 = scmp.ne.s32.totalorder %s31, %s34
    %p40 = scmp.eq.s32.totalorder %s9, 0
    %p41 = por %p39, %p40
    %p42 = scmp.ne.s32.totalorder %s31, %s34
    %p43 = scmp.eq.s32.totalorder %s14, 5
    %p44 = por %p42, %p43
    %p45 = scmp.ne.s32.totalorder %s34, %s35
    %p46 = scmp.eq.s32.totalorder %s14, 0
    %p47 = por %p45, %p46
    %p48 = scmp.ne.s32.totalorder %s34, %s35
    %p49 = scmp.eq.s32.totalorder %s15, 5
    %p50 = por %p48, %p49
    %p52 = scmp.ne.s32.totalorder %s35, %s51
    %p53 = scmp.eq.s32.totalorder %s15, 0
    %p54 = por %p52, %p53
    %s56 = sadd.s32 %s55, 1
    %p59 = scmp.eq.s32.totalorder %s9, 5
    %p60 = scmp.ne.s32.totalorder %s55, %s57
    %p61 = scmp.eq.s32.totalorder %s9, 0
    %p62 = por %p60, %p61
    %p63 = scmp.ne.s32.totalorder %s55, %s57
    %p64 = scmp.eq.s32.totalorder %s14, 5
    %p65 = por %p63, %p64
    %p66 = scmp.ne.s32.totalorder %s57, %s58
    %p67 = scmp.eq.s32.totalorder %s14, 0
    %p68 = por %p66, %p67
    %p69 = scmp.ne.s32.totalorder %s57, %s58
    %p70 = scmp.eq.s32.totalorder %s15, 5
    %p71 = por %p69, %p70
    %p73 = scmp.ne.s32.totalorder %s58, %s72
    %p74 = scmp.eq.s32.totalorder %s15, 0
    %p75 = por %p73, %p74
    %s77 = sadd.s32 %s76, 1
    %p80 = scmp.eq.s32.totalorder %s9, 5
    %p81 = scmp.ne.s32.totalorder %s76, %s78
    %p82 = scmp.eq.s32.totalorder %s9, 0
    %p83 = por %p81, %p82
    %p84 = scmp.ne.s32.totalorder %s76, %s78
    %p85 = scmp.eq.s32.totalorder %s14, 5
    %p86 = por %p84, %p85
    %p87 = scmp.ne.s32.totalorder %s78, %s79
    %p88 = scmp.eq.s32.totalorder %s14, 0
    %p89 = por %p87, %p88
    %p90 = scmp.ne.s32.totalorder %s78, %s79
    %p91 = scmp.eq.s32.totalorder %s15, 5
    %p92 = por %p90, %p91
    %p94 = scmp.ne.s32.totalorder %s79, %s93
    %p95 = scmp.eq.s32.totalorder %s15, 0
    %p96 = por %p94, %p95
    %s97 = ssub.s32 %s16, %s28
    %s98 = ssub.s32 %s17, %s24
    %s99 = sor.u32 %s97, %s98
    %p100 = scmp.eq.s32.totalorder %s99, 0
    %s102 = sadd.s32 %s101, 1
    %s103 = scalar_select %p100, %s101, %s102
    %p106 = pneg %p100
    %p107 = scmp.eq.s32.totalorder %s9, 5
    %p108 = por %p106, %p107
    %p109 = scmp.ne.s32.totalorder %s101, %s104
    %p110 = scmp.eq.s32.totalorder %s9, 0
    %p111 = por %p109, %p110
    %p112 = scmp.ne.s32.totalorder %s101, %s104
    %p113 = scmp.eq.s32.totalorder %s14, 5
    %p114 = por %p112, %p113
    %p115 = scmp.ne.s32.totalorder %s104, %s105
    %p116 = scmp.eq.s32.totalorder %s14, 0
    %p117 = por %p115, %p116
    %p118 = scmp.ne.s32.totalorder %s104, %s105
    %p119 = scmp.eq.s32.totalorder %s15, 5
    %p120 = por %p118, %p119
    %p122 = scmp.ne.s32.totalorder %s105, %s121
    %p123 = scmp.eq.s32.totalorder %s15, 0
    %p124 = por %p122, %p123
    %p125 = scmp.le.s32.totalorder 1, %s9
    %p126 = scmp.lt.s32.totalorder %s9, 7
    %p127 = pnand %p125, %p126
    %p128 = pneg %p127
    // Predicated region
    $region9: #{scene_net_forward.12} parent=5 // pred_check
      _
    $region10: #{scene_net_forward.12} parent=5 // pred_check_branch
      %130 = sbr.rel (%p127) target = $region12
    $region11: #{scene_net_forward.12} parent=5 // pred_region
      %s131 = ssub.s32 %s9, 1
      // Predicated region
      $region13: #{scene_net_forward.12} parent=11 // pred_check
        %p132 = pneg %p68
      $region14: #{scene_net_forward.12} parent=11 // pred_check_branch
        %134 = sbr.rel (%p132) target = $region16
      $region15: #{scene_net_forward.12} parent=11 // pred_region
        _
      $region16: #{scene_net_forward.12} parent=11 // pred_fallthru
        _
      // Predicated region
      $region17: #{scene_net_forward.12} parent=11 // pred_check
        %p135 = pneg %p89
      $region18: #{scene_net_forward.12} parent=11 // pred_check_branch
        %137 = sbr.rel (%p135) target = $region20
      $region19: #{scene_net_forward.12} parent=11 // pred_region
        _
      $region20: #{scene_net_forward.12} parent=11 // pred_fallthru
        _
    $region12: #{scene_net_forward.12} parent=5 // pred_fallthru
      _
    %p138 = scmp.lt.s32.totalorder %s9, 6
    // Predicated region
    $region21: #{scene_net_forward.12} parent=5 // pred_check
      %p139 = pneg %p138
    $region22: #{scene_net_forward.12} parent=5 // pred_check_branch
      %141 = sbr.rel (%p139) target = $region24
    $region23: #{scene_net_forward.12} parent=5 // pred_region
      // Predicated region
      $region25: #{scene_net_forward.12} parent=23 // pred_check
        %p142 = pneg %p41
      $region26: #{scene_net_forward.12} parent=23 // pred_check_branch
        %144 = sbr.rel (%p142) target = $region28
      $region27: #{scene_net_forward.12} parent=23 // pred_region
        %p145 = scmp.lt.s32.totalorder %s16, 5
        %s146 = scalar_select %p145, %s16, 5
        %s147 = smul.addr %s146, 52
        %s148 = smul.addr %s147, 4
        %s149 = scalar_lea.vmem %s0, %s148
      $region28: #{scene_net_forward.12} parent=23 // pred_fallthru
        _
    $region24: #{scene_net_forward.12} parent=5 // pred_fallthru
      _
    %p150 = scmp.le.s32.totalorder 1, %s9
    %p151 = scmp.lt.s32.totalorder %s9, 7
    %p152 = pnand %p150, %p151
    %p153 = pneg %p152
    // Predicated region
    $region29: #{scene_net_forward.12} parent=5 // pred_check
      _
    $region30: #{scene_net_forward.12} parent=5 // pred_check_branch
      %155 = sbr.rel (%p152) target = $region32
    $region31: #{scene_net_forward.12} parent=5 // pred_region
      %s156 = ssub.s32 %s9, 1
      %p157 = scmp.lt.s32.totalorder %s18, 5
      %s158 = scalar_select %p157, %s18, 5
      %s159 = smul.addr %s158, 52
      %s160 = smul.addr %s159, 4
      %s161 = scalar_lea.vmem %s0, %s160
      %p162 = pneg %p47
      %p163 = pneg %p44
      %p164 = pneg %p68
      %p165 = pneg %p65
      %p166 = pneg %p89
      %p167 = pneg %p86
      %p168 = pneg %p117
      %p169 = pneg %p114
      %s170 = smul.u32 48, %s19
      %p171 = scmp.lt.s32.totalorder %s18, 5
      %s172 = scalar_select %p171, %s18, 5
      %p173 = scmp.lt.s32.totalorder %s170, 47
      %s174 = scalar_select %p173, %s170, 47
      %s175 = smul.addr %s172, 48
      %s176 = sadd.s32 %s174, %s175
      %s177 = smul.addr %s176, 4
      %s178 = scalar_lea.vmem %s3, %s177
      %p179 = scmp.lt.s32.totalorder %s18, 5
      %s180 = scalar_select %p179, %s18, 5
      %s181 = smul.addr %s180, 52
      %s182 = smul.addr %s181, 4
      %s183 = scalar_lea.vmem %s0, %s182
      %s184 = smul.u32 48, %s19
      %p185 = scmp.lt.s32.totalorder %s18, 5
      %s186 = scalar_select %p185, %s18, 5
      %p187 = scmp.lt.s32.totalorder %s184, 47
      %s188 = scalar_select %p187, %s184, 47
      %s189 = smul.addr %s186, 48
      %s190 = sadd.s32 %s188, %s189
      %s191 = smul.addr %s190, 4
      %s192 = scalar_lea.vmem %s3, %s191
      %s193 = smul.u32 48, %s19
      %v195 = vld [vmem:[%s183] sm:$0xf]
      %v196 = vld [vmem:[%s183 + $0x4] sm:$0xf]
      %v197 = vld [vmem:[%s183 + $0x8] sm:$0xf]
      %v198 = vld [vmem:[%s183 + $0xc] sm:$0xf]
      %v199 = vld [vmem:[%s183 + $0x10] sm:$0xf]
      %v200 = vld [vmem:[%s183 + $0x14] sm:$0xf]
      %v201 = vld [vmem:[%s183 + $0x18] sm:$0xf]
      %v202 = vld [vmem:[%s183 + $0x1c] sm:$0xf]
      %v203 = vld [vmem:[%s183 + $0x20] sm:$0xf]
      %v204 = vld [vmem:[%s183 + $0x24] sm:$0xf]
      %v205 = vld [vmem:[%s183 + $0x28] sm:$0xf]
      %v206 = vld [vmem:[%s183 + $0x2c] sm:$0xf]
      %v207 = vld [vmem:[%s183 + $0x30] sm:$0xf]
      %v208 = vld [vmem:[%s183 + $0x34] sm:$0xf]
      %v209 = vld [vmem:[%s183 + $0x38] sm:$0xf]
      %v210 = vld [vmem:[%s183 + $0x3c] sm:$0xf]
      %v211 = vld [vmem:[%s183 + $0x40] sm:$0xf]
      %v212 = vld [vmem:[%s183 + $0x44] sm:$0xf]
      %v213 = vld [vmem:[%s183 + $0x48] sm:$0xf]
      %v214 = vld [vmem:[%s183 + $0x4c] sm:$0xf]
      %v215 = vld [vmem:[%s183 + $0x50] sm:$0xf]
      %v216 = vld [vmem:[%s183 + $0x54] sm:$0xf]
      %v217 = vld [vmem:[%s183 + $0x58] sm:$0xf]
      %v218 = vld [vmem:[%s183 + $0x5c] sm:$0xf]
      %v219 = vld [vmem:[%s183 + $0x60] sm:$0xf]
      %v220 = vld [vmem:[%s183 + $0x64] sm:$0xf]
      %v221 = vld [vmem:[%s183 + $0x68] sm:$0xf]
      %v222 = vld [vmem:[%s183 + $0x6c] sm:$0xf]
      %v223 = vld [vmem:[%s183 + $0x70] sm:$0xf]
      %v224 = vld [vmem:[%s183 + $0x74] sm:$0xf]
      %v225 = vld [vmem:[%s183 + $0x78] sm:$0xf]
      %v226 = vld [vmem:[%s183 + $0x7c] sm:$0xf]
      %v227 = vld [vmem:[%s183 + $0x80] sm:$0xf]
      %v228 = vld [vmem:[%s183 + $0x84] sm:$0xf]
      %v229 = vld [vmem:[%s183 + $0x88] sm:$0xf]
      %v230 = vld [vmem:[%s183 + $0x8c] sm:$0xf]
      %v231 = vld [vmem:[%s183 + $0x90] sm:$0xf]
      %v232 = vld [vmem:[%s183 + $0x94] sm:$0xf]
      %v233 = vld [vmem:[%s183 + $0x98] sm:$0xf]
      %v234 = vld [vmem:[%s183 + $0x9c] sm:$0xf]
      %v235 = vld [vmem:[%s183 + $0xa0] sm:$0xf]
      %v236 = vld [vmem:[%s183 + $0xa4] sm:$0xf]
      %v237 = vld [vmem:[%s183 + $0xa8] sm:$0xf]
      %v238 = vld [vmem:[%s183 + $0xac] sm:$0xf]
      %v239 = vld [vmem:[%s183 + $0xb0] sm:$0xf]
      %v240 = vld [vmem:[%s183 + $0xb4] sm:$0xf]
      %v241 = vld [vmem:[%s183 + $0xb8] sm:$0xf]
      %v242 = vld [vmem:[%s183 + $0xbc] sm:$0xf]
      %v243 = vld [vmem:[%s183 + $0xc0] sm:$0xf]
      %v244 = vunpack.c.l.bf16 %v195
      %v245 = vunpack.c.l.bf16 %v196
      %v246 = vunpack.c.l.bf16 %v197
      %v247 = vunpack.c.l.bf16 %v198
      %v248 = vunpack.c.l.bf16 %v199
      %v249 = vunpack.c.l.bf16 %v200
      %v250 = vunpack.c.l.bf16 %v201
      %v251 = vunpack.c.l.bf16 %v202
      %v252 = vunpack.c.l.bf16 %v203
      %v253 = vunpack.c.l.bf16 %v204
      %v254 = vunpack.c.l.bf16 %v205
      %v255 = vunpack.c.l.bf16 %v206
      %v256 = vunpack.c.l.bf16 %v207
      %v257 = vunpack.c.l.bf16 %v208
      %v258 = vunpack.c.l.bf16 %v209
      %v259 = vunpack.c.l.bf16 %v210
      %v260 = vunpack.c.l.bf16 %v211
      %v261 = vunpack.c.l.bf16 %v212
      %v262 = vunpack.c.l.bf16 %v213
      %v263 = vunpack.c.l.bf16 %v214
      %v264 = vunpack.c.l.bf16 %v215
      %v265 = vunpack.c.l.bf16 %v216
      %v266 = vunpack.c.l.bf16 %v217
      %v267 = vunpack.c.l.bf16 %v218
      %v268 = vunpack.c.l.bf16 %v219
      %v269 = vunpack.c.l.bf16 %v220
      %v270 = vunpack.c.l.bf16 %v221
      %v271 = vunpack.c.l.bf16 %v222
      %v272 = vunpack.c.l.bf16 %v223
      %v273 = vunpack.c.l.bf16 %v224
      %v274 = vunpack.c.l.bf16 %v225
      %v275 = vunpack.c.l.bf16 %v226
      %v276 = vunpack.c.l.bf16 %v227
      %v277 = vunpack.c.l.bf16 %v228
      %v278 = vunpack.c.l.bf16 %v229
      %v279 = vunpack.c.l.bf16 %v230
      %v280 = vunpack.c.l.bf16 %v231
      %v281 = vunpack.c.l.bf16 %v232
      %v282 = vunpack.c.l.bf16 %v233
      %v283 = vunpack.c.l.bf16 %v234
      %v284 = vunpack.c.l.bf16 %v235
      %v285 = vunpack.c.l.bf16 %v236
      %v286 = vunpack.c.l.bf16 %v237
      %v287 = vunpack.c.l.bf16 %v238
      %v288 = vunpack.c.l.bf16 %v239
      %v289 = vunpack.c.l.bf16 %v240
      %v290 = vunpack.c.l.bf16 %v241
      %v291 = vunpack.c.l.bf16 %v242
      %v292 = vunpack.c.l.bf16 %v243
      %v293 = vld [vmem:[%s1] sm:$0xf]
      %v294 = vld [vmem:[%s1 + $0x4] sm:$0x3]
      %v295 = vpack.c.bf16 %v245, %v244
      %v296 = vpack.c.bf16 %v247, %v246
      %v297 = vpack.c.bf16 %v249, %v248
      %v298 = vpack.c.bf16 %v251, %v250
      %v299 = vpack.c.bf16 %v253, %v252
      %v300 = vpack.c.bf16 %v255, %v254
      %v301 = vpack.c.bf16 %v257, %v256
      %v302 = vpack.c.bf16 %v259, %v258
      %v303 = vpack.c.bf16 %v261, %v260
      %v304 = vpack.c.bf16 %v263, %v262
      %v305 = vpack.c.bf16 %v265, %v264
      %v306 = vpack.c.bf16 %v267, %v266
      %v307 = vpack.c.bf16 %v269, %v268
      %v308 = vpack.c.bf16 %v271, %v270
      %v309 = vpack.c.bf16 %v273, %v272
      %v310 = vpack.c.bf16 %v275, %v274
      %v311 = vpack.c.bf16 %v277, %v276
      %v312 = vpack.c.bf16 %v279, %v278
      %v313 = vpack.c.bf16 %v281, %v280
      %v314 = vpack.c.bf16 %v283, %v282
      %v315 = vpack.c.bf16 %v285, %v284
      %v316 = vpack.c.bf16 %v287, %v286
      %v317 = vpack.c.bf16 %v289, %v288
      %v318 = vpack.c.bf16 %v291, %v290
      %v319 = vpack.c.bf16 %v292, %v292
      %s320 = scalar_lea.vmem %s1, 8
      %v321 = vld [vmem:[%s320] sm:$0xf]
      %v322 = vld [vmem:[%s320 + $0x4] sm:$0x3]
      %vm323 = vsmask.f32 7424
      %v325 = vshrl.u32 %v295, 16
      %v327 = vshll.u32 %v295, 16
      %v329 = vrot.slane %v327, 1
      %v330 = vor.u32 %v325, %v329
      %v332 = vshll.u32 %v296, 16
      %v334 = vrot.slane %v332, 1
      %v335 = vsel %vm323, %v330, %v334
      %v336 = vshrl.u32 %v296, 16
      %v338 = vor.u32 %v336, %v334
      %v340 = vshll.u32 %v297, 16
      %v342 = vrot.slane %v340, 1
      %v343 = vsel %vm323, %v338, %v342
      %v344 = vshrl.u32 %v297, 16
      %v346 = vor.u32 %v344, %v342
      %v348 = vshll.u32 %v298, 16
      %v350 = vrot.slane %v348, 1
      %v351 = vsel %vm323, %v346, %v350
      %v352 = vshrl.u32 %v298, 16
      %v354 = vor.u32 %v352, %v350
      %v356 = vshll.u32 %v299, 16
      %v358 = vrot.slane %v356, 1
      %v359 = vsel %vm323, %v354, %v358
      %v360 = vshrl.u32 %v299, 16
      %v362 = vor.u32 %v360, %v358
      %v364 = vshll.u32 %v300, 16
      %v366 = vrot.slane %v364, 1
      %v367 = vsel %vm323, %v362, %v366
      %v368 = vshrl.u32 %v300, 16
      %v370 = vor.u32 %v368, %v366
      %v372 = vshll.u32 %v301, 16
      %v374 = vrot.slane %v372, 1
      %v375 = vsel %vm323, %v370, %v374
      %v376 = vshrl.u32 %v301, 16
      %v378 = vor.u32 %v376, %v374
      %v380 = vshll.u32 %v302, 16
      %v382 = vrot.slane %v380, 1
      %v383 = vsel %vm323, %v378, %v382
      %v384 = vshrl.u32 %v302, 16
      %v386 = vor.u32 %v384, %v382
      %v388 = vshll.u32 %v303, 16
      %v390 = vrot.slane %v388, 1
      %v391 = vsel %vm323, %v386, %v390
      %v392 = vshrl.u32 %v303, 16
      %v394 = vor.u32 %v392, %v390
      %v396 = vshll.u32 %v304, 16
      %v398 = vrot.slane %v396, 1
      %v399 = vsel %vm323, %v394, %v398
      %v400 = vshrl.u32 %v304, 16
      %v402 = vor.u32 %v400, %v398
      %v404 = vshll.u32 %v305, 16
      %v406 = vrot.slane %v404, 1
      %v407 = vsel %vm323, %v402, %v406
      %v408 = vshrl.u32 %v305, 16
      %v410 = vor.u32 %v408, %v406
      %v412 = vshll.u32 %v306, 16
      %v414 = vrot.slane %v412, 1
      %v415 = vsel %vm323, %v410, %v414
      %v416 = vshrl.u32 %v306, 16
      %v418 = vor.u32 %v416, %v414
      %v420 = vshll.u32 %v307, 16
      %v422 = vrot.slane %v420, 1
      %v423 = vsel %vm323, %v418, %v422
      %v424 = vshrl.u32 %v307, 16
      %v426 = vor.u32 %v424, %v422
      %v428 = vshll.u32 %v308, 16
      %v430 = vrot.slane %v428, 1
      %v431 = vsel %vm323, %v426, %v430
      %v432 = vshrl.u32 %v308, 16
      %v434 = vor.u32 %v432, %v430
      %v436 = vshll.u32 %v309, 16
      %v438 = vrot.slane %v436, 1
      %v439 = vsel %vm323, %v434, %v438
      %v440 = vshrl.u32 %v309, 16
      %v442 = vor.u32 %v440, %v438
      %v444 = vshll.u32 %v310, 16
      %v446 = vrot.slane %v444, 1
      %v447 = vsel %vm323, %v442, %v446
      %v448 = vshrl.u32 %v310, 16
      %v450 = vor.u32 %v448, %v446
      %v452 = vshll.u32 %v311, 16
      %v454 = vrot.slane %v452, 1
      %v455 = vsel %vm323, %v450, %v454
      %v456 = vshrl.u32 %v311, 16
      %v458 = vor.u32 %v456, %v454
      %v460 = vshll.u32 %v312, 16
      %v462 = vrot.slane %v460, 1
      %v463 = vsel %vm323, %v458, %v462
      %v464 = vshrl.u32 %v312, 16
      %v466 = vor.u32 %v464, %v462
      %v468 = vshll.u32 %v313, 16
      %v470 = vrot.slane %v468, 1
      %v471 = vsel %vm323, %v466, %v470
      %v472 = vshrl.u32 %v313, 16
      %v474 = vor.u32 %v472, %v470
      %v476 = vshll.u32 %v314, 16
      %v478 = vrot.slane %v476, 1
      %v479 = vsel %vm323, %v474, %v478
      %v480 = vshrl.u32 %v314, 16
      %v482 = vor.u32 %v480, %v478
      %v484 = vshll.u32 %v315, 16
      %v486 = vrot.slane %v484, 1
      %v487 = vsel %vm323, %v482, %v486
      %v488 = vshrl.u32 %v315, 16
      %v490 = vor.u32 %v488, %v486
      %v492 = vshll.u32 %v316, 16
      %v494 = vrot.slane %v492, 1
      %v495 = vsel %vm323, %v490, %v494
      %v496 = vshrl.u32 %v316, 16
      %v498 = vor.u32 %v496, %v494
      %v500 = vshll.u32 %v317, 16
      %v502 = vrot.slane %v500, 1
      %v503 = vsel %vm323, %v498, %v502
      %v504 = vshrl.u32 %v317, 16
      %v506 = vor.u32 %v504, %v502
      %v508 = vshll.u32 %v318, 16
      %v510 = vrot.slane %v508, 1
      %v511 = vsel %vm323, %v506, %v510
      %v512 = vshrl.u32 %v318, 16
      %v514 = vor.u32 %v512, %v510
      %v516 = vshll.u32 %v319, 16
      %v518 = vrot.slane %v516, 1
      %v519 = vsel %vm323, %v514, %v518
      %v522 = vunpack.c.l.b16 %v321
      %v523 = vunpack.c.l.b16 %v322
      %v524 = vpack.c.b16 %v523, %v522
      %vm525 = vcmask 97280
      %v527 = vsel %vm525, %v335, 0
      %v530 = vsel %vm525, %v343, 0
      %v533 = vsel %vm525, %v351, 0
      %v536 = vsel %vm525, %v359, 0
      %v539 = vsel %vm525, %v367, 0
      %v542 = vsel %vm525, %v375, 0
      %v545 = vsel %vm525, %v383, 0
      %v548 = vsel %vm525, %v391, 0
      %v551 = vsel %vm525, %v399, 0
      %v554 = vsel %vm525, %v407, 0
      %v557 = vsel %vm525, %v415, 0
      %v560 = vsel %vm525, %v423, 0
      %v563 = vsel %vm525, %v431, 0
      %v566 = vsel %vm525, %v439, 0
      %v569 = vsel %vm525, %v447, 0
      %v572 = vsel %vm525, %v455, 0
      %v575 = vsel %vm525, %v463, 0
      %v578 = vsel %vm525, %v471, 0
      %v581 = vsel %vm525, %v479, 0
      %v584 = vsel %vm525, %v487, 0
      %v587 = vsel %vm525, %v495, 0
      %v590 = vsel %vm525, %v503, 0
      %v593 = vsel %vm525, %v511, 0
      %v596 = vsel %vm525, %v519, 0
      %vm598 = vcmask 1045504
      %v600 = vsel %vm598, %v524, 0
      %602 = vmatprep.subr.bf16.mxu0 0
      %603 = vmatpush1.bf16.msra.mxu0 %v600
      %604 = vmatprep.subr.bf16.mxu0 0
      %605 = vmatpush1.bf16.msra.mxu0 0
      %606 = vmatprep.subr.bf16.mxu0 0
      %607 = vmatpush1.bf16.msra.mxu0 0
      %608 = vmatprep.subr.bf16.mxu0 0
      %609 = vmatpush1.bf16.msra.mxu0 0
      %610 = vmatprep.subr.bf16.mxu0 0
      %611 = vmatpush1.bf16.msra.mxu0 0
      %612 = vmatprep.subr.bf16.mxu0 0
      %613 = vmatpush1.bf16.msra.mxu0 0
      %614 = vmatprep.subr.bf16.mxu0 0
      %615 = vmatpush1.bf16.msra.mxu0 0
      %616 = vmatprep.subr.bf16.mxu0 0
      %617 = vmatpush1.bf16.msra.mxu0 0
      %618 = vmatprep.subr.bf16.mxu0 0
      %619 = vmatpush1.bf16.msra.mxu0 0
      %620 = vmatprep.subr.bf16.mxu0 0
      %621 = vmatpush1.bf16.msra.mxu0 0
      %622 = vmatprep.subr.bf16.mxu0 0
      %623 = vmatpush1.bf16.msra.mxu0 0
      %624 = vmatprep.subr.bf16.mxu0 0
      %625 = vmatpush1.bf16.msra.mxu0 0
      %626 = vmatprep.subr.bf16.mxu0 0
      %627 = vmatpush1.bf16.msra.mxu0 0
      %628 = vmatprep.subr.bf16.mxu0 0
      %629 = vmatpush1.bf16.msra.mxu0 0
      %630 = vmatprep.subr.bf16.mxu0 0
      %631 = vmatpush1.bf16.msra.mxu0 0
      %632 = vmatprep.subr.bf16.mxu0 0
      %633 = vmatpush1.bf16.msra.mxu0 0
      %634 = vmatprep.mubr.bf16.mxu0 0
      %635 = vmatmul.mubr.bf16.gmra.mrb[0].mxu0 %v527
      %v636 = vpop.f32.mrb[0].mxu0
      %v637 = vadd.f32 0.0, %v636
      %v638 = vpop.f32.mrb[0].mxu0
      %v639 = vpop.f32.mrb[0].mxu0
      %v640 = vadd.f32 0.0, %v639
      %v641 = vpop.f32.mrb[0].mxu0
      %642 = vmatprep.mubr.bf16.mxu0 0
      %643 = vmatmul.mubr.bf16.gmra.mrb[0].mxu0 %v530
      %v644 = vpop.f32.mrb[0].mxu0
      %v645 = vadd.f32 0.0, %v644
      %v646 = vpop.f32.mrb[0].mxu0
      %v647 = vpop.f32.mrb[0].mxu0
      %v648 = vadd.f32 0.0, %v647
      %v649 = vpop.f32.mrb[0].mxu0
      %650 = vmatprep.mubr.bf16.mxu0 0
      %651 = vmatmul.mubr.bf16.gmra.mrb[0].mxu0 %v533
      %v652 = vpop.f32.mrb[0].mxu0
      %v653 = vadd.f32 0.0, %v652
      %v654 = vpop.f32.mrb[0].mxu0
      %v655 = vpop.f32.mrb[0].mxu0
      %v656 = vadd.f32 0.0, %v655
      %v657 = vpop.f32.mrb[0].mxu0
      %658 = vmatprep.mubr.bf16.mxu0 0
      %659 = vmatmul.mubr.bf16.gmra.mrb[0].mxu0 %v536
      %v660 = vpop.f32.mrb[0].mxu0
      %v661 = vadd.f32 0.0, %v660
      %v662 = vpop.f32.mrb[0].mxu0
      %v663 = vpop.f32.mrb[0].mxu0
      %v664 = vadd.f32 0.0, %v663
      %v665 = vpop.f32.mrb[0].mxu0
      %666 = vmatprep.mubr.bf16.mxu0 0
      %667 = vmatmul.mubr.bf16.gmra.mrb[0].mxu0 %v539
      %v668 = vpop.f32.mrb[0].mxu0
      %v669 = vadd.f32 0.0, %v668
      %v670 = vpop.f32.mrb[0].mxu0
      %v671 = vpop.f32.mrb[0].mxu0
      %v672 = vadd.f32 0.0, %v671
      %v673 = vpop.f32.mrb[0].mxu0
      %674 = vmatprep.mubr.bf16.mxu0 0
      %675 = vmatmul.mubr.bf16.gmra.mrb[0].mxu0 %v542
      %v676 = vpop.f32.mrb[0].mxu0
      %v677 = vadd.f32 0.0, %v676
      %v678 = vpop.f32.mrb[0].mxu0
      %v679 = vpop.f32.mrb[0].mxu0
      %v680 = vadd.f32 0.0, %v679
      %v681 = vpop.f32.mrb[0].mxu0
      %682 = vmatprep.mubr.bf16.mxu0 0
      %683 = vmatmul.mubr.bf16.gmra.mrb[0].mxu0 %v545
      %v684 = vpop.f32.mrb[0].mxu0
      %v685 = vadd.f32 0.0, %v684
      %v686 = vpop.f32.mrb[0].mxu0
      %v687 = vpop.f32.mrb[0].mxu0
      %v688 = vadd.f32 0.0, %v687
      %v689 = vpop.f32.mrb[0].mxu0
      %690 = vmatprep.mubr.bf16.mxu0 0
      %691 = vmatmul.mubr.bf16.gmra.mrb[0].mxu0 %v548
      %v692 = vpop.f32.mrb[0].mxu0
      %v693 = vadd.f32 0.0, %v692
      %v694 = vpop.f32.mrb[0].mxu0
      %v695 = vpop.f32.mrb[0].mxu0
      %v696 = vadd.f32 0.0, %v695
      %v697 = vpop.f32.mrb[0].mxu0
      %698 = vmatprep.mubr.bf16.mxu0 0
      %699 = vmatmul.mubr.bf16.gmra.mrb[0].mxu0 %v551
      %v700 = vpop.f32.mrb[0].mxu0
      %v701 = vadd.f32 0.0, %v700
      %v702 = vpop.f32.mrb[0].mxu0
      %v703 = vpop.f32.mrb[0].mxu0
      %v704 = vadd.f32 0.0, %v703
      %v705 = vpop.f32.mrb[0].mxu0
      %706 = vmatprep.mubr.bf16.mxu0 0
      %707 = vmatmul.mubr.bf16.gmra.mrb[0].mxu0 %v554
      %v708 = vpop.f32.mrb[0].mxu0
      %v709 = vadd.f32 0.0, %v708
      %v710 = vpop.f32.mrb[0].mxu0
      %v711 = vpop.f32.mrb[0].mxu0
      %v712 = vadd.f32 0.0, %v711
      %v713 = vpop.f32.mrb[0].mxu0
      %714 = vmatprep.mubr.bf16.mxu0 0
      %715 = vmatmul.mubr.bf16.gmra.mrb[0].mxu0 %v557
      %v716 = vpop.f32.mrb[0].mxu0
      %v717 = vadd.f32 0.0, %v716
      %v718 = vpop.f32.mrb[0].mxu0
      %v719 = vpop.f32.mrb[0].mxu0
      %v720 = vadd.f32 0.0, %v719
      %v721 = vpop.f32.mrb[0].mxu0
      %722 = vmatprep.mubr.bf16.mxu0 0
      %723 = vmatmul.mubr.bf16.gmra.mrb[0].mxu0 %v560
      %v724 = vpop.f32.mrb[0].mxu0
      %v725 = vadd.f32 0.0, %v724
      %v726 = vpop.f32.mrb[0].mxu0
      %v727 = vpop.f32.mrb[0].mxu0
      %v728 = vadd.f32 0.0, %v727
      %v729 = vpop.f32.mrb[0].mxu0
      %730 = vmatprep.mubr.bf16.mxu0 0
      %731 = vmatmul.mubr.bf16.gmra.mrb[0].mxu0 %v563
      %v732 = vpop.f32.mrb[0].mxu0
      %v733 = vadd.f32 0.0, %v732
      %v734 = vpop.f32.mrb[0].mxu0
      %v735 = vpop.f32.mrb[0].mxu0
      %v736 = vadd.f32 0.0, %v735
      %v737 = vpop.f32.mrb[0].mxu0
      %738 = vmatprep.mubr.bf16.mxu0 0
      %739 = vmatmul.mubr.bf16.gmra.mrb[0].mxu0 %v566
      %v740 = vpop.f32.mrb[0].mxu0
      %v741 = vadd.f32 0.0, %v740
      %v742 = vpop.f32.mrb[0].mxu0
      %v743 = vpop.f32.mrb[0].mxu0
      %v744 = vadd.f32 0.0, %v743
      %v745 = vpop.f32.mrb[0].mxu0
      %746 = vmatprep.mubr.bf16.mxu0 0
      %747 = vmatmul.mubr.bf16.gmra.mrb[0].mxu0 %v569
      %v748 = vpop.f32.mrb[0].mxu0
      %v749 = vadd.f32 0.0, %v748
      %v750 = vpop.f32.mrb[0].mxu0
      %v751 = vpop.f32.mrb[0].mxu0
      %v752 = vadd.f32 0.0, %v751
      %v753 = vpop.f32.mrb[0].mxu0
      %754 = vmatprep.mubr.bf16.mxu0 0
      %755 = vmatmul.mubr.bf16.gmra.mrb[0].mxu0 %v572
      %v756 = vpop.f32.mrb[0].mxu0
      %v757 = vadd.f32 0.0, %v756
      %v758 = vpop.f32.mrb[0].mxu0
      %v759 = vpop.f32.mrb[0].mxu0
      %v760 = vadd.f32 0.0, %v759
      %v761 = vpop.f32.mrb[0].mxu0
      %762 = vmatprep.mubr.bf16.mxu0 0
      %763 = vmatmul.mubr.bf16.gmra.mrb[0].mxu0 %v575
      %v764 = vpop.f32.mrb[0].mxu0
      %v765 = vadd.f32 0.0, %v764
      %v766 = vpop.f32.mrb[0].mxu0
      %v767 = vpop.f32.mrb[0].mxu0
      %v768 = vadd.f32 0.0, %v767
      %v769 = vpop.f32.mrb[0].mxu0
      %770 = vmatprep.mubr.bf16.mxu0 0
      %771 = vmatmul.mubr.bf16.gmra.mrb[0].mxu0 %v578
      %v772 = vpop.f32.mrb[0].mxu0
      %v773 = vadd.f32 0.0, %v772
      %v774 = vpop.f32.mrb[0].mxu0
      %v775 = vpop.f32.mrb[0].mxu0
      %v776 = vadd.f32 0.0, %v775
      %v777 = vpop.f32.mrb[0].mxu0
      %778 = vmatprep.mubr.bf16.mxu0 0
      %779 = vmatmul.mubr.bf16.gmra.mrb[0].mxu0 %v581
      %v780 = vpop.f32.mrb[0].mxu0
      %v781 = vadd.f32 0.0, %v780
      %v782 = vpop.f32.mrb[0].mxu0
      %v783 = vpop.f32.mrb[0].mxu0
      %v784 = vadd.f32 0.0, %v783
      %v785 = vpop.f32.mrb[0].mxu0
      %786 = vmatprep.mubr.bf16.mxu0 0
      %787 = vmatmul.mubr.bf16.gmra.mrb[0].mxu0 %v584
      %v788 = vpop.f32.mrb[0].mxu0
      %v789 = vadd.f32 0.0, %v788
      %v790 = vpop.f32.mrb[0].mxu0
      %v791 = vpop.f32.mrb[0].mxu0
      %v792 = vadd.f32 0.0, %v791
      %v793 = vpop.f32.mrb[0].mxu0
      %794 = vmatprep.mubr.bf16.mxu0 0
      %795 = vmatmul.mubr.bf16.gmra.mrb[0].mxu0 %v587
      %v796 = vpop.f32.mrb[0].mxu0
      %v797 = vadd.f32 0.0, %v796
      %v798 = vpop.f32.mrb[0].mxu0
      %v799 = vpop.f32.mrb[0].mxu0
      %v800 = vadd.f32 0.0, %v799
      %v801 = vpop.f32.mrb[0].mxu0
      %802 = vmatprep.mubr.bf16.mxu0 0
      %803 = vmatmul.mubr.bf16.gmra.mrb[0].mxu0 %v590
      %v804 = vpop.f32.mrb[0].mxu0
      %v805 = vadd.f32 0.0, %v804
      %v806 = vpop.f32.mrb[0].mxu0
      %v807 = vpop.f32.mrb[0].mxu0
      %v808 = vadd.f32 0.0, %v807
      %v809 = vpop.f32.mrb[0].mxu0
      %810 = vmatprep.mubr.bf16.mxu0 0
      %811 = vmatmul.mubr.bf16.gmra.mrb[0].mxu0 %v593
      %v812 = vpop.f32.mrb[0].mxu0
      %v813 = vadd.f32 0.0, %v812
      %v814 = vpop.f32.mrb[0].mxu0
      %v815 = vpop.f32.mrb[0].mxu0
      %v816 = vadd.f32 0.0, %v815
      %v817 = vpop.f32.mrb[0].mxu0
      %818 = vmatprep.mubr.bf16.mxu0 0
      %819 = vmatmul.mubr.bf16.gmra.mrb[0].mxu0 %v596
      %v820 = vpop.f32.mrb[0].mxu0
      %v821 = vadd.f32 0.0, %v820
      %v822 = vpop.f32.mrb[0].mxu0
      %v823 = vpop.f32.mrb[0].mxu0
      %v824 = vadd.f32 0.0, %v823
      %v825 = vpop.f32.mrb[0].mxu0
      %826 = vdwg.mxu0
      %v875 = vunpack.c.l.b16 %v195
      %v876 = vunpack.c.l.b16 %v196
      %v877 = vunpack.c.l.b16 %v197
      %v878 = vunpack.c.l.b16 %v198
      %v879 = vunpack.c.l.b16 %v199
      %v880 = vunpack.c.l.b16 %v200
      %v881 = vunpack.c.l.b16 %v201
      %v882 = vunpack.c.l.b16 %v202
      %v883 = vunpack.c.l.b16 %v203
      %v884 = vunpack.c.l.b16 %v204
      %v885 = vunpack.c.l.b16 %v205
      %v886 = vunpack.c.l.b16 %v206
      %v887 = vunpack.c.l.b16 %v207
      %v888 = vunpack.c.l.b16 %v208
      %v889 = vunpack.c.l.b16 %v209
      %v890 = vunpack.c.l.b16 %v210
      %v891 = vunpack.c.l.b16 %v211
      %v892 = vunpack.c.l.b16 %v212
      %v893 = vunpack.c.l.b16 %v213
      %v894 = vunpack.c.l.b16 %v214
      %v895 = vunpack.c.l.b16 %v215
      %v896 = vunpack.c.l.b16 %v216
      %v897 = vunpack.c.l.b16 %v217
      %v898 = vunpack.c.l.b16 %v218
      %v899 = vunpack.c.l.b16 %v219
      %v900 = vunpack.c.l.b16 %v220
      %v901 = vunpack.c.l.b16 %v221
      %v902 = vunpack.c.l.b16 %v222
      %v903 = vunpack.c.l.b16 %v223
      %v904 = vunpack.c.l.b16 %v224
      %v905 = vunpack.c.l.b16 %v225
      %v906 = vunpack.c.l.b16 %v226
      %v907 = vunpack.c.l.b16 %v227
      %v908 = vunpack.c.l.b16 %v228
      %v909 = vunpack.c.l.b16 %v229
      %v910 = vunpack.c.l.b16 %v230
      %v911 = vunpack.c.l.b16 %v231
      %v912 = vunpack.c.l.b16 %v232
      %v913 = vunpack.c.l.b16 %v233
      %v914 = vunpack.c.l.b16 %v234
      %v915 = vunpack.c.l.b16 %v235
      %v916 = vunpack.c.l.b16 %v236
      %v917 = vunpack.c.l.b16 %v237
      %v918 = vunpack.c.l.b16 %v238
      %v919 = vunpack.c.l.b16 %v239
      %v920 = vunpack.c.l.b16 %v240
      %v921 = vunpack.c.l.b16 %v241
      %v922 = vunpack.c.l.b16 %v242
      %v923 = vpack.c.b16 %v876, %v875
      %v924 = vpack.c.b16 %v878, %v877
      %v925 = vpack.c.b16 %v880, %v879
      %v926 = vpack.c.b16 %v882, %v881
      %v927 = vpack.c.b16 %v884, %v883
      %v928 = vpack.c.b16 %v886, %v885
      %v929 = vpack.c.b16 %v888, %v887
      %v930 = vpack.c.b16 %v890, %v889
      %v931 = vpack.c.b16 %v892, %v891
      %v932 = vpack.c.b16 %v894, %v893
      %v933 = vpack.c.b16 %v896, %v895
      %v934 = vpack.c.b16 %v898, %v897
      %v935 = vpack.c.b16 %v900, %v899
      %v936 = vpack.c.b16 %v902, %v901
      %v937 = vpack.c.b16 %v904, %v903
      %v938 = vpack.c.b16 %v906, %v905
      %v939 = vpack.c.b16 %v908, %v907
      %v940 = vpack.c.b16 %v910, %v909
      %v941 = vpack.c.b16 %v912, %v911
      %v942 = vpack.c.b16 %v914, %v913
      %v943 = vpack.c.b16 %v916, %v915
      %v944 = vpack.c.b16 %v918, %v917
      %v945 = vpack.c.b16 %v920, %v919
      %v946 = vpack.c.b16 %v922, %v921
      %v949 = vunpack.c.l.b16 %v293
      %v950 = vunpack.c.l.b16 %v294
      %v951 = vpack.c.b16 %v950, %v949
      %v953 = vsel %vm525, %v923, 0
      %v956 = vsel %vm525, %v924, 0
      %v959 = vsel %vm525, %v925, 0
      %v962 = vsel %vm525, %v926, 0
      %v965 = vsel %vm525, %v927, 0
      %v968 = vsel %vm525, %v928, 0
      %v971 = vsel %vm525, %v929, 0
      %v974 = vsel %vm525, %v930, 0
      %v977 = vsel %vm525, %v931, 0
      %v980 = vsel %vm525, %v932, 0
      %v983 = vsel %vm525, %v933, 0
      %v986 = vsel %vm525, %v934, 0
      %v989 = vsel %vm525, %v935, 0
      %v992 = vsel %vm525, %v936, 0
      %v995 = vsel %vm525, %v937, 0
      %v998 = vsel %vm525, %v938, 0
      %v1001 = vsel %vm525, %v939, 0
      %v1004 = vsel %vm525, %v940, 0
      %v1007 = vsel %vm525, %v941, 0
      %v1010 = vsel %vm525, %v942, 0
      %v1013 = vsel %vm525, %v943, 0
      %v1016 = vsel %vm525, %v944, 0
      %v1019 = vsel %vm525, %v945, 0
      %v1022 = vsel %vm525, %v946, 0
      %v1025 = vsel %vm598, %v951, 0
      %1027 = vmatprep.subr.bf16.mxu0 0
      %1028 = vmatpush1.bf16.msra.mxu0 %v1025
      %1029 = vmatprep.subr.bf16.mxu0 0
      %1030 = vmatpush1.bf16.msra.mxu0 0
      %1031 = vmatprep.subr.bf16.mxu0 0
      %1032 = vmatpush1.bf16.msra.mxu0 0
      %1033 = vmatprep.subr.bf16.mxu0 0
      %1034 = vmatpush1.bf16.msra.mxu0 0
      %1035 = vmatprep.subr.bf16.mxu0 0
      %1036 = vmatpush1.bf16.msra.mxu0 0
      %1037 = vmatprep.subr.bf16.mxu0 0
      %1038 = vmatpush1.bf16.msra.mxu0 0
      %1039 = vmatprep.subr.bf16.mxu0 0
      %1040 = vmatpush1.bf16.msra.mxu0 0
      %1041 = vmatprep.subr.bf16.mxu0 0
      %1042 = vmatpush1.bf16.msra.mxu0 0
      %1043 = vmatprep.subr.bf16.mxu0 0
      %1044 = vmatpush1.bf16.msra.mxu0 0
      %1045 = vmatprep.subr.bf16.mxu0 0
      %1046 = vmatpush1.bf16.msra.mxu0 0
      %1047 = vmatprep.subr.bf16.mxu0 0
      %1048 = vmatpush1.bf16.msra.mxu0 0
      %1049 = vmatprep.subr.bf16.mxu0 0
      %1050 = vmatpush1.bf16.msra.mxu0 0
      %1051 = vmatprep.subr.bf16.mxu0 0
      %1052 = vmatpush1.bf16.msra.mxu0 0
      %1053 = vmatprep.subr.bf16.mxu0 0
      %1054 = vmatpush1.bf16.msra.mxu0 0
      %1055 = vmatprep.subr.bf16.mxu0 0
      %1056 = vmatpush1.bf16.msra.mxu0 0
      %1057 = vmatprep.subr.bf16.mxu0 0
      %1058 = vmatpush1.bf16.msra.mxu0 0
      %1059 = vmatprep.mubr.bf16.mxu0 0
      %1060 = vmatmul.mubr.bf16.gmra.mrb[0].mxu0 %v953
      %v1061 = vpop.f32.mrb[0].mxu0
      %v1062 = vadd.f32 %v637, %v1061
      %v1063 = vpop.f32.mrb[0].mxu0
      %v1064 = vpop.f32.mrb[0].mxu0
      %v1065 = vadd.f32 %v640, %v1064
      %v1066 = vpop.f32.mrb[0].mxu0
      %1067 = vmatprep.mubr.bf16.mxu0 0
      %1068 = vmatmul.mubr.bf16.gmra.mrb[0].mxu0 %v956
      %v1069 = vpop.f32.mrb[0].mxu0
      %v1070 = vadd.f32 %v645, %v1069
      %v1071 = vpop.f32.mrb[0].mxu0
      %v1072 = vpop.f32.mrb[0].mxu0
      %v1073 = vadd.f32 %v648, %v1072
      %v1074 = vpop.f32.mrb[0].mxu0
      %1075 = vmatprep.mubr.bf16.mxu0 0
      %1076 = vmatmul.mubr.bf16.gmra.mrb[0].mxu0 %v959
      %v1077 = vpop.f32.mrb[0].mxu0
      %v1078 = vadd.f32 %v653, %v1077
      %v1079 = vpop.f32.mrb[0].mxu0
      %v1080 = vpop.f32.mrb[0].mxu0
      %v1081 = vadd.f32 %v656, %v1080
      %v1082 = vpop.f32.mrb[0].mxu0
      %1083 = vmatprep.mubr.bf16.mxu0 0
      %1084 = vmatmul.mubr.bf16.gmra.mrb[0].mxu0 %v962
      %v1085 = vpop.f32.mrb[0].mxu0
      %v1086 = vadd.f32 %v661, %v1085
      %v1087 = vpop.f32.mrb[0].mxu0
      %v1088 = vpop.f32.mrb[0].mxu0
      %v1089 = vadd.f32 %v664, %v1088
      %v1090 = vpop.f32.mrb[0].mxu0
      %1091 = vmatprep.mubr.bf16.mxu0 0
      %1092 = vmatmul.mubr.bf16.gmra.mrb[0].mxu0 %v965
      %v1093 = vpop.f32.mrb[0].mxu0
      %v1094 = vadd.f32 %v669, %v1093
      %v1095 = vpop.f32.mrb[0].mxu0
      %v1096 = vpop.f32.mrb[0].mxu0
      %v1097 = vadd.f32 %v672, %v1096
      %v1098 = vpop.f32.mrb[0].mxu0
      %1099 = vmatprep.mubr.bf16.mxu0 0
      %1100 = vmatmul.mubr.bf16.gmra.mrb[0].mxu0 %v968
      %v1101 = vpop.f32.mrb[0].mxu0
      %v1102 = vadd.f32 %v677, %v1101
      %v1103 = vpop.f32.mrb[0].mxu0
      %v1104 = vpop.f32.mrb[0].mxu0
      %v1105 = vadd.f32 %v680, %v1104
      %v1106 = vpop.f32.mrb[0].mxu0
      %1107 = vmatprep.mubr.bf16.mxu0 0
      %1108 = vmatmul.mubr.bf16.gmra.mrb[0].mxu0 %v971
      %v1109 = vpop.f32.mrb[0].mxu0
      %v1110 = vadd.f32 %v685, %v1109
      %v1111 = vpop.f32.mrb[0].mxu0
      %v1112 = vpop.f32.mrb[0].mxu0
      %v1113 = vadd.f32 %v688, %v1112
      %v1114 = vpop.f32.mrb[0].mxu0
      %1115 = vmatprep.mubr.bf16.mxu0 0
      %1116 = vmatmul.mubr.bf16.gmra.mrb[0].mxu0 %v974
      %v1117 = vpop.f32.mrb[0].mxu0
      %v1118 = vadd.f32 %v693, %v1117
      %v1119 = vpop.f32.mrb[0].mxu0
      %v1120 = vpop.f32.mrb[0].mxu0
      %v1121 = vadd.f32 %v696, %v1120
      %v1122 = vpop.f32.mrb[0].mxu0
      %1123 = vmatprep.mubr.bf16.mxu0 0
      %1124 = vmatmul.mubr.bf16.gmra.mrb[0].mxu0 %v977
      %v1125 = vpop.f32.mrb[0].mxu0
      %v1126 = vadd.f32 %v701, %v1125
      %v1127 = vpop.f32.mrb[0].mxu0
      %v1128 = vpop.f32.mrb[0].mxu0
      %v1129 = vadd.f32 %v704, %v1128
      %v1130 = vpop.f32.mrb[0].mxu0
      %1131 = vmatprep.mubr.bf16.mxu0 0
      %1132 = vmatmul.mubr.bf16.gmra.mrb[0].mxu0 %v980
      %v1133 = vpop.f32.mrb[0].mxu0
      %v1134 = vadd.f32 %v709, %v1133
      %v1135 = vpop.f32.mrb[0].mxu0
      %v1136 = vpop.f32.mrb[0].mxu0
      %v1137 = vadd.f32 %v712, %v1136
      %v1138 = vpop.f32.mrb[0].mxu0
      %1139 = vmatprep.mubr.bf16.mxu0 0
      %1140 = vmatmul.mubr.bf16.gmra.mrb[0].mxu0 %v983
      %v1141 = vpop.f32.mrb[0].mxu0
      %v1142 = vadd.f32 %v717, %v1141
      %v1143 = vpop.f32.mrb[0].mxu0
      %v1144 = vpop.f32.mrb[0].mxu0
      %v1145 = vadd.f32 %v720, %v1144
      %v1146 = vpop.f32.mrb[0].mxu0
      %1147 = vmatprep.mubr.bf16.mxu0 0
      %1148 = vmatmul.mubr.bf16.gmra.mrb[0].mxu0 %v986
      %v1149 = vpop.f32.mrb[0].mxu0
      %v1150 = vadd.f32 %v725, %v1149
      %v1151 = vpop.f32.mrb[0].mxu0
      %v1152 = vpop.f32.mrb[0].mxu0
      %v1153 = vadd.f32 %v728, %v1152
      %v1154 = vpop.f32.mrb[0].mxu0
      %1155 = vmatprep.mubr.bf16.mxu0 0
      %1156 = vmatmul.mubr.bf16.gmra.mrb[0].mxu0 %v989
      %v1157 = vpop.f32.mrb[0].mxu0
      %v1158 = vadd.f32 %v733, %v1157
      %v1159 = vpop.f32.mrb[0].mxu0
      %v1160 = vpop.f32.mrb[0].mxu0
      %v1161 = vadd.f32 %v736, %v1160
      %v1162 = vpop.f32.mrb[0].mxu0
      %1163 = vmatprep.mubr.bf16.mxu0 0
      %1164 = vmatmul.mubr.bf16.gmra.mrb[0].mxu0 %v992
      %v1165 = vpop.f32.mrb[0].mxu0
      %v1166 = vadd.f32 %v741, %v1165
      %v1167 = vpop.f32.mrb[0].mxu0
      %v1168 = vpop.f32.mrb[0].mxu0
      %v1169 = vadd.f32 %v744, %v1168
      %v1170 = vpop.f32.mrb[0].mxu0
      %1171 = vmatprep.mubr.bf16.mxu0 0
      %1172 = vmatmul.mubr.bf16.gmra.mrb[0].mxu0 %v995
      %v1173 = vpop.f32.mrb[0].mxu0
      %v1174 = vadd.f32 %v749, %v1173
      %v1175 = vpop.f32.mrb[0].mxu0
      %v1176 = vpop.f32.mrb[0].mxu0
      %v1177 = vadd.f32 %v752, %v1176
      %v1178 = vpop.f32.mrb[0].mxu0
      %1179 = vmatprep.mubr.bf16.mxu0 0
      %1180 = vmatmul.mubr.bf16.gmra.mrb[0].mxu0 %v998
      %v1181 = vpop.f32.mrb[0].mxu0
      %v1182 = vadd.f32 %v757, %v1181
      %v1183 = vpop.f32.mrb[0].mxu0
      %v1184 = vpop.f32.mrb[0].mxu0
      %v1185 = vadd.f32 %v760, %v1184
      %v1186 = vpop.f32.mrb[0].mxu0
      %1187 = vmatprep.mubr.bf16.mxu0 0
      %1188 = vmatmul.mubr.bf16.gmra.mrb[0].mxu0 %v1001
      %v1189 = vpop.f32.mrb[0].mxu0
      %v1190 = vadd.f32 %v765, %v1189
      %v1191 = vpop.f32.mrb[0].mxu0
      %v1192 = vpop.f32.mrb[0].mxu0
      %v1193 = vadd.f32 %v768, %v1192
      %v1194 = vpop.f32.mrb[0].mxu0
      %1195 = vmatprep.mubr.bf16.mxu0 0
      %1196 = vmatmul.mubr.bf16.gmra.mrb[0].mxu0 %v1004
      %v1197 = vpop.f32.mrb[0].mxu0
      %v1198 = vadd.f32 %v773, %v1197
      %v1199 = vpop.f32.mrb[0].mxu0
      %v1200 = vpop.f32.mrb[0].mxu0
      %v1201 = vadd.f32 %v776, %v1200
      %v1202 = vpop.f32.mrb[0].mxu0
      %1203 = vmatprep.mubr.bf16.mxu0 0
      %1204 = vmatmul.mubr.bf16.gmra.mrb[0].mxu0 %v1007
      %v1205 = vpop.f32.mrb[0].mxu0
      %v1206 = vadd.f32 %v781, %v1205
      %v1207 = vpop.f32.mrb[0].mxu0
      %v1208 = vpop.f32.mrb[0].mxu0
      %v1209 = vadd.f32 %v784, %v1208
      %v1210 = vpop.f32.mrb[0].mxu0
      %1211 = vmatprep.mubr.bf16.mxu0 0
      %1212 = vmatmul.mubr.bf16.gmra.mrb[0].mxu0 %v1010
      %v1213 = vpop.f32.mrb[0].mxu0
      %v1214 = vadd.f32 %v789, %v1213
      %v1215 = vpop.f32.mrb[0].mxu0
      %v1216 = vpop.f32.mrb[0].mxu0
      %v1217 = vadd.f32 %v792, %v1216
      %v1218 = vpop.f32.mrb[0].mxu0
      %1219 = vmatprep.mubr.bf16.mxu0 0
      %1220 = vmatmul.mubr.bf16.gmra.mrb[0].mxu0 %v1013
      %v1221 = vpop.f32.mrb[0].mxu0
      %v1222 = vadd.f32 %v797, %v1221
      %v1223 = vpop.f32.mrb[0].mxu0
      %v1224 = vpop.f32.mrb[0].mxu0
      %v1225 = vadd.f32 %v800, %v1224
      %v1226 = vpop.f32.mrb[0].mxu0
      %1227 = vmatprep.mubr.bf16.mxu0 0
      %1228 = vmatmul.mubr.bf16.gmra.mrb[0].mxu0 %v1016
      %v1229 = vpop.f32.mrb[0].mxu0
      %v1230 = vadd.f32 %v805, %v1229
      %v1231 = vpop.f32.mrb[0].mxu0
      %v1232 = vpop.f32.mrb[0].mxu0
      %v1233 = vadd.f32 %v808, %v1232
      %v1234 = vpop.f32.mrb[0].mxu0
      %1235 = vmatprep.mubr.bf16.mxu0 0
      %1236 = vmatmul.mubr.bf16.gmra.mrb[0].mxu0 %v1019
      %v1237 = vpop.f32.mrb[0].mxu0
      %v1238 = vadd.f32 %v813, %v1237
      %v1239 = vpop.f32.mrb[0].mxu0
      %v1240 = vpop.f32.mrb[0].mxu0
      %v1241 = vadd.f32 %v816, %v1240
      %v1242 = vpop.f32.mrb[0].mxu0
      %1243 = vmatprep.mubr.bf16.mxu0 0
      %1244 = vmatmul.mubr.bf16.gmra.mrb[0].mxu0 %v1022
      %v1245 = vpop.f32.mrb[0].mxu0
      %v1246 = vadd.f32 %v821, %v1245
      %v1247 = vpop.f32.mrb[0].mxu0
      %v1248 = vpop.f32.mrb[0].mxu0
      %v1249 = vadd.f32 %v824, %v1248
      %v1250 = vpop.f32.mrb[0].mxu0
      %1251 = vdwg.mxu0
      %v1252 = vld [vmem:[%s183 + $0xc] sm:$0xf]
      %v1253 = vld [vmem:[%s183 + $0x10] sm:$0xf]
      %v1254 = vld [vmem:[%s183 + $0x14] sm:$0xf]
      %v1255 = vld [vmem:[%s183 + $0x18] sm:$0xf]
      %v1256 = vld [vmem:[%s183 + $0x1c] sm:$0xf]
      %v1257 = vld [vmem:[%s183 + $0x20] sm:$0xf]
      %v1258 = vld [vmem:[%s183 + $0x24] sm:$0xf]
      %v1259 = vld [vmem:[%s183 + $0x28] sm:$0xf]
      %v1260 = vld [vmem:[%s183 + $0x2c] sm:$0xf]
      %v1261 = vld [vmem:[%s183 + $0x30] sm:$0xf]
      %v1262 = vld [vmem:[%s183 + $0x34] sm:$0xf]
      %v1263 = vld [vmem:[%s183 + $0x38] sm:$0xf]
      %v1264 = vld [vmem:[%s183 + $0x3c] sm:$0xf]
      %v1265 = vld [vmem:[%s183 + $0x40] sm:$0xf]
      %v1266 = vld [vmem:[%s183 + $0x44] sm:$0xf]
      %v1267 = vld [vmem:[%s183 + $0x48] sm:$0xf]
      %v1268 = vld [vmem:[%s183 + $0x4c] sm:$0xf]
      %v1269 = vld [vmem:[%s183 + $0x50] sm:$0xf]
      %v1270 = vld [vmem:[%s183 + $0x54] sm:$0xf]
      %v1271 = vld [vmem:[%s183 + $0x58] sm:$0xf]
      %v1272 = vld [vmem:[%s183 + $0x5c] sm:$0xf]
      %v1273 = vld [vmem:[%s183 + $0x60] sm:$0xf]
      %v1274 = vld [vmem:[%s183 + $0x64] sm:$0xf]
      %v1275 = vld [vmem:[%s183 + $0x68] sm:$0xf]
      %v1276 = vld [vmem:[%s183 + $0x6c] sm:$0xf]
      %v1277 = vld [vmem:[%s183 + $0x70] sm:$0xf]
      %v1278 = vld [vmem:[%s183 + $0x74] sm:$0xf]
      %v1279 = vld [vmem:[%s183 + $0x78] sm:$0xf]
      %v1280 = vld [vmem:[%s183 + $0x7c] sm:$0xf]
      %v1281 = vld [vmem:[%s183 + $0x80] sm:$0xf]
      %v1282 = vld [vmem:[%s183 + $0x84] sm:$0xf]
      %v1283 = vld [vmem:[%s183 + $0x88] sm:$0xf]
      %v1284 = vld [vmem:[%s183 + $0x8c] sm:$0xf]
      %v1285 = vld [vmem:[%s183 + $0x90] sm:$0xf]
      %v1286 = vld [vmem:[%s183 + $0x94] sm:$0xf]
      %v1287 = vld [vmem:[%s183 + $0x98] sm:$0xf]
      %v1288 = vld [vmem:[%s183 + $0x9c] sm:$0xf]
      %v1289 = vld [vmem:[%s183 + $0xa0] sm:$0xf]
      %v1290 = vld [vmem:[%s183 + $0xa4] sm:$0xf]
      %v1291 = vld [vmem:[%s183 + $0xa8] sm:$0xf]
      %v1292 = vld [vmem:[%s183 + $0xac] sm:$0xf]
      %v1293 = vld [vmem:[%s183 + $0xb0] sm:$0xf]
      %v1294 = vld [vmem:[%s183 + $0xb4] sm:$0xf]
      %v1295 = vld [vmem:[%s183 + $0xb8] sm:$0xf]
      %v1296 = vld [vmem:[%s183 + $0xbc] sm:$0xf]
      %v1297 = vld [vmem:[%s183 + $0xc0] sm:$0xf]
      %v1298 = vld [vmem:[%s183 + $0xc4] sm:$0xf]
      %v1299 = vld [vmem:[%s183 + $0xc8] sm:$0xf]
      %v1300 = vld [vmem:[%s183 + $0xcc] sm:$0xf]
      %v1301 = vunpack.c.l.bf16 %v1252
      %v1302 = vunpack.c.l.bf16 %v1253
      %v1303 = vunpack.c.l.bf16 %v1254
      %v1304 = vunpack.c.l.bf16 %v1255
      %v1305 = vunpack.c.l.bf16 %v1256
      %v1306 = vunpack.c.l.bf16 %v1257
      %v1307 = vunpack.c.l.bf16 %v1258
      %v1308 = vunpack.c.l.bf16 %v1259
      %v1309 = vunpack.c.l.bf16 %v1260
      %v1310 = vunpack.c.l.bf16 %v1261
      %v1311 = vunpack.c.l.bf16 %v1262
      %v1312 = vunpack.c.l.bf16 %v1263
      %v1313 = vunpack.c.l.bf16 %v1264
      %v1314 = vunpack.c.l.bf16 %v1265
      %v1315 = vunpack.c.l.bf16 %v1266
      %v1316 = vunpack.c.l.bf16 %v1267
      %v1317 = vunpack.c.l.bf16 %v1268
      %v1318 = vunpack.c.l.bf16 %v1269
      %v1319 = vunpack.c.l.bf16 %v1270
      %v1320 = vunpack.c.l.bf16 %v1271
      %v1321 = vunpack.c.l.bf16 %v1272
      %v1322 = vunpack.c.l.bf16 %v1273
      %v1323 = vunpack.c.l.bf16 %v1274
      %v1324 = vunpack.c.l.bf16 %v1275
      %v1325 = vunpack.c.l.bf16 %v1276
      %v1326 = vunpack.c.l.bf16 %v1277
      %v1327 = vunpack.c.l.bf16 %v1278
      %v1328 = vunpack.c.l.bf16 %v1279
      %v1329 = vunpack.c.l.bf16 %v1280
      %v1330 = vunpack.c.l.bf16 %v1281
      %v1331 = vunpack.c.l.bf16 %v1282
      %v1332 = vunpack.c.l.bf16 %v1283
      %v1333 = vunpack.c.l.bf16 %v1284
      %v1334 = vunpack.c.l.bf16 %v1285
      %v1335 = vunpack.c.l.bf16 %v1286
      %v1336 = vunpack.c.l.bf16 %v1287
      %v1337 = vunpack.c.l.bf16 %v1288
      %v1338 = vunpack.c.l.bf16 %v1289
      %v1339 = vunpack.c.l.bf16 %v1290
      %v1340 = vunpack.c.l.bf16 %v1291
      %v1341 = vunpack.c.l.bf16 %v1292
      %v1342 = vunpack.c.l.bf16 %v1293
      %v1343 = vunpack.c.l.bf16 %v1294
      %v1344 = vunpack.c.l.bf16 %v1295
      %v1345 = vunpack.c.l.bf16 %v1296
      %v1346 = vunpack.c.l.bf16 %v1297
      %v1347 = vunpack.c.l.bf16 %v1298
      %v1348 = vunpack.c.l.bf16 %v1299
      %v1349 = vunpack.c.l.bf16 %v1300
      %s1350 = scalar_lea.vmem %s1, 16
      %v1351 = vld [vmem:[%s1350] sm:$0xf]
      %v1352 = vld [vmem:[%s1350 + $0x4] sm:$0x3]
      %v1401 = vunpack.c.l.b16 %v1252
      %v1402 = vunpack.c.l.b16 %v1253
      %v1403 = vunpack.c.l.b16 %v1254
      %v1404 = vunpack.c.l.b16 %v1255
      %v1405 = vunpack.c.l.b16 %v1256
      %v1406 = vunpack.c.l.b16 %v1257
      %v1407 = vunpack.c.l.b16 %v1258
      %v1408 = vunpack.c.l.b16 %v1259
      %v1409 = vunpack.c.l.b16 %v1260
      %v1410 = vunpack.c.l.b16 %v1261
      %v1411 = vunpack.c.l.b16 %v1262
      %v1412 = vunpack.c.l.b16 %v1263
      %v1413 = vunpack.c.l.b16 %v1264
      %v1414 = vunpack.c.l.b16 %v1265
      %v1415 = vunpack.c.l.b16 %v1266
      %v1416 = vunpack.c.l.b16 %v1267
      %v1417 = vunpack.c.l.b16 %v1268
      %v1418 = vunpack.c.l.b16 %v1269
      %v1419 = vunpack.c.l.b16 %v1270
      %v1420 = vunpack.c.l.b16 %v1271
      %v1421 = vunpack.c.l.b16 %v1272
      %v1422 = vunpack.c.l.b16 %v1273
      %v1423 = vunpack.c.l.b16 %v1274
      %v1424 = vunpack.c.l.b16 %v1275
      %v1425 = vunpack.c.l.b16 %v1276
      %v1426 = vunpack.c.l.b16 %v1277
      %v1427 = vunpack.c.l.b16 %v1278
      %v1428 = vunpack.c.l.b16 %v1279
      %v1429 = vunpack.c.l.b16 %v1280
      %v1430 = vunpack.c.l.b16 %v1281
      %v1431 = vunpack.c.l.b16 %v1282
      %v1432 = vunpack.c.l.b16 %v1283
      %v1433 = vunpack.c.l.b16 %v1284
      %v1434 = vunpack.c.l.b16 %v1285
      %v1435 = vunpack.c.l.b16 %v1286
      %v1436 = vunpack.c.l.b16 %v1287
      %v1437 = vunpack.c.l.b16 %v1288
      %v1438 = vunpack.c.l.b16 %v1289
      %v1439 = vunpack.c.l.b16 %v1290
      %v1440 = vunpack.c.l.b16 %v1291
      %v1441 = vunpack.c.l.b16 %v1292
      %v1442 = vunpack.c.l.b16 %v1293
      %v1443 = vunpack.c.l.b16 %v1294
      %v1444 = vunpack.c.l.b16 %v1295
      %v1445 = vunpack.c.l.b16 %v1296
      %v1446 = vunpack.c.l.b16 %v1297
      %v1447 = vunpack.c.l.b16 %v1298
      %v1448 = vunpack.c.l.b16 %v1299
      %v1449 = vpack.c.b16 %v1402, %v1401
      %v1450 = vpack.c.b16 %v1404, %v1403
      %v1451 = vpack.c.b16 %v1406, %v1405
      %v1452 = vpack.c.b16 %v1408, %v1407
      %v1453 = vpack.c.b16 %v1410, %v1409
      %v1454 = vpack.c.b16 %v1412, %v1411
      %v1455 = vpack.c.b16 %v1414, %v1413
      %v1456 = vpack.c.b16 %v1416, %v1415
      %v1457 = vpack.c.b16 %v1418, %v1417
      %v1458 = vpack.c.b16 %v1420, %v1419
      %v1459 = vpack.c.b16 %v1422, %v1421
      %v1460 = vpack.c.b16 %v1424, %v1423
      %v1461 = vpack.c.b16 %v1426, %v1425
      %v1462 = vpack.c.b16 %v1428, %v1427
      %v1463 = vpack.c.b16 %v1430, %v1429
      %v1464 = vpack.c.b16 %v1432, %v1431
      %v1465 = vpack.c.b16 %v1434, %v1433
      %v1466 = vpack.c.b16 %v1436, %v1435
      %v1467 = vpack.c.b16 %v1438, %v1437
      %v1468 = vpack.c.b16 %v1440, %v1439
      %v1469 = vpack.c.b16 %v1442, %v1441
      %v1470 = vpack.c.b16 %v1444, %v1443
      %v1471 = vpack.c.b16 %v1446, %v1445
      %v1472 = vpack.c.b16 %v1448, %v1447
      %v1475 = vunpack.c.l.b16 %v1351
      %v1476 = vunpack.c.l.b16 %v1352
      %v1477 = vpack.c.b16 %v1476, %v1475
      %v1479 = vsel %vm525, %v1449, 0
      %v1482 = vsel %vm525, %v1450, 0
      %v1485 = vsel %vm525, %v1451, 0
      %v1488 = vsel %vm525, %v1452, 0
      %v1491 = vsel %vm525, %v1453, 0
      %v1494 = vsel %vm525, %v1454, 0
      %v1497 = vsel %vm525, %v1455, 0
      %v1500 = vsel %vm525, %v1456, 0
      %v1503 = vsel %vm525, %v1457, 0
      %v1506 = vsel %vm525, %v1458, 0
      %v1509 = vsel %vm525, %v1459, 0
      %v1512 = vsel %vm525, %v1460, 0
      %v1515 = vsel %vm525, %v1461, 0
      %v1518 = vsel %vm525, %v1462, 0
      %v1521 = vsel %vm525, %v1463, 0
      %v1524 = vsel %vm525, %v1464, 0
      %v1527 = vsel %vm525, %v1465, 0
      %v1530 = vsel %vm525, %v1466, 0
      %v1533 = vsel %vm525, %v1467, 0
      %v1536 = vsel %vm525, %v1468, 0
      %v1539 = vsel %vm525, %v1469, 0
      %v1542 = vsel %vm525, %v1470, 0
      %v1545 = vsel %vm525, %v1471, 0
      %v1548 = vsel %vm525, %v1472, 0
      %v1551 = vsel %vm598, %v1477, 0
      %1553 = vmatprep.subr.bf16.mxu0 0
      %1554 = vmatpush1.bf16.msra.mxu0 %v1551
      %1555 = vmatprep.subr.bf16.mxu0 0
      %1556 = vmatpush1.bf16.msra.mxu0 0
      %1557 = vmatprep.subr.bf16.mxu0 0
      %1558 = vmatpush1.bf16.msra.mxu0 0
      %1559 = vmatprep.subr.bf16.mxu0 0
      %1560 = vmatpush1.bf16.msra.mxu0 0
      %1561 = vmatprep.subr.bf16.mxu0 0
      %1562 = vmatpush1.bf16.msra.mxu0 0
      %1563 = vmatprep.subr.bf16.mxu0 0
      %1564 = vmatpush1.bf16.msra.mxu0 0
      %1565 = vmatprep.subr.bf16.mxu0 0
      %1566 = vmatpush1.bf16.msra.mxu0 0
      %1567 = vmatprep.subr.bf16.mxu0 0
      %1568 = vmatpush1.bf16.msra.mxu0 0
      %1569 = vmatprep.subr.bf16.mxu0 0
      %1570 = vmatpush1.bf16.msra.mxu0 0
      %1571 = vmatprep.subr.bf16.mxu0 0
      %1572 = vmatpush1.bf16.msra.mxu0 0
      %1573 = vmatprep.subr.bf16.mxu0 0
      %1574 = vmatpush1.bf16.msra.mxu0 0
      %1575 = vmatprep.subr.bf16.mxu0 0
      %1576 = vmatpush1.bf16.msra.mxu0 0
      %1577 = vmatprep.subr.bf16.mxu0 0
      %1578 = vmatpush1.bf16.msra.mxu0 0
      %1579 = vmatprep.subr.bf16.mxu0 0
      %1580 = vmatpush1.bf16.msra.mxu0 0
      %1581 = vmatprep.subr.bf16.mxu0 0
      %1582 = vmatpush1.bf16.msra.mxu0 0
      %1583 = vmatprep.subr.bf16.mxu0 0
      %1584 = vmatpush1.bf16.msra.mxu0 0
      %1585 = vmatprep.mubr.bf16.mxu0 0
      %1586 = vmatmul.mubr.bf16.gmra.mrb[0].mxu0 %v1479
      %v1587 = vpop.f32.mrb[0].mxu0
      %v1588 = vadd.f32 0.0, %v1587
      %v1589 = vpop.f32.mrb[0].mxu0
      %v1590 = vpop.f32.mrb[0].mxu0
      %v1591 = vadd.f32 0.0, %v1590
      %v1592 = vpop.f32.mrb[0].mxu0
      %1593 = vmatprep.mubr.bf16.mxu0 0
      %1594 = vmatmul.mubr.bf16.gmra.mrb[0].mxu0 %v1482
      %v1595 = vpop.f32.mrb[0].mxu0
      %v1596 = vadd.f32 0.0, %v1595
      %v1597 = vpop.f32.mrb[0].mxu0
      %v1598 = vpop.f32.mrb[0].mxu0
      %v1599 = vadd.f32 0.0, %v1598
      %v1600 = vpop.f32.mrb[0].mxu0
      %1601 = vmatprep.mubr.bf16.mxu0 0
      %1602 = vmatmul.mubr.bf16.gmra.mrb[0].mxu0 %v1485
      %v1603 = vpop.f32.mrb[0].mxu0
      %v1604 = vadd.f32 0.0, %v1603
      %v1605 = vpop.f32.mrb[0].mxu0
      %v1606 = vpop.f32.mrb[0].mxu0
      %v1607 = vadd.f32 0.0, %v1606
      %v1608 = vpop.f32.mrb[0].mxu0
      %1609 = vmatprep.mubr.bf16.mxu0 0
      %1610 = vmatmul.mubr.bf16.gmra.mrb[0].mxu0 %v1488
      %v1611 = vpop.f32.mrb[0].mxu0
      %v1612 = vadd.f32 0.0, %v1611
      %v1613 = vpop.f32.mrb[0].mxu0
      %v1614 = vpop.f32.mrb[0].mxu0
      %v1615 = vadd.f32 0.0, %v1614
      %v1616 = vpop.f32.mrb[0].mxu0
      %1617 = vmatprep.mubr.bf16.mxu0 0
      %1618 = vmatmul.mubr.bf16.gmra.mrb[0].mxu0 %v1491
      %v1619 = vpop.f32.mrb[0].mxu0
      %v1620 = vadd.f32 0.0, %v1619
      %v1621 = vpop.f32.mrb[0].mxu0
      %v1622 = vpop.f32.mrb[0].mxu0
      %v1623 = vadd.f32 0.0, %v1622
      %v1624 = vpop.f32.mrb[0].mxu0
      %1625 = vmatprep.mubr.bf16.mxu0 0
      %1626 = vmatmul.mubr.bf16.gmra.mrb[0].mxu0 %v1494
      %v1627 = vpop.f32.mrb[0].mxu0
      %v1628 = vadd.f32 0.0, %v1627
      %v1629 = vpop.f32.mrb[0].mxu0
      %v1630 = vpop.f32.mrb[0].mxu0
      %v1631 = vadd.f32 0.0, %v1630
      %v1632 = vpop.f32.mrb[0].mxu0
      %1633 = vmatprep.mubr.bf16.mxu0 0
      %1634 = vmatmul.mubr.bf16.gmra.mrb[0].mxu0 %v1497
      %v1635 = vpop.f32.mrb[0].mxu0
      %v1636 = vadd.f32 0.0, %v1635
      %v1637 = vpop.f32.mrb[0].mxu0
      %v1638 = vpop.f32.mrb[0].mxu0
      %v1639 = vadd.f32 0.0, %v1638
      %v1640 = vpop.f32.mrb[0].mxu0
      %1641 = vmatprep.mubr.bf16.mxu0 0
      %1642 = vmatmul.mubr.bf16.gmra.mrb[0].mxu0 %v1500
      %v1643 = vpop.f32.mrb[0].mxu0
      %v1644 = vadd.f32 0.0, %v1643
      %v1645 = vpop.f32.mrb[0].mxu0
      %v1646 = vpop.f32.mrb[0].mxu0
      %v1647 = vadd.f32 0.0, %v1646
      %v1648 = vpop.f32.mrb[0].mxu0
      %1649 = vmatprep.mubr.bf16.mxu0 0
      %1650 = vmatmul.mubr.bf16.gmra.mrb[0].mxu0 %v1503
      %v1651 = vpop.f32.mrb[0].mxu0
      %v1652 = vadd.f32 0.0, %v1651
      %v1653 = vpop.f32.mrb[0].mxu0
      %v1654 = vpop.f32.mrb[0].mxu0
      %v1655 = vadd.f32 0.0, %v1654
      %v1656 = vpop.f32.mrb[0].mxu0
      %1657 = vmatprep.mubr.bf16.mxu0 0
      %1658 = vmatmul.mubr.bf16.gmra.mrb[0].mxu0 %v1506
      %v1659 = vpop.f32.mrb[0].mxu0
      %v1660 = vadd.f32 0.0, %v1659
      %v1661 = vpop.f32.mrb[0].mxu0
      %v1662 = vpop.f32.mrb[0].mxu0
      %v1663 = vadd.f32 0.0, %v1662
      %v1664 = vpop.f32.mrb[0].mxu0
      %1665 = vmatprep.mubr.bf16.mxu0 0
      %1666 = vmatmul.mubr.bf16.gmra.mrb[0].mxu0 %v1509
      %v1667 = vpop.f32.mrb[0].mxu0
      %v1668 = vadd.f32 0.0, %v1667
      %v1669 = vpop.f32.mrb[0].mxu0
      %v1670 = vpop.f32.mrb[0].mxu0
      %v1671 = vadd.f32 0.0, %v1670
      %v1672 = vpop.f32.mrb[0].mxu0
      %1673 = vmatprep.mubr.bf16.mxu0 0
      %1674 = vmatmul.mubr.bf16.gmra.mrb[0].mxu0 %v1512
      %v1675 = vpop.f32.mrb[0].mxu0
      %v1676 = vadd.f32 0.0, %v1675
      %v1677 = vpop.f32.mrb[0].mxu0
      %v1678 = vpop.f32.mrb[0].mxu0
      %v1679 = vadd.f32 0.0, %v1678
      %v1680 = vpop.f32.mrb[0].mxu0
      %1681 = vmatprep.mubr.bf16.mxu0 0
      %1682 = vmatmul.mubr.bf16.gmra.mrb[0].mxu0 %v1515
      %v1683 = vpop.f32.mrb[0].mxu0
      %v1684 = vadd.f32 0.0, %v1683
      %v1685 = vpop.f32.mrb[0].mxu0
      %v1686 = vpop.f32.mrb[0].mxu0
      %v1687 = vadd.f32 0.0, %v1686
      %v1688 = vpop.f32.mrb[0].mxu0
      %1689 = vmatprep.mubr.bf16.mxu0 0
      %1690 = vmatmul.mubr.bf16.gmra.mrb[0].mxu0 %v1518
      %v1691 = vpop.f32.mrb[0].mxu0
      %v1692 = vadd.f32 0.0, %v1691
      %v1693 = vpop.f32.mrb[0].mxu0
      %v1694 = vpop.f32.mrb[0].mxu0
      %v1695 = vadd.f32 0.0, %v1694
      %v1696 = vpop.f32.mrb[0].mxu0
      %1697 = vmatprep.mubr.bf16.mxu0 0
      %1698 = vmatmul.mubr.bf16.gmra.mrb[0].mxu0 %v1521
      %v1699 = vpop.f32.mrb[0].mxu0
      %v1700 = vadd.f32 0.0, %v1699
      %v1701 = vpop.f32.mrb[0].mxu0
      %v1702 = vpop.f32.mrb[0].mxu0
      %v1703 = vadd.f32 0.0, %v1702
      %v1704 = vpop.f32.mrb[0].mxu0
      %1705 = vmatprep.mubr.bf16.mxu0 0
      %1706 = vmatmul.mubr.bf16.gmra.mrb[0].mxu0 %v1524
      %v1707 = vpop.f32.mrb[0].mxu0
      %v1708 = vadd.f32 0.0, %v1707
      %v1709 = vpop.f32.mrb[0].mxu0
      %v1710 = vpop.f32.mrb[0].mxu0
      %v1711 = vadd.f32 0.0, %v1710
      %v1712 = vpop.f32.mrb[0].mxu0
      %1713 = vmatprep.mubr.bf16.mxu0 0
      %1714 = vmatmul.mubr.bf16.gmra.mrb[0].mxu0 %v1527
      %v1715 = vpop.f32.mrb[0].mxu0
      %v1716 = vadd.f32 0.0, %v1715
      %v1717 = vpop.f32.mrb[0].mxu0
      %v1718 = vpop.f32.mrb[0].mxu0
      %v1719 = vadd.f32 0.0, %v1718
      %v1720 = vpop.f32.mrb[0].mxu0
      %1721 = vmatprep.mubr.bf16.mxu0 0
      %1722 = vmatmul.mubr.bf16.gmra.mrb[0].mxu0 %v1530
      %v1723 = vpop.f32.mrb[0].mxu0
      %v1724 = vadd.f32 0.0, %v1723
      %v1725 = vpop.f32.mrb[0].mxu0
      %v1726 = vpop.f32.mrb[0].mxu0
      %v1727 = vadd.f32 0.0, %v1726
      %v1728 = vpop.f32.mrb[0].mxu0
      %1729 = vmatprep.mubr.bf16.mxu0 0
      %1730 = vmatmul.mubr.bf16.gmra.mrb[0].mxu0 %v1533
      %v1731 = vpop.f32.mrb[0].mxu0
      %v1732 = vadd.f32 0.0, %v1731
      %v1733 = vpop.f32.mrb[0].mxu0
      %v1734 = vpop.f32.mrb[0].mxu0
      %v1735 = vadd.f32 0.0, %v1734
      %v1736 = vpop.f32.mrb[0].mxu0
      %1737 = vmatprep.mubr.bf16.mxu0 0
      %1738 = vmatmul.mubr.bf16.gmra.mrb[0].mxu0 %v1536
      %v1739 = vpop.f32.mrb[0].mxu0
      %v1740 = vadd.f32 0.0, %v1739
      %v1741 = vpop.f32.mrb[0].mxu0
      %v1742 = vpop.f32.mrb[0].mxu0
      %v1743 = vadd.f32 0.0, %v1742
      %v1744 = vpop.f32.mrb[0].mxu0
      %1745 = vmatprep.mubr.bf16.mxu0 0
      %1746 = vmatmul.mubr.bf16.gmra.mrb[0].mxu0 %v1539
      %v1747 = vpop.f32.mrb[0].mxu0
      %v1748 = vadd.f32 0.0, %v1747
      %v1749 = vpop.f32.mrb[0].mxu0
      %v1750 = vpop.f32.mrb[0].mxu0
      %v1751 = vadd.f32 0.0, %v1750
      %v1752 = vpop.f32.mrb[0].mxu0
      %1753 = vmatprep.mubr.bf16.mxu0 0
      %1754 = vmatmul.mubr.bf16.gmra.mrb[0].mxu0 %v1542
      %v1755 = vpop.f32.mrb[0].mxu0
      %v1756 = vadd.f32 0.0, %v1755
      %v1757 = vpop.f32.mrb[0].mxu0
      %v1758 = vpop.f32.mrb[0].mxu0
      %v1759 = vadd.f32 0.0, %v1758
      %v1760 = vpop.f32.mrb[0].mxu0
      %1761 = vmatprep.mubr.bf16.mxu0 0
      %1762 = vmatmul.mubr.bf16.gmra.mrb[0].mxu0 %v1545
      %v1763 = vpop.f32.mrb[0].mxu0
      %v1764 = vadd.f32 0.0, %v1763
      %v1765 = vpop.f32.mrb[0].mxu0
      %v1766 = vpop.f32.mrb[0].mxu0
      %v1767 = vadd.f32 0.0, %v1766
      %v1768 = vpop.f32.mrb[0].mxu0
      %1769 = vmatprep.mubr.bf16.mxu0 0
      %1770 = vmatmul.mubr.bf16.gmra.mrb[0].mxu0 %v1548
      %v1771 = vpop.f32.mrb[0].mxu0
      %v1772 = vadd.f32 0.0, %v1771
      %v1773 = vpop.f32.mrb[0].mxu0
      %v1774 = vpop.f32.mrb[0].mxu0
      %v1775 = vadd.f32 0.0, %v1774
      %v1776 = vpop.f32.mrb[0].mxu0
      %1777 = vdwg.mxu0
      %v1778 = vadd.f32 %v1062, %v1588
      %v1779 = vadd.f32 %v1065, %v1591
      %v1780 = vadd.f32 %v1070, %v1596
      %v1781 = vadd.f32 %v1073, %v1599
      %v1782 = vadd.f32 %v1078, %v1604
      %v1783 = vadd.f32 %v1081, %v1607
      %v1784 = vadd.f32 %v1086, %v1612
      %v1785 = vadd.f32 %v1089, %v1615
      %v1786 = vadd.f32 %v1094, %v1620
      %v1787 = vadd.f32 %v1097, %v1623
      %v1788 = vadd.f32 %v1102, %v1628
      %v1789 = vadd.f32 %v1105, %v1631
      %v1790 = vadd.f32 %v1110, %v1636
      %v1791 = vadd.f32 %v1113, %v1639
      %v1792 = vadd.f32 %v1118, %v1644
      %v1793 = vadd.f32 %v1121, %v1647
      %v1794 = vadd.f32 %v1126, %v1652
      %v1795 = vadd.f32 %v1129, %v1655
      %v1796 = vadd.f32 %v1134, %v1660
      %v1797 = vadd.f32 %v1137, %v1663
      %v1798 = vadd.f32 %v1142, %v1668
      %v1799 = vadd.f32 %v1145, %v1671
      %v1800 = vadd.f32 %v1150, %v1676
      %v1801 = vadd.f32 %v1153, %v1679
      %v1802 = vadd.f32 %v1158, %v1684
      %v1803 = vadd.f32 %v1161, %v1687
      %v1804 = vadd.f32 %v1166, %v1692
      %v1805 = vadd.f32 %v1169, %v1695
      %v1806 = vadd.f32 %v1174, %v1700
      %v1807 = vadd.f32 %v1177, %v1703
      %v1808 = vadd.f32 %v1182, %v1708
      %v1809 = vadd.f32 %v1185, %v1711
      %v1810 = vadd.f32 %v1190, %v1716
      %v1811 = vadd.f32 %v1193, %v1719
      %v1812 = vadd.f32 %v1198, %v1724
      %v1813 = vadd.f32 %v1201, %v1727
      %v1814 = vadd.f32 %v1206, %v1732
      %v1815 = vadd.f32 %v1209, %v1735
      %v1816 = vadd.f32 %v1214, %v1740
      %v1817 = vadd.f32 %v1217, %v1743
      %v1818 = vadd.f32 %v1222, %v1748
      %v1819 = vadd.f32 %v1225, %v1751
      %v1820 = vadd.f32 %v1230, %v1756
      %v1821 = vadd.f32 %v1233, %v1759
      %v1822 = vadd.f32 %v1238, %v1764
      %v1823 = vadd.f32 %v1241, %v1767
      %v1824 = vadd.f32 %v1246, %v1772
      %v1825 = vadd.f32 %v1249, %v1775
      %v1826 = vpack.c.bf16 %v1302, %v1301
      %v1827 = vpack.c.bf16 %v1304, %v1303
      %v1828 = vpack.c.bf16 %v1306, %v1305
      %v1829 = vpack.c.bf16 %v1308, %v1307
      %v1830 = vpack.c.bf16 %v1310, %v1309
      %v1831 = vpack.c.bf16 %v1312, %v1311
      %v1832 = vpack.c.bf16 %v1314, %v1313
      %v1833 = vpack.c.bf16 %v1316, %v1315
      %v1834 = vpack.c.bf16 %v1318, %v1317
      %v1835 = vpack.c.bf16 %v1320, %v1319
      %v1836 = vpack.c.bf16 %v1322, %v1321
      %v1837 = vpack.c.bf16 %v1324, %v1323
      %v1838 = vpack.c.bf16 %v1326, %v1325
      %v1839 = vpack.c.bf16 %v1328, %v1327
      %v1840 = vpack.c.bf16 %v1330, %v1329
      %v1841 = vpack.c.bf16 %v1332, %v1331
      %v1842 = vpack.c.bf16 %v1334, %v1333
      %v1843 = vpack.c.bf16 %v1336, %v1335
      %v1844 = vpack.c.bf16 %v1338, %v1337
      %v1845 = vpack.c.bf16 %v1340, %v1339
      %v1846 = vpack.c.bf16 %v1342, %v1341
      %v1847 = vpack.c.bf16 %v1344, %v1343
      %v1848 = vpack.c.bf16 %v1346, %v1345
      %v1849 = vpack.c.bf16 %v1348, %v1347
      %v1850 = vpack.c.bf16 %v1349, %v1349
      %s1851 = scalar_lea.vmem %s1, 24
      %v1852 = vld [vmem:[%s1851] sm:$0xf]
      %v1853 = vld [vmem:[%s1851 + $0x4] sm:$0x3]
      %v1855 = vshrl.u32 %v1826, 16
      %v1857 = vshll.u32 %v1826, 16
      %v1859 = vrot.slane %v1857, 1
      %v1860 = vor.u32 %v1855, %v1859
      %v1862 = vshll.u32 %v1827, 16
      %v1864 = vrot.slane %v1862, 1
      %v1865 = vsel %vm323, %v1860, %v1864
      %v1866 = vshrl.u32 %v1827, 16
      %v1868 = vor.u32 %v1866, %v1864
      %v1870 = vshll.u32 %v1828, 16
      %v1872 = vrot.slane %v1870, 1
      %v1873 = vsel %vm323, %v1868, %v1872
      %v1874 = vshrl.u32 %v1828, 16
      %v1876 = vor.u32 %v1874, %v1872
      %v1878 = vshll.u32 %v1829, 16
      %v1880 = vrot.slane %v1878, 1
      %v1881 = vsel %vm323, %v1876, %v1880
      %v1882 = vshrl.u32 %v1829, 16
      %v1884 = vor.u32 %v1882, %v1880
      %v1886 = vshll.u32 %v1830, 16
      %v1888 = vrot.slane %v1886, 1
      %v1889 = vsel %vm323, %v1884, %v1888
      %v1890 = vshrl.u32 %v1830, 16
      %v1892 = vor.u32 %v1890, %v1888
      %v1894 = vshll.u32 %v1831, 16
      %v1896 = vrot.slane %v1894, 1
      %v1897 = vsel %vm323, %v1892, %v1896
      %v1898 = vshrl.u32 %v1831, 16
      %v1900 = vor.u32 %v1898, %v1896
      %v1902 = vshll.u32 %v1832, 16
      %v1904 = vrot.slane %v1902, 1
      %v1905 = vsel %vm323, %v1900, %v1904
      %v1906 = vshrl.u32 %v1832, 16
      %v1908 = vor.u32 %v1906, %v1904
      %v1910 = vshll.u32 %v1833, 16
      %v1912 = vrot.slane %v1910, 1
      %v1913 = vsel %vm323, %v1908, %v1912
      %v1914 = vshrl.u32 %v1833, 16
      %v1916 = vor.u32 %v1914, %v1912
      %v1918 = vshll.u32 %v1834, 16
      %v1920 = vrot.slane %v1918, 1
      %v1921 = vsel %vm323, %v1916, %v1920
      %v1922 = vshrl.u32 %v1834, 16
      %v1924 = vor.u32 %v1922, %v1920
      %v1926 = vshll.u32 %v1835, 16
      %v1928 = vrot.slane %v1926, 1
      %v1929 = vsel %vm323, %v1924, %v1928
      %v1930 = vshrl.u32 %v1835, 16
      %v1932 = vor.u32 %v1930, %v1928
      %v1934 = vshll.u32 %v1836, 16
      %v1936 = vrot.slane %v1934, 1
      %v1937 = vsel %vm323, %v1932, %v1936
      %v1938 = vshrl.u32 %v1836, 16
      %v1940 = vor.u32 %v1938, %v1936
      %v1942 = vshll.u32 %v1837, 16
      %v1944 = vrot.slane %v1942, 1
      %v1945 = vsel %vm323, %v1940, %v1944
      %v1946 = vshrl.u32 %v1837, 16
      %v1948 = vor.u32 %v1946, %v1944
      %v1950 = vshll.u32 %v1838, 16
      %v1952 = vrot.slane %v1950, 1
      %v1953 = vsel %vm323, %v1948, %v1952
      %v1954 = vshrl.u32 %v1838, 16
      %v1956 = vor.u32 %v1954, %v1952
      %v1958 = vshll.u32 %v1839, 16
      %v1960 = vrot.slane %v1958, 1
      %v1961 = vsel %vm323, %v1956, %v1960
      %v1962 = vshrl.u32 %v1839, 16
      %v1964 = vor.u32 %v1962, %v1960
      %v1966 = vshll.u32 %v1840, 16
      %v1968 = vrot.slane %v1966, 1
      %v1969 = vsel %vm323, %v1964, %v1968
      %v1970 = vshrl.u32 %v1840, 16
      %v1972 = vor.u32 %v1970, %v1968
      %v1974 = vshll.u32 %v1841, 16
      %v1976 = vrot.slane %v1974, 1
      %v1977 = vsel %vm323, %v1972, %v1976
      %v1978 = vshrl.u32 %v1841, 16
      %v1980 = vor.u32 %v1978, %v1976
      %v1982 = vshll.u32 %v1842, 16
      %v1984 = vrot.slane %v1982, 1
      %v1985 = vsel %vm323, %v1980, %v1984
      %v1986 = vshrl.u32 %v1842, 16
      %v1988 = vor.u32 %v1986, %v1984
      %v1990 = vshll.u32 %v1843, 16
      %v1992 = vrot.slane %v1990, 1
      %v1993 = vsel %vm323, %v1988, %v1992
      %v1994 = vshrl.u32 %v1843, 16
      %v1996 = vor.u32 %v1994, %v1992
      %v1998 = vshll.u32 %v1844, 16
      %v2000 = vrot.slane %v1998, 1
      %v2001 = vsel %vm323, %v1996, %v2000
      %v2002 = vshrl.u32 %v1844, 16
      %v2004 = vor.u32 %v2002, %v2000
      %v2006 = vshll.u32 %v1845, 16
      %v2008 = vrot.slane %v2006, 1
      %v2009 = vsel %vm323, %v2004, %v2008
      %v2010 = vshrl.u32 %v1845, 16
      %v2012 = vor.u32 %v2010, %v2008
      %v2014 = vshll.u32 %v1846, 16
      %v2016 = vrot.slane %v2014, 1
      %v2017 = vsel %vm323, %v2012, %v2016
      %v2018 = vshrl.u32 %v1846, 16
      %v2020 = vor.u32 %v2018, %v2016
      %v2022 = vshll.u32 %v1847, 16
      %v2024 = vrot.slane %v2022, 1
      %v2025 = vsel %vm323, %v2020, %v2024
      %v2026 = vshrl.u32 %v1847, 16
      %v2028 = vor.u32 %v2026, %v2024
      %v2030 = vshll.u32 %v1848, 16
      %v2032 = vrot.slane %v2030, 1
      %v2033 = vsel %vm323, %v2028, %v2032
      %v2034 = vshrl.u32 %v1848, 16
      %v2036 = vor.u32 %v2034, %v2032
      %v2038 = vshll.u32 %v1849, 16
      %v2040 = vrot.slane %v2038, 1
      %v2041 = vsel %vm323, %v2036, %v2040
      %v2042 = vshrl.u32 %v1849, 16
      %v2044 = vor.u32 %v2042, %v2040
      %v2046 = vshll.u32 %v1850, 16
      %v2048 = vrot.slane %v2046, 1
      %v2049 = vsel %vm323, %v2044, %v2048
      %v2052 = vunpack.c.l.b16 %v1852
      %v2053 = vunpack.c.l.b16 %v1853
      %v2054 = vpack.c.b16 %v2053, %v2052
      %v2056 = vsel %vm525, %v1865, 0
      %v2059 = vsel %vm525, %v1873, 0
      %v2062 = vsel %vm525, %v1881, 0
      %v2065 = vsel %vm525, %v1889, 0
      %v2068 = vsel %vm525, %v1897, 0
      %v2071 = vsel %vm525, %v1905, 0
      %v2074 = vsel %vm525, %v1913, 0
      %v2077 = vsel %vm525, %v1921, 0
      %v2080 = vsel %vm525, %v1929, 0
      %v2083 = vsel %vm525, %v1937, 0
      %v2086 = vsel %vm525, %v1945, 0
      %v2089 = vsel %vm525, %v1953, 0
      %v2092 = vsel %vm525, %v1961, 0
      %v2095 = vsel %vm525, %v1969, 0
      %v2098 = vsel %vm525, %v1977, 0
      %v2101 = vsel %vm525, %v1985, 0
      %v2104 = vsel %vm525, %v1993, 0
      %v2107 = vsel %vm525, %v2001, 0
      %v2110 = vsel %vm525, %v2009, 0
      %v2113 = vsel %vm525, %v2017, 0
      %v2116 = vsel %vm525, %v2025, 0
      %v2119 = vsel %vm525, %v2033, 0
      %v2122 = vsel %vm525, %v2041, 0
      %v2125 = vsel %vm525, %v2049, 0
      %v2128 = vsel %vm598, %v2054, 0
      %2130 = vmatprep.subr.bf16.mxu0 0
      %2131 = vmatpush1.bf16.msra.mxu0 %v2128
      %2132 = vmatprep.subr.bf16.mxu0 0
      %2133 = vmatpush1.bf16.msra.mxu0 0
      %2134 = vmatprep.subr.bf16.mxu0 0
      %2135 = vmatpush1.bf16.msra.mxu0 0
      %2136 = vmatprep.subr.bf16.mxu0 0
      %2137 = vmatpush1.bf16.msra.mxu0 0
      %2138 = vmatprep.subr.bf16.mxu0 0
      %2139 = vmatpush1.bf16.msra.mxu0 0
      %2140 = vmatprep.subr.bf16.mxu0 0
      %2141 = vmatpush1.bf16.msra.mxu0 0
      %2142 = vmatprep.subr.bf16.mxu0 0
      %2143 = vmatpush1.bf16.msra.mxu0 0
      %2144 = vmatprep.subr.bf16.mxu0 0
      %2145 = vmatpush1.bf16.msra.mxu0 0
      %2146 = vmatprep.subr.bf16.mxu0 0
      %2147 = vmatpush1.bf16.msra.mxu0 0
      %2148 = vmatprep.subr.bf16.mxu0 0
      %2149 = vmatpush1.bf16.msra.mxu0 0
      %2150 = vmatprep.subr.bf16.mxu0 0
      %2151 = vmatpush1.bf16.msra.mxu0 0
      %2152 = vmatprep.subr.bf16.mxu0 0
      %2153 = vmatpush1.bf16.msra.mxu0 0
      %2154 = vmatprep.subr.bf16.mxu0 0
      %2155 = vmatpush1.bf16.msra.mxu0 0
      %2156 = vmatprep.subr.bf16.mxu0 0
      %2157 = vmatpush1.bf16.msra.mxu0 0
      %2158 = vmatprep.subr.bf16.mxu0 0
      %2159 = vmatpush1.bf16.msra.mxu0 0
      %2160 = vmatprep.subr.bf16.mxu0 0
      %2161 = vmatpush1.bf16.msra.mxu0 0
      %2162 = vmatprep.mubr.bf16.mxu0 0
      %2163 = vmatmul.mubr.bf16.gmra.mrb[0].mxu0 %v2056
      %v2164 = vpop.f32.mrb[0].mxu0
      %v2165 = vadd.f32 0.0, %v2164
      %v2166 = vpop.f32.mrb[0].mxu0
      %v2167 = vpop.f32.mrb[0].mxu0
      %v2168 = vadd.f32 0.0, %v2167
      %v2169 = vpop.f32.mrb[0].mxu0
      %2170 = vmatprep.mubr.bf16.mxu0 0
      %2171 = vmatmul.mubr.bf16.gmra.mrb[0].mxu0 %v2059
      %v2172 = vpop.f32.mrb[0].mxu0
      %v2173 = vadd.f32 0.0, %v2172
      %v2174 = vpop.f32.mrb[0].mxu0
      %v2175 = vpop.f32.mrb[0].mxu0
      %v2176 = vadd.f32 0.0, %v2175
      %v2177 = vpop.f32.mrb[0].mxu0
      %2178 = vmatprep.mubr.bf16.mxu0 0
      %2179 = vmatmul.mubr.bf16.gmra.mrb[0].mxu0 %v2062
      %v2180 = vpop.f32.mrb[0].mxu0
      %v2181 = vadd.f32 0.0, %v2180
      %v2182 = vpop.f32.mrb[0].mxu0
      %v2183 = vpop.f32.mrb[0].mxu0
      %v2184 = vadd.f32 0.0, %v2183
      %v2185 = vpop.f32.mrb[0].mxu0
      %2186 = vmatprep.mubr.bf16.mxu0 0
      %2187 = vmatmul.mubr.bf16.gmra.mrb[0].mxu0 %v2065
      %v2188 = vpop.f32.mrb[0].mxu0
      %v2189 = vadd.f32 0.0, %v2188
      %v2190 = vpop.f32.mrb[0].mxu0
      %v2191 = vpop.f32.mrb[0].mxu0
      %v2192 = vadd.f32 0.0, %v2191
      %v2193 = vpop.f32.mrb[0].mxu0
      %2194 = vmatprep.mubr.bf16.mxu0 0
      %2195 = vmatmul.mubr.bf16.gmra.mrb[0].mxu0 %v2068
      %v2196 = vpop.f32.mrb[0].mxu0
      %v2197 = vadd.f32 0.0, %v2196
      %v2198 = vpop.f32.mrb[0].mxu0
      %v2199 = vpop.f32.mrb[0].mxu0
      %v2200 = vadd.f32 0.0, %v2199
      %v2201 = vpop.f32.mrb[0].mxu0
      %2202 = vmatprep.mubr.bf16.mxu0 0
      %2203 = vmatmul.mubr.bf16.gmra.mrb[0].mxu0 %v2071
      %v2204 = vpop.f32.mrb[0].mxu0
      %v2205 = vadd.f32 0.0, %v2204
      %v2206 = vpop.f32.mrb[0].mxu0
      %v2207 = vpop.f32.mrb[0].mxu0
      %v2208 = vadd.f32 0.0, %v2207
      %v2209 = vpop.f32.mrb[0].mxu0
      %2210 = vmatprep.mubr.bf16.mxu0 0
      %2211 = vmatmul.mubr.bf16.gmra.mrb[0].mxu0 %v2074
      %v2212 = vpop.f32.mrb[0].mxu0
      %v2213 = vadd.f32 0.0, %v2212
      %v2214 = vpop.f32.mrb[0].mxu0
      %v2215 = vpop.f32.mrb[0].mxu0
      %v2216 = vadd.f32 0.0, %v2215
      %v2217 = vpop.f32.mrb[0].mxu0
      %2218 = vmatprep.mubr.bf16.mxu0 0
      %2219 = vmatmul.mubr.bf16.gmra.mrb[0].mxu0 %v2077
      %v2220 = vpop.f32.mrb[0].mxu0
      %v2221 = vadd.f32 0.0, %v2220
      %v2222 = vpop.f32.mrb[0].mxu0
      %v2223 = vpop.f32.mrb[0].mxu0
      %v2224 = vadd.f32 0.0, %v2223
      %v2225 = vpop.f32.mrb[0].mxu0
      %2226 = vmatprep.mubr.bf16.mxu0 0
      %2227 = vmatmul.mubr.bf16.gmra.mrb[0].mxu0 %v2080
      %v2228 = vpop.f32.mrb[0].mxu0
      %v2229 = vadd.f32 0.0, %v2228
      %v2230 = vpop.f32.mrb[0].mxu0
      %v2231 = vpop.f32.mrb[0].mxu0
      %v2232 = vadd.f32 0.0, %v2231
      %v2233 = vpop.f32.mrb[0].mxu0
      %2234 = vmatprep.mubr.bf16.mxu0 0
      %2235 = vmatmul.mubr.bf16.gmra.mrb[0].mxu0 %v2083
      %v2236 = vpop.f32.mrb[0].mxu0
      %v2237 = vadd.f32 0.0, %v2236
      %v2238 = vpop.f32.mrb[0].mxu0
      %v2239 = vpop.f32.mrb[0].mxu0
      %v2240 = vadd.f32 0.0, %v2239
      %v2241 = vpop.f32.mrb[0].mxu0
      %2242 = vmatprep.mubr.bf16.mxu0 0
      %2243 = vmatmul.mubr.bf16.gmra.mrb[0].mxu0 %v2086
      %v2244 = vpop.f32.mrb[0].mxu0
      %v2245 = vadd.f32 0.0, %v2244
      %v2246 = vpop.f32.mrb[0].mxu0
      %v2247 = vpop.f32.mrb[0].mxu0
      %v2248 = vadd.f32 0.0, %v2247
      %v2249 = vpop.f32.mrb[0].mxu0
      %2250 = vmatprep.mubr.bf16.mxu0 0
      %2251 = vmatmul.mubr.bf16.gmra.mrb[0].mxu0 %v2089
      %v2252 = vpop.f32.mrb[0].mxu0
      %v2253 = vadd.f32 0.0, %v2252
      %v2254 = vpop.f32.mrb[0].mxu0
      %v2255 = vpop.f32.mrb[0].mxu0
      %v2256 = vadd.f32 0.0, %v2255
      %v2257 = vpop.f32.mrb[0].mxu0
      %2258 = vmatprep.mubr.bf16.mxu0 0
      %2259 = vmatmul.mubr.bf16.gmra.mrb[0].mxu0 %v2092
      %v2260 = vpop.f32.mrb[0].mxu0
      %v2261 = vadd.f32 0.0, %v2260
      %v2262 = vpop.f32.mrb[0].mxu0
      %v2263 = vpop.f32.mrb[0].mxu0
      %v2264 = vadd.f32 0.0, %v2263
      %v2265 = vpop.f32.mrb[0].mxu0
      %2266 = vmatprep.mubr.bf16.mxu0 0
      %2267 = vmatmul.mubr.bf16.gmra.mrb[0].mxu0 %v2095
      %v2268 = vpop.f32.mrb[0].mxu0
      %v2269 = vadd.f32 0.0, %v2268
      %v2270 = vpop.f32.mrb[0].mxu0
      %v2271 = vpop.f32.mrb[0].mxu0
      %v2272 = vadd.f32 0.0, %v2271
      %v2273 = vpop.f32.mrb[0].mxu0
      %2274 = vmatprep.mubr.bf16.mxu0 0
      %2275 = vmatmul.mubr.bf16.gmra.mrb[0].mxu0 %v2098
      %v2276 = vpop.f32.mrb[0].mxu0
      %v2277 = vadd.f32 0.0, %v2276
      %v2278 = vpop.f32.mrb[0].mxu0
      %v2279 = vpop.f32.mrb[0].mxu0
      %v2280 = vadd.f32 0.0, %v2279
      %v2281 = vpop.f32.mrb[0].mxu0
      %2282 = vmatprep.mubr.bf16.mxu0 0
      %2283 = vmatmul.mubr.bf16.gmra.mrb[0].mxu0 %v2101
      %v2284 = vpop.f32.mrb[0].mxu0
      %v2285 = vadd.f32 0.0, %v2284
      %v2286 = vpop.f32.mrb[0].mxu0
      %v2287 = vpop.f32.mrb[0].mxu0
      %v2288 = vadd.f32 0.0, %v2287
      %v2289 = vpop.f32.mrb[0].mxu0
      %2290 = vmatprep.mubr.bf16.mxu0 0
      %2291 = vmatmul.mubr.bf16.gmra.mrb[0].mxu0 %v2104
      %v2292 = vpop.f32.mrb[0].mxu0
      %v2293 = vadd.f32 0.0, %v2292
      %v2294 = vpop.f32.mrb[0].mxu0
      %v2295 = vpop.f32.mrb[0].mxu0
      %v2296 = vadd.f32 0.0, %v2295
      %v2297 = vpop.f32.mrb[0].mxu0
      %2298 = vmatprep.mubr.bf16.mxu0 0
      %2299 = vmatmul.mubr.bf16.gmra.mrb[0].mxu0 %v2107
      %v2300 = vpop.f32.mrb[0].mxu0
      %v2301 = vadd.f32 0.0, %v2300
      %v2302 = vpop.f32.mrb[0].mxu0
      %v2303 = vpop.f32.mrb[0].mxu0
      %v2304 = vadd.f32 0.0, %v2303
      %v2305 = vpop.f32.mrb[0].mxu0
      %2306 = vmatprep.mubr.bf16.mxu0 0
      %2307 = vmatmul.mubr.bf16.gmra.mrb[0].mxu0 %v2110
      %v2308 = vpop.f32.mrb[0].mxu0
      %v2309 = vadd.f32 0.0, %v2308
      %v2310 = vpop.f32.mrb[0].mxu0
      %v2311 = vpop.f32.mrb[0].mxu0
      %v2312 = vadd.f32 0.0, %v2311
      %v2313 = vpop.f32.mrb[0].mxu0
      %2314 = vmatprep.mubr.bf16.mxu0 0
      %2315 = vmatmul.mubr.bf16.gmra.mrb[0].mxu0 %v2113
      %v2316 = vpop.f32.mrb[0].mxu0
      %v2317 = vadd.f32 0.0, %v2316
      %v2318 = vpop.f32.mrb[0].mxu0
      %v2319 = vpop.f32.mrb[0].mxu0
      %v2320 = vadd.f32 0.0, %v2319
      %v2321 = vpop.f32.mrb[0].mxu0
      %2322 = vmatprep.mubr.bf16.mxu0 0
      %2323 = vmatmul.mubr.bf16.gmra.mrb[0].mxu0 %v2116
      %v2324 = vpop.f32.mrb[0].mxu0
      %v2325 = vadd.f32 0.0, %v2324
      %v2326 = vpop.f32.mrb[0].mxu0
      %v2327 = vpop.f32.mrb[0].mxu0
      %v2328 = vadd.f32 0.0, %v2327
      %v2329 = vpop.f32.mrb[0].mxu0
      %2330 = vmatprep.mubr.bf16.mxu0 0
      %2331 = vmatmul.mubr.bf16.gmra.mrb[0].mxu0 %v2119
      %v2332 = vpop.f32.mrb[0].mxu0
      %v2333 = vadd.f32 0.0, %v2332
      %v2334 = vpop.f32.mrb[0].mxu0
      %v2335 = vpop.f32.mrb[0].mxu0
      %v2336 = vadd.f32 0.0, %v2335
      %v2337 = vpop.f32.mrb[0].mxu0
      %2338 = vmatprep.mubr.bf16.mxu0 0
      %2339 = vmatmul.mubr.bf16.gmra.mrb[0].mxu0 %v2122
      %v2340 = vpop.f32.mrb[0].mxu0
      %v2341 = vadd.f32 0.0, %v2340
      %v2342 = vpop.f32.mrb[0].mxu0
      %v2343 = vpop.f32.mrb[0].mxu0
      %v2344 = vadd.f32 0.0, %v2343
      %v2345 = vpop.f32.mrb[0].mxu0
      %2346 = vmatprep.mubr.bf16.mxu0 0
      %2347 = vmatmul.mubr.bf16.gmra.mrb[0].mxu0 %v2125
      %v2348 = vpop.f32.mrb[0].mxu0
      %v2349 = vadd.f32 0.0, %v2348
      %v2350 = vpop.f32.mrb[0].mxu0
      %v2351 = vpop.f32.mrb[0].mxu0
      %v2352 = vadd.f32 0.0, %v2351
      %v2353 = vpop.f32.mrb[0].mxu0
      %2354 = vdwg.mxu0
      %v2355 = vadd.f32 %v1778, %v2165
      %v2356 = vadd.f32 %v1779, %v2168
      %v2357 = vadd.f32 %v1780, %v2173
      %v2358 = vadd.f32 %v1781, %v2176
      %v2359 = vadd.f32 %v1782, %v2181
      %v2360 = vadd.f32 %v1783, %v2184
      %v2361 = vadd.f32 %v1784, %v2189
      %v2362 = vadd.f32 %v1785, %v2192
      %v2363 = vadd.f32 %v1786, %v2197
      %v2364 = vadd.f32 %v1787, %v2200
      %v2365 = vadd.f32 %v1788, %v2205
      %v2366 = vadd.f32 %v1789, %v2208
      %v2367 = vadd.f32 %v1790, %v2213
      %v2368 = vadd.f32 %v1791, %v2216
      %v2369 = vadd.f32 %v1792, %v2221
      %v2370 = vadd.f32 %v1793, %v2224
      %v2371 = vadd.f32 %v1794, %v2229
      %v2372 = vadd.f32 %v1795, %v2232
      %v2373 = vadd.f32 %v1796, %v2237
      %v2374 = vadd.f32 %v1797, %v2240
      %v2375 = vadd.f32 %v1798, %v2245
      %v2376 = vadd.f32 %v1799, %v2248
      %v2377 = vadd.f32 %v1800, %v2253
      %v2378 = vadd.f32 %v1801, %v2256
      %v2379 = vadd.f32 %v1802, %v2261
      %v2380 = vadd.f32 %v1803, %v2264
      %v2381 = vadd.f32 %v1804, %v2269
      %v2382 = vadd.f32 %v1805, %v2272
      %v2383 = vadd.f32 %v1806, %v2277
      %v2384 = vadd.f32 %v1807, %v2280
      %v2385 = vadd.f32 %v1808, %v2285
      %v2386 = vadd.f32 %v1809, %v2288
      %v2387 = vadd.f32 %v1810, %v2293
      %v2388 = vadd.f32 %v1811, %v2296
      %v2389 = vadd.f32 %v1812, %v2301
      %v2390 = vadd.f32 %v1813, %v2304
      %v2391 = vadd.f32 %v1814, %v2309
      %v2392 = vadd.f32 %v1815, %v2312
      %v2393 = vadd.f32 %v1816, %v2317
      %v2394 = vadd.f32 %v1817, %v2320
      %v2395 = vadd.f32 %v1818, %v2325
      %v2396 = vadd.f32 %v1819, %v2328
      %v2397 = vadd.f32 %v1820, %v2333
      %v2398 = vadd.f32 %v1821, %v2336
      %v2399 = vadd.f32 %v1822, %v2341
      %v2400 = vadd.f32 %v1823, %v2344
      %v2401 = vadd.f32 %v1824, %v2349
      %v2402 = vadd.f32 %v1825, %v2352
      %v2403 = vld [vmem:[%s2] sm:$0x1]
      %v2405 = vlaneseq
      %v2406 = vshrl.u32 %v2405, 7
      %v2407 = vsub.s32 0, %v2406
      %v2408 = vrot.slane %v2403, %v2407
      %v2410 = vadd.f32 %v2355, %v2408
      %v2411 = vadd.f32 %v2356, %v2408
      %v2412 = vadd.f32 %v2357, %v2408
      %v2413 = vadd.f32 %v2358, %v2408
      %v2414 = vadd.f32 %v2359, %v2408
      %v2415 = vadd.f32 %v2360, %v2408
      %v2416 = vadd.f32 %v2361, %v2408
      %v2417 = vadd.f32 %v2362, %v2408
      %v2418 = vadd.f32 %v2363, %v2408
      %v2419 = vadd.f32 %v2364, %v2408
      %v2420 = vadd.f32 %v2365, %v2408
      %v2421 = vadd.f32 %v2366, %v2408
      %v2422 = vadd.f32 %v2367, %v2408
      %v2423 = vadd.f32 %v2368, %v2408
      %v2424 = vadd.f32 %v2369, %v2408
      %v2425 = vadd.f32 %v2370, %v2408
      %v2426 = vadd.f32 %v2371, %v2408
      %v2427 = vadd.f32 %v2372, %v2408
      %v2428 = vadd.f32 %v2373, %v2408
      %v2429 = vadd.f32 %v2374, %v2408
      %v2430 = vadd.f32 %v2375, %v2408
      %v2431 = vadd.f32 %v2376, %v2408
      %v2432 = vadd.f32 %v2377, %v2408
      %v2433 = vadd.f32 %v2378, %v2408
      %v2434 = vadd.f32 %v2379, %v2408
      %v2435 = vadd.f32 %v2380, %v2408
      %v2436 = vadd.f32 %v2381, %v2408
      %v2437 = vadd.f32 %v2382, %v2408
      %v2438 = vadd.f32 %v2383, %v2408
      %v2439 = vadd.f32 %v2384, %v2408
      %v2440 = vadd.f32 %v2385, %v2408
      %v2441 = vadd.f32 %v2386, %v2408
      %v2442 = vadd.f32 %v2387, %v2408
      %v2443 = vadd.f32 %v2388, %v2408
      %v2444 = vadd.f32 %v2389, %v2408
      %v2445 = vadd.f32 %v2390, %v2408
      %v2446 = vadd.f32 %v2391, %v2408
      %v2447 = vadd.f32 %v2392, %v2408
      %v2448 = vadd.f32 %v2393, %v2408
      %v2449 = vadd.f32 %v2394, %v2408
      %v2450 = vadd.f32 %v2395, %v2408
      %v2451 = vadd.f32 %v2396, %v2408
      %v2452 = vadd.f32 %v2397, %v2408
      %v2453 = vadd.f32 %v2398, %v2408
      %v2454 = vadd.f32 %v2399, %v2408
      %v2455 = vadd.f32 %v2400, %v2408
      %v2456 = vadd.f32 %v2401, %v2408
      %v2457 = vadd.f32 %v2402, %v2408
      %v2458 = vmax.f32 %v2410, 0.0
      %v2459 = vmax.f32 %v2411, 0.0
      %v2460 = vmax.f32 %v2412, 0.0
      %v2461 = vmax.f32 %v2413, 0.0
      %v2462 = vmax.f32 %v2414, 0.0
      %v2463 = vmax.f32 %v2415, 0.0
      %v2464 = vmax.f32 %v2416, 0.0
      %v2465 = vmax.f32 %v2417, 0.0
      %v2466 = vmax.f32 %v2418, 0.0
      %v2467 = vmax.f32 %v2419, 0.0
      %v2468 = vmax.f32 %v2420, 0.0
      %v2469 = vmax.f32 %v2421, 0.0
      %v2470 = vmax.f32 %v2422, 0.0
      %v2471 = vmax.f32 %v2423, 0.0
      %v2472 = vmax.f32 %v2424, 0.0
      %v2473 = vmax.f32 %v2425, 0.0
      %v2474 = vmax.f32 %v2426, 0.0
      %v2475 = vmax.f32 %v2427, 0.0
      %v2476 = vmax.f32 %v2428, 0.0
      %v2477 = vmax.f32 %v2429, 0.0
      %v2478 = vmax.f32 %v2430, 0.0
      %v2479 = vmax.f32 %v2431, 0.0
      %v2480 = vmax.f32 %v2432, 0.0
      %v2481 = vmax.f32 %v2433, 0.0
      %v2482 = vmax.f32 %v2434, 0.0
      %v2483 = vmax.f32 %v2435, 0.0
      %v2484 = vmax.f32 %v2436, 0.0
      %v2485 = vmax.f32 %v2437, 0.0
      %v2486 = vmax.f32 %v2438, 0.0
      %v2487 = vmax.f32 %v2439, 0.0
      %v2488 = vmax.f32 %v2440, 0.0
      %v2489 = vmax.f32 %v2441, 0.0
      %v2490 = vmax.f32 %v2442, 0.0
      %v2491 = vmax.f32 %v2443, 0.0
      %v2492 = vmax.f32 %v2444, 0.0
      %v2493 = vmax.f32 %v2445, 0.0
      %v2494 = vmax.f32 %v2446, 0.0
      %v2495 = vmax.f32 %v2447, 0.0
      %v2496 = vmax.f32 %v2448, 0.0
      %v2497 = vmax.f32 %v2449, 0.0
      %v2498 = vmax.f32 %v2450, 0.0
      %v2499 = vmax.f32 %v2451, 0.0
      %v2500 = vmax.f32 %v2452, 0.0
      %v2501 = vmax.f32 %v2453, 0.0
      %v2502 = vmax.f32 %v2454, 0.0
      %v2503 = vmax.f32 %v2455, 0.0
      %v2504 = vmax.f32 %v2456, 0.0
      %v2505 = vmax.f32 %v2457, 0.0
      %v2506 = vpack.c.bf16 %v2459, %v2458
      %v2507 = vpack.c.bf16 %v2461, %v2460
      %v2508 = vpack.c.bf16 %v2463, %v2462
      %v2509 = vpack.c.bf16 %v2465, %v2464
      %v2510 = vpack.c.bf16 %v2467, %v2466
      %v2511 = vpack.c.bf16 %v2469, %v2468
      %v2512 = vpack.c.bf16 %v2471, %v2470
      %v2513 = vpack.c.bf16 %v2473, %v2472
      %v2514 = vpack.c.bf16 %v2475, %v2474
      %v2515 = vpack.c.bf16 %v2477, %v2476
      %v2516 = vpack.c.bf16 %v2479, %v2478
      %v2517 = vpack.c.bf16 %v2481, %v2480
      %v2518 = vpack.c.bf16 %v2483, %v2482
      %v2519 = vpack.c.bf16 %v2485, %v2484
      %v2520 = vpack.c.bf16 %v2487, %v2486
      %v2521 = vpack.c.bf16 %v2489, %v2488
      %v2522 = vpack.c.bf16 %v2491, %v2490
      %v2523 = vpack.c.bf16 %v2493, %v2492
      %v2524 = vpack.c.bf16 %v2495, %v2494
      %v2525 = vpack.c.bf16 %v2497, %v2496
      %v2526 = vpack.c.bf16 %v2499, %v2498
      %v2527 = vpack.c.bf16 %v2501, %v2500
      %v2528 = vpack.c.bf16 %v2503, %v2502
      %v2529 = vpack.c.bf16 %v2505, %v2504
      %v2554 = vunpack.c.l.b16 %v2506
      %v2555 = vunpack.c.h.b16 %v2506
      %v2556 = vunpack.c.l.b16 %v2507
      %v2557 = vunpack.c.h.b16 %v2507
      %v2558 = vunpack.c.l.b16 %v2508
      %v2559 = vunpack.c.h.b16 %v2508
      %v2560 = vunpack.c.l.b16 %v2509
      %v2561 = vunpack.c.h.b16 %v2509
      %v2562 = vunpack.c.l.b16 %v2510
      %v2563 = vunpack.c.h.b16 %v2510
      %v2564 = vunpack.c.l.b16 %v2511
      %v2565 = vunpack.c.h.b16 %v2511
      %v2566 = vunpack.c.l.b16 %v2512
      %v2567 = vunpack.c.h.b16 %v2512
      %v2568 = vunpack.c.l.b16 %v2513
      %v2569 = vunpack.c.h.b16 %v2513
      %v2570 = vunpack.c.l.b16 %v2514
      %v2571 = vunpack.c.h.b16 %v2514
      %v2572 = vunpack.c.l.b16 %v2515
      %v2573 = vunpack.c.h.b16 %v2515
      %v2574 = vunpack.c.l.b16 %v2516
      %v2575 = vunpack.c.h.b16 %v2516
      %v2576 = vunpack.c.l.b16 %v2517
      %v2577 = vunpack.c.h.b16 %v2517
      %v2578 = vunpack.c.l.b16 %v2518
      %v2579 = vunpack.c.h.b16 %v2518
      %v2580 = vunpack.c.l.b16 %v2519
      %v2581 = vunpack.c.h.b16 %v2519
      %v2582 = vunpack.c.l.b16 %v2520
      %v2583 = vunpack.c.h.b16 %v2520
      %v2584 = vunpack.c.l.b16 %v2521
      %v2585 = vunpack.c.h.b16 %v2521
      %v2586 = vunpack.c.l.b16 %v2522
      %v2587 = vunpack.c.h.b16 %v2522
      %v2588 = vunpack.c.l.b16 %v2523
      %v2589 = vunpack.c.h.b16 %v2523
      %v2590 = vunpack.c.l.b16 %v2524
      %v2591 = vunpack.c.h.b16 %v2524
      %v2592 = vunpack.c.l.b16 %v2525
      %v2593 = vunpack.c.h.b16 %v2525
      %v2594 = vunpack.c.l.b16 %v2526
      %v2595 = vunpack.c.h.b16 %v2526
      %v2596 = vunpack.c.l.b16 %v2527
      %v2597 = vunpack.c.h.b16 %v2527
      %v2598 = vunpack.c.l.b16 %v2528
      %v2599 = vunpack.c.h.b16 %v2528
      %v2600 = vunpack.c.l.b16 %v2529
      %v2601 = vunpack.c.h.b16 %v2529
      %v2602 = vpack.c.b16 %v2554, %v2554
      %v2603 = vpack.c.b16 %v2555, %v2555
      %v2604 = vpack.c.b16 %v2556, %v2556
      %v2605 = vpack.c.b16 %v2557, %v2557
      %v2606 = vpack.c.b16 %v2558, %v2558
      %v2607 = vpack.c.b16 %v2559, %v2559
      %v2608 = vpack.c.b16 %v2560, %v2560
      %v2609 = vpack.c.b16 %v2561, %v2561
      %v2610 = vpack.c.b16 %v2562, %v2562
      %v2611 = vpack.c.b16 %v2563, %v2563
      %v2612 = vpack.c.b16 %v2564, %v2564
      %v2613 = vpack.c.b16 %v2565, %v2565
      %v2614 = vpack.c.b16 %v2566, %v2566
      %v2615 = vpack.c.b16 %v2567, %v2567
      %v2616 = vpack.c.b16 %v2568, %v2568
      %v2617 = vpack.c.b16 %v2569, %v2569
      %v2618 = vpack.c.b16 %v2570, %v2570
      %v2619 = vpack.c.b16 %v2571, %v2571
      %v2620 = vpack.c.b16 %v2572, %v2572
      %v2621 = vpack.c.b16 %v2573, %v2573
      %v2622 = vpack.c.b16 %v2574, %v2574
      %v2623 = vpack.c.b16 %v2575, %v2575
      %v2624 = vpack.c.b16 %v2576, %v2576
      %v2625 = vpack.c.b16 %v2577, %v2577
      %v2626 = vpack.c.b16 %v2578, %v2578
      %v2627 = vpack.c.b16 %v2579, %v2579
      %v2628 = vpack.c.b16 %v2580, %v2580
      %v2629 = vpack.c.b16 %v2581, %v2581
      %v2630 = vpack.c.b16 %v2582, %v2582
      %v2631 = vpack.c.b16 %v2583, %v2583
      %v2632 = vpack.c.b16 %v2584, %v2584
      %v2633 = vpack.c.b16 %v2585, %v2585
      %v2634 = vpack.c.b16 %v2586, %v2586
      %v2635 = vpack.c.b16 %v2587, %v2587
      %v2636 = vpack.c.b16 %v2588, %v2588
      %v2637 = vpack.c.b16 %v2589, %v2589
      %v2638 = vpack.c.b16 %v2590, %v2590
      %v2639 = vpack.c.b16 %v2591, %v2591
      %v2640 = vpack.c.b16 %v2592, %v2592
      %v2641 = vpack.c.b16 %v2593, %v2593
      %v2642 = vpack.c.b16 %v2594, %v2594
      %v2643 = vpack.c.b16 %v2595, %v2595
      %v2644 = vpack.c.b16 %v2596, %v2596
      %v2645 = vpack.c.b16 %v2597, %v2597
      %v2646 = vpack.c.b16 %v2598, %v2598
      %v2647 = vpack.c.b16 %v2599, %v2599
      %v2648 = vpack.c.b16 %v2600, %v2600
      %v2649 = vpack.c.b16 %v2601, %v2601
      %vm2698 = vcmask 60416
      %2699 = vst.msk [vmem:[%s192] sm:$0xf] %vm2698, %v2602
      %2700 = vst.msk [vmem:[%s192 + $0x4] sm:$0xf] %vm2698, %v2603
      %2701 = vst.msk [vmem:[%s192 + $0x8] sm:$0xf] %vm2698, %v2604
      %2702 = vst.msk [vmem:[%s192 + $0xc] sm:$0xf] %vm2698, %v2605
      %2703 = vst.msk [vmem:[%s192 + $0x10] sm:$0xf] %vm2698, %v2606
      %2704 = vst.msk [vmem:[%s192 + $0x14] sm:$0xf] %vm2698, %v2607
      %2705 = vst.msk [vmem:[%s192 + $0x18] sm:$0xf] %vm2698, %v2608
      %2706 = vst.msk [vmem:[%s192 + $0x1c] sm:$0xf] %vm2698, %v2609
      %2707 = vst.msk [vmem:[%s192 + $0x20] sm:$0xf] %vm2698, %v2610
      %2708 = vst.msk [vmem:[%s192 + $0x24] sm:$0xf] %vm2698, %v2611
      %2709 = vst.msk [vmem:[%s192 + $0x28] sm:$0xf] %vm2698, %v2612
      %2710 = vst.msk [vmem:[%s192 + $0x2c] sm:$0xf] %vm2698, %v2613
      %2711 = vst.msk [vmem:[%s192 + $0x30] sm:$0xf] %vm2698, %v2614
      %2712 = vst.msk [vmem:[%s192 + $0x34] sm:$0xf] %vm2698, %v2615
      %2713 = vst.msk [vmem:[%s192 + $0x38] sm:$0xf] %vm2698, %v2616
      %2714 = vst.msk [vmem:[%s192 + $0x3c] sm:$0xf] %vm2698, %v2617
      %2715 = vst.msk [vmem:[%s192 + $0x40] sm:$0xf] %vm2698, %v2618
      %2716 = vst.msk [vmem:[%s192 + $0x44] sm:$0xf] %vm2698, %v2619
      %2717 = vst.msk [vmem:[%s192 + $0x48] sm:$0xf] %vm2698, %v2620
      %2718 = vst.msk [vmem:[%s192 + $0x4c] sm:$0xf] %vm2698, %v2621
      %2719 = vst.msk [vmem:[%s192 + $0x50] sm:$0xf] %vm2698, %v2622
      %2720 = vst.msk [vmem:[%s192 + $0x54] sm:$0xf] %vm2698, %v2623
      %2721 = vst.msk [vmem:[%s192 + $0x58] sm:$0xf] %vm2698, %v2624
      %2722 = vst.msk [vmem:[%s192 + $0x5c] sm:$0xf] %vm2698, %v2625
      %2723 = vst.msk [vmem:[%s192 + $0x60] sm:$0xf] %vm2698, %v2626
      %2724 = vst.msk [vmem:[%s192 + $0x64] sm:$0xf] %vm2698, %v2627
      %2725 = vst.msk [vmem:[%s192 + $0x68] sm:$0xf] %vm2698, %v2628
      %2726 = vst.msk [vmem:[%s192 + $0x6c] sm:$0xf] %vm2698, %v2629
      %2727 = vst.msk [vmem:[%s192 + $0x70] sm:$0xf] %vm2698, %v2630
      %2728 = vst.msk [vmem:[%s192 + $0x74] sm:$0xf] %vm2698, %v2631
      %2729 = vst.msk [vmem:[%s192 + $0x78] sm:$0xf] %vm2698, %v2632
      %2730 = vst.msk [vmem:[%s192 + $0x7c] sm:$0xf] %vm2698, %v2633
      %2731 = vst.msk [vmem:[%s192 + $0x80] sm:$0xf] %vm2698, %v2634
      %2732 = vst.msk [vmem:[%s192 + $0x84] sm:$0xf] %vm2698, %v2635
      %2733 = vst.msk [vmem:[%s192 + $0x88] sm:$0xf] %vm2698, %v2636
      %2734 = vst.msk [vmem:[%s192 + $0x8c] sm:$0xf] %vm2698, %v2637
      %2735 = vst.msk [vmem:[%s192 + $0x90] sm:$0xf] %vm2698, %v2638
      %2736 = vst.msk [vmem:[%s192 + $0x94] sm:$0xf] %vm2698, %v2639
      %2737 = vst.msk [vmem:[%s192 + $0x98] sm:$0xf] %vm2698, %v2640
      %2738 = vst.msk [vmem:[%s192 + $0x9c] sm:$0xf] %vm2698, %v2641
      %2739 = vst.msk [vmem:[%s192 + $0xa0] sm:$0xf] %vm2698, %v2642
      %2740 = vst.msk [vmem:[%s192 + $0xa4] sm:$0xf] %vm2698, %v2643
      %2741 = vst.msk [vmem:[%s192 + $0xa8] sm:$0xf] %vm2698, %v2644
      %2742 = vst.msk [vmem:[%s192 + $0xac] sm:$0xf] %vm2698, %v2645
      %2743 = vst.msk [vmem:[%s192 + $0xb0] sm:$0xf] %vm2698, %v2646
      %2744 = vst.msk [vmem:[%s192 + $0xb4] sm:$0xf] %vm2698, %v2647
      %2745 = vst.msk [vmem:[%s192 + $0xb8] sm:$0xf] %vm2698, %v2648
      %2746 = vst.msk [vmem:[%s192 + $0xbc] sm:$0xf] %vm2698, %v2649
      %s2747 = smul.u32 48, %s19
      %p2748 = scmp.lt.s32.totalorder %s18, 5
      %s2749 = scalar_select %p2748, %s18, 5
      %p2750 = scmp.lt.s32.totalorder %s2747, 47
      %s2751 = scalar_select %p2750, %s2747, 47
      %s2752 = smul.addr %s2749, 48
      %s2753 = sadd.s32 %s2751, %s2752
      %s2754 = smul.addr %s2753, 4
      %s2755 = scalar_lea.vmem %s3, %s2754
      // Predicated region
      $region33: #{scene_net_forward.12} parent=31 // pred_check
        %p2756 = pneg %p114
      $region34: #{scene_net_forward.12} parent=31 // pred_check_branch
        %2758 = sbr.rel (%p2756) target = $region36
      $region35: #{scene_net_forward.12} parent=31 // pred_region
        %s2759 = smul.u32 48, %s19
      $region36: #{scene_net_forward.12} parent=31 // pred_fallthru
        _
    $region32: #{scene_net_forward.12} parent=5 // pred_fallthru
      _
    %p2760 = scmp.le.s32.totalorder 2, %s9
    // Predicated region
    $region37: #{scene_net_forward.12} parent=5 // pred_check
      %p2761 = pneg %p2760
    $region38: #{scene_net_forward.12} parent=5 // pred_check_branch
      %2763 = sbr.rel (%p2761) target = $region40
    $region39: #{scene_net_forward.12} parent=5 // pred_region
      %s2764 = ssub.s32 %s9, 2
      // Predicated region
      $region41: #{scene_net_forward.12} parent=39 // pred_check
        %p2765 = pneg %p120
      $region42: #{scene_net_forward.12} parent=39 // pred_check_branch
        %2767 = sbr.rel (%p2765) target = $region44
      $region43: #{scene_net_forward.12} parent=39 // pred_region
        %s2768 = smul.u32 48, %s21
        %p2769 = scmp.lt.s32.totalorder %s20, 5
        %s2770 = scalar_select %p2769, %s20, 5
        %p2771 = scmp.lt.s32.totalorder %s2768, 47
        %s2772 = scalar_select %p2771, %s2768, 47
        %s2773 = smul.addr %s2770, 48
        %s2774 = sadd.s32 %s2772, %s2773
        %s2775 = smul.addr %s2774, 4
        %s2776 = scalar_lea.vmem %s3, %s2775
      $region44: #{scene_net_forward.12} parent=39 // pred_fallthru
        _
    $region40: #{scene_net_forward.12} parent=5 // pred_fallthru
      _
  $region6: #{scene_net_forward.12} parent=0 // loop_footer
    %s13 = sadd.s32 1, %s9
  $region7: #{scene_net_forward.12} parent=0 // loop_footer_branch
    %8 = sbr.rel target = $region3
  $region8: #{scene_net_forward.12} parent=0 // loop_exit
    _

// kernel: scene_net_forward.13
$region0: #{scene_net_forward.13}
  #allocation0 [shape = 'u32[]', space=smem, size = 0x4, offset = 0x4, fixed_abs, tag = 'smem constant byte address 0x4 - core index']
  #allocation1 [shape = 'u32[144,128]{1,0:T(1,128)}', space=vmem, size = 0x12000, scoped, tag = 'internal scratch']
  %s0 = inlined_call_operand.vmem [shape: bf16[6,152,32], index: 0, kind: input, shape index: {}]
  %s1 = inlined_call_operand.vmem [shape: bf16[4,32,8], index: 1, kind: input, shape index: {}]
  %s2 = inlined_call_operand.vmem [shape: f32[1,8], index: 2, kind: input, shape index: {}]
  %s3 = inlined_call_operand.vmem [shape: bf16[6,128,8], index: 3, kind: output, shape index: {}]
  %s4 = sld [smem:[#allocation0]]
  $region45: #{scene_net_forward.13} parent=0
    _
  %s6 = ssub.s32 1, %s4
  %s7 = scalar_select 0, %s6, %s4
  loop: start=0, step=1, limit=8
  $region2: #{scene_net_forward.13} parent=0 // loop_pre_header
    _
  $region3: #{scene_net_forward.13} parent=0 // loop_header
    %s9 = sphi 0, %s13
    %p10 = scmp.ge.s32.totalorder %s9, 8
    %s16 = sphi 0, %s28
    %s17 = sphi 0, %s24
    %s18 = sphi 0, %s16
    %s19 = sphi 0, %s17
    %s20 = sphi 0, %s18
    %s21 = sphi 0, %s19
    %s31 = sphi 0, %s33
    %s34 = sphi 0, %s31
    %s35 = sphi 0, %s34
    %s51 = sphi 0, %s35
    %s55 = sphi 0, %s55
    %s57 = sphi 0, %s55
    %s58 = sphi 0, %s57
    %s72 = sphi 0, %s58
    %s76 = sphi 0, %s76
    %s78 = sphi 0, %s76
    %s79 = sphi 0, %s78
    %s93 = sphi 0, %s79
    %s101 = sphi 0, %s103
    %s104 = sphi 0, %s101
    %s105 = sphi 0, %s104
    %s121 = sphi 0, %s105
  $region4: #{scene_net_forward.13} parent=0 // loop_header_branch
    %12 = sbr.rel (%p10) target = $region8
  $region5: #{scene_net_forward.13} parent=0 // loop_body
    %s14 = ssub.s32 %s9, 1
    %s15 = ssub.s32 %s9, 2
    %s22 = sadd.s32 1, %s17
    %p23 = scmp.ge.s32.totalorder %s22, 1
    %s24 = scalar_select %p23, 0, %s22
    %s25 = sadd.s32 1, %s16
    %s26 = scalar_select %p23, %s25, %s16
    %p27 = scmp.ge.s32.totalorder %s26, 6
    %s28 = scalar_select %p27, 0, %s26
    %s29 = ssub.s32 %s16, %s28
    %p30 = scmp.eq.s32.totalorder %s29, 0
    %s32 = sadd.s32 %s31, 1
    %s33 = scalar_select %p30, %s31, %s32
    %p36 = pneg %p30
    %p37 = scmp.eq.s32.totalorder %s9, 5
    %p38 = por %p36, %p37
    %p39 = scmp.ne.s32.totalorder %s31, %s34
    %p40 = scmp.eq.s32.totalorder %s9, 0
    %p41 = por %p39, %p40
    %p42 = scmp.ne.s32.totalorder %s31, %s34
    %p43 = scmp.eq.s32.totalorder %s14, 5
    %p44 = por %p42, %p43
    %p45 = scmp.ne.s32.totalorder %s34, %s35
    %p46 = scmp.eq.s32.totalorder %s14, 0
    %p47 = por %p45, %p46
    %p48 = scmp.ne.s32.totalorder %s34, %s35
    %p49 = scmp.eq.s32.totalorder %s15, 5
    %p50 = por %p48, %p49
    %p52 = scmp.ne.s32.totalorder %s35, %s51
    %p53 = scmp.eq.s32.totalorder %s15, 0
    %p54 = por %p52, %p53
    %s56 = sadd.s32 %s55, 1
    %p59 = scmp.eq.s32.totalorder %s9, 5
    %p60 = scmp.ne.s32.totalorder %s55, %s57
    %p61 = scmp.eq.s32.totalorder %s9, 0
    %p62 = por %p60, %p61
    %p63 = scmp.ne.s32.totalorder %s55, %s57
    %p64 = scmp.eq.s32.totalorder %s14, 5
    %p65 = por %p63, %p64
    %p66 = scmp.ne.s32.totalorder %s57, %s58
    %p67 = scmp.eq.s32.totalorder %s14, 0
    %p68 = por %p66, %p67
    %p69 = scmp.ne.s32.totalorder %s57, %s58
    %p70 = scmp.eq.s32.totalorder %s15, 5
    %p71 = por %p69, %p70
    %p73 = scmp.ne.s32.totalorder %s58, %s72
    %p74 = scmp.eq.s32.totalorder %s15, 0
    %p75 = por %p73, %p74
    %s77 = sadd.s32 %s76, 1
    %p80 = scmp.eq.s32.totalorder %s9, 5
    %p81 = scmp.ne.s32.totalorder %s76, %s78
    %p82 = scmp.eq.s32.totalorder %s9, 0
    %p83 = por %p81, %p82
    %p84 = scmp.ne.s32.totalorder %s76, %s78
    %p85 = scmp.eq.s32.totalorder %s14, 5
    %p86 = por %p84, %p85
    %p87 = scmp.ne.s32.totalorder %s78, %s79
    %p88 = scmp.eq.s32.totalorder %s14, 0
    %p89 = por %p87, %p88
    %p90 = scmp.ne.s32.totalorder %s78, %s79
    %p91 = scmp.eq.s32.totalorder %s15, 5
    %p92 = por %p90, %p91
    %p94 = scmp.ne.s32.totalorder %s79, %s93
    %p95 = scmp.eq.s32.totalorder %s15, 0
    %p96 = por %p94, %p95
    %s97 = ssub.s32 %s16, %s28
    %s98 = ssub.s32 %s17, %s24
    %s99 = sor.u32 %s97, %s98
    %p100 = scmp.eq.s32.totalorder %s99, 0
    %s102 = sadd.s32 %s101, 1
    %s103 = scalar_select %p100, %s101, %s102
    %p106 = pneg %p100
    %p107 = scmp.eq.s32.totalorder %s9, 5
    %p108 = por %p106, %p107
    %p109 = scmp.ne.s32.totalorder %s101, %s104
    %p110 = scmp.eq.s32.totalorder %s9, 0
    %p111 = por %p109, %p110
    %p112 = scmp.ne.s32.totalorder %s101, %s104
    %p113 = scmp.eq.s32.totalorder %s14, 5
    %p114 = por %p112, %p113
    %p115 = scmp.ne.s32.totalorder %s104, %s105
    %p116 = scmp.eq.s32.totalorder %s14, 0
    %p117 = por %p115, %p116
    %p118 = scmp.ne.s32.totalorder %s104, %s105
    %p119 = scmp.eq.s32.totalorder %s15, 5
    %p120 = por %p118, %p119
    %p122 = scmp.ne.s32.totalorder %s105, %s121
    %p123 = scmp.eq.s32.totalorder %s15, 0
    %p124 = por %p122, %p123
    %p125 = scmp.le.s32.totalorder 1, %s9
    %p126 = scmp.lt.s32.totalorder %s9, 7
    %p127 = pnand %p125, %p126
    %p128 = pneg %p127
    // Predicated region
    $region9: #{scene_net_forward.13} parent=5 // pred_check
      _
    $region10: #{scene_net_forward.13} parent=5 // pred_check_branch
      %130 = sbr.rel (%p127) target = $region12
    $region11: #{scene_net_forward.13} parent=5 // pred_region
      %s131 = ssub.s32 %s9, 1
      // Predicated region
      $region13: #{scene_net_forward.13} parent=11 // pred_check
        %p132 = pneg %p68
      $region14: #{scene_net_forward.13} parent=11 // pred_check_branch
        %134 = sbr.rel (%p132) target = $region16
      $region15: #{scene_net_forward.13} parent=11 // pred_region
        _
      $region16: #{scene_net_forward.13} parent=11 // pred_fallthru
        _
      // Predicated region
      $region17: #{scene_net_forward.13} parent=11 // pred_check
        %p135 = pneg %p89
      $region18: #{scene_net_forward.13} parent=11 // pred_check_branch
        %137 = sbr.rel (%p135) target = $region20
      $region19: #{scene_net_forward.13} parent=11 // pred_region
        _
      $region20: #{scene_net_forward.13} parent=11 // pred_fallthru
        _
    $region12: #{scene_net_forward.13} parent=5 // pred_fallthru
      _
    %p138 = scmp.lt.s32.totalorder %s9, 6
    // Predicated region
    $region21: #{scene_net_forward.13} parent=5 // pred_check
      %p139 = pneg %p138
    $region22: #{scene_net_forward.13} parent=5 // pred_check_branch
      %141 = sbr.rel (%p139) target = $region24
    $region23: #{scene_net_forward.13} parent=5 // pred_region
      // Predicated region
      $region25: #{scene_net_forward.13} parent=23 // pred_check
        %p142 = pneg %p41
      $region26: #{scene_net_forward.13} parent=23 // pred_check_branch
        %144 = sbr.rel (%p142) target = $region28
      $region27: #{scene_net_forward.13} parent=23 // pred_region
        %p145 = scmp.lt.s32.totalorder %s16, 5
        %s146 = scalar_select %p145, %s16, 5
        %s147 = smul.addr %s146, 19
        %s148 = smul.addr %s147, 4
        %s149 = scalar_lea.vmem %s0, %s148
      $region28: #{scene_net_forward.13} parent=23 // pred_fallthru
        _
    $region24: #{scene_net_forward.13} parent=5 // pred_fallthru
      _
    %p150 = scmp.le.s32.totalorder 1, %s9
    %p151 = scmp.lt.s32.totalorder %s9, 7
    %p152 = pnand %p150, %p151
    %p153 = pneg %p152
    // Predicated region
    $region29: #{scene_net_forward.13} parent=5 // pred_check
      _
    $region30: #{scene_net_forward.13} parent=5 // pred_check_branch
      %155 = sbr.rel (%p152) target = $region32
    $region31: #{scene_net_forward.13} parent=5 // pred_region
      %s156 = ssub.s32 %s9, 1
      %p157 = scmp.lt.s32.totalorder %s18, 5
      %s158 = scalar_select %p157, %s18, 5
      %s159 = smul.addr %s158, 19
      %s160 = smul.addr %s159, 4
      %s161 = scalar_lea.vmem %s0, %s160
      %p162 = pneg %p47
      %p163 = pneg %p44
      %p164 = pneg %p68
      %p165 = pneg %p65
      %p166 = pneg %p89
      %p167 = pneg %p86
      %p168 = pneg %p117
      %p169 = pneg %p114
      %s170 = smul.u32 16, %s19
      %p171 = scmp.lt.s32.totalorder %s18, 5
      %s172 = scalar_select %p171, %s18, 5
      %p173 = scmp.lt.s32.totalorder %s170, 15
      %s174 = scalar_select %p173, %s170, 15
      %s175 = smul.addr %s172, 16
      %s176 = sadd.s32 %s174, %s175
      %s177 = smul.addr %s176, 4
      %s178 = scalar_lea.vmem %s3, %s177
      %p179 = scmp.lt.s32.totalorder %s18, 5
      %s180 = scalar_select %p179, %s18, 5
      %s181 = smul.addr %s180, 19
      %s182 = smul.addr %s181, 4
      %s183 = scalar_lea.vmem %s0, %s182
      %s184 = smul.u32 16, %s19
      %p185 = scmp.lt.s32.totalorder %s18, 5
      %s186 = scalar_select %p185, %s18, 5
      %p187 = scmp.lt.s32.totalorder %s184, 15
      %s188 = scalar_select %p187, %s184, 15
      %s189 = smul.addr %s186, 16
      %s190 = sadd.s32 %s188, %s189
      %s191 = smul.addr %s190, 4
      %s192 = scalar_lea.vmem %s3, %s191
      %s193 = smul.u32 16, %s19
      %v195 = vld [vmem:[%s183] sm:$0xf]
      %v196 = vld [vmem:[%s183 + $0x4] sm:$0xf]
      %v197 = vld [vmem:[%s183 + $0x8] sm:$0xf]
      %v198 = vld [vmem:[%s183 + $0xc] sm:$0xf]
      %v199 = vld [vmem:[%s183 + $0x10] sm:$0xf]
      %v200 = vld [vmem:[%s183 + $0x14] sm:$0xf]
      %v201 = vld [vmem:[%s183 + $0x18] sm:$0xf]
      %v202 = vld [vmem:[%s183 + $0x1c] sm:$0xf]
      %v203 = vld [vmem:[%s183 + $0x20] sm:$0xf]
      %v204 = vld [vmem:[%s183 + $0x24] sm:$0xf]
      %v205 = vld [vmem:[%s183 + $0x28] sm:$0xf]
      %v206 = vld [vmem:[%s183 + $0x2c] sm:$0xf]
      %v207 = vld [vmem:[%s183 + $0x30] sm:$0xf]
      %v208 = vld [vmem:[%s183 + $0x34] sm:$0xf]
      %v209 = vld [vmem:[%s183 + $0x38] sm:$0xf]
      %v210 = vld [vmem:[%s183 + $0x3c] sm:$0xf]
      %v211 = vld [vmem:[%s183 + $0x40] sm:$0xf]
      %v212 = vunpack.c.l.bf16 %v195
      %v213 = vunpack.c.l.bf16 %v196
      %v214 = vunpack.c.l.bf16 %v197
      %v215 = vunpack.c.l.bf16 %v198
      %v216 = vunpack.c.l.bf16 %v199
      %v217 = vunpack.c.l.bf16 %v200
      %v218 = vunpack.c.l.bf16 %v201
      %v219 = vunpack.c.l.bf16 %v202
      %v220 = vunpack.c.l.bf16 %v203
      %v221 = vunpack.c.l.bf16 %v204
      %v222 = vunpack.c.l.bf16 %v205
      %v223 = vunpack.c.l.bf16 %v206
      %v224 = vunpack.c.l.bf16 %v207
      %v225 = vunpack.c.l.bf16 %v208
      %v226 = vunpack.c.l.bf16 %v209
      %v227 = vunpack.c.l.bf16 %v210
      %v228 = vunpack.c.l.bf16 %v211
      %v229 = vld [vmem:[%s1] sm:$0xf]
      %v230 = vld [vmem:[%s1 + $0x4] sm:$0xf]
      %v231 = vld [vmem:[%s1 + $0x8] sm:$0xf]
      %v232 = vld [vmem:[%s1 + $0xc] sm:$0xf]
      %v233 = vpack.c.bf16 %v213, %v212
      %v234 = vpack.c.bf16 %v215, %v214
      %v235 = vpack.c.bf16 %v217, %v216
      %v236 = vpack.c.bf16 %v219, %v218
      %v237 = vpack.c.bf16 %v221, %v220
      %v238 = vpack.c.bf16 %v223, %v222
      %v239 = vpack.c.bf16 %v225, %v224
      %v240 = vpack.c.bf16 %v227, %v226
      %v241 = vpack.c.bf16 %v228, %v228
      %s242 = scalar_lea.vmem %s1, 16
      %v243 = vld [vmem:[%s242] sm:$0xf]
      %v244 = vld [vmem:[%s242 + $0x4] sm:$0xf]
      %v245 = vld [vmem:[%s242 + $0x8] sm:$0xf]
      %v246 = vld [vmem:[%s242 + $0xc] sm:$0xf]
      %vm247 = vsmask.f32 7424
      %v249 = vshrl.u32 %v233, 16
      %v251 = vshll.u32 %v233, 16
      %v253 = vrot.slane %v251, 1
      %v254 = vor.u32 %v249, %v253
      %v256 = vshll.u32 %v234, 16
      %v258 = vrot.slane %v256, 1
      %v259 = vsel %vm247, %v254, %v258
      %v260 = vshrl.u32 %v234, 16
      %v262 = vor.u32 %v260, %v258
      %v264 = vshll.u32 %v235, 16
      %v266 = vrot.slane %v264, 1
      %v267 = vsel %vm247, %v262, %v266
      %v268 = vshrl.u32 %v235, 16
      %v270 = vor.u32 %v268, %v266
      %v272 = vshll.u32 %v236, 16
      %v274 = vrot.slane %v272, 1
      %v275 = vsel %vm247, %v270, %v274
      %v276 = vshrl.u32 %v236, 16
      %v278 = vor.u32 %v276, %v274
      %v280 = vshll.u32 %v237, 16
      %v282 = vrot.slane %v280, 1
      %v283 = vsel %vm247, %v278, %v282
      %v284 = vshrl.u32 %v237, 16
      %v286 = vor.u32 %v284, %v282
      %v288 = vshll.u32 %v238, 16
      %v290 = vrot.slane %v288, 1
      %v291 = vsel %vm247, %v286, %v290
      %v292 = vshrl.u32 %v238, 16
      %v294 = vor.u32 %v292, %v290
      %v296 = vshll.u32 %v239, 16
      %v298 = vrot.slane %v296, 1
      %v299 = vsel %vm247, %v294, %v298
      %v300 = vshrl.u32 %v239, 16
      %v302 = vor.u32 %v300, %v298
      %v304 = vshll.u32 %v240, 16
      %v306 = vrot.slane %v304, 1
      %v307 = vsel %vm247, %v302, %v306
      %v308 = vshrl.u32 %v240, 16
      %v310 = vor.u32 %v308, %v306
      %v312 = vshll.u32 %v241, 16
      %v314 = vrot.slane %v312, 1
      %v315 = vsel %vm247, %v310, %v314
      %v320 = vunpack.c.l.b16 %v243
      %v321 = vunpack.c.l.b16 %v244
      %v322 = vunpack.c.l.b16 %v245
      %v323 = vunpack.c.l.b16 %v246
      %v324 = vpack.c.b16 %v321, %v320
      %v325 = vpack.c.b16 %v323, %v322
      %vm328 = vcmask 261120
      %v330 = vsel %vm328, %v259, 0
      %v333 = vsel %vm328, %v267, 0
      %v336 = vsel %vm328, %v275, 0
      %v339 = vsel %vm328, %v283, 0
      %v342 = vsel %vm328, %v291, 0
      %v345 = vsel %vm328, %v299, 0
      %v348 = vsel %vm328, %v307, 0
      %v351 = vsel %vm328, %v315, 0
      %353 = vmatprep.subr.bf16.mxu0 0
      %354 = vmatpush1.bf16.msra.mxu0 %v324
      %355 = vmatprep.subr.bf16.mxu0 0
      %356 = vmatpush1.bf16.msra.mxu0 %v325
      %357 = vmatprep.subr.bf16.mxu0 0
      %358 = vmatpush1.bf16.msra.mxu0 0
      %359 = vmatprep.subr.bf16.mxu0 0
      %360 = vmatpush1.bf16.msra.mxu0 0
      %361 = vmatprep.subr.bf16.mxu0 0
      %362 = vmatpush1.bf16.msra.mxu0 0
      %363 = vmatprep.subr.bf16.mxu0 0
      %364 = vmatpush1.bf16.msra.mxu0 0
      %365 = vmatprep.subr.bf16.mxu0 0
      %366 = vmatpush1.bf16.msra.mxu0 0
      %367 = vmatprep.subr.bf16.mxu0 0
      %368 = vmatpush1.bf16.msra.mxu0 0
      %369 = vmatprep.subr.bf16.mxu0 0
      %370 = vmatpush1.bf16.msra.mxu0 0
      %371 = vmatprep.subr.bf16.mxu0 0
      %372 = vmatpush1.bf16.msra.mxu0 0
      %373 = vmatprep.subr.bf16.mxu0 0
      %374 = vmatpush1.bf16.msra.mxu0 0
      %375 = vmatprep.subr.bf16.mxu0 0
      %376 = vmatpush1.bf16.msra.mxu0 0
      %377 = vmatprep.subr.bf16.mxu0 0
      %378 = vmatpush1.bf16.msra.mxu0 0
      %379 = vmatprep.subr.bf16.mxu0 0
      %380 = vmatpush1.bf16.msra.mxu0 0
      %381 = vmatprep.subr.bf16.mxu0 0
      %382 = vmatpush1.bf16.msra.mxu0 0
      %383 = vmatprep.subr.bf16.mxu0 0
      %384 = vmatpush1.bf16.msra.mxu0 0
      %385 = vmatprep.mubr.bf16.mxu0 0
      %386 = vmatmul.mubr.bf16.gmra.mrb[0].mxu0 %v330
      %v387 = vpop.f32.mrb[0].mxu0
      %v388 = vadd.f32 0.0, %v387
      %v389 = vpop.f32.mrb[0].mxu0
      %v390 = vpop.f32.mrb[0].mxu0
      %v391 = vadd.f32 0.0, %v390
      %v392 = vpop.f32.mrb[0].mxu0
      %393 = vmatprep.mubr.bf16.mxu0 0
      %394 = vmatmul.mubr.bf16.gmra.mrb[0].mxu0 %v333
      %v395 = vpop.f32.mrb[0].mxu0
      %v396 = vadd.f32 0.0, %v395
      %v397 = vpop.f32.mrb[0].mxu0
      %v398 = vpop.f32.mrb[0].mxu0
      %v399 = vadd.f32 0.0, %v398
      %v400 = vpop.f32.mrb[0].mxu0
      %401 = vmatprep.mubr.bf16.mxu0 0
      %402 = vmatmul.mubr.bf16.gmra.mrb[0].mxu0 %v336
      %v403 = vpop.f32.mrb[0].mxu0
      %v404 = vadd.f32 0.0, %v403
      %v405 = vpop.f32.mrb[0].mxu0
      %v406 = vpop.f32.mrb[0].mxu0
      %v407 = vadd.f32 0.0, %v406
      %v408 = vpop.f32.mrb[0].mxu0
      %409 = vmatprep.mubr.bf16.mxu0 0
      %410 = vmatmul.mubr.bf16.gmra.mrb[0].mxu0 %v339
      %v411 = vpop.f32.mrb[0].mxu0
      %v412 = vadd.f32 0.0, %v411
      %v413 = vpop.f32.mrb[0].mxu0
      %v414 = vpop.f32.mrb[0].mxu0
      %v415 = vadd.f32 0.0, %v414
      %v416 = vpop.f32.mrb[0].mxu0
      %417 = vmatprep.mubr.bf16.mxu0 0
      %418 = vmatmul.mubr.bf16.gmra.mrb[0].mxu0 %v342
      %v419 = vpop.f32.mrb[0].mxu0
      %v420 = vadd.f32 0.0, %v419
      %v421 = vpop.f32.mrb[0].mxu0
      %v422 = vpop.f32.mrb[0].mxu0
      %v423 = vadd.f32 0.0, %v422
      %v424 = vpop.f32.mrb[0].mxu0
      %425 = vmatprep.mubr.bf16.mxu0 0
      %426 = vmatmul.mubr.bf16.gmra.mrb[0].mxu0 %v345
      %v427 = vpop.f32.mrb[0].mxu0
      %v428 = vadd.f32 0.0, %v427
      %v429 = vpop.f32.mrb[0].mxu0
      %v430 = vpop.f32.mrb[0].mxu0
      %v431 = vadd.f32 0.0, %v430
      %v432 = vpop.f32.mrb[0].mxu0
      %433 = vmatprep.mubr.bf16.mxu0 0
      %434 = vmatmul.mubr.bf16.gmra.mrb[0].mxu0 %v348
      %v435 = vpop.f32.mrb[0].mxu0
      %v436 = vadd.f32 0.0, %v435
      %v437 = vpop.f32.mrb[0].mxu0
      %v438 = vpop.f32.mrb[0].mxu0
      %v439 = vadd.f32 0.0, %v438
      %v440 = vpop.f32.mrb[0].mxu0
      %441 = vmatprep.mubr.bf16.mxu0 0
      %442 = vmatmul.mubr.bf16.gmra.mrb[0].mxu0 %v351
      %v443 = vpop.f32.mrb[0].mxu0
      %v444 = vadd.f32 0.0, %v443
      %v445 = vpop.f32.mrb[0].mxu0
      %v446 = vpop.f32.mrb[0].mxu0
      %v447 = vadd.f32 0.0, %v446
      %v448 = vpop.f32.mrb[0].mxu0
      %449 = vdwg.mxu0
      %v466 = vunpack.c.l.b16 %v195
      %v467 = vunpack.c.l.b16 %v196
      %v468 = vunpack.c.l.b16 %v197
      %v469 = vunpack.c.l.b16 %v198
      %v470 = vunpack.c.l.b16 %v199
      %v471 = vunpack.c.l.b16 %v200
      %v472 = vunpack.c.l.b16 %v201
      %v473 = vunpack.c.l.b16 %v202
      %v474 = vunpack.c.l.b16 %v203
      %v475 = vunpack.c.l.b16 %v204
      %v476 = vunpack.c.l.b16 %v205
      %v477 = vunpack.c.l.b16 %v206
      %v478 = vunpack.c.l.b16 %v207
      %v479 = vunpack.c.l.b16 %v208
      %v480 = vunpack.c.l.b16 %v209
      %v481 = vunpack.c.l.b16 %v210
      %v482 = vpack.c.b16 %v467, %v466
      %v483 = vpack.c.b16 %v469, %v468
      %v484 = vpack.c.b16 %v471, %v470
      %v485 = vpack.c.b16 %v473, %v472
      %v486 = vpack.c.b16 %v475, %v474
      %v487 = vpack.c.b16 %v477, %v476
      %v488 = vpack.c.b16 %v479, %v478
      %v489 = vpack.c.b16 %v481, %v480
      %v494 = vunpack.c.l.b16 %v229
      %v495 = vunpack.c.l.b16 %v230
      %v496 = vunpack.c.l.b16 %v231
      %v497 = vunpack.c.l.b16 %v232
      %v498 = vpack.c.b16 %v495, %v494
      %v499 = vpack.c.b16 %v497, %v496
      %v503 = vsel %vm328, %v482, 0
      %v506 = vsel %vm328, %v483, 0
      %v509 = vsel %vm328, %v484, 0
      %v512 = vsel %vm328, %v485, 0
      %v515 = vsel %vm328, %v486, 0
      %v518 = vsel %vm328, %v487, 0
      %v521 = vsel %vm328, %v488, 0
      %v524 = vsel %vm328, %v489, 0
      %526 = vmatprep.subr.bf16.mxu0 0
      %527 = vmatpush1.bf16.msra.mxu0 %v498
      %528 = vmatprep.subr.bf16.mxu0 0
      %529 = vmatpush1.bf16.msra.mxu0 %v499
      %530 = vmatprep.subr.bf16.mxu0 0
      %531 = vmatpush1.bf16.msra.mxu0 0
      %532 = vmatprep.subr.bf16.mxu0 0
      %533 = vmatpush1.bf16.msra.mxu0 0
      %534 = vmatprep.subr.bf16.mxu0 0
      %535 = vmatpush1.bf16.msra.mxu0 0
      %536 = vmatprep.subr.bf16.mxu0 0
      %537 = vmatpush1.bf16.msra.mxu0 0
      %538 = vmatprep.subr.bf16.mxu0 0
      %539 = vmatpush1.bf16.msra.mxu0 0
      %540 = vmatprep.subr.bf16.mxu0 0
      %541 = vmatpush1.bf16.msra.mxu0 0
      %542 = vmatprep.subr.bf16.mxu0 0
      %543 = vmatpush1.bf16.msra.mxu0 0
      %544 = vmatprep.subr.bf16.mxu0 0
      %545 = vmatpush1.bf16.msra.mxu0 0
      %546 = vmatprep.subr.bf16.mxu0 0
      %547 = vmatpush1.bf16.msra.mxu0 0
      %548 = vmatprep.subr.bf16.mxu0 0
      %549 = vmatpush1.bf16.msra.mxu0 0
      %550 = vmatprep.subr.bf16.mxu0 0
      %551 = vmatpush1.bf16.msra.mxu0 0
      %552 = vmatprep.subr.bf16.mxu0 0
      %553 = vmatpush1.bf16.msra.mxu0 0
      %554 = vmatprep.subr.bf16.mxu0 0
      %555 = vmatpush1.bf16.msra.mxu0 0
      %556 = vmatprep.subr.bf16.mxu0 0
      %557 = vmatpush1.bf16.msra.mxu0 0
      %558 = vmatprep.mubr.bf16.mxu0 0
      %559 = vmatmul.mubr.bf16.gmra.mrb[0].mxu0 %v503
      %v560 = vpop.f32.mrb[0].mxu0
      %v561 = vadd.f32 %v388, %v560
      %v562 = vpop.f32.mrb[0].mxu0
      %v563 = vpop.f32.mrb[0].mxu0
      %v564 = vadd.f32 %v391, %v563
      %v565 = vpop.f32.mrb[0].mxu0
      %566 = vmatprep.mubr.bf16.mxu0 0
      %567 = vmatmul.mubr.bf16.gmra.mrb[0].mxu0 %v506
      %v568 = vpop.f32.mrb[0].mxu0
      %v569 = vadd.f32 %v396, %v568
      %v570 = vpop.f32.mrb[0].mxu0
      %v571 = vpop.f32.mrb[0].mxu0
      %v572 = vadd.f32 %v399, %v571
      %v573 = vpop.f32.mrb[0].mxu0
      %574 = vmatprep.mubr.bf16.mxu0 0
      %575 = vmatmul.mubr.bf16.gmra.mrb[0].mxu0 %v509
      %v576 = vpop.f32.mrb[0].mxu0
      %v577 = vadd.f32 %v404, %v576
      %v578 = vpop.f32.mrb[0].mxu0
      %v579 = vpop.f32.mrb[0].mxu0
      %v580 = vadd.f32 %v407, %v579
      %v581 = vpop.f32.mrb[0].mxu0
      %582 = vmatprep.mubr.bf16.mxu0 0
      %583 = vmatmul.mubr.bf16.gmra.mrb[0].mxu0 %v512
      %v584 = vpop.f32.mrb[0].mxu0
      %v585 = vadd.f32 %v412, %v584
      %v586 = vpop.f32.mrb[0].mxu0
      %v587 = vpop.f32.mrb[0].mxu0
      %v588 = vadd.f32 %v415, %v587
      %v589 = vpop.f32.mrb[0].mxu0
      %590 = vmatprep.mubr.bf16.mxu0 0
      %591 = vmatmul.mubr.bf16.gmra.mrb[0].mxu0 %v515
      %v592 = vpop.f32.mrb[0].mxu0
      %v593 = vadd.f32 %v420, %v592
      %v594 = vpop.f32.mrb[0].mxu0
      %v595 = vpop.f32.mrb[0].mxu0
      %v596 = vadd.f32 %v423, %v595
      %v597 = vpop.f32.mrb[0].mxu0
      %598 = vmatprep.mubr.bf16.mxu0 0
      %599 = vmatmul.mubr.bf16.gmra.mrb[0].mxu0 %v518
      %v600 = vpop.f32.mrb[0].mxu0
      %v601 = vadd.f32 %v428, %v600
      %v602 = vpop.f32.mrb[0].mxu0
      %v603 = vpop.f32.mrb[0].mxu0
      %v604 = vadd.f32 %v431, %v603
      %v605 = vpop.f32.mrb[0].mxu0
      %606 = vmatprep.mubr.bf16.mxu0 0
      %607 = vmatmul.mubr.bf16.gmra.mrb[0].mxu0 %v521
      %v608 = vpop.f32.mrb[0].mxu0
      %v609 = vadd.f32 %v436, %v608
      %v610 = vpop.f32.mrb[0].mxu0
      %v611 = vpop.f32.mrb[0].mxu0
      %v612 = vadd.f32 %v439, %v611
      %v613 = vpop.f32.mrb[0].mxu0
      %614 = vmatprep.mubr.bf16.mxu0 0
      %615 = vmatmul.mubr.bf16.gmra.mrb[0].mxu0 %v524
      %v616 = vpop.f32.mrb[0].mxu0
      %v617 = vadd.f32 %v444, %v616
      %v618 = vpop.f32.mrb[0].mxu0
      %v619 = vpop.f32.mrb[0].mxu0
      %v620 = vadd.f32 %v447, %v619
      %v621 = vpop.f32.mrb[0].mxu0
      %622 = vdwg.mxu0
      %v623 = vld [vmem:[%s183 + $0x8] sm:$0xf]
      %v624 = vld [vmem:[%s183 + $0xc] sm:$0xf]
      %v625 = vld [vmem:[%s183 + $0x10] sm:$0xf]
      %v626 = vld [vmem:[%s183 + $0x14] sm:$0xf]
      %v627 = vld [vmem:[%s183 + $0x18] sm:$0xf]
      %v628 = vld [vmem:[%s183 + $0x1c] sm:$0xf]
      %v629 = vld [vmem:[%s183 + $0x20] sm:$0xf]
      %v630 = vld [vmem:[%s183 + $0x24] sm:$0xf]
      %v631 = vld [vmem:[%s183 + $0x28] sm:$0xf]
      %v632 = vld [vmem:[%s183 + $0x2c] sm:$0xf]
      %v633 = vld [vmem:[%s183 + $0x30] sm:$0xf]
      %v634 = vld [vmem:[%s183 + $0x34] sm:$0xf]
      %v635 = vld [vmem:[%s183 + $0x38] sm:$0xf]
      %v636 = vld [vmem:[%s183 + $0x3c] sm:$0xf]
      %v637 = vld [vmem:[%s183 + $0x40] sm:$0xf]
      %v638 = vld [vmem:[%s183 + $0x44] sm:$0xf]
      %v639 = vld [vmem:[%s183 + $0x48] sm:$0xf]
      %v640 = vunpack.c.l.bf16 %v623
      %v641 = vunpack.c.l.bf16 %v624
      %v642 = vunpack.c.l.bf16 %v625
      %v643 = vunpack.c.l.bf16 %v626
      %v644 = vunpack.c.l.bf16 %v627
      %v645 = vunpack.c.l.bf16 %v628
      %v646 = vunpack.c.l.bf16 %v629
      %v647 = vunpack.c.l.bf16 %v630
      %v648 = vunpack.c.l.bf16 %v631
      %v649 = vunpack.c.l.bf16 %v632
      %v650 = vunpack.c.l.bf16 %v633
      %v651 = vunpack.c.l.bf16 %v634
      %v652 = vunpack.c.l.bf16 %v635
      %v653 = vunpack.c.l.bf16 %v636
      %v654 = vunpack.c.l.bf16 %v637
      %v655 = vunpack.c.l.bf16 %v638
      %v656 = vunpack.c.l.bf16 %v639
      %s657 = scalar_lea.vmem %s1, 32
      %v658 = vld [vmem:[%s657] sm:$0xf]
      %v659 = vld [vmem:[%s657 + $0x4] sm:$0xf]
      %v660 = vld [vmem:[%s657 + $0x8] sm:$0xf]
      %v661 = vld [vmem:[%s657 + $0xc] sm:$0xf]
      %v678 = vunpack.c.l.b16 %v623
      %v679 = vunpack.c.l.b16 %v624
      %v680 = vunpack.c.l.b16 %v625
      %v681 = vunpack.c.l.b16 %v626
      %v682 = vunpack.c.l.b16 %v627
      %v683 = vunpack.c.l.b16 %v628
      %v684 = vunpack.c.l.b16 %v629
      %v685 = vunpack.c.l.b16 %v630
      %v686 = vunpack.c.l.b16 %v631
      %v687 = vunpack.c.l.b16 %v632
      %v688 = vunpack.c.l.b16 %v633
      %v689 = vunpack.c.l.b16 %v634
      %v690 = vunpack.c.l.b16 %v635
      %v691 = vunpack.c.l.b16 %v636
      %v692 = vunpack.c.l.b16 %v637
      %v693 = vunpack.c.l.b16 %v638
      %v694 = vpack.c.b16 %v679, %v678
      %v695 = vpack.c.b16 %v681, %v680
      %v696 = vpack.c.b16 %v683, %v682
      %v697 = vpack.c.b16 %v685, %v684
      %v698 = vpack.c.b16 %v687, %v686
      %v699 = vpack.c.b16 %v689, %v688
      %v700 = vpack.c.b16 %v691, %v690
      %v701 = vpack.c.b16 %v693, %v692
      %v706 = vunpack.c.l.b16 %v658
      %v707 = vunpack.c.l.b16 %v659
      %v708 = vunpack.c.l.b16 %v660
      %v709 = vunpack.c.l.b16 %v661
      %v710 = vpack.c.b16 %v707, %v706
      %v711 = vpack.c.b16 %v709, %v708
      %v715 = vsel %vm328, %v694, 0
      %v718 = vsel %vm328, %v695, 0
      %v721 = vsel %vm328, %v696, 0
      %v724 = vsel %vm328, %v697, 0
      %v727 = vsel %vm328, %v698, 0
      %v730 = vsel %vm328, %v699, 0
      %v733 = vsel %vm328, %v700, 0
      %v736 = vsel %vm328, %v701, 0
      %738 = vmatprep.subr.bf16.mxu0 0
      %739 = vmatpush1.bf16.msra.mxu0 %v710
      %740 = vmatprep.subr.bf16.mxu0 0
      %741 = vmatpush1.bf16.msra.mxu0 %v711
      %742 = vmatprep.subr.bf16.mxu0 0
      %743 = vmatpush1.bf16.msra.mxu0 0
      %744 = vmatprep.subr.bf16.mxu0 0
      %745 = vmatpush1.bf16.msra.mxu0 0
      %746 = vmatprep.subr.bf16.mxu0 0
      %747 = vmatpush1.bf16.msra.mxu0 0
      %748 = vmatprep.subr.bf16.mxu0 0
      %749 = vmatpush1.bf16.msra.mxu0 0
      %750 = vmatprep.subr.bf16.mxu0 0
      %751 = vmatpush1.bf16.msra.mxu0 0
      %752 = vmatprep.subr.bf16.mxu0 0
      %753 = vmatpush1.bf16.msra.mxu0 0
      %754 = vmatprep.subr.bf16.mxu0 0
      %755 = vmatpush1.bf16.msra.mxu0 0
      %756 = vmatprep.subr.bf16.mxu0 0
      %757 = vmatpush1.bf16.msra.mxu0 0
      %758 = vmatprep.subr.bf16.mxu0 0
      %759 = vmatpush1.bf16.msra.mxu0 0
      %760 = vmatprep.subr.bf16.mxu0 0
      %761 = vmatpush1.bf16.msra.mxu0 0
      %762 = vmatprep.subr.bf16.mxu0 0
      %763 = vmatpush1.bf16.msra.mxu0 0
      %764 = vmatprep.subr.bf16.mxu0 0
      %765 = vmatpush1.bf16.msra.mxu0 0
      %766 = vmatprep.subr.bf16.mxu0 0
      %767 = vmatpush1.bf16.msra.mxu0 0
      %768 = vmatprep.subr.bf16.mxu0 0
      %769 = vmatpush1.bf16.msra.mxu0 0
      %770 = vmatprep.mubr.bf16.mxu0 0
      %771 = vmatmul.mubr.bf16.gmra.mrb[0].mxu0 %v715
      %v772 = vpop.f32.mrb[0].mxu0
      %v773 = vadd.f32 0.0, %v772
      %v774 = vpop.f32.mrb[0].mxu0
      %v775 = vpop.f32.mrb[0].mxu0
      %v776 = vadd.f32 0.0, %v775
      %v777 = vpop.f32.mrb[0].mxu0
      %778 = vmatprep.mubr.bf16.mxu0 0
      %779 = vmatmul.mubr.bf16.gmra.mrb[0].mxu0 %v718
      %v780 = vpop.f32.mrb[0].mxu0
      %v781 = vadd.f32 0.0, %v780
      %v782 = vpop.f32.mrb[0].mxu0
      %v783 = vpop.f32.mrb[0].mxu0
      %v784 = vadd.f32 0.0, %v783
      %v785 = vpop.f32.mrb[0].mxu0
      %786 = vmatprep.mubr.bf16.mxu0 0
      %787 = vmatmul.mubr.bf16.gmra.mrb[0].mxu0 %v721
      %v788 = vpop.f32.mrb[0].mxu0
      %v789 = vadd.f32 0.0, %v788
      %v790 = vpop.f32.mrb[0].mxu0
      %v791 = vpop.f32.mrb[0].mxu0
      %v792 = vadd.f32 0.0, %v791
      %v793 = vpop.f32.mrb[0].mxu0
      %794 = vmatprep.mubr.bf16.mxu0 0
      %795 = vmatmul.mubr.bf16.gmra.mrb[0].mxu0 %v724
      %v796 = vpop.f32.mrb[0].mxu0
      %v797 = vadd.f32 0.0, %v796
      %v798 = vpop.f32.mrb[0].mxu0
      %v799 = vpop.f32.mrb[0].mxu0
      %v800 = vadd.f32 0.0, %v799
      %v801 = vpop.f32.mrb[0].mxu0
      %802 = vmatprep.mubr.bf16.mxu0 0
      %803 = vmatmul.mubr.bf16.gmra.mrb[0].mxu0 %v727
      %v804 = vpop.f32.mrb[0].mxu0
      %v805 = vadd.f32 0.0, %v804
      %v806 = vpop.f32.mrb[0].mxu0
      %v807 = vpop.f32.mrb[0].mxu0
      %v808 = vadd.f32 0.0, %v807
      %v809 = vpop.f32.mrb[0].mxu0
      %810 = vmatprep.mubr.bf16.mxu0 0
      %811 = vmatmul.mubr.bf16.gmra.mrb[0].mxu0 %v730
      %v812 = vpop.f32.mrb[0].mxu0
      %v813 = vadd.f32 0.0, %v812
      %v814 = vpop.f32.mrb[0].mxu0
      %v815 = vpop.f32.mrb[0].mxu0
      %v816 = vadd.f32 0.0, %v815
      %v817 = vpop.f32.mrb[0].mxu0
      %818 = vmatprep.mubr.bf16.mxu0 0
      %819 = vmatmul.mubr.bf16.gmra.mrb[0].mxu0 %v733
      %v820 = vpop.f32.mrb[0].mxu0
      %v821 = vadd.f32 0.0, %v820
      %v822 = vpop.f32.mrb[0].mxu0
      %v823 = vpop.f32.mrb[0].mxu0
      %v824 = vadd.f32 0.0, %v823
      %v825 = vpop.f32.mrb[0].mxu0
      %826 = vmatprep.mubr.bf16.mxu0 0
      %827 = vmatmul.mubr.bf16.gmra.mrb[0].mxu0 %v736
      %v828 = vpop.f32.mrb[0].mxu0
      %v829 = vadd.f32 0.0, %v828
      %v830 = vpop.f32.mrb[0].mxu0
      %v831 = vpop.f32.mrb[0].mxu0
      %v832 = vadd.f32 0.0, %v831
      %v833 = vpop.f32.mrb[0].mxu0
      %834 = vdwg.mxu0
      %v835 = vadd.f32 %v561, %v773
      %v836 = vadd.f32 %v564, %v776
      %v837 = vadd.f32 %v569, %v781
      %v838 = vadd.f32 %v572, %v784
      %v839 = vadd.f32 %v577, %v789
      %v840 = vadd.f32 %v580, %v792
      %v841 = vadd.f32 %v585, %v797
      %v842 = vadd.f32 %v588, %v800
      %v843 = vadd.f32 %v593, %v805
      %v844 = vadd.f32 %v596, %v808
      %v845 = vadd.f32 %v601, %v813
      %v846 = vadd.f32 %v604, %v816
      %v847 = vadd.f32 %v609, %v821
      %v848 = vadd.f32 %v612, %v824
      %v849 = vadd.f32 %v617, %v829
      %v850 = vadd.f32 %v620, %v832
      %v851 = vpack.c.bf16 %v641, %v640
      %v852 = vpack.c.bf16 %v643, %v642
      %v853 = vpack.c.bf16 %v645, %v644
      %v854 = vpack.c.bf16 %v647, %v646
      %v855 = vpack.c.bf16 %v649, %v648
      %v856 = vpack.c.bf16 %v651, %v650
      %v857 = vpack.c.bf16 %v653, %v652
      %v858 = vpack.c.bf16 %v655, %v654
      %v859 = vpack.c.bf16 %v656, %v656
      %s860 = scalar_lea.vmem %s1, 48
      %v861 = vld [vmem:[%s860] sm:$0xf]
      %v862 = vld [vmem:[%s860 + $0x4] sm:$0xf]
      %v863 = vld [vmem:[%s860 + $0x8] sm:$0xf]
      %v864 = vld [vmem:[%s860 + $0xc] sm:$0xf]
      %v866 = vshrl.u32 %v851, 16
      %v868 = vshll.u32 %v851, 16
      %v870 = vrot.slane %v868, 1
      %v871 = vor.u32 %v866, %v870
      %v873 = vshll.u32 %v852, 16
      %v875 = vrot.slane %v873, 1
      %v876 = vsel %vm247, %v871, %v875
      %v877 = vshrl.u32 %v852, 16
      %v879 = vor.u32 %v877, %v875
      %v881 = vshll.u32 %v853, 16
      %v883 = vrot.slane %v881, 1
      %v884 = vsel %vm247, %v879, %v883
      %v885 = vshrl.u32 %v853, 16
      %v887 = vor.u32 %v885, %v883
      %v889 = vshll.u32 %v854, 16
      %v891 = vrot.slane %v889, 1
      %v892 = vsel %vm247, %v887, %v891
      %v893 = vshrl.u32 %v854, 16
      %v895 = vor.u32 %v893, %v891
      %v897 = vshll.u32 %v855, 16
      %v899 = vrot.slane %v897, 1
      %v900 = vsel %vm247, %v895, %v899
      %v901 = vshrl.u32 %v855, 16
      %v903 = vor.u32 %v901, %v899
      %v905 = vshll.u32 %v856, 16
      %v907 = vrot.slane %v905, 1
      %v908 = vsel %vm247, %v903, %v907
      %v909 = vshrl.u32 %v856, 16
      %v911 = vor.u32 %v909, %v907
      %v913 = vshll.u32 %v857, 16
      %v915 = vrot.slane %v913, 1
      %v916 = vsel %vm247, %v911, %v915
      %v917 = vshrl.u32 %v857, 16
      %v919 = vor.u32 %v917, %v915
      %v921 = vshll.u32 %v858, 16
      %v923 = vrot.slane %v921, 1
      %v924 = vsel %vm247, %v919, %v923
      %v925 = vshrl.u32 %v858, 16
      %v927 = vor.u32 %v925, %v923
      %v929 = vshll.u32 %v859, 16
      %v931 = vrot.slane %v929, 1
      %v932 = vsel %vm247, %v927, %v931
      %v937 = vunpack.c.l.b16 %v861
      %v938 = vunpack.c.l.b16 %v862
      %v939 = vunpack.c.l.b16 %v863
      %v940 = vunpack.c.l.b16 %v864
      %v941 = vpack.c.b16 %v938, %v937
      %v942 = vpack.c.b16 %v940, %v939
      %v946 = vsel %vm328, %v876, 0
      %v949 = vsel %vm328, %v884, 0
      %v952 = vsel %vm328, %v892, 0
      %v955 = vsel %vm328, %v900, 0
      %v958 = vsel %vm328, %v908, 0
      %v961 = vsel %vm328, %v916, 0
      %v964 = vsel %vm328, %v924, 0
      %v967 = vsel %vm328, %v932, 0
      %969 = vmatprep.subr.bf16.mxu0 0
      %970 = vmatpush1.bf16.msra.mxu0 %v941
      %971 = vmatprep.subr.bf16.mxu0 0
      %972 = vmatpush1.bf16.msra.mxu0 %v942
      %973 = vmatprep.subr.bf16.mxu0 0
      %974 = vmatpush1.bf16.msra.mxu0 0
      %975 = vmatprep.subr.bf16.mxu0 0
      %976 = vmatpush1.bf16.msra.mxu0 0
      %977 = vmatprep.subr.bf16.mxu0 0
      %978 = vmatpush1.bf16.msra.mxu0 0
      %979 = vmatprep.subr.bf16.mxu0 0
      %980 = vmatpush1.bf16.msra.mxu0 0
      %981 = vmatprep.subr.bf16.mxu0 0
      %982 = vmatpush1.bf16.msra.mxu0 0
      %983 = vmatprep.subr.bf16.mxu0 0
      %984 = vmatpush1.bf16.msra.mxu0 0
      %985 = vmatprep.subr.bf16.mxu0 0
      %986 = vmatpush1.bf16.msra.mxu0 0
      %987 = vmatprep.subr.bf16.mxu0 0
      %988 = vmatpush1.bf16.msra.mxu0 0
      %989 = vmatprep.subr.bf16.mxu0 0
      %990 = vmatpush1.bf16.msra.mxu0 0
      %991 = vmatprep.subr.bf16.mxu0 0
      %992 = vmatpush1.bf16.msra.mxu0 0
      %993 = vmatprep.subr.bf16.mxu0 0
      %994 = vmatpush1.bf16.msra.mxu0 0
      %995 = vmatprep.subr.bf16.mxu0 0
      %996 = vmatpush1.bf16.msra.mxu0 0
      %997 = vmatprep.subr.bf16.mxu0 0
      %998 = vmatpush1.bf16.msra.mxu0 0
      %999 = vmatprep.subr.bf16.mxu0 0
      %1000 = vmatpush1.bf16.msra.mxu0 0
      %1001 = vmatprep.mubr.bf16.mxu0 0
      %1002 = vmatmul.mubr.bf16.gmra.mrb[0].mxu0 %v946
      %v1003 = vpop.f32.mrb[0].mxu0
      %v1004 = vadd.f32 0.0, %v1003
      %v1005 = vpop.f32.mrb[0].mxu0
      %v1006 = vpop.f32.mrb[0].mxu0
      %v1007 = vadd.f32 0.0, %v1006
      %v1008 = vpop.f32.mrb[0].mxu0
      %1009 = vmatprep.mubr.bf16.mxu0 0
      %1010 = vmatmul.mubr.bf16.gmra.mrb[0].mxu0 %v949
      %v1011 = vpop.f32.mrb[0].mxu0
      %v1012 = vadd.f32 0.0, %v1011
      %v1013 = vpop.f32.mrb[0].mxu0
      %v1014 = vpop.f32.mrb[0].mxu0
      %v1015 = vadd.f32 0.0, %v1014
      %v1016 = vpop.f32.mrb[0].mxu0
      %1017 = vmatprep.mubr.bf16.mxu0 0
      %1018 = vmatmul.mubr.bf16.gmra.mrb[0].mxu0 %v952
      %v1019 = vpop.f32.mrb[0].mxu0
      %v1020 = vadd.f32 0.0, %v1019
      %v1021 = vpop.f32.mrb[0].mxu0
      %v1022 = vpop.f32.mrb[0].mxu0
      %v1023 = vadd.f32 0.0, %v1022
      %v1024 = vpop.f32.mrb[0].mxu0
      %1025 = vmatprep.mubr.bf16.mxu0 0
      %1026 = vmatmul.mubr.bf16.gmra.mrb[0].mxu0 %v955
      %v1027 = vpop.f32.mrb[0].mxu0
      %v1028 = vadd.f32 0.0, %v1027
      %v1029 = vpop.f32.mrb[0].mxu0
      %v1030 = vpop.f32.mrb[0].mxu0
      %v1031 = vadd.f32 0.0, %v1030
      %v1032 = vpop.f32.mrb[0].mxu0
      %1033 = vmatprep.mubr.bf16.mxu0 0
      %1034 = vmatmul.mubr.bf16.gmra.mrb[0].mxu0 %v958
      %v1035 = vpop.f32.mrb[0].mxu0
      %v1036 = vadd.f32 0.0, %v1035
      %v1037 = vpop.f32.mrb[0].mxu0
      %v1038 = vpop.f32.mrb[0].mxu0
      %v1039 = vadd.f32 0.0, %v1038
      %v1040 = vpop.f32.mrb[0].mxu0
      %1041 = vmatprep.mubr.bf16.mxu0 0
      %1042 = vmatmul.mubr.bf16.gmra.mrb[0].mxu0 %v961
      %v1043 = vpop.f32.mrb[0].mxu0
      %v1044 = vadd.f32 0.0, %v1043
      %v1045 = vpop.f32.mrb[0].mxu0
      %v1046 = vpop.f32.mrb[0].mxu0
      %v1047 = vadd.f32 0.0, %v1046
      %v1048 = vpop.f32.mrb[0].mxu0
      %1049 = vmatprep.mubr.bf16.mxu0 0
      %1050 = vmatmul.mubr.bf16.gmra.mrb[0].mxu0 %v964
      %v1051 = vpop.f32.mrb[0].mxu0
      %v1052 = vadd.f32 0.0, %v1051
      %v1053 = vpop.f32.mrb[0].mxu0
      %v1054 = vpop.f32.mrb[0].mxu0
      %v1055 = vadd.f32 0.0, %v1054
      %v1056 = vpop.f32.mrb[0].mxu0
      %1057 = vmatprep.mubr.bf16.mxu0 0
      %1058 = vmatmul.mubr.bf16.gmra.mrb[0].mxu0 %v967
      %v1059 = vpop.f32.mrb[0].mxu0
      %v1060 = vadd.f32 0.0, %v1059
      %v1061 = vpop.f32.mrb[0].mxu0
      %v1062 = vpop.f32.mrb[0].mxu0
      %v1063 = vadd.f32 0.0, %v1062
      %v1064 = vpop.f32.mrb[0].mxu0
      %1065 = vdwg.mxu0
      %v1066 = vadd.f32 %v835, %v1004
      %v1067 = vadd.f32 %v836, %v1007
      %v1068 = vadd.f32 %v837, %v1012
      %v1069 = vadd.f32 %v838, %v1015
      %v1070 = vadd.f32 %v839, %v1020
      %v1071 = vadd.f32 %v840, %v1023
      %v1072 = vadd.f32 %v841, %v1028
      %v1073 = vadd.f32 %v842, %v1031
      %v1074 = vadd.f32 %v843, %v1036
      %v1075 = vadd.f32 %v844, %v1039
      %v1076 = vadd.f32 %v845, %v1044
      %v1077 = vadd.f32 %v846, %v1047
      %v1078 = vadd.f32 %v847, %v1052
      %v1079 = vadd.f32 %v848, %v1055
      %v1080 = vadd.f32 %v849, %v1060
      %v1081 = vadd.f32 %v850, %v1063
      %v1082 = vld [vmem:[%s2] sm:$0x1]
      %v1084 = vlaneseq
      %v1085 = vshrl.u32 %v1084, 7
      %v1086 = vsub.s32 0, %v1085
      %v1087 = vrot.slane %v1082, %v1086
      %v1089 = vadd.f32 %v1066, %v1087
      %v1090 = vadd.f32 %v1067, %v1087
      %v1091 = vadd.f32 %v1068, %v1087
      %v1092 = vadd.f32 %v1069, %v1087
      %v1093 = vadd.f32 %v1070, %v1087
      %v1094 = vadd.f32 %v1071, %v1087
      %v1095 = vadd.f32 %v1072, %v1087
      %v1096 = vadd.f32 %v1073, %v1087
      %v1097 = vadd.f32 %v1074, %v1087
      %v1098 = vadd.f32 %v1075, %v1087
      %v1099 = vadd.f32 %v1076, %v1087
      %v1100 = vadd.f32 %v1077, %v1087
      %v1101 = vadd.f32 %v1078, %v1087
      %v1102 = vadd.f32 %v1079, %v1087
      %v1103 = vadd.f32 %v1080, %v1087
      %v1104 = vadd.f32 %v1081, %v1087
      %v1105 = vmax.f32 %v1089, 0.0
      %v1106 = vmax.f32 %v1090, 0.0
      %v1107 = vmax.f32 %v1091, 0.0
      %v1108 = vmax.f32 %v1092, 0.0
      %v1109 = vmax.f32 %v1093, 0.0
      %v1110 = vmax.f32 %v1094, 0.0
      %v1111 = vmax.f32 %v1095, 0.0
      %v1112 = vmax.f32 %v1096, 0.0
      %v1113 = vmax.f32 %v1097, 0.0
      %v1114 = vmax.f32 %v1098, 0.0
      %v1115 = vmax.f32 %v1099, 0.0
      %v1116 = vmax.f32 %v1100, 0.0
      %v1117 = vmax.f32 %v1101, 0.0
      %v1118 = vmax.f32 %v1102, 0.0
      %v1119 = vmax.f32 %v1103, 0.0
      %v1120 = vmax.f32 %v1104, 0.0
      %v1121 = vpack.c.bf16 %v1106, %v1105
      %v1122 = vpack.c.bf16 %v1108, %v1107
      %v1123 = vpack.c.bf16 %v1110, %v1109
      %v1124 = vpack.c.bf16 %v1112, %v1111
      %v1125 = vpack.c.bf16 %v1114, %v1113
      %v1126 = vpack.c.bf16 %v1116, %v1115
      %v1127 = vpack.c.bf16 %v1118, %v1117
      %v1128 = vpack.c.bf16 %v1120, %v1119
      %v1137 = vunpack.c.l.b16 %v1121
      %v1138 = vunpack.c.h.b16 %v1121
      %v1139 = vunpack.c.l.b16 %v1122
      %v1140 = vunpack.c.h.b16 %v1122
      %v1141 = vunpack.c.l.b16 %v1123
      %v1142 = vunpack.c.h.b16 %v1123
      %v1143 = vunpack.c.l.b16 %v1124
      %v1144 = vunpack.c.h.b16 %v1124
      %v1145 = vunpack.c.l.b16 %v1125
      %v1146 = vunpack.c.h.b16 %v1125
      %v1147 = vunpack.c.l.b16 %v1126
      %v1148 = vunpack.c.h.b16 %v1126
      %v1149 = vunpack.c.l.b16 %v1127
      %v1150 = vunpack.c.h.b16 %v1127
      %v1151 = vunpack.c.l.b16 %v1128
      %v1152 = vunpack.c.h.b16 %v1128
      %v1153 = vpack.c.b16 %v1137, %v1137
      %v1154 = vpack.c.b16 %v1138, %v1138
      %v1155 = vpack.c.b16 %v1139, %v1139
      %v1156 = vpack.c.b16 %v1140, %v1140
      %v1157 = vpack.c.b16 %v1141, %v1141
      %v1158 = vpack.c.b16 %v1142, %v1142
      %v1159 = vpack.c.b16 %v1143, %v1143
      %v1160 = vpack.c.b16 %v1144, %v1144
      %v1161 = vpack.c.b16 %v1145, %v1145
      %v1162 = vpack.c.b16 %v1146, %v1146
      %v1163 = vpack.c.b16 %v1147, %v1147
      %v1164 = vpack.c.b16 %v1148, %v1148
      %v1165 = vpack.c.b16 %v1149, %v1149
      %v1166 = vpack.c.b16 %v1150, %v1150
      %v1167 = vpack.c.b16 %v1151, %v1151
      %v1168 = vpack.c.b16 %v1152, %v1152
      %vm1185 = vcmask 60416
      %1186 = vst.msk [vmem:[%s192] sm:$0xf] %vm1185, %v1153
      %1187 = vst.msk [vmem:[%s192 + $0x4] sm:$0xf] %vm1185, %v1154
      %1188 = vst.msk [vmem:[%s192 + $0x8] sm:$0xf] %vm1185, %v1155
      %1189 = vst.msk [vmem:[%s192 + $0xc] sm:$0xf] %vm1185, %v1156
      %1190 = vst.msk [vmem:[%s192 + $0x10] sm:$0xf] %vm1185, %v1157
      %1191 = vst.msk [vmem:[%s192 + $0x14] sm:$0xf] %vm1185, %v1158
      %1192 = vst.msk [vmem:[%s192 + $0x18] sm:$0xf] %vm1185, %v1159
      %1193 = vst.msk [vmem:[%s192 + $0x1c] sm:$0xf] %vm1185, %v1160
      %1194 = vst.msk [vmem:[%s192 + $0x20] sm:$0xf] %vm1185, %v1161
      %1195 = vst.msk [vmem:[%s192 + $0x24] sm:$0xf] %vm1185, %v1162
      %1196 = vst.msk [vmem:[%s192 + $0x28] sm:$0xf] %vm1185, %v1163
      %1197 = vst.msk [vmem:[%s192 + $0x2c] sm:$0xf] %vm1185, %v1164
      %1198 = vst.msk [vmem:[%s192 + $0x30] sm:$0xf] %vm1185, %v1165
      %1199 = vst.msk [vmem:[%s192 + $0x34] sm:$0xf] %vm1185, %v1166
      %1200 = vst.msk [vmem:[%s192 + $0x38] sm:$0xf] %vm1185, %v1167
      %1201 = vst.msk [vmem:[%s192 + $0x3c] sm:$0xf] %vm1185, %v1168
      %s1202 = smul.u32 16, %s19
      %p1203 = scmp.lt.s32.totalorder %s18, 5
      %s1204 = scalar_select %p1203, %s18, 5
      %p1205 = scmp.lt.s32.totalorder %s1202, 15
      %s1206 = scalar_select %p1205, %s1202, 15
      %s1207 = smul.addr %s1204, 16
      %s1208 = sadd.s32 %s1206, %s1207
      %s1209 = smul.addr %s1208, 4
      %s1210 = scalar_lea.vmem %s3, %s1209
      // Predicated region
      $region33: #{scene_net_forward.13} parent=31 // pred_check
        %p1211 = pneg %p114
      $region34: #{scene_net_forward.13} parent=31 // pred_check_branch
        %1213 = sbr.rel (%p1211) target = $region36
      $region35: #{scene_net_forward.13} parent=31 // pred_region
        %s1214 = smul.u32 16, %s19
      $region36: #{scene_net_forward.13} parent=31 // pred_fallthru
        _
    $region32: #{scene_net_forward.13} parent=5 // pred_fallthru
      _
    %p1215 = scmp.le.s32.totalorder 2, %s9
    // Predicated region
    $region37: #{scene_net_forward.13} parent=5 // pred_check
      %p1216 = pneg %p1215
    $region38: #{scene_net_forward.13} parent=5 // pred_check_branch
      %1218 = sbr.rel (%p1216) target = $region40
    $region39: #{scene_net_forward.13} parent=5 // pred_region
      %s1219 = ssub.s32 %s9, 2
      // Predicated region
      $region41: #{scene_net_forward.13} parent=39 // pred_check
        %p1220 = pneg %p120
      $region42: #{scene_net_forward.13} parent=39 // pred_check_branch
        %1222 = sbr.rel (%p1220) target = $region44
      $region43: #{scene_net_forward.13} parent=39 // pred_region
        %s1223 = smul.u32 16, %s21
        %p1224 = scmp.lt.s32.totalorder %s20, 5
        %s1225 = scalar_select %p1224, %s20, 5
        %p1226 = scmp.lt.s32.totalorder %s1223, 15
        %s1227 = scalar_select %p1226, %s1223, 15
        %s1228 = smul.addr %s1225, 16
        %s1229 = sadd.s32 %s1227, %s1228
        %s1230 = smul.addr %s1229, 4
        %s1231 = scalar_lea.vmem %s3, %s1230
      $region44: #{scene_net_forward.13} parent=39 // pred_fallthru
        _
    $region40: #{scene_net_forward.13} parent=5 // pred_fallthru
      _
  $region6: #{scene_net_forward.13} parent=0 // loop_footer
    %s13 = sadd.s32 1, %s9
  $region7: #{scene_net_forward.13} parent=0 // loop_footer_branch
    %8 = sbr.rel target = $region3
  $region8: #{scene_net_forward.13} parent=0 // loop_exit
    _

// kernel: scene_net_forward.14
$region0: #{scene_net_forward.14}
  #allocation0 [shape = 'u32[]', space=smem, size = 0x4, offset = 0x4, fixed_abs, tag = 'smem constant byte address 0x4 - core index']
  #allocation1 [shape = 'u32[144,128]{1,0:T(1,128)}', space=vmem, size = 0x12000, scoped, tag = 'internal scratch']
  %s0 = inlined_call_operand.vmem [shape: bf16[6,48,32], index: 0, kind: input, shape index: {}]
  %s1 = inlined_call_operand.vmem [shape: bf16[4,32,16], index: 1, kind: input, shape index: {}]
  %s2 = inlined_call_operand.vmem [shape: f32[1,16], index: 2, kind: input, shape index: {}]
  %s3 = inlined_call_operand.vmem [shape: bf16[6,32,16], index: 3, kind: output, shape index: {}]
  %s4 = sld [smem:[#allocation0]]
  $region45: #{scene_net_forward.14} parent=0
    _
  %s6 = ssub.s32 1, %s4
  %s7 = scalar_select 0, %s6, %s4
  loop: start=0, step=1, limit=8
  $region2: #{scene_net_forward.14} parent=0 // loop_pre_header
    _
  $region3: #{scene_net_forward.14} parent=0 // loop_header
    %s9 = sphi 0, %s13
    %p10 = scmp.ge.s32.totalorder %s9, 8
    %s16 = sphi 0, %s28
    %s17 = sphi 0, %s24
    %s18 = sphi 0, %s16
    %s19 = sphi 0, %s17
    %s20 = sphi 0, %s18
    %s21 = sphi 0, %s19
    %s31 = sphi 0, %s33
    %s34 = sphi 0, %s31
    %s35 = sphi 0, %s34
    %s51 = sphi 0, %s35
    %s55 = sphi 0, %s55
    %s57 = sphi 0, %s55
    %s58 = sphi 0, %s57
    %s72 = sphi 0, %s58
    %s76 = sphi 0, %s76
    %s78 = sphi 0, %s76
    %s79 = sphi 0, %s78
    %s93 = sphi 0, %s79
    %s101 = sphi 0, %s103
    %s104 = sphi 0, %s101
    %s105 = sphi 0, %s104
    %s121 = sphi 0, %s105
  $region4: #{scene_net_forward.14} parent=0 // loop_header_branch
    %12 = sbr.rel (%p10) target = $region8
  $region5: #{scene_net_forward.14} parent=0 // loop_body
    %s14 = ssub.s32 %s9, 1
    %s15 = ssub.s32 %s9, 2
    %s22 = sadd.s32 1, %s17
    %p23 = scmp.ge.s32.totalorder %s22, 1
    %s24 = scalar_select %p23, 0, %s22
    %s25 = sadd.s32 1, %s16
    %s26 = scalar_select %p23, %s25, %s16
    %p27 = scmp.ge.s32.totalorder %s26, 6
    %s28 = scalar_select %p27, 0, %s26
    %s29 = ssub.s32 %s16, %s28
    %p30 = scmp.eq.s32.totalorder %s29, 0
    %s32 = sadd.s32 %s31, 1
    %s33 = scalar_select %p30, %s31, %s32
    %p36 = pneg %p30
    %p37 = scmp.eq.s32.totalorder %s9, 5
    %p38 = por %p36, %p37
    %p39 = scmp.ne.s32.totalorder %s31, %s34
    %p40 = scmp.eq.s32.totalorder %s9, 0
    %p41 = por %p39, %p40
    %p42 = scmp.ne.s32.totalorder %s31, %s34
    %p43 = scmp.eq.s32.totalorder %s14, 5
    %p44 = por %p42, %p43
    %p45 = scmp.ne.s32.totalorder %s34, %s35
    %p46 = scmp.eq.s32.totalorder %s14, 0
    %p47 = por %p45, %p46
    %p48 = scmp.ne.s32.totalorder %s34, %s35
    %p49 = scmp.eq.s32.totalorder %s15, 5
    %p50 = por %p48, %p49
    %p52 = scmp.ne.s32.totalorder %s35, %s51
    %p53 = scmp.eq.s32.totalorder %s15, 0
    %p54 = por %p52, %p53
    %s56 = sadd.s32 %s55, 1
    %p59 = scmp.eq.s32.totalorder %s9, 5
    %p60 = scmp.ne.s32.totalorder %s55, %s57
    %p61 = scmp.eq.s32.totalorder %s9, 0
    %p62 = por %p60, %p61
    %p63 = scmp.ne.s32.totalorder %s55, %s57
    %p64 = scmp.eq.s32.totalorder %s14, 5
    %p65 = por %p63, %p64
    %p66 = scmp.ne.s32.totalorder %s57, %s58
    %p67 = scmp.eq.s32.totalorder %s14, 0
    %p68 = por %p66, %p67
    %p69 = scmp.ne.s32.totalorder %s57, %s58
    %p70 = scmp.eq.s32.totalorder %s15, 5
    %p71 = por %p69, %p70
    %p73 = scmp.ne.s32.totalorder %s58, %s72
    %p74 = scmp.eq.s32.totalorder %s15, 0
    %p75 = por %p73, %p74
    %s77 = sadd.s32 %s76, 1
    %p80 = scmp.eq.s32.totalorder %s9, 5
    %p81 = scmp.ne.s32.totalorder %s76, %s78
    %p82 = scmp.eq.s32.totalorder %s9, 0
    %p83 = por %p81, %p82
    %p84 = scmp.ne.s32.totalorder %s76, %s78
    %p85 = scmp.eq.s32.totalorder %s14, 5
    %p86 = por %p84, %p85
    %p87 = scmp.ne.s32.totalorder %s78, %s79
    %p88 = scmp.eq.s32.totalorder %s14, 0
    %p89 = por %p87, %p88
    %p90 = scmp.ne.s32.totalorder %s78, %s79
    %p91 = scmp.eq.s32.totalorder %s15, 5
    %p92 = por %p90, %p91
    %p94 = scmp.ne.s32.totalorder %s79, %s93
    %p95 = scmp.eq.s32.totalorder %s15, 0
    %p96 = por %p94, %p95
    %s97 = ssub.s32 %s16, %s28
    %s98 = ssub.s32 %s17, %s24
    %s99 = sor.u32 %s97, %s98
    %p100 = scmp.eq.s32.totalorder %s99, 0
    %s102 = sadd.s32 %s101, 1
    %s103 = scalar_select %p100, %s101, %s102
    %p106 = pneg %p100
    %p107 = scmp.eq.s32.totalorder %s9, 5
    %p108 = por %p106, %p107
    %p109 = scmp.ne.s32.totalorder %s101, %s104
    %p110 = scmp.eq.s32.totalorder %s9, 0
    %p111 = por %p109, %p110
    %p112 = scmp.ne.s32.totalorder %s101, %s104
    %p113 = scmp.eq.s32.totalorder %s14, 5
    %p114 = por %p112, %p113
    %p115 = scmp.ne.s32.totalorder %s104, %s105
    %p116 = scmp.eq.s32.totalorder %s14, 0
    %p117 = por %p115, %p116
    %p118 = scmp.ne.s32.totalorder %s104, %s105
    %p119 = scmp.eq.s32.totalorder %s15, 5
    %p120 = por %p118, %p119
    %p122 = scmp.ne.s32.totalorder %s105, %s121
    %p123 = scmp.eq.s32.totalorder %s15, 0
    %p124 = por %p122, %p123
    %p125 = scmp.le.s32.totalorder 1, %s9
    %p126 = scmp.lt.s32.totalorder %s9, 7
    %p127 = pnand %p125, %p126
    %p128 = pneg %p127
    // Predicated region
    $region9: #{scene_net_forward.14} parent=5 // pred_check
      _
    $region10: #{scene_net_forward.14} parent=5 // pred_check_branch
      %130 = sbr.rel (%p127) target = $region12
    $region11: #{scene_net_forward.14} parent=5 // pred_region
      %s131 = ssub.s32 %s9, 1
      // Predicated region
      $region13: #{scene_net_forward.14} parent=11 // pred_check
        %p132 = pneg %p68
      $region14: #{scene_net_forward.14} parent=11 // pred_check_branch
        %134 = sbr.rel (%p132) target = $region16
      $region15: #{scene_net_forward.14} parent=11 // pred_region
        _
      $region16: #{scene_net_forward.14} parent=11 // pred_fallthru
        _
      // Predicated region
      $region17: #{scene_net_forward.14} parent=11 // pred_check
        %p135 = pneg %p89
      $region18: #{scene_net_forward.14} parent=11 // pred_check_branch
        %137 = sbr.rel (%p135) target = $region20
      $region19: #{scene_net_forward.14} parent=11 // pred_region
        _
      $region20: #{scene_net_forward.14} parent=11 // pred_fallthru
        _
    $region12: #{scene_net_forward.14} parent=5 // pred_fallthru
      _
    %p138 = scmp.lt.s32.totalorder %s9, 6
    // Predicated region
    $region21: #{scene_net_forward.14} parent=5 // pred_check
      %p139 = pneg %p138
    $region22: #{scene_net_forward.14} parent=5 // pred_check_branch
      %141 = sbr.rel (%p139) target = $region24
    $region23: #{scene_net_forward.14} parent=5 // pred_region
      // Predicated region
      $region25: #{scene_net_forward.14} parent=23 // pred_check
        %p142 = pneg %p41
      $region26: #{scene_net_forward.14} parent=23 // pred_check_branch
        %144 = sbr.rel (%p142) target = $region28
      $region27: #{scene_net_forward.14} parent=23 // pred_region
        %p145 = scmp.lt.s32.totalorder %s16, 5
        %s146 = scalar_select %p145, %s16, 5
        %s147 = smul.addr %s146, 6
        %s148 = smul.addr %s147, 4
        %s149 = scalar_lea.vmem %s0, %s148
      $region28: #{scene_net_forward.14} parent=23 // pred_fallthru
        _
    $region24: #{scene_net_forward.14} parent=5 // pred_fallthru
      _
    %p150 = scmp.le.s32.totalorder 1, %s9
    %p151 = scmp.lt.s32.totalorder %s9, 7
    %p152 = pnand %p150, %p151
    %p153 = pneg %p152
    // Predicated region
    $region29: #{scene_net_forward.14} parent=5 // pred_check
      _
    $region30: #{scene_net_forward.14} parent=5 // pred_check_branch
      %155 = sbr.rel (%p152) target = $region32
    $region31: #{scene_net_forward.14} parent=5 // pred_region
      %s156 = ssub.s32 %s9, 1
      %p157 = scmp.lt.s32.totalorder %s18, 5
      %s158 = scalar_select %p157, %s18, 5
      %s159 = smul.addr %s158, 6
      %s160 = smul.addr %s159, 4
      %s161 = scalar_lea.vmem %s0, %s160
      %p162 = pneg %p47
      %p163 = pneg %p44
      %p164 = pneg %p68
      %p165 = pneg %p65
      %p166 = pneg %p89
      %p167 = pneg %p86
      %p168 = pneg %p117
      %p169 = pneg %p114
      %s170 = smul.u32 4, %s19
      %p171 = scmp.lt.s32.totalorder %s18, 5
      %s172 = scalar_select %p171, %s18, 5
      %p173 = scmp.lt.s32.totalorder %s170, 3
      %s174 = scalar_select %p173, %s170, 3
      %s175 = smul.addr %s172, 4
      %s176 = sadd.s32 %s174, %s175
      %s177 = smul.addr %s176, 4
      %s178 = scalar_lea.vmem %s3, %s177
      %p179 = scmp.lt.s32.totalorder %s18, 5
      %s180 = scalar_select %p179, %s18, 5
      %s181 = smul.addr %s180, 6
      %s182 = smul.addr %s181, 4
      %s183 = scalar_lea.vmem %s0, %s182
      %s184 = smul.u32 4, %s19
      %p185 = scmp.lt.s32.totalorder %s18, 5
      %s186 = scalar_select %p185, %s18, 5
      %p187 = scmp.lt.s32.totalorder %s184, 3
      %s188 = scalar_select %p187, %s184, 3
      %s189 = smul.addr %s186, 4
      %s190 = sadd.s32 %s188, %s189
      %s191 = smul.addr %s190, 4
      %s192 = scalar_lea.vmem %s3, %s191
      %s193 = smul.u32 4, %s19
      %v195 = vld [vmem:[%s183] sm:$0xf]
      %v196 = vld [vmem:[%s183 + $0x4] sm:$0xf]
      %v197 = vld [vmem:[%s183 + $0x8] sm:$0xf]
      %v198 = vld [vmem:[%s183 + $0xc] sm:$0xf]
      %v199 = vld [vmem:[%s183 + $0x10] sm:$0xf]
      %v200 = vunpack.c.l.bf16 %v195
      %v201 = vunpack.c.l.bf16 %v196
      %v202 = vunpack.c.l.bf16 %v197
      %v203 = vunpack.c.l.bf16 %v198
      %v204 = vunpack.c.l.bf16 %v199
      %v205 = vld [vmem:[%s1] sm:$0xf]
      %v206 = vld [vmem:[%s1 + $0x4] sm:$0xf]
      %v207 = vld [vmem:[%s1 + $0x8] sm:$0xf]
      %v208 = vld [vmem:[%s1 + $0xc] sm:$0xf]
      %v209 = vpack.c.bf16 %v201, %v200
      %v210 = vpack.c.bf16 %v203, %v202
      %v211 = vpack.c.bf16 %v204, %v204
      %s212 = scalar_lea.vmem %s1, 16
      %v213 = vld [vmem:[%s212] sm:$0xf]
      %v214 = vld [vmem:[%s212 + $0x4] sm:$0xf]
      %v215 = vld [vmem:[%s212 + $0x8] sm:$0xf]
      %v216 = vld [vmem:[%s212 + $0xc] sm:$0xf]
      %vm217 = vsmask.f32 7424
      %v219 = vshrl.u32 %v209, 16
      %v221 = vshll.u32 %v209, 16
      %v223 = vrot.slane %v221, 1
      %v224 = vor.u32 %v219, %v223
      %v226 = vshll.u32 %v210, 16
      %v228 = vrot.slane %v226, 1
      %v229 = vsel %vm217, %v224, %v228
      %v230 = vshrl.u32 %v210, 16
      %v232 = vor.u32 %v230, %v228
      %v234 = vshll.u32 %v211, 16
      %v236 = vrot.slane %v234, 1
      %v237 = vsel %vm217, %v232, %v236
      %v242 = vunpack.c.l.b16 %v213
      %v243 = vunpack.c.l.b16 %v214
      %v244 = vunpack.c.l.b16 %v215
      %v245 = vunpack.c.l.b16 %v216
      %v246 = vpack.c.b16 %v243, %v242
      %v247 = vpack.c.b16 %v245, %v244
      %vm250 = vcmask 261120
      %v252 = vsel %vm250, %v229, 0
      %v255 = vsel %vm250, %v237, 0
      %257 = vmatprep.subr.bf16.mxu0 0
      %258 = vmatpush1.bf16.msra.mxu0 %v246
      %259 = vmatprep.subr.bf16.mxu0 0
      %260 = vmatpush1.bf16.msra.mxu0 %v247
      %261 = vmatprep.subr.bf16.mxu0 0
      %262 = vmatpush1.bf16.msra.mxu0 0
      %263 = vmatprep.subr.bf16.mxu0 0
      %264 = vmatpush1.bf16.msra.mxu0 0
      %265 = vmatprep.subr.bf16.mxu0 0
      %266 = vmatpush1.bf16.msra.mxu0 0
      %267 = vmatprep.subr.bf16.mxu0 0
      %268 = vmatpush1.bf16.msra.mxu0 0
      %269 = vmatprep.subr.bf16.mxu0 0
      %270 = vmatpush1.bf16.msra.mxu0 0
      %271 = vmatprep.subr.bf16.mxu0 0
      %272 = vmatpush1.bf16.msra.mxu0 0
      %273 = vmatprep.subr.bf16.mxu0 0
      %274 = vmatpush1.bf16.msra.mxu0 0
      %275 = vmatprep.subr.bf16.mxu0 0
      %276 = vmatpush1.bf16.msra.mxu0 0
      %277 = vmatprep.subr.bf16.mxu0 0
      %278 = vmatpush1.bf16.msra.mxu0 0
      %279 = vmatprep.subr.bf16.mxu0 0
      %280 = vmatpush1.bf16.msra.mxu0 0
      %281 = vmatprep.subr.bf16.mxu0 0
      %282 = vmatpush1.bf16.msra.mxu0 0
      %283 = vmatprep.subr.bf16.mxu0 0
      %284 = vmatpush1.bf16.msra.mxu0 0
      %285 = vmatprep.subr.bf16.mxu0 0
      %286 = vmatpush1.bf16.msra.mxu0 0
      %287 = vmatprep.subr.bf16.mxu0 0
      %288 = vmatpush1.bf16.msra.mxu0 0
      %289 = vmatprep.mubr.bf16.mxu0 0
      %290 = vmatmul.mubr.bf16.gmra.mrb[0].mxu0 %v252
      %v291 = vpop.f32.mrb[0].mxu0
      %v292 = vadd.f32 0.0, %v291
      %v293 = vpop.f32.mrb[0].mxu0
      %v294 = vpop.f32.mrb[0].mxu0
      %v295 = vadd.f32 0.0, %v294
      %v296 = vpop.f32.mrb[0].mxu0
      %297 = vmatprep.mubr.bf16.mxu0 0
      %298 = vmatmul.mubr.bf16.gmra.mrb[0].mxu0 %v255
      %v299 = vpop.f32.mrb[0].mxu0
      %v300 = vadd.f32 0.0, %v299
      %v301 = vpop.f32.mrb[0].mxu0
      %v302 = vpop.f32.mrb[0].mxu0
      %v303 = vadd.f32 0.0, %v302
      %v304 = vpop.f32.mrb[0].mxu0
      %305 = vdwg.mxu0
      %v310 = vunpack.c.l.b16 %v195
      %v311 = vunpack.c.l.b16 %v196
      %v312 = vunpack.c.l.b16 %v197
      %v313 = vunpack.c.l.b16 %v198
      %v314 = vpack.c.b16 %v311, %v310
      %v315 = vpack.c.b16 %v313, %v312
      %v320 = vunpack.c.l.b16 %v205
      %v321 = vunpack.c.l.b16 %v206
      %v322 = vunpack.c.l.b16 %v207
      %v323 = vunpack.c.l.b16 %v208
      %v324 = vpack.c.b16 %v321, %v320
      %v325 = vpack.c.b16 %v323, %v322
      %v329 = vsel %vm250, %v314, 0
      %v332 = vsel %vm250, %v315, 0
      %334 = vmatprep.subr.bf16.mxu0 0
      %335 = vmatpush1.bf16.msra.mxu0 %v324
      %336 = vmatprep.subr.bf16.mxu0 0
      %337 = vmatpush1.bf16.msra.mxu0 %v325
      %338 = vmatprep.subr.bf16.mxu0 0
      %339 = vmatpush1.bf16.msra.mxu0 0
      %340 = vmatprep.subr.bf16.mxu0 0
      %341 = vmatpush1.bf16.msra.mxu0 0
      %342 = vmatprep.subr.bf16.mxu0 0
      %343 = vmatpush1.bf16.msra.mxu0 0
      %344 = vmatprep.subr.bf16.mxu0 0
      %345 = vmatpush1.bf16.msra.mxu0 0
      %346 = vmatprep.subr.bf16.mxu0 0
      %347 = vmatpush1.bf16.msra.mxu0 0
      %348 = vmatprep.subr.bf16.mxu0 0
      %349 = vmatpush1.bf16.msra.mxu0 0
      %350 = vmatprep.subr.bf16.mxu0 0
      %351 = vmatpush1.bf16.msra.mxu0 0
      %352 = vmatprep.subr.bf16.mxu0 0
      %353 = vmatpush1.bf16.msra.mxu0 0
      %354 = vmatprep.subr.bf16.mxu0 0
      %355 = vmatpush1.bf16.msra.mxu0 0
      %356 = vmatprep.subr.bf16.mxu0 0
      %357 = vmatpush1.bf16.msra.mxu0 0
      %358 = vmatprep.subr.bf16.mxu0 0
      %359 = vmatpush1.bf16.msra.mxu0 0
      %360 = vmatprep.subr.bf16.mxu0 0
      %361 = vmatpush1.bf16.msra.mxu0 0
      %362 = vmatprep.subr.bf16.mxu0 0
      %363 = vmatpush1.bf16.msra.mxu0 0
      %364 = vmatprep.subr.bf16.mxu0 0
      %365 = vmatpush1.bf16.msra.mxu0 0
      %366 = vmatprep.mubr.bf16.mxu0 0
      %367 = vmatmul.mubr.bf16.gmra.mrb[0].mxu0 %v329
      %v368 = vpop.f32.mrb[0].mxu0
      %v369 = vadd.f32 %v292, %v368
      %v370 = vpop.f32.mrb[0].mxu0
      %v371 = vpop.f32.mrb[0].mxu0
      %v372 = vadd.f32 %v295, %v371
      %v373 = vpop.f32.mrb[0].mxu0
      %374 = vmatprep.mubr.bf16.mxu0 0
      %375 = vmatmul.mubr.bf16.gmra.mrb[0].mxu0 %v332
      %v376 = vpop.f32.mrb[0].mxu0
      %v377 = vadd.f32 %v300, %v376
      %v378 = vpop.f32.mrb[0].mxu0
      %v379 = vpop.f32.mrb[0].mxu0
      %v380 = vadd.f32 %v303, %v379
      %v381 = vpop.f32.mrb[0].mxu0
      %382 = vdwg.mxu0
      %v383 = vld [vmem:[%s183 + $0x4] sm:$0xf]
      %v384 = vld [vmem:[%s183 + $0x8] sm:$0xf]
      %v385 = vld [vmem:[%s183 + $0xc] sm:$0xf]
      %v386 = vld [vmem:[%s183 + $0x10] sm:$0xf]
      %v387 = vld [vmem:[%s183 + $0x14] sm:$0xf]
      %v388 = vunpack.c.l.bf16 %v383
      %v389 = vunpack.c.l.bf16 %v384
      %v390 = vunpack.c.l.bf16 %v385
      %v391 = vunpack.c.l.bf16 %v386
      %v392 = vunpack.c.l.bf16 %v387
      %s393 = scalar_lea.vmem %s1, 32
      %v394 = vld [vmem:[%s393] sm:$0xf]
      %v395 = vld [vmem:[%s393 + $0x4] sm:$0xf]
      %v396 = vld [vmem:[%s393 + $0x8] sm:$0xf]
      %v397 = vld [vmem:[%s393 + $0xc] sm:$0xf]
      %v402 = vunpack.c.l.b16 %v383
      %v403 = vunpack.c.l.b16 %v384
      %v404 = vunpack.c.l.b16 %v385
      %v405 = vunpack.c.l.b16 %v386
      %v406 = vpack.c.b16 %v403, %v402
      %v407 = vpack.c.b16 %v405, %v404
      %v412 = vunpack.c.l.b16 %v394
      %v413 = vunpack.c.l.b16 %v395
      %v414 = vunpack.c.l.b16 %v396
      %v415 = vunpack.c.l.b16 %v397
      %v416 = vpack.c.b16 %v413, %v412
      %v417 = vpack.c.b16 %v415, %v414
      %v421 = vsel %vm250, %v406, 0
      %v424 = vsel %vm250, %v407, 0
      %426 = vmatprep.subr.bf16.mxu0 0
      %427 = vmatpush1.bf16.msra.mxu0 %v416
      %428 = vmatprep.subr.bf16.mxu0 0
      %429 = vmatpush1.bf16.msra.mxu0 %v417
      %430 = vmatprep.subr.bf16.mxu0 0
      %431 = vmatpush1.bf16.msra.mxu0 0
      %432 = vmatprep.subr.bf16.mxu0 0
      %433 = vmatpush1.bf16.msra.mxu0 0
      %434 = vmatprep.subr.bf16.mxu0 0
      %435 = vmatpush1.bf16.msra.mxu0 0
      %436 = vmatprep.subr.bf16.mxu0 0
      %437 = vmatpush1.bf16.msra.mxu0 0
      %438 = vmatprep.subr.bf16.mxu0 0
      %439 = vmatpush1.bf16.msra.mxu0 0
      %440 = vmatprep.subr.bf16.mxu0 0
      %441 = vmatpush1.bf16.msra.mxu0 0
      %442 = vmatprep.subr.bf16.mxu0 0
      %443 = vmatpush1.bf16.msra.mxu0 0
      %444 = vmatprep.subr.bf16.mxu0 0
      %445 = vmatpush1.bf16.msra.mxu0 0
      %446 = vmatprep.subr.bf16.mxu0 0
      %447 = vmatpush1.bf16.msra.mxu0 0
      %448 = vmatprep.subr.bf16.mxu0 0
      %449 = vmatpush1.bf16.msra.mxu0 0
      %450 = vmatprep.subr.bf16.mxu0 0
      %451 = vmatpush1.bf16.msra.mxu0 0
      %452 = vmatprep.subr.bf16.mxu0 0
      %453 = vmatpush1.bf16.msra.mxu0 0
      %454 = vmatprep.subr.bf16.mxu0 0
      %455 = vmatpush1.bf16.msra.mxu0 0
      %456 = vmatprep.subr.bf16.mxu0 0
      %457 = vmatpush1.bf16.msra.mxu0 0
      %458 = vmatprep.mubr.bf16.mxu0 0
      %459 = vmatmul.mubr.bf16.gmra.mrb[0].mxu0 %v421
      %v460 = vpop.f32.mrb[0].mxu0
      %v461 = vadd.f32 0.0, %v460
      %v462 = vpop.f32.mrb[0].mxu0
      %v463 = vpop.f32.mrb[0].mxu0
      %v464 = vadd.f32 0.0, %v463
      %v465 = vpop.f32.mrb[0].mxu0
      %466 = vmatprep.mubr.bf16.mxu0 0
      %467 = vmatmul.mubr.bf16.gmra.mrb[0].mxu0 %v424
      %v468 = vpop.f32.mrb[0].mxu0
      %v469 = vadd.f32 0.0, %v468
      %v470 = vpop.f32.mrb[0].mxu0
      %v471 = vpop.f32.mrb[0].mxu0
      %v472 = vadd.f32 0.0, %v471
      %v473 = vpop.f32.mrb[0].mxu0
      %474 = vdwg.mxu0
      %v475 = vadd.f32 %v369, %v461
      %v476 = vadd.f32 %v372, %v464
      %v477 = vadd.f32 %v377, %v469
      %v478 = vadd.f32 %v380, %v472
      %v479 = vpack.c.bf16 %v389, %v388
      %v480 = vpack.c.bf16 %v391, %v390
      %v481 = vpack.c.bf16 %v392, %v392
      %s482 = scalar_lea.vmem %s1, 48
      %v483 = vld [vmem:[%s482] sm:$0xf]
      %v484 = vld [vmem:[%s482 + $0x4] sm:$0xf]
      %v485 = vld [vmem:[%s482 + $0x8] sm:$0xf]
      %v486 = vld [vmem:[%s482 + $0xc] sm:$0xf]
      %v488 = vshrl.u32 %v479, 16
      %v490 = vshll.u32 %v479, 16
      %v492 = vrot.slane %v490, 1
      %v493 = vor.u32 %v488, %v492
      %v495 = vshll.u32 %v480, 16
      %v497 = vrot.slane %v495, 1
      %v498 = vsel %vm217, %v493, %v497
      %v499 = vshrl.u32 %v480, 16
      %v501 = vor.u32 %v499, %v497
      %v503 = vshll.u32 %v481, 16
      %v505 = vrot.slane %v503, 1
      %v506 = vsel %vm217, %v501, %v505
      %v511 = vunpack.c.l.b16 %v483
      %v512 = vunpack.c.l.b16 %v484
      %v513 = vunpack.c.l.b16 %v485
      %v514 = vunpack.c.l.b16 %v486
      %v515 = vpack.c.b16 %v512, %v511
      %v516 = vpack.c.b16 %v514, %v513
      %v520 = vsel %vm250, %v498, 0
      %v523 = vsel %vm250, %v506, 0
      %525 = vmatprep.subr.bf16.mxu0 0
      %526 = vmatpush1.bf16.msra.mxu0 %v515
      %527 = vmatprep.subr.bf16.mxu0 0
      %528 = vmatpush1.bf16.msra.mxu0 %v516
      %529 = vmatprep.subr.bf16.mxu0 0
      %530 = vmatpush1.bf16.msra.mxu0 0
      %531 = vmatprep.subr.bf16.mxu0 0
      %532 = vmatpush1.bf16.msra.mxu0 0
      %533 = vmatprep.subr.bf16.mxu0 0
      %534 = vmatpush1.bf16.msra.mxu0 0
      %535 = vmatprep.subr.bf16.mxu0 0
      %536 = vmatpush1.bf16.msra.mxu0 0
      %537 = vmatprep.subr.bf16.mxu0 0
      %538 = vmatpush1.bf16.msra.mxu0 0
      %539 = vmatprep.subr.bf16.mxu0 0
      %540 = vmatpush1.bf16.msra.mxu0 0
      %541 = vmatprep.subr.bf16.mxu0 0
      %542 = vmatpush1.bf16.msra.mxu0 0
      %543 = vmatprep.subr.bf16.mxu0 0
      %544 = vmatpush1.bf16.msra.mxu0 0
      %545 = vmatprep.subr.bf16.mxu0 0
      %546 = vmatpush1.bf16.msra.mxu0 0
      %547 = vmatprep.subr.bf16.mxu0 0
      %548 = vmatpush1.bf16.msra.mxu0 0
      %549 = vmatprep.subr.bf16.mxu0 0
      %550 = vmatpush1.bf16.msra.mxu0 0
      %551 = vmatprep.subr.bf16.mxu0 0
      %552 = vmatpush1.bf16.msra.mxu0 0
      %553 = vmatprep.subr.bf16.mxu0 0
      %554 = vmatpush1.bf16.msra.mxu0 0
      %555 = vmatprep.subr.bf16.mxu0 0
      %556 = vmatpush1.bf16.msra.mxu0 0
      %557 = vmatprep.mubr.bf16.mxu0 0
      %558 = vmatmul.mubr.bf16.gmra.mrb[0].mxu0 %v520
      %v559 = vpop.f32.mrb[0].mxu0
      %v560 = vadd.f32 0.0, %v559
      %v561 = vpop.f32.mrb[0].mxu0
      %v562 = vpop.f32.mrb[0].mxu0
      %v563 = vadd.f32 0.0, %v562
      %v564 = vpop.f32.mrb[0].mxu0
      %565 = vmatprep.mubr.bf16.mxu0 0
      %566 = vmatmul.mubr.bf16.gmra.mrb[0].mxu0 %v523
      %v567 = vpop.f32.mrb[0].mxu0
      %v568 = vadd.f32 0.0, %v567
      %v569 = vpop.f32.mrb[0].mxu0
      %v570 = vpop.f32.mrb[0].mxu0
      %v571 = vadd.f32 0.0, %v570
      %v572 = vpop.f32.mrb[0].mxu0
      %573 = vdwg.mxu0
      %v574 = vadd.f32 %v475, %v560
      %v575 = vadd.f32 %v476, %v563
      %v576 = vadd.f32 %v477, %v568
      %v577 = vadd.f32 %v478, %v571
      %v578 = vld [vmem:[%s2] sm:$0x1]
      %v580 = vlaneseq
      %v581 = vshrl.u32 %v580, 7
      %v582 = vsub.s32 0, %v581
      %v583 = vrot.slane %v578, %v582
      %v585 = vadd.f32 %v574, %v583
      %v586 = vadd.f32 %v575, %v583
      %v587 = vadd.f32 %v576, %v583
      %v588 = vadd.f32 %v577, %v583
      %v589 = vmax.f32 %v585, 0.0
      %v590 = vmax.f32 %v586, 0.0
      %v591 = vmax.f32 %v587, 0.0
      %v592 = vmax.f32 %v588, 0.0
      %v593 = vpack.c.bf16 %v590, %v589
      %v594 = vpack.c.bf16 %v592, %v591
      %v597 = vunpack.c.l.b16 %v593
      %v598 = vunpack.c.h.b16 %v593
      %v599 = vunpack.c.l.b16 %v594
      %v600 = vunpack.c.h.b16 %v594
      %v601 = vpack.c.b16 %v597, %v597
      %v602 = vpack.c.b16 %v598, %v598
      %v603 = vpack.c.b16 %v599, %v599
      %v604 = vpack.c.b16 %v600, %v600
      %vm609 = vcmask 125952
      %610 = vst.msk [vmem:[%s192] sm:$0xf] %vm609, %v601
      %611 = vst.msk [vmem:[%s192 + $0x4] sm:$0xf] %vm609, %v602
      %612 = vst.msk [vmem:[%s192 + $0x8] sm:$0xf] %vm609, %v603
      %613 = vst.msk [vmem:[%s192 + $0xc] sm:$0xf] %vm609, %v604
      %s614 = smul.u32 4, %s19
      %p615 = scmp.lt.s32.totalorder %s18, 5
      %s616 = scalar_select %p615, %s18, 5
      %p617 = scmp.lt.s32.totalorder %s614, 3
      %s618 = scalar_select %p617, %s614, 3
      %s619 = smul.addr %s616, 4
      %s620 = sadd.s32 %s618, %s619
      %s621 = smul.addr %s620, 4
      %s622 = scalar_lea.vmem %s3, %s621
      // Predicated region
      $region33: #{scene_net_forward.14} parent=31 // pred_check
        %p623 = pneg %p114
      $region34: #{scene_net_forward.14} parent=31 // pred_check_branch
        %625 = sbr.rel (%p623) target = $region36
      $region35: #{scene_net_forward.14} parent=31 // pred_region
        %s626 = smul.u32 4, %s19
      $region36: #{scene_net_forward.14} parent=31 // pred_fallthru
        _
    $region32: #{scene_net_forward.14} parent=5 // pred_fallthru
      _
    %p627 = scmp.le.s32.totalorder 2, %s9
    // Predicated region
    $region37: #{scene_net_forward.14} parent=5 // pred_check
      %p628 = pneg %p627
    $region38: #{scene_net_forward.14} parent=5 // pred_check_branch
      %630 = sbr.rel (%p628) target = $region40
    $region39: #{scene_net_forward.14} parent=5 // pred_region
      %s631 = ssub.s32 %s9, 2
      // Predicated region
      $region41: #{scene_net_forward.14} parent=39 // pred_check
        %p632 = pneg %p120
      $region42: #{scene_net_forward.14} parent=39 // pred_check_branch
        %634 = sbr.rel (%p632) target = $region44
      $region43: #{scene_net_forward.14} parent=39 // pred_region
        %s635 = smul.u32 4, %s21
        %p636 = scmp.lt.s32.totalorder %s20, 5
        %s637 = scalar_select %p636, %s20, 5
        %p638 = scmp.lt.s32.totalorder %s635, 3
        %s639 = scalar_select %p638, %s635, 3
        %s640 = smul.addr %s637, 4
        %s641 = sadd.s32 %s639, %s640
        %s642 = smul.addr %s641, 4
        %s643 = scalar_lea.vmem %s3, %s642
      $region44: #{scene_net_forward.14} parent=39 // pred_fallthru
        _
    $region40: #{scene_net_forward.14} parent=5 // pred_fallthru
      _
  $region6: #{scene_net_forward.14} parent=0 // loop_footer
    %s13 = sadd.s32 1, %s9
  $region7: #{scene_net_forward.14} parent=0 // loop_footer_branch
    %8 = sbr.rel target = $region3
  $region8: #{scene_net_forward.14} parent=0 // loop_exit
    _

// kernel: scene_net_forward.15
$region0: #{scene_net_forward.15}
  #allocation0 [shape = 'u32[]', space=smem, size = 0x4, offset = 0x4, fixed_abs, tag = 'smem constant byte address 0x4 - core index']
  #allocation1 [shape = 'u32[144,128]{1,0:T(1,128)}', space=vmem, size = 0x12000, scoped, tag = 'internal scratch']
  %s0 = inlined_call_operand.vmem [shape: bf16[6,56,16], index: 0, kind: input, shape index: {}]
  %s1 = inlined_call_operand.vmem [shape: bf16[9,16,16], index: 1, kind: input, shape index: {}]
  %s2 = inlined_call_operand.vmem [shape: f32[1,16], index: 2, kind: input, shape index: {}]
  %s3 = inlined_call_operand.vmem [shape: bf16[6,32,16], index: 3, kind: output, shape index: {}]
  %s4 = sld [smem:[#allocation0]]
  $region45: #{scene_net_forward.15} parent=0
    _
  %s6 = ssub.s32 1, %s4
  %s7 = scalar_select 0, %s6, %s4
  loop: start=0, step=1, limit=8
  $region2: #{scene_net_forward.15} parent=0 // loop_pre_header
    _
  $region3: #{scene_net_forward.15} parent=0 // loop_header
    %s9 = sphi 0, %s13
    %p10 = scmp.ge.s32.totalorder %s9, 8
    %s16 = sphi 0, %s28
    %s17 = sphi 0, %s24
    %s18 = sphi 0, %s16
    %s19 = sphi 0, %s17
    %s20 = sphi 0, %s18
    %s21 = sphi 0, %s19
    %s31 = sphi 0, %s33
    %s34 = sphi 0, %s31
    %s35 = sphi 0, %s34
    %s51 = sphi 0, %s35
    %s55 = sphi 0, %s55
    %s57 = sphi 0, %s55
    %s58 = sphi 0, %s57
    %s72 = sphi 0, %s58
    %s76 = sphi 0, %s76
    %s78 = sphi 0, %s76
    %s79 = sphi 0, %s78
    %s93 = sphi 0, %s79
    %s101 = sphi 0, %s103
    %s104 = sphi 0, %s101
    %s105 = sphi 0, %s104
    %s121 = sphi 0, %s105
  $region4: #{scene_net_forward.15} parent=0 // loop_header_branch
    %12 = sbr.rel (%p10) target = $region8
  $region5: #{scene_net_forward.15} parent=0 // loop_body
    %s14 = ssub.s32 %s9, 1
    %s15 = ssub.s32 %s9, 2
    %s22 = sadd.s32 1, %s17
    %p23 = scmp.ge.s32.totalorder %s22, 1
    %s24 = scalar_select %p23, 0, %s22
    %s25 = sadd.s32 1, %s16
    %s26 = scalar_select %p23, %s25, %s16
    %p27 = scmp.ge.s32.totalorder %s26, 6
    %s28 = scalar_select %p27, 0, %s26
    %s29 = ssub.s32 %s16, %s28
    %p30 = scmp.eq.s32.totalorder %s29, 0
    %s32 = sadd.s32 %s31, 1
    %s33 = scalar_select %p30, %s31, %s32
    %p36 = pneg %p30
    %p37 = scmp.eq.s32.totalorder %s9, 5
    %p38 = por %p36, %p37
    %p39 = scmp.ne.s32.totalorder %s31, %s34
    %p40 = scmp.eq.s32.totalorder %s9, 0
    %p41 = por %p39, %p40
    %p42 = scmp.ne.s32.totalorder %s31, %s34
    %p43 = scmp.eq.s32.totalorder %s14, 5
    %p44 = por %p42, %p43
    %p45 = scmp.ne.s32.totalorder %s34, %s35
    %p46 = scmp.eq.s32.totalorder %s14, 0
    %p47 = por %p45, %p46
    %p48 = scmp.ne.s32.totalorder %s34, %s35
    %p49 = scmp.eq.s32.totalorder %s15, 5
    %p50 = por %p48, %p49
    %p52 = scmp.ne.s32.totalorder %s35, %s51
    %p53 = scmp.eq.s32.totalorder %s15, 0
    %p54 = por %p52, %p53
    %s56 = sadd.s32 %s55, 1
    %p59 = scmp.eq.s32.totalorder %s9, 5
    %p60 = scmp.ne.s32.totalorder %s55, %s57
    %p61 = scmp.eq.s32.totalorder %s9, 0
    %p62 = por %p60, %p61
    %p63 = scmp.ne.s32.totalorder %s55, %s57
    %p64 = scmp.eq.s32.totalorder %s14, 5
    %p65 = por %p63, %p64
    %p66 = scmp.ne.s32.totalorder %s57, %s58
    %p67 = scmp.eq.s32.totalorder %s14, 0
    %p68 = por %p66, %p67
    %p69 = scmp.ne.s32.totalorder %s57, %s58
    %p70 = scmp.eq.s32.totalorder %s15, 5
    %p71 = por %p69, %p70
    %p73 = scmp.ne.s32.totalorder %s58, %s72
    %p74 = scmp.eq.s32.totalorder %s15, 0
    %p75 = por %p73, %p74
    %s77 = sadd.s32 %s76, 1
    %p80 = scmp.eq.s32.totalorder %s9, 5
    %p81 = scmp.ne.s32.totalorder %s76, %s78
    %p82 = scmp.eq.s32.totalorder %s9, 0
    %p83 = por %p81, %p82
    %p84 = scmp.ne.s32.totalorder %s76, %s78
    %p85 = scmp.eq.s32.totalorder %s14, 5
    %p86 = por %p84, %p85
    %p87 = scmp.ne.s32.totalorder %s78, %s79
    %p88 = scmp.eq.s32.totalorder %s14, 0
    %p89 = por %p87, %p88
    %p90 = scmp.ne.s32.totalorder %s78, %s79
    %p91 = scmp.eq.s32.totalorder %s15, 5
    %p92 = por %p90, %p91
    %p94 = scmp.ne.s32.totalorder %s79, %s93
    %p95 = scmp.eq.s32.totalorder %s15, 0
    %p96 = por %p94, %p95
    %s97 = ssub.s32 %s16, %s28
    %s98 = ssub.s32 %s17, %s24
    %s99 = sor.u32 %s97, %s98
    %p100 = scmp.eq.s32.totalorder %s99, 0
    %s102 = sadd.s32 %s101, 1
    %s103 = scalar_select %p100, %s101, %s102
    %p106 = pneg %p100
    %p107 = scmp.eq.s32.totalorder %s9, 5
    %p108 = por %p106, %p107
    %p109 = scmp.ne.s32.totalorder %s101, %s104
    %p110 = scmp.eq.s32.totalorder %s9, 0
    %p111 = por %p109, %p110
    %p112 = scmp.ne.s32.totalorder %s101, %s104
    %p113 = scmp.eq.s32.totalorder %s14, 5
    %p114 = por %p112, %p113
    %p115 = scmp.ne.s32.totalorder %s104, %s105
    %p116 = scmp.eq.s32.totalorder %s14, 0
    %p117 = por %p115, %p116
    %p118 = scmp.ne.s32.totalorder %s104, %s105
    %p119 = scmp.eq.s32.totalorder %s15, 5
    %p120 = por %p118, %p119
    %p122 = scmp.ne.s32.totalorder %s105, %s121
    %p123 = scmp.eq.s32.totalorder %s15, 0
    %p124 = por %p122, %p123
    %p125 = scmp.le.s32.totalorder 1, %s9
    %p126 = scmp.lt.s32.totalorder %s9, 7
    %p127 = pnand %p125, %p126
    %p128 = pneg %p127
    // Predicated region
    $region9: #{scene_net_forward.15} parent=5 // pred_check
      _
    $region10: #{scene_net_forward.15} parent=5 // pred_check_branch
      %130 = sbr.rel (%p127) target = $region12
    $region11: #{scene_net_forward.15} parent=5 // pred_region
      %s131 = ssub.s32 %s9, 1
      // Predicated region
      $region13: #{scene_net_forward.15} parent=11 // pred_check
        %p132 = pneg %p68
      $region14: #{scene_net_forward.15} parent=11 // pred_check_branch
        %134 = sbr.rel (%p132) target = $region16
      $region15: #{scene_net_forward.15} parent=11 // pred_region
        _
      $region16: #{scene_net_forward.15} parent=11 // pred_fallthru
        _
      // Predicated region
      $region17: #{scene_net_forward.15} parent=11 // pred_check
        %p135 = pneg %p89
      $region18: #{scene_net_forward.15} parent=11 // pred_check_branch
        %137 = sbr.rel (%p135) target = $region20
      $region19: #{scene_net_forward.15} parent=11 // pred_region
        _
      $region20: #{scene_net_forward.15} parent=11 // pred_fallthru
        _
    $region12: #{scene_net_forward.15} parent=5 // pred_fallthru
      _
    %p138 = scmp.lt.s32.totalorder %s9, 6
    // Predicated region
    $region21: #{scene_net_forward.15} parent=5 // pred_check
      %p139 = pneg %p138
    $region22: #{scene_net_forward.15} parent=5 // pred_check_branch
      %141 = sbr.rel (%p139) target = $region24
    $region23: #{scene_net_forward.15} parent=5 // pred_region
      // Predicated region
      $region25: #{scene_net_forward.15} parent=23 // pred_check
        %p142 = pneg %p41
      $region26: #{scene_net_forward.15} parent=23 // pred_check_branch
        %144 = sbr.rel (%p142) target = $region28
      $region27: #{scene_net_forward.15} parent=23 // pred_region
        %p145 = scmp.lt.s32.totalorder %s16, 5
        %s146 = scalar_select %p145, %s16, 5
        %s147 = smul.addr %s146, 7
        %s148 = smul.addr %s147, 4
        %s149 = scalar_lea.vmem %s0, %s148
      $region28: #{scene_net_forward.15} parent=23 // pred_fallthru
        _
    $region24: #{scene_net_forward.15} parent=5 // pred_fallthru
      _
    %p150 = scmp.le.s32.totalorder 1, %s9
    %p151 = scmp.lt.s32.totalorder %s9, 7
    %p152 = pnand %p150, %p151
    %p153 = pneg %p152
    // Predicated region
    $region29: #{scene_net_forward.15} parent=5 // pred_check
      _
    $region30: #{scene_net_forward.15} parent=5 // pred_check_branch
      %155 = sbr.rel (%p152) target = $region32
    $region31: #{scene_net_forward.15} parent=5 // pred_region
      %s156 = ssub.s32 %s9, 1
      %p157 = scmp.lt.s32.totalorder %s18, 5
      %s158 = scalar_select %p157, %s18, 5
      %s159 = smul.addr %s158, 7
      %s160 = smul.addr %s159, 4
      %s161 = scalar_lea.vmem %s0, %s160
      %p162 = pneg %p47
      %p163 = pneg %p44
      %p164 = pneg %p68
      %p165 = pneg %p65
      %p166 = pneg %p89
      %p167 = pneg %p86
      %p168 = pneg %p117
      %p169 = pneg %p114
      %s170 = smul.u32 4, %s19
      %p171 = scmp.lt.s32.totalorder %s18, 5
      %s172 = scalar_select %p171, %s18, 5
      %p173 = scmp.lt.s32.totalorder %s170, 3
      %s174 = scalar_select %p173, %s170, 3
      %s175 = smul.addr %s172, 4
      %s176 = sadd.s32 %s174, %s175
      %s177 = smul.addr %s176, 4
      %s178 = scalar_lea.vmem %s3, %s177
      %p179 = scmp.lt.s32.totalorder %s18, 5
      %s180 = scalar_select %p179, %s18, 5
      %s181 = smul.addr %s180, 7
      %s182 = smul.addr %s181, 4
      %s183 = scalar_lea.vmem %s0, %s182
      %s184 = smul.u32 4, %s19
      %p185 = scmp.lt.s32.totalorder %s18, 5
      %s186 = scalar_select %p185, %s18, 5
      %p187 = scmp.lt.s32.totalorder %s184, 3
      %s188 = scalar_select %p187, %s184, 3
      %s189 = smul.addr %s186, 4
      %s190 = sadd.s32 %s188, %s189
      %s191 = smul.addr %s190, 4
      %s192 = scalar_lea.vmem %s3, %s191
      %s193 = smul.u32 4, %s19
      %v195 = vld [vmem:[%s183] sm:$0xf]
      %v196 = vld [vmem:[%s183 + $0x4] sm:$0xf]
      %v197 = vld [vmem:[%s183 + $0x8] sm:$0xf]
      %v198 = vld [vmem:[%s183 + $0xc] sm:$0xf]
      %v199 = vld [vmem:[%s183 + $0x10] sm:$0xf]
      %v200 = vunpack.c.l.bf16 %v195
      %v201 = vunpack.c.l.bf16 %v196
      %v202 = vunpack.c.l.bf16 %v197
      %v203 = vunpack.c.l.bf16 %v198
      %v204 = vunpack.c.l.bf16 %v199
      %v205 = vld [vmem:[%s1] sm:$0xf]
      %v206 = vld [vmem:[%s1 + $0x4] sm:$0xf]
      %v207 = vpack.c.bf16 %v201, %v200
      %v208 = vpack.c.bf16 %v203, %v202
      %v209 = vpack.c.bf16 %v204, %v204
      %s210 = scalar_lea.vmem %s1, 8
      %v211 = vld [vmem:[%s210] sm:$0xf]
      %v212 = vld [vmem:[%s210 + $0x4] sm:$0xf]
      %vm213 = vsmask.f32 7424
      %v215 = vshrl.u32 %v207, 16
      %v217 = vshll.u32 %v207, 16
      %v219 = vrot.slane %v217, 1
      %v220 = vor.u32 %v215, %v219
      %v222 = vshll.u32 %v208, 16
      %v224 = vrot.slane %v222, 1
      %v225 = vsel %vm213, %v220, %v224
      %v226 = vshrl.u32 %v208, 16
      %v228 = vor.u32 %v226, %v224
      %v230 = vshll.u32 %v209, 16
      %v232 = vrot.slane %v230, 1
      %v233 = vsel %vm213, %v228, %v232
      %v236 = vunpack.c.l.b16 %v211
      %v237 = vunpack.c.l.b16 %v212
      %v238 = vpack.c.b16 %v237, %v236
      %vm240 = vcmask 130048
      %v242 = vsel %vm240, %v225, 0
      %v245 = vsel %vm240, %v233, 0
      %247 = vmatprep.subr.bf16.mxu0 0
      %248 = vmatpush1.bf16.msra.mxu0 %v238
      %249 = vmatprep.subr.bf16.mxu0 0
      %250 = vmatpush1.bf16.msra.mxu0 0
      %251 = vmatprep.subr.bf16.mxu0 0
      %252 = vmatpush1.bf16.msra.mxu0 0
      %253 = vmatprep.subr.bf16.mxu0 0
      %254 = vmatpush1.bf16.msra.mxu0 0
      %255 = vmatprep.subr.bf16.mxu0 0
      %256 = vmatpush1.bf16.msra.mxu0 0
      %257 = vmatprep.subr.bf16.mxu0 0
      %258 = vmatpush1.bf16.msra.mxu0 0
      %259 = vmatprep.subr.bf16.mxu0 0
      %260 = vmatpush1.bf16.msra.mxu0 0
      %261 = vmatprep.subr.bf16.mxu0 0
      %262 = vmatpush1.bf16.msra.mxu0 0
      %263 = vmatprep.subr.bf16.mxu0 0
      %264 = vmatpush1.bf16.msra.mxu0 0
      %265 = vmatprep.subr.bf16.mxu0 0
      %266 = vmatpush1.bf16.msra.mxu0 0
      %267 = vmatprep.subr.bf16.mxu0 0
      %268 = vmatpush1.bf16.msra.mxu0 0
      %269 = vmatprep.subr.bf16.mxu0 0
      %270 = vmatpush1.bf16.msra.mxu0 0
      %271 = vmatprep.subr.bf16.mxu0 0
      %272 = vmatpush1.bf16.msra.mxu0 0
      %273 = vmatprep.subr.bf16.mxu0 0
      %274 = vmatpush1.bf16.msra.mxu0 0
      %275 = vmatprep.subr.bf16.mxu0 0
      %276 = vmatpush1.bf16.msra.mxu0 0
      %277 = vmatprep.subr.bf16.mxu0 0
      %278 = vmatpush1.bf16.msra.mxu0 0
      %279 = vmatprep.mubr.bf16.mxu0 0
      %280 = vmatmul.mubr.bf16.gmra.mrb[0].mxu0 %v242
      %v281 = vpop.f32.mrb[0].mxu0
      %v282 = vadd.f32 0.0, %v281
      %v283 = vpop.f32.mrb[0].mxu0
      %v284 = vpop.f32.mrb[0].mxu0
      %v285 = vadd.f32 0.0, %v284
      %v286 = vpop.f32.mrb[0].mxu0
      %287 = vmatprep.mubr.bf16.mxu0 0
      %288 = vmatmul.mubr.bf16.gmra.mrb[0].mxu0 %v245
      %v289 = vpop.f32.mrb[0].mxu0
      %v290 = vadd.f32 0.0, %v289
      %v291 = vpop.f32.mrb[0].mxu0
      %v292 = vpop.f32.mrb[0].mxu0
      %v293 = vadd.f32 0.0, %v292
      %v294 = vpop.f32.mrb[0].mxu0
      %295 = vdwg.mxu0
      %v300 = vunpack.c.l.b16 %v195
      %v301 = vunpack.c.l.b16 %v196
      %v302 = vunpack.c.l.b16 %v197
      %v303 = vunpack.c.l.b16 %v198
      %v304 = vpack.c.b16 %v301, %v300
      %v305 = vpack.c.b16 %v303, %v302
      %v308 = vunpack.c.l.b16 %v205
      %v309 = vunpack.c.l.b16 %v206
      %v310 = vpack.c.b16 %v309, %v308
      %v313 = vsel %vm240, %v304, 0
      %v316 = vsel %vm240, %v305, 0
      %318 = vmatprep.subr.bf16.mxu0 0
      %319 = vmatpush1.bf16.msra.mxu0 %v310
      %320 = vmatprep.subr.bf16.mxu0 0
      %321 = vmatpush1.bf16.msra.mxu0 0
      %322 = vmatprep.subr.bf16.mxu0 0
      %323 = vmatpush1.bf16.msra.mxu0 0
      %324 = vmatprep.subr.bf16.mxu0 0
      %325 = vmatpush1.bf16.msra.mxu0 0
      %326 = vmatprep.subr.bf16.mxu0 0
      %327 = vmatpush1.bf16.msra.mxu0 0
      %328 = vmatprep.subr.bf16.mxu0 0
      %329 = vmatpush1.bf16.msra.mxu0 0
      %330 = vmatprep.subr.bf16.mxu0 0
      %331 = vmatpush1.bf16.msra.mxu0 0
      %332 = vmatprep.subr.bf16.mxu0 0
      %333 = vmatpush1.bf16.msra.mxu0 0
      %334 = vmatprep.subr.bf16.mxu0 0
      %335 = vmatpush1.bf16.msra.mxu0 0
      %336 = vmatprep.subr.bf16.mxu0 0
      %337 = vmatpush1.bf16.msra.mxu0 0
      %338 = vmatprep.subr.bf16.mxu0 0
      %339 = vmatpush1.bf16.msra.mxu0 0
      %340 = vmatprep.subr.bf16.mxu0 0
      %341 = vmatpush1.bf16.msra.mxu0 0
      %342 = vmatprep.subr.bf16.mxu0 0
      %343 = vmatpush1.bf16.msra.mxu0 0
      %344 = vmatprep.subr.bf16.mxu0 0
      %345 = vmatpush1.bf16.msra.mxu0 0
      %346 = vmatprep.subr.bf16.mxu0 0
      %347 = vmatpush1.bf16.msra.mxu0 0
      %348 = vmatprep.subr.bf16.mxu0 0
      %349 = vmatpush1.bf16.msra.mxu0 0
      %350 = vmatprep.mubr.bf16.mxu0 0
      %351 = vmatmul.mubr.bf16.gmra.mrb[0].mxu0 %v313
      %v352 = vpop.f32.mrb[0].mxu0
      %v353 = vadd.f32 %v282, %v352
      %v354 = vpop.f32.mrb[0].mxu0
      %v355 = vpop.f32.mrb[0].mxu0
      %v356 = vadd.f32 %v285, %v355
      %v357 = vpop.f32.mrb[0].mxu0
      %358 = vmatprep.mubr.bf16.mxu0 0
      %359 = vmatmul.mubr.bf16.gmra.mrb[0].mxu0 %v316
      %v360 = vpop.f32.mrb[0].mxu0
      %v361 = vadd.f32 %v290, %v360
      %v362 = vpop.f32.mrb[0].mxu0
      %v363 = vpop.f32.mrb[0].mxu0
      %v364 = vadd.f32 %v293, %v363
      %v365 = vpop.f32.mrb[0].mxu0
      %366 = vdwg.mxu0
      %s367 = scalar_lea.vmem %s1, 16
      %v368 = vld [vmem:[%s367] sm:$0xf]
      %v369 = vld [vmem:[%s367 + $0x4] sm:$0xf]
      %vm373 = vcmask 1046528
      %v374 = vrot.slane %v207, 1
      %v375 = vrot.slane %v208, 1
      %v376 = vsel %vm373, %v374, %v375
      %v377 = vrot.slane %v209, 1
      %v378 = vsel %vm373, %v375, %v377
      %v381 = vunpack.c.l.b16 %v368
      %v382 = vunpack.c.l.b16 %v369
      %v383 = vpack.c.b16 %v382, %v381
      %v386 = vsel %vm240, %v376, 0
      %v389 = vsel %vm240, %v378, 0
      %391 = vmatprep.subr.bf16.mxu0 0
      %392 = vmatpush1.bf16.msra.mxu0 %v383
      %393 = vmatprep.subr.bf16.mxu0 0
      %394 = vmatpush1.bf16.msra.mxu0 0
      %395 = vmatprep.subr.bf16.mxu0 0
      %396 = vmatpush1.bf16.msra.mxu0 0
      %397 = vmatprep.subr.bf16.mxu0 0
      %398 = vmatpush1.bf16.msra.mxu0 0
      %399 = vmatprep.subr.bf16.mxu0 0
      %400 = vmatpush1.bf16.msra.mxu0 0
      %401 = vmatprep.subr.bf16.mxu0 0
      %402 = vmatpush1.bf16.msra.mxu0 0
      %403 = vmatprep.subr.bf16.mxu0 0
      %404 = vmatpush1.bf16.msra.mxu0 0
      %405 = vmatprep.subr.bf16.mxu0 0
      %406 = vmatpush1.bf16.msra.mxu0 0
      %407 = vmatprep.subr.bf16.mxu0 0
      %408 = vmatpush1.bf16.msra.mxu0 0
      %409 = vmatprep.subr.bf16.mxu0 0
      %410 = vmatpush1.bf16.msra.mxu0 0
      %411 = vmatprep.subr.bf16.mxu0 0
      %412 = vmatpush1.bf16.msra.mxu0 0
      %413 = vmatprep.subr.bf16.mxu0 0
      %414 = vmatpush1.bf16.msra.mxu0 0
      %415 = vmatprep.subr.bf16.mxu0 0
      %416 = vmatpush1.bf16.msra.mxu0 0
      %417 = vmatprep.subr.bf16.mxu0 0
      %418 = vmatpush1.bf16.msra.mxu0 0
      %419 = vmatprep.subr.bf16.mxu0 0
      %420 = vmatpush1.bf16.msra.mxu0 0
      %421 = vmatprep.subr.bf16.mxu0 0
      %422 = vmatpush1.bf16.msra.mxu0 0
      %423 = vmatprep.mubr.bf16.mxu0 0
      %424 = vmatmul.mubr.bf16.gmra.mrb[0].mxu0 %v386
      %v425 = vpop.f32.mrb[0].mxu0
      %v426 = vadd.f32 0.0, %v425
      %v427 = vpop.f32.mrb[0].mxu0
      %v428 = vpop.f32.mrb[0].mxu0
      %v429 = vadd.f32 0.0, %v428
      %v430 = vpop.f32.mrb[0].mxu0
      %431 = vmatprep.mubr.bf16.mxu0 0
      %432 = vmatmul.mubr.bf16.gmra.mrb[0].mxu0 %v389
      %v433 = vpop.f32.mrb[0].mxu0
      %v434 = vadd.f32 0.0, %v433
      %v435 = vpop.f32.mrb[0].mxu0
      %v436 = vpop.f32.mrb[0].mxu0
      %v437 = vadd.f32 0.0, %v436
      %v438 = vpop.f32.mrb[0].mxu0
      %439 = vdwg.mxu0
      %v440 = vadd.f32 %v353, %v426
      %v441 = vadd.f32 %v356, %v429
      %v442 = vadd.f32 %v361, %v434
      %v443 = vadd.f32 %v364, %v437
      %v444 = vld [vmem:[%s183 + $0x4] sm:$0xf]
      %v445 = vld [vmem:[%s183 + $0x8] sm:$0xf]
      %v446 = vld [vmem:[%s183 + $0xc] sm:$0xf]
      %v447 = vld [vmem:[%s183 + $0x10] sm:$0xf]
      %v448 = vld [vmem:[%s183 + $0x14] sm:$0xf]
      %v449 = vunpack.c.l.bf16 %v444
      %v450 = vunpack.c.l.bf16 %v445
      %v451 = vunpack.c.l.bf16 %v446
      %v452 = vunpack.c.l.bf16 %v447
      %v453 = vunpack.c.l.bf16 %v448
      %s454 = scalar_lea.vmem %s1, 24
      %v455 = vld [vmem:[%s454] sm:$0xf]
      %v456 = vld [vmem:[%s454 + $0x4] sm:$0xf]
      %v461 = vunpack.c.l.b16 %v444
      %v462 = vunpack.c.l.b16 %v445
      %v463 = vunpack.c.l.b16 %v446
      %v464 = vunpack.c.l.b16 %v447
      %v465 = vpack.c.b16 %v462, %v461
      %v466 = vpack.c.b16 %v464, %v463
      %v469 = vunpack.c.l.b16 %v455
      %v470 = vunpack.c.l.b16 %v456
      %v471 = vpack.c.b16 %v470, %v469
      %v474 = vsel %vm240, %v465, 0
      %v477 = vsel %vm240, %v466, 0
      %479 = vmatprep.subr.bf16.mxu0 0
      %480 = vmatpush1.bf16.msra.mxu0 %v471
      %481 = vmatprep.subr.bf16.mxu0 0
      %482 = vmatpush1.bf16.msra.mxu0 0
      %483 = vmatprep.subr.bf16.mxu0 0
      %484 = vmatpush1.bf16.msra.mxu0 0
      %485 = vmatprep.subr.bf16.mxu0 0
      %486 = vmatpush1.bf16.msra.mxu0 0
      %487 = vmatprep.subr.bf16.mxu0 0
      %488 = vmatpush1.bf16.msra.mxu0 0
      %489 = vmatprep.subr.bf16.mxu0 0
      %490 = vmatpush1.bf16.msra.mxu0 0
      %491 = vmatprep.subr.bf16.mxu0 0
      %492 = vmatpush1.bf16.msra.mxu0 0
      %493 = vmatprep.subr.bf16.mxu0 0
      %494 = vmatpush1.bf16.msra.mxu0 0
      %495 = vmatprep.subr.bf16.mxu0 0
      %496 = vmatpush1.bf16.msra.mxu0 0
      %497 = vmatprep.subr.bf16.mxu0 0
      %498 = vmatpush1.bf16.msra.mxu0 0
      %499 = vmatprep.subr.bf16.mxu0 0
      %500 = vmatpush1.bf16.msra.mxu0 0
      %501 = vmatprep.subr.bf16.mxu0 0
      %502 = vmatpush1.bf16.msra.mxu0 0
      %503 = vmatprep.subr.bf16.mxu0 0
      %504 = vmatpush1.bf16.msra.mxu0 0
      %505 = vmatprep.subr.bf16.mxu0 0
      %506 = vmatpush1.bf16.msra.mxu0 0
      %507 = vmatprep.subr.bf16.mxu0 0
      %508 = vmatpush1.bf16.msra.mxu0 0
      %509 = vmatprep.subr.bf16.mxu0 0
      %510 = vmatpush1.bf16.msra.mxu0 0
      %511 = vmatprep.mubr.bf16.mxu0 0
      %512 = vmatmul.mubr.bf16.gmra.mrb[0].mxu0 %v474
      %v513 = vpop.f32.mrb[0].mxu0
      %v514 = vadd.f32 0.0, %v513
      %v515 = vpop.f32.mrb[0].mxu0
      %v516 = vpop.f32.mrb[0].mxu0
      %v517 = vadd.f32 0.0, %v516
      %v518 = vpop.f32.mrb[0].mxu0
      %519 = vmatprep.mubr.bf16.mxu0 0
      %520 = vmatmul.mubr.bf16.gmra.mrb[0].mxu0 %v477
      %v521 = vpop.f32.mrb[0].mxu0
      %v522 = vadd.f32 0.0, %v521
      %v523 = vpop.f32.mrb[0].mxu0
      %v524 = vpop.f32.mrb[0].mxu0
      %v525 = vadd.f32 0.0, %v524
      %v526 = vpop.f32.mrb[0].mxu0
      %527 = vdwg.mxu0
      %v528 = vadd.f32 %v440, %v514
      %v529 = vadd.f32 %v441, %v517
      %v530 = vadd.f32 %v442, %v522
      %v531 = vadd.f32 %v443, %v525
      %v532 = vpack.c.bf16 %v450, %v449
      %v533 = vpack.c.bf16 %v452, %v451
      %v534 = vpack.c.bf16 %v453, %v453
      %s535 = scalar_lea.vmem %s1, 32
      %v536 = vld [vmem:[%s535] sm:$0xf]
      %v537 = vld [vmem:[%s535 + $0x4] sm:$0xf]
      %v539 = vshrl.u32 %v532, 16
      %v541 = vshll.u32 %v532, 16
      %v543 = vrot.slane %v541, 1
      %v544 = vor.u32 %v539, %v543
      %v546 = vshll.u32 %v533, 16
      %v548 = vrot.slane %v546, 1
      %v549 = vsel %vm213, %v544, %v548
      %v550 = vshrl.u32 %v533, 16
      %v552 = vor.u32 %v550, %v548
      %v554 = vshll.u32 %v534, 16
      %v556 = vrot.slane %v554, 1
      %v557 = vsel %vm213, %v552, %v556
      %v560 = vunpack.c.l.b16 %v536
      %v561 = vunpack.c.l.b16 %v537
      %v562 = vpack.c.b16 %v561, %v560
      %v565 = vsel %vm240, %v549, 0
      %v568 = vsel %vm240, %v557, 0
      %570 = vmatprep.subr.bf16.mxu0 0
      %571 = vmatpush1.bf16.msra.mxu0 %v562
      %572 = vmatprep.subr.bf16.mxu0 0
      %573 = vmatpush1.bf16.msra.mxu0 0
      %574 = vmatprep.subr.bf16.mxu0 0
      %575 = vmatpush1.bf16.msra.mxu0 0
      %576 = vmatprep.subr.bf16.mxu0 0
      %577 = vmatpush1.bf16.msra.mxu0 0
      %578 = vmatprep.subr.bf16.mxu0 0
      %579 = vmatpush1.bf16.msra.mxu0 0
      %580 = vmatprep.subr.bf16.mxu0 0
      %581 = vmatpush1.bf16.msra.mxu0 0
      %582 = vmatprep.subr.bf16.mxu0 0
      %583 = vmatpush1.bf16.msra.mxu0 0
      %584 = vmatprep.subr.bf16.mxu0 0
      %585 = vmatpush1.bf16.msra.mxu0 0
      %586 = vmatprep.subr.bf16.mxu0 0
      %587 = vmatpush1.bf16.msra.mxu0 0
      %588 = vmatprep.subr.bf16.mxu0 0
      %589 = vmatpush1.bf16.msra.mxu0 0
      %590 = vmatprep.subr.bf16.mxu0 0
      %591 = vmatpush1.bf16.msra.mxu0 0
      %592 = vmatprep.subr.bf16.mxu0 0
      %593 = vmatpush1.bf16.msra.mxu0 0
      %594 = vmatprep.subr.bf16.mxu0 0
      %595 = vmatpush1.bf16.msra.mxu0 0
      %596 = vmatprep.subr.bf16.mxu0 0
      %597 = vmatpush1.bf16.msra.mxu0 0
      %598 = vmatprep.subr.bf16.mxu0 0
      %599 = vmatpush1.bf16.msra.mxu0 0
      %600 = vmatprep.subr.bf16.mxu0 0
      %601 = vmatpush1.bf16.msra.mxu0 0
      %602 = vmatprep.mubr.bf16.mxu0 0
      %603 = vmatmul.mubr.bf16.gmra.mrb[0].mxu0 %v565
      %v604 = vpop.f32.mrb[0].mxu0
      %v605 = vadd.f32 0.0, %v604
      %v606 = vpop.f32.mrb[0].mxu0
      %v607 = vpop.f32.mrb[0].mxu0
      %v608 = vadd.f32 0.0, %v607
      %v609 = vpop.f32.mrb[0].mxu0
      %610 = vmatprep.mubr.bf16.mxu0 0
      %611 = vmatmul.mubr.bf16.gmra.mrb[0].mxu0 %v568
      %v612 = vpop.f32.mrb[0].mxu0
      %v613 = vadd.f32 0.0, %v612
      %v614 = vpop.f32.mrb[0].mxu0
      %v615 = vpop.f32.mrb[0].mxu0
      %v616 = vadd.f32 0.0, %v615
      %v617 = vpop.f32.mrb[0].mxu0
      %618 = vdwg.mxu0
      %v619 = vadd.f32 %v528, %v605
      %v620 = vadd.f32 %v529, %v608
      %v621 = vadd.f32 %v530, %v613
      %v622 = vadd.f32 %v531, %v616
      %s623 = scalar_lea.vmem %s1, 40
      %v624 = vld [vmem:[%s623] sm:$0xf]
      %v625 = vld [vmem:[%s623 + $0x4] sm:$0xf]
      %v629 = vrot.slane %v532, 1
      %v630 = vrot.slane %v533, 1
      %v631 = vsel %vm373, %v629, %v630
      %v632 = vrot.slane %v534, 1
      %v633 = vsel %vm373, %v630, %v632
      %v636 = vunpack.c.l.b16 %v624
      %v637 = vunpack.c.l.b16 %v625
      %v638 = vpack.c.b16 %v637, %v636
      %v641 = vsel %vm240, %v631, 0
      %v644 = vsel %vm240, %v633, 0
      %646 = vmatprep.subr.bf16.mxu0 0
      %647 = vmatpush1.bf16.msra.mxu0 %v638
      %648 = vmatprep.subr.bf16.mxu0 0
      %649 = vmatpush1.bf16.msra.mxu0 0
      %650 = vmatprep.subr.bf16.mxu0 0
      %651 = vmatpush1.bf16.msra.mxu0 0
      %652 = vmatprep.subr.bf16.mxu0 0
      %653 = vmatpush1.bf16.msra.mxu0 0
      %654 = vmatprep.subr.bf16.mxu0 0
      %655 = vmatpush1.bf16.msra.mxu0 0
      %656 = vmatprep.subr.bf16.mxu0 0
      %657 = vmatpush1.bf16.msra.mxu0 0
      %658 = vmatprep.subr.bf16.mxu0 0
      %659 = vmatpush1.bf16.msra.mxu0 0
      %660 = vmatprep.subr.bf16.mxu0 0
      %661 = vmatpush1.bf16.msra.mxu0 0
      %662 = vmatprep.subr.bf16.mxu0 0
      %663 = vmatpush1.bf16.msra.mxu0 0
      %664 = vmatprep.subr.bf16.mxu0 0
      %665 = vmatpush1.bf16.msra.mxu0 0
      %666 = vmatprep.subr.bf16.mxu0 0
      %667 = vmatpush1.bf16.msra.mxu0 0
      %668 = vmatprep.subr.bf16.mxu0 0
      %669 = vmatpush1.bf16.msra.mxu0 0
      %670 = vmatprep.subr.bf16.mxu0 0
      %671 = vmatpush1.bf16.msra.mxu0 0
      %672 = vmatprep.subr.bf16.mxu0 0
      %673 = vmatpush1.bf16.msra.mxu0 0
      %674 = vmatprep.subr.bf16.mxu0 0
      %675 = vmatpush1.bf16.msra.mxu0 0
      %676 = vmatprep.subr.bf16.mxu0 0
      %677 = vmatpush1.bf16.msra.mxu0 0
      %678 = vmatprep.mubr.bf16.mxu0 0
      %679 = vmatmul.mubr.bf16.gmra.mrb[0].mxu0 %v641
      %v680 = vpop.f32.mrb[0].mxu0
      %v681 = vadd.f32 0.0, %v680
      %v682 = vpop.f32.mrb[0].mxu0
      %v683 = vpop.f32.mrb[0].mxu0
      %v684 = vadd.f32 0.0, %v683
      %v685 = vpop.f32.mrb[0].mxu0
      %686 = vmatprep.mubr.bf16.mxu0 0
      %687 = vmatmul.mubr.bf16.gmra.mrb[0].mxu0 %v644
      %v688 = vpop.f32.mrb[0].mxu0
      %v689 = vadd.f32 0.0, %v688
      %v690 = vpop.f32.mrb[0].mxu0
      %v691 = vpop.f32.mrb[0].mxu0
      %v692 = vadd.f32 0.0, %v691
      %v693 = vpop.f32.mrb[0].mxu0
      %694 = vdwg.mxu0
      %v695 = vadd.f32 %v619, %v681
      %v696 = vadd.f32 %v620, %v684
      %v697 = vadd.f32 %v621, %v689
      %v698 = vadd.f32 %v622, %v692
      %v699 = vld [vmem:[%s183 + $0x8] sm:$0xf]
      %v700 = vld [vmem:[%s183 + $0xc] sm:$0xf]
      %v701 = vld [vmem:[%s183 + $0x10] sm:$0xf]
      %v702 = vld [vmem:[%s183 + $0x14] sm:$0xf]
      %v703 = vld [vmem:[%s183 + $0x18] sm:$0xf]
      %v704 = vunpack.c.l.bf16 %v699
      %v705 = vunpack.c.l.bf16 %v700
      %v706 = vunpack.c.l.bf16 %v701
      %v707 = vunpack.c.l.bf16 %v702
      %v708 = vunpack.c.l.bf16 %v703
      %s709 = scalar_lea.vmem %s1, 48
      %v710 = vld [vmem:[%s709] sm:$0xf]
      %v711 = vld [vmem:[%s709 + $0x4] sm:$0xf]
      %v716 = vunpack.c.l.b16 %v699
      %v717 = vunpack.c.l.b16 %v700
      %v718 = vunpack.c.l.b16 %v701
      %v719 = vunpack.c.l.b16 %v702
      %v720 = vpack.c.b16 %v717, %v716
      %v721 = vpack.c.b16 %v719, %v718
      %v724 = vunpack.c.l.b16 %v710
      %v725 = vunpack.c.l.b16 %v711
      %v726 = vpack.c.b16 %v725, %v724
      %v729 = vsel %vm240, %v720, 0
      %v732 = vsel %vm240, %v721, 0
      %734 = vmatprep.subr.bf16.mxu0 0
      %735 = vmatpush1.bf16.msra.mxu0 %v726
      %736 = vmatprep.subr.bf16.mxu0 0
      %737 = vmatpush1.bf16.msra.mxu0 0
      %738 = vmatprep.subr.bf16.mxu0 0
      %739 = vmatpush1.bf16.msra.mxu0 0
      %740 = vmatprep.subr.bf16.mxu0 0
      %741 = vmatpush1.bf16.msra.mxu0 0
      %742 = vmatprep.subr.bf16.mxu0 0
      %743 = vmatpush1.bf16.msra.mxu0 0
      %744 = vmatprep.subr.bf16.mxu0 0
      %745 = vmatpush1.bf16.msra.mxu0 0
      %746 = vmatprep.subr.bf16.mxu0 0
      %747 = vmatpush1.bf16.msra.mxu0 0
      %748 = vmatprep.subr.bf16.mxu0 0
      %749 = vmatpush1.bf16.msra.mxu0 0
      %750 = vmatprep.subr.bf16.mxu0 0
      %751 = vmatpush1.bf16.msra.mxu0 0
      %752 = vmatprep.subr.bf16.mxu0 0
      %753 = vmatpush1.bf16.msra.mxu0 0
      %754 = vmatprep.subr.bf16.mxu0 0
      %755 = vmatpush1.bf16.msra.mxu0 0
      %756 = vmatprep.subr.bf16.mxu0 0
      %757 = vmatpush1.bf16.msra.mxu0 0
      %758 = vmatprep.subr.bf16.mxu0 0
      %759 = vmatpush1.bf16.msra.mxu0 0
      %760 = vmatprep.subr.bf16.mxu0 0
      %761 = vmatpush1.bf16.msra.mxu0 0
      %762 = vmatprep.subr.bf16.mxu0 0
      %763 = vmatpush1.bf16.msra.mxu0 0
      %764 = vmatprep.subr.bf16.mxu0 0
      %765 = vmatpush1.bf16.msra.mxu0 0
      %766 = vmatprep.mubr.bf16.mxu0 0
      %767 = vmatmul.mubr.bf16.gmra.mrb[0].mxu0 %v729
      %v768 = vpop.f32.mrb[0].mxu0
      %v769 = vadd.f32 0.0, %v768
      %v770 = vpop.f32.mrb[0].mxu0
      %v771 = vpop.f32.mrb[0].mxu0
      %v772 = vadd.f32 0.0, %v771
      %v773 = vpop.f32.mrb[0].mxu0
      %774 = vmatprep.mubr.bf16.mxu0 0
      %775 = vmatmul.mubr.bf16.gmra.mrb[0].mxu0 %v732
      %v776 = vpop.f32.mrb[0].mxu0
      %v777 = vadd.f32 0.0, %v776
      %v778 = vpop.f32.mrb[0].mxu0
      %v779 = vpop.f32.mrb[0].mxu0
      %v780 = vadd.f32 0.0, %v779
      %v781 = vpop.f32.mrb[0].mxu0
      %782 = vdwg.mxu0
      %v783 = vadd.f32 %v695, %v769
      %v784 = vadd.f32 %v696, %v772
      %v785 = vadd.f32 %v697, %v777
      %v786 = vadd.f32 %v698, %v780
      %v787 = vpack.c.bf16 %v705, %v704
      %v788 = vpack.c.bf16 %v707, %v706
      %v789 = vpack.c.bf16 %v708, %v708
      %s790 = scalar_lea.vmem %s1, 56
      %v791 = vld [vmem:[%s790] sm:$0xf]
      %v792 = vld [vmem:[%s790 + $0x4] sm:$0xf]
      %v794 = vshrl.u32 %v787, 16
      %v796 = vshll.u32 %v787, 16
      %v798 = vrot.slane %v796, 1
      %v799 = vor.u32 %v794, %v798
      %v801 = vshll.u32 %v788, 16
      %v803 = vrot.slane %v801, 1
      %v804 = vsel %vm213, %v799, %v803
      %v805 = vshrl.u32 %v788, 16
      %v807 = vor.u32 %v805, %v803
      %v809 = vshll.u32 %v789, 16
      %v811 = vrot.slane %v809, 1
      %v812 = vsel %vm213, %v807, %v811
      %v815 = vunpack.c.l.b16 %v791
      %v816 = vunpack.c.l.b16 %v792
      %v817 = vpack.c.b16 %v816, %v815
      %v820 = vsel %vm240, %v804, 0
      %v823 = vsel %vm240, %v812, 0
      %825 = vmatprep.subr.bf16.mxu0 0
      %826 = vmatpush1.bf16.msra.mxu0 %v817
      %827 = vmatprep.subr.bf16.mxu0 0
      %828 = vmatpush1.bf16.msra.mxu0 0
      %829 = vmatprep.subr.bf16.mxu0 0
      %830 = vmatpush1.bf16.msra.mxu0 0
      %831 = vmatprep.subr.bf16.mxu0 0
      %832 = vmatpush1.bf16.msra.mxu0 0
      %833 = vmatprep.subr.bf16.mxu0 0
      %834 = vmatpush1.bf16.msra.mxu0 0
      %835 = vmatprep.subr.bf16.mxu0 0
      %836 = vmatpush1.bf16.msra.mxu0 0
      %837 = vmatprep.subr.bf16.mxu0 0
      %838 = vmatpush1.bf16.msra.mxu0 0
      %839 = vmatprep.subr.bf16.mxu0 0
      %840 = vmatpush1.bf16.msra.mxu0 0
      %841 = vmatprep.subr.bf16.mxu0 0
      %842 = vmatpush1.bf16.msra.mxu0 0
      %843 = vmatprep.subr.bf16.mxu0 0
      %844 = vmatpush1.bf16.msra.mxu0 0
      %845 = vmatprep.subr.bf16.mxu0 0
      %846 = vmatpush1.bf16.msra.mxu0 0
      %847 = vmatprep.subr.bf16.mxu0 0
      %848 = vmatpush1.bf16.msra.mxu0 0
      %849 = vmatprep.subr.bf16.mxu0 0
      %850 = vmatpush1.bf16.msra.mxu0 0
      %851 = vmatprep.subr.bf16.mxu0 0
      %852 = vmatpush1.bf16.msra.mxu0 0
      %853 = vmatprep.subr.bf16.mxu0 0
      %854 = vmatpush1.bf16.msra.mxu0 0
      %855 = vmatprep.subr.bf16.mxu0 0
      %856 = vmatpush1.bf16.msra.mxu0 0
      %857 = vmatprep.mubr.bf16.mxu0 0
      %858 = vmatmul.mubr.bf16.gmra.mrb[0].mxu0 %v820
      %v859 = vpop.f32.mrb[0].mxu0
      %v860 = vadd.f32 0.0, %v859
      %v861 = vpop.f32.mrb[0].mxu0
      %v862 = vpop.f32.mrb[0].mxu0
      %v863 = vadd.f32 0.0, %v862
      %v864 = vpop.f32.mrb[0].mxu0
      %865 = vmatprep.mubr.bf16.mxu0 0
      %866 = vmatmul.mubr.bf16.gmra.mrb[0].mxu0 %v823
      %v867 = vpop.f32.mrb[0].mxu0
      %v868 = vadd.f32 0.0, %v867
      %v869 = vpop.f32.mrb[0].mxu0
      %v870 = vpop.f32.mrb[0].mxu0
      %v871 = vadd.f32 0.0, %v870
      %v872 = vpop.f32.mrb[0].mxu0
      %873 = vdwg.mxu0
      %v874 = vadd.f32 %v783, %v860
      %v875 = vadd.f32 %v784, %v863
      %v876 = vadd.f32 %v785, %v868
      %v877 = vadd.f32 %v786, %v871
      %s878 = scalar_lea.vmem %s1, 64
      %v879 = vld [vmem:[%s878] sm:$0xf]
      %v880 = vld [vmem:[%s878 + $0x4] sm:$0xf]
      %v884 = vrot.slane %v787, 1
      %v885 = vrot.slane %v788, 1
      %v886 = vsel %vm373, %v884, %v885
      %v887 = vrot.slane %v789, 1
      %v888 = vsel %vm373, %v885, %v887
      %v891 = vunpack.c.l.b16 %v879
      %v892 = vunpack.c.l.b16 %v880
      %v893 = vpack.c.b16 %v892, %v891
      %v896 = vsel %vm240, %v886, 0
      %v899 = vsel %vm240, %v888, 0
      %901 = vmatprep.subr.bf16.mxu0 0
      %902 = vmatpush1.bf16.msra.mxu0 %v893
      %903 = vmatprep.subr.bf16.mxu0 0
      %904 = vmatpush1.bf16.msra.mxu0 0
      %905 = vmatprep.subr.bf16.mxu0 0
      %906 = vmatpush1.bf16.msra.mxu0 0
      %907 = vmatprep.subr.bf16.mxu0 0
      %908 = vmatpush1.bf16.msra.mxu0 0
      %909 = vmatprep.subr.bf16.mxu0 0
      %910 = vmatpush1.bf16.msra.mxu0 0
      %911 = vmatprep.subr.bf16.mxu0 0
      %912 = vmatpush1.bf16.msra.mxu0 0
      %913 = vmatprep.subr.bf16.mxu0 0
      %914 = vmatpush1.bf16.msra.mxu0 0
      %915 = vmatprep.subr.bf16.mxu0 0
      %916 = vmatpush1.bf16.msra.mxu0 0
      %917 = vmatprep.subr.bf16.mxu0 0
      %918 = vmatpush1.bf16.msra.mxu0 0
      %919 = vmatprep.subr.bf16.mxu0 0
      %920 = vmatpush1.bf16.msra.mxu0 0
      %921 = vmatprep.subr.bf16.mxu0 0
      %922 = vmatpush1.bf16.msra.mxu0 0
      %923 = vmatprep.subr.bf16.mxu0 0
      %924 = vmatpush1.bf16.msra.mxu0 0
      %925 = vmatprep.subr.bf16.mxu0 0
      %926 = vmatpush1.bf16.msra.mxu0 0
      %927 = vmatprep.subr.bf16.mxu0 0
      %928 = vmatpush1.bf16.msra.mxu0 0
      %929 = vmatprep.subr.bf16.mxu0 0
      %930 = vmatpush1.bf16.msra.mxu0 0
      %931 = vmatprep.subr.bf16.mxu0 0
      %932 = vmatpush1.bf16.msra.mxu0 0
      %933 = vmatprep.mubr.bf16.mxu0 0
      %934 = vmatmul.mubr.bf16.gmra.mrb[0].mxu0 %v896
      %v935 = vpop.f32.mrb[0].mxu0
      %v936 = vadd.f32 0.0, %v935
      %v937 = vpop.f32.mrb[0].mxu0
      %v938 = vpop.f32.mrb[0].mxu0
      %v939 = vadd.f32 0.0, %v938
      %v940 = vpop.f32.mrb[0].mxu0
      %941 = vmatprep.mubr.bf16.mxu0 0
      %942 = vmatmul.mubr.bf16.gmra.mrb[0].mxu0 %v899
      %v943 = vpop.f32.mrb[0].mxu0
      %v944 = vadd.f32 0.0, %v943
      %v945 = vpop.f32.mrb[0].mxu0
      %v946 = vpop.f32.mrb[0].mxu0
      %v947 = vadd.f32 0.0, %v946
      %v948 = vpop.f32.mrb[0].mxu0
      %949 = vdwg.mxu0
      %v950 = vadd.f32 %v874, %v936
      %v951 = vadd.f32 %v875, %v939
      %v952 = vadd.f32 %v876, %v944
      %v953 = vadd.f32 %v877, %v947
      %v954 = vld [vmem:[%s2] sm:$0x1]
      %v956 = vlaneseq
      %v957 = vshrl.u32 %v956, 7
      %v958 = vsub.s32 0, %v957
      %v959 = vrot.slane %v954, %v958
      %v961 = vadd.f32 %v950, %v959
      %v962 = vadd.f32 %v951, %v959
      %v963 = vadd.f32 %v952, %v959
      %v964 = vadd.f32 %v953, %v959
      %v965 = vmax.f32 %v961, 0.0
      %v966 = vmax.f32 %v962, 0.0
      %v967 = vmax.f32 %v963, 0.0
      %v968 = vmax.f32 %v964, 0.0
      %v969 = vpack.c.bf16 %v966, %v965
      %v970 = vpack.c.bf16 %v968, %v967
      %v973 = vunpack.c.l.b16 %v969
      %v974 = vunpack.c.h.b16 %v969
      %v975 = vunpack.c.l.b16 %v970
      %v976 = vunpack.c.h.b16 %v970
      %v977 = vpack.c.b16 %v973, %v973
      %v978 = vpack.c.b16 %v974, %v974
      %v979 = vpack.c.b16 %v975, %v975
      %v980 = vpack.c.b16 %v976, %v976
      %vm985 = vcmask 125952
      %986 = vst.msk [vmem:[%s192] sm:$0xf] %vm985, %v977
      %987 = vst.msk [vmem:[%s192 + $0x4] sm:$0xf] %vm985, %v978
      %988 = vst.msk [vmem:[%s192 + $0x8] sm:$0xf] %vm985, %v979
      %989 = vst.msk [vmem:[%s192 + $0xc] sm:$0xf] %vm985, %v980
      %s990 = smul.u32 4, %s19
      %p991 = scmp.lt.s32.totalorder %s18, 5
      %s992 = scalar_select %p991, %s18, 5
      %p993 = scmp.lt.s32.totalorder %s990, 3
      %s994 = scalar_select %p993, %s990, 3
      %s995 = smul.addr %s992, 4
      %s996 = sadd.s32 %s994, %s995
      %s997 = smul.addr %s996, 4
      %s998 = scalar_lea.vmem %s3, %s997
      // Predicated region
      $region33: #{scene_net_forward.15} parent=31 // pred_check
        %p999 = pneg %p114
      $region34: #{scene_net_forward.15} parent=31 // pred_check_branch
        %1001 = sbr.rel (%p999) target = $region36
      $region35: #{scene_net_forward.15} parent=31 // pred_region
        %s1002 = smul.u32 4, %s19
      $region36: #{scene_net_forward.15} parent=31 // pred_fallthru
        _
    $region32: #{scene_net_forward.15} parent=5 // pred_fallthru
      _
    %p1003 = scmp.le.s32.totalorder 2, %s9
    // Predicated region
    $region37: #{scene_net_forward.15} parent=5 // pred_check
      %p1004 = pneg %p1003
    $region38: #{scene_net_forward.15} parent=5 // pred_check_branch
      %1006 = sbr.rel (%p1004) target = $region40
    $region39: #{scene_net_forward.15} parent=5 // pred_region
      %s1007 = ssub.s32 %s9, 2
      // Predicated region
      $region41: #{scene_net_forward.15} parent=39 // pred_check
        %p1008 = pneg %p120
      $region42: #{scene_net_forward.15} parent=39 // pred_check_branch
        %1010 = sbr.rel (%p1008) target = $region44
      $region43: #{scene_net_forward.15} parent=39 // pred_region
        %s1011 = smul.u32 4, %s21
        %p1012 = scmp.lt.s32.totalorder %s20, 5
        %s1013 = scalar_select %p1012, %s20, 5
        %p1014 = scmp.lt.s32.totalorder %s1011, 3
        %s1015 = scalar_select %p1014, %s1011, 3
        %s1016 = smul.addr %s1013, 4
        %s1017 = sadd.s32 %s1015, %s1016
        %s1018 = smul.addr %s1017, 4
        %s1019 = scalar_lea.vmem %s3, %s1018
      $region44: #{scene_net_forward.15} parent=39 // pred_fallthru
        _
    $region40: #{scene_net_forward.15} parent=5 // pred_fallthru
      _
  $region6: #{scene_net_forward.15} parent=0 // loop_footer
    %s13 = sadd.s32 1, %s9
  $region7: #{scene_net_forward.15} parent=0 // loop_footer_branch
    %8 = sbr.rel target = $region3
  $region8: #{scene_net_forward.15} parent=0 // loop_exit
    _

// kernel: scene_net_forward.16
$region0: #{scene_net_forward.16}
  #allocation0 [shape = 'u32[]', space=smem, size = 0x4, offset = 0x4, fixed_abs, tag = 'smem constant byte address 0x4 - core index']
  #allocation1 [shape = 'u32[144,128]{1,0:T(1,128)}', space=vmem, size = 0x12000, scoped, tag = 'internal scratch']
  %s0 = inlined_call_operand.vmem [shape: bf16[6,56,16], index: 0, kind: input, shape index: {}]
  %s1 = inlined_call_operand.vmem [shape: bf16[9,16,16], index: 1, kind: input, shape index: {}]
  %s2 = inlined_call_operand.vmem [shape: f32[1,16], index: 2, kind: input, shape index: {}]
  %s3 = inlined_call_operand.vmem [shape: bf16[1,16,16], index: 3, kind: input, shape index: {}]
  %s4 = inlined_call_operand.vmem [shape: f32[1,16], index: 4, kind: input, shape index: {}]
  %s5 = inlined_call_operand.vmem [shape: bf16[6,32,16], index: 5, kind: output, shape index: {0}]
  %s6 = inlined_call_operand.vmem [shape: bf16[6,32,16], index: 6, kind: output, shape index: {1}]
  %7 = xla_tuple %s5, %s6
  %s8 = sld [smem:[#allocation0]]
  $region61: #{scene_net_forward.16} parent=0
    _
  %s10 = ssub.s32 1, %s8
  %s11 = scalar_select 0, %s10, %s8
  loop: start=0, step=1, limit=8
  $region2: #{scene_net_forward.16} parent=0 // loop_pre_header
    _
  $region3: #{scene_net_forward.16} parent=0 // loop_header
    %s13 = sphi 0, %s17
    %p14 = scmp.ge.s32.totalorder %s13, 8
    %s20 = sphi 0, %s32
    %s21 = sphi 0, %s28
    %s22 = sphi 0, %s20
    %s23 = sphi 0, %s21
    %s24 = sphi 0, %s22
    %s25 = sphi 0, %s23
    %s35 = sphi 0, %s37
    %s38 = sphi 0, %s35
    %s39 = sphi 0, %s38
    %s55 = sphi 0, %s39
    %s59 = sphi 0, %s59
    %s61 = sphi 0, %s59
    %s62 = sphi 0, %s61
    %s76 = sphi 0, %s62
    %s80 = sphi 0, %s80
    %s82 = sphi 0, %s80
    %s83 = sphi 0, %s82
    %s97 = sphi 0, %s83
    %s101 = sphi 0, %s101
    %s103 = sphi 0, %s101
    %s104 = sphi 0, %s103
    %s118 = sphi 0, %s104
    %s122 = sphi 0, %s122
    %s124 = sphi 0, %s122
    %s125 = sphi 0, %s124
    %s139 = sphi 0, %s125
    %s147 = sphi 0, %s149
    %s150 = sphi 0, %s147
    %s151 = sphi 0, %s150
    %s167 = sphi 0, %s151
    %s175 = sphi 0, %s177
    %s178 = sphi 0, %s175
    %s179 = sphi 0, %s178
    %s195 = sphi 0, %s179
  $region4: #{scene_net_forward.16} parent=0 // loop_header_branch
    %16 = sbr.rel (%p14) target = $region8
  $region5: #{scene_net_forward.16} parent=0 // loop_body
    %s18 = ssub.s32 %s13, 1
    %s19 = ssub.s32 %s13, 2
    %s26 = sadd.s32 1, %s21
    %p27 = scmp.ge.s32.totalorder %s26, 1
    %s28 = scalar_select %p27, 0, %s26
    %s29 = sadd.s32 1, %s20
    %s30 = scalar_select %p27, %s29, %s20
    %p31 = scmp.ge.s32.totalorder %s30, 6
    %s32 = scalar_select %p31, 0, %s30
    %s33 = ssub.s32 %s20, %s32
    %p34 = scmp.eq.s32.totalorder %s33, 0
    %s36 = sadd.s32 %s35, 1
    %s37 = scalar_select %p34, %s35, %s36
    %p40 = pneg %p34
    %p41 = scmp.eq.s32.totalorder %s13, 5
    %p42 = por %p40, %p41
    %p43 = scmp.ne.s32.totalorder %s35, %s38
    %p44 = scmp.eq.s32.totalorder %s13, 0
    %p45 = por %p43, %p44
    %p46 = scmp.ne.s32.totalorder %s35, %s38
    %p47 = scmp.eq.s32.totalorder %s18, 5
    %p48 = por %p46, %p47
    %p49 = scmp.ne.s32.totalorder %s38, %s39
    %p50 = scmp.eq.s32.totalorder %s18, 0
    %p51 = por %p49, %p50
    %p52 = scmp.ne.s32.totalorder %s38, %s39
    %p53 = scmp.eq.s32.totalorder %s19, 5
    %p54 = por %p52, %p53
    %p56 = scmp.ne.s32.totalorder %s39, %s55
    %p57 = scmp.eq.s32.totalorder %s19, 0
    %p58 = por %p56, %p57
    %s60 = sadd.s32 %s59, 1
    %p63 = scmp.eq.s32.totalorder %s13, 5
    %p64 = scmp.ne.s32.totalorder %s59, %s61
    %p65 = scmp.eq.s32.totalorder %s13, 0
    %p66 = por %p64, %p65
    %p67 = scmp.ne.s32.totalorder %s59, %s61
    %p68 = scmp.eq.s32.totalorder %s18, 5
    %p69 = por %p67, %p68
    %p70 = scmp.ne.s32.totalorder %s61, %s62
    %p71 = scmp.eq.s32.totalorder %s18, 0
    %p72 = por %p70, %p71
    %p73 = scmp.ne.s32.totalorder %s61, %s62
    %p74 = scmp.eq.s32.totalorder %s19, 5
    %p75 = por %p73, %p74
    %p77 = scmp.ne.s32.totalorder %s62, %s76
    %p78 = scmp.eq.s32.totalorder %s19, 0
    %p79 = por %p77, %p78
    %s81 = sadd.s32 %s80, 1
    %p84 = scmp.eq.s32.totalorder %s13, 5
    %p85 = scmp.ne.s32.totalorder %s80, %s82
    %p86 = scmp.eq.s32.totalorder %s13, 0
    %p87 = por %p85, %p86
    %p88 = scmp.ne.s32.totalorder %s80, %s82
    %p89 = scmp.eq.s32.totalorder %s18, 5
    %p90 = por %p88, %p89
    %p91 = scmp.ne.s32.totalorder %s82, %s83
    %p92 = scmp.eq.s32.totalorder %s18, 0
    %p93 = por %p91, %p92
    %p94 = scmp.ne.s32.totalorder %s82, %s83
    %p95 = scmp.eq.s32.totalorder %s19, 5
    %p96 = por %p94, %p95
    %p98 = scmp.ne.s32.totalorder %s83, %s97
    %p99 = scmp.eq.s32.totalorder %s19, 0
    %p100 = por %p98, %p99
    %s102 = sadd.s32 %s101, 1
    %p105 = scmp.eq.s32.totalorder %s13, 5
    %p106 = scmp.ne.s32.totalorder %s101, %s103
    %p107 = scmp.eq.s32.totalorder %s13, 0
    %p108 = por %p106, %p107
    %p109 = scmp.ne.s32.totalorder %s101, %s103
    %p110 = scmp.eq.s32.totalorder %s18, 5
    %p111 = por %p109, %p110
    %p112 = scmp.ne.s32.totalorder %s103, %s104
    %p113 = scmp.eq.s32.totalorder %s18, 0
    %p114 = por %p112, %p113
    %p115 = scmp.ne.s32.totalorder %s103, %s104
    %p116 = scmp.eq.s32.totalorder %s19, 5
    %p117 = por %p115, %p116
    %p119 = scmp.ne.s32.totalorder %s104, %s118
    %p120 = scmp.eq.s32.totalorder %s19, 0
    %p121 = por %p119, %p120
    %s123 = sadd.s32 %s122, 1
    %p126 = scmp.eq.s32.totalorder %s13, 5
    %p127 = scmp.ne.s32.totalorder %s122, %s124
    %p128 = scmp.eq.s32.totalorder %s13, 0
    %p129 = por %p127, %p128
    %p130 = scmp.ne.s32.totalorder %s122, %s124
    %p131 = scmp.eq.s32.totalorder %s18, 5
    %p132 = por %p130, %p131
    %p133 = scmp.ne.s32.totalorder %s124, %s125
    %p134 = scmp.eq.s32.totalorder %s18, 0
    %p135 = por %p133, %p134
    %p136 = scmp.ne.s32.totalorder %s124, %s125
    %p137 = scmp.eq.s32.totalorder %s19, 5
    %p138 = por %p136, %p137
    %p140 = scmp.ne.s32.totalorder %s125, %s139
    %p141 = scmp.eq.s32.totalorder %s19, 0
    %p142 = por %p140, %p141
    %s143 = ssub.s32 %s20, %s32
    %s144 = ssub.s32 %s21, %s28
    %s145 = sor.u32 %s143, %s144
    %p146 = scmp.eq.s32.totalorder %s145, 0
    %s148 = sadd.s32 %s147, 1
    %s149 = scalar_select %p146, %s147, %s148
    %p152 = pneg %p146
    %p153 = scmp.eq.s32.totalorder %s13, 5
    %p154 = por %p152, %p153
    %p155 = scmp.ne.s32.totalorder %s147, %s150
    %p156 = scmp.eq.s32.totalorder %s13, 0
    %p157 = por %p155, %p156
    %p158 = scmp.ne.s32.totalorder %s147, %s150
    %p159 = scmp.eq.s32.totalorder %s18, 5
    %p160 = por %p158, %p159
    %p161 = scmp.ne.s32.totalorder %s150, %s151
    %p162 = scmp.eq.s32.totalorder %s18, 0
    %p163 = por %p161, %p162
    %p164 = scmp.ne.s32.totalorder %s150, %s151
    %p165 = scmp.eq.s32.totalorder %s19, 5
    %p166 = por %p164, %p165
    %p168 = scmp.ne.s32.totalorder %s151, %s167
    %p169 = scmp.eq.s32.totalorder %s19, 0
    %p170 = por %p168, %p169
    %s171 = ssub.s32 %s20, %s32
    %s172 = ssub.s32 %s21, %s28
    %s173 = sor.u32 %s171, %s172
    %p174 = scmp.eq.s32.totalorder %s173, 0
    %s176 = sadd.s32 %s175, 1
    %s177 = scalar_select %p174, %s175, %s176
    %p180 = pneg %p174
    %p181 = scmp.eq.s32.totalorder %s13, 5
    %p182 = por %p180, %p181
    %p183 = scmp.ne.s32.totalorder %s175, %s178
    %p184 = scmp.eq.s32.totalorder %s13, 0
    %p185 = por %p183, %p184
    %p186 = scmp.ne.s32.totalorder %s175, %s178
    %p187 = scmp.eq.s32.totalorder %s18, 5
    %p188 = por %p186, %p187
    %p189 = scmp.ne.s32.totalorder %s178, %s179
    %p190 = scmp.eq.s32.totalorder %s18, 0
    %p191 = por %p189, %p190
    %p192 = scmp.ne.s32.totalorder %s178, %s179
    %p193 = scmp.eq.s32.totalorder %s19, 5
    %p194 = por %p192, %p193
    %p196 = scmp.ne.s32.totalorder %s179, %s195
    %p197 = scmp.eq.s32.totalorder %s19, 0
    %p198 = por %p196, %p197
    %p199 = scmp.le.s32.totalorder 1, %s13
    %p200 = scmp.lt.s32.totalorder %s13, 7
    %p201 = pnand %p199, %p200
    %p202 = pneg %p201
    // Predicated region
    $region9: #{scene_net_forward.16} parent=5 // pred_check
      _
    $region10: #{scene_net_forward.16} parent=5 // pred_check_branch
      %204 = sbr.rel (%p201) target = $region12
    $region11: #{scene_net_forward.16} parent=5 // pred_region
      %s205 = ssub.s32 %s13, 1
      // Predicated region
      $region13: #{scene_net_forward.16} parent=11 // pred_check
        %p206 = pneg %p72
      $region14: #{scene_net_forward.16} parent=11 // pred_check_branch
        %208 = sbr.rel (%p206) target = $region16
      $region15: #{scene_net_forward.16} parent=11 // pred_region
        _
      $region16: #{scene_net_forward.16} parent=11 // pred_fallthru
        _
      // Predicated region
      $region17: #{scene_net_forward.16} parent=11 // pred_check
        %p209 = pneg %p93
      $region18: #{scene_net_forward.16} parent=11 // pred_check_branch
        %211 = sbr.rel (%p209) target = $region20
      $region19: #{scene_net_forward.16} parent=11 // pred_region
        _
      $region20: #{scene_net_forward.16} parent=11 // pred_fallthru
        _
      // Predicated region
      $region21: #{scene_net_forward.16} parent=11 // pred_check
        %p212 = pneg %p114
      $region22: #{scene_net_forward.16} parent=11 // pred_check_branch
        %214 = sbr.rel (%p212) target = $region24
      $region23: #{scene_net_forward.16} parent=11 // pred_region
        _
      $region24: #{scene_net_forward.16} parent=11 // pred_fallthru
        _
      // Predicated region
      $region25: #{scene_net_forward.16} parent=11 // pred_check
        %p215 = pneg %p135
      $region26: #{scene_net_forward.16} parent=11 // pred_check_branch
        %217 = sbr.rel (%p215) target = $region28
      $region27: #{scene_net_forward.16} parent=11 // pred_region
        _
      $region28: #{scene_net_forward.16} parent=11 // pred_fallthru
        _
    $region12: #{scene_net_forward.16} parent=5 // pred_fallthru
      _
    %p218 = scmp.lt.s32.totalorder %s13, 6
    // Predicated region
    $region29: #{scene_net_forward.16} parent=5 // pred_check
      %p219 = pneg %p218
    $region30: #{scene_net_forward.16} parent=5 // pred_check_branch
      %221 = sbr.rel (%p219) target = $region32
    $region31: #{scene_net_forward.16} parent=5 // pred_region
      // Predicated region
      $region33: #{scene_net_forward.16} parent=31 // pred_check
        %p222 = pneg %p45
      $region34: #{scene_net_forward.16} parent=31 // pred_check_branch
        %224 = sbr.rel (%p222) target = $region36
      $region35: #{scene_net_forward.16} parent=31 // pred_region
        %p225 = scmp.lt.s32.totalorder %s20, 5
        %s226 = scalar_select %p225, %s20, 5
        %s227 = smul.addr %s226, 7
        %s228 = smul.addr %s227, 4
        %s229 = scalar_lea.vmem %s0, %s228
      $region36: #{scene_net_forward.16} parent=31 // pred_fallthru
        _
    $region32: #{scene_net_forward.16} parent=5 // pred_fallthru
      _
    %p230 = scmp.le.s32.totalorder 1, %s13
    %p231 = scmp.lt.s32.totalorder %s13, 7
    %p232 = pnand %p230, %p231
    %p233 = pneg %p232
    // Predicated region
    $region37: #{scene_net_forward.16} parent=5 // pred_check
      _
    $region38: #{scene_net_forward.16} parent=5 // pred_check_branch
      %235 = sbr.rel (%p232) target = $region40
    $region39: #{scene_net_forward.16} parent=5 // pred_region
      %s236 = ssub.s32 %s13, 1
      %p237 = scmp.lt.s32.totalorder %s22, 5
      %s238 = scalar_select %p237, %s22, 5
      %s239 = smul.addr %s238, 7
      %s240 = smul.addr %s239, 4
      %s241 = scalar_lea.vmem %s0, %s240
      %p242 = pneg %p51
      %p243 = pneg %p48
      %p244 = pneg %p72
      %p245 = pneg %p69
      %p246 = pneg %p93
      %p247 = pneg %p90
      %p248 = pneg %p114
      %p249 = pneg %p111
      %p250 = pneg %p135
      %p251 = pneg %p132
      %p252 = pneg %p163
      %p253 = pneg %p160
      %s254 = smul.u32 4, %s23
      %p255 = scmp.lt.s32.totalorder %s22, 5
      %s256 = scalar_select %p255, %s22, 5
      %p257 = scmp.lt.s32.totalorder %s254, 3
      %s258 = scalar_select %p257, %s254, 3
      %s259 = smul.addr %s256, 4
      %s260 = sadd.s32 %s258, %s259
      %s261 = smul.addr %s260, 4
      %s262 = scalar_lea.vmem %s5, %s261
      %p263 = pneg %p191
      %p264 = pneg %p188
      %s265 = smul.u32 4, %s23
      %p266 = scmp.lt.s32.totalorder %s22, 5
      %s267 = scalar_select %p266, %s22, 5
      %p268 = scmp.lt.s32.totalorder %s265, 3
      %s269 = scalar_select %p268, %s265, 3
      %s270 = smul.addr %s267, 4
      %s271 = sadd.s32 %s269, %s270
      %s272 = smul.addr %s271, 4
      %s273 = scalar_lea.vmem %s6, %s272
      %p274 = scmp.lt.s32.totalorder %s22, 5
      %s275 = scalar_select %p274, %s22, 5
      %s276 = smul.addr %s275, 7
      %s277 = smul.addr %s276, 4
      %s278 = scalar_lea.vmem %s0, %s277
      %s279 = smul.u32 4, %s23
      %p280 = scmp.lt.s32.totalorder %s22, 5
      %s281 = scalar_select %p280, %s22, 5
      %p282 = scmp.lt.s32.totalorder %s279, 3
      %s283 = scalar_select %p282, %s279, 3
      %s284 = smul.addr %s281, 4
      %s285 = sadd.s32 %s283, %s284
      %s286 = smul.addr %s285, 4
      %s287 = scalar_lea.vmem %s5, %s286
      %s288 = smul.u32 4, %s23
      %s289 = smul.u32 4, %s23
      %p290 = scmp.lt.s32.totalorder %s22, 5
      %s291 = scalar_select %p290, %s22, 5
      %p292 = scmp.lt.s32.totalorder %s289, 3
      %s293 = scalar_select %p292, %s289, 3
      %s294 = smul.addr %s291, 4
      %s295 = sadd.s32 %s293, %s294
      %s296 = smul.addr %s295, 4
      %s297 = scalar_lea.vmem %s6, %s296
      %s298 = smul.u32 4, %s23
      %v300 = vld [vmem:[%s278] sm:$0xf]
      %v301 = vld [vmem:[%s278 + $0x4] sm:$0xf]
      %v302 = vld [vmem:[%s278 + $0x8] sm:$0xf]
      %v303 = vld [vmem:[%s278 + $0xc] sm:$0xf]
      %v304 = vld [vmem:[%s278 + $0x10] sm:$0xf]
      %v305 = vunpack.c.l.bf16 %v300
      %v306 = vunpack.c.l.bf16 %v301
      %v307 = vunpack.c.l.bf16 %v302
      %v308 = vunpack.c.l.bf16 %v303
      %v309 = vunpack.c.l.bf16 %v304
      %v310 = vld [vmem:[%s1] sm:$0xf]
      %v311 = vld [vmem:[%s1 + $0x4] sm:$0xf]
      %v312 = vpack.c.bf16 %v306, %v305
      %v313 = vpack.c.bf16 %v308, %v307
      %v314 = vpack.c.bf16 %v309, %v309
      %s315 = scalar_lea.vmem %s1, 8
      %v316 = vld [vmem:[%s315] sm:$0xf]
      %v317 = vld [vmem:[%s315 + $0x4] sm:$0xf]
      %vm318 = vsmask.f32 7424
      %v320 = vshrl.u32 %v312, 16
      %v322 = vshll.u32 %v312, 16
      %v324 = vrot.slane %v322, 1
      %v325 = vor.u32 %v320, %v324
      %v327 = vshll.u32 %v313, 16
      %v329 = vrot.slane %v327, 1
      %v330 = vsel %vm318, %v325, %v329
      %v331 = vshrl.u32 %v313, 16
      %v333 = vor.u32 %v331, %v329
      %v335 = vshll.u32 %v314, 16
      %v337 = vrot.slane %v335, 1
      %v338 = vsel %vm318, %v333, %v337
      %v341 = vunpack.c.l.b16 %v316
      %v342 = vunpack.c.l.b16 %v317
      %v343 = vpack.c.b16 %v342, %v341
      %vm345 = vcmask 130048
      %v347 = vsel %vm345, %v330, 0
      %v350 = vsel %vm345, %v338, 0
      %352 = vmatprep.subr.bf16.mxu0 0
      %353 = vmatpush1.bf16.msra.mxu0 %v343
      %354 = vmatprep.subr.bf16.mxu0 0
      %355 = vmatpush1.bf16.msra.mxu0 0
      %356 = vmatprep.subr.bf16.mxu0 0
      %357 = vmatpush1.bf16.msra.mxu0 0
      %358 = vmatprep.subr.bf16.mxu0 0
      %359 = vmatpush1.bf16.msra.mxu0 0
      %360 = vmatprep.subr.bf16.mxu0 0
      %361 = vmatpush1.bf16.msra.mxu0 0
      %362 = vmatprep.subr.bf16.mxu0 0
      %363 = vmatpush1.bf16.msra.mxu0 0
      %364 = vmatprep.subr.bf16.mxu0 0
      %365 = vmatpush1.bf16.msra.mxu0 0
      %366 = vmatprep.subr.bf16.mxu0 0
      %367 = vmatpush1.bf16.msra.mxu0 0
      %368 = vmatprep.subr.bf16.mxu0 0
      %369 = vmatpush1.bf16.msra.mxu0 0
      %370 = vmatprep.subr.bf16.mxu0 0
      %371 = vmatpush1.bf16.msra.mxu0 0
      %372 = vmatprep.subr.bf16.mxu0 0
      %373 = vmatpush1.bf16.msra.mxu0 0
      %374 = vmatprep.subr.bf16.mxu0 0
      %375 = vmatpush1.bf16.msra.mxu0 0
      %376 = vmatprep.subr.bf16.mxu0 0
      %377 = vmatpush1.bf16.msra.mxu0 0
      %378 = vmatprep.subr.bf16.mxu0 0
      %379 = vmatpush1.bf16.msra.mxu0 0
      %380 = vmatprep.subr.bf16.mxu0 0
      %381 = vmatpush1.bf16.msra.mxu0 0
      %382 = vmatprep.subr.bf16.mxu0 0
      %383 = vmatpush1.bf16.msra.mxu0 0
      %384 = vmatprep.mubr.bf16.mxu0 0
      %385 = vmatmul.mubr.bf16.gmra.mrb[0].mxu0 %v347
      %v386 = vpop.f32.mrb[0].mxu0
      %v387 = vadd.f32 0.0, %v386
      %v388 = vpop.f32.mrb[0].mxu0
      %v389 = vpop.f32.mrb[0].mxu0
      %v390 = vadd.f32 0.0, %v389
      %v391 = vpop.f32.mrb[0].mxu0
      %392 = vmatprep.mubr.bf16.mxu0 0
      %393 = vmatmul.mubr.bf16.gmra.mrb[0].mxu0 %v350
      %v394 = vpop.f32.mrb[0].mxu0
      %v395 = vadd.f32 0.0, %v394
      %v396 = vpop.f32.mrb[0].mxu0
      %v397 = vpop.f32.mrb[0].mxu0
      %v398 = vadd.f32 0.0, %v397
      %v399 = vpop.f32.mrb[0].mxu0
      %400 = vdwg.mxu0
      %v405 = vunpack.c.l.b16 %v300
      %v406 = vunpack.c.l.b16 %v301
      %v407 = vunpack.c.l.b16 %v302
      %v408 = vunpack.c.l.b16 %v303
      %v409 = vpack.c.b16 %v406, %v405
      %v410 = vpack.c.b16 %v408, %v407
      %v413 = vunpack.c.l.b16 %v310
      %v414 = vunpack.c.l.b16 %v311
      %v415 = vpack.c.b16 %v414, %v413
      %v418 = vsel %vm345, %v409, 0
      %v421 = vsel %vm345, %v410, 0
      %423 = vmatprep.subr.bf16.mxu0 0
      %424 = vmatpush1.bf16.msra.mxu0 %v415
      %425 = vmatprep.subr.bf16.mxu0 0
      %426 = vmatpush1.bf16.msra.mxu0 0
      %427 = vmatprep.subr.bf16.mxu0 0
      %428 = vmatpush1.bf16.msra.mxu0 0
      %429 = vmatprep.subr.bf16.mxu0 0
      %430 = vmatpush1.bf16.msra.mxu0 0
      %431 = vmatprep.subr.bf16.mxu0 0
      %432 = vmatpush1.bf16.msra.mxu0 0
      %433 = vmatprep.subr.bf16.mxu0 0
      %434 = vmatpush1.bf16.msra.mxu0 0
      %435 = vmatprep.subr.bf16.mxu0 0
      %436 = vmatpush1.bf16.msra.mxu0 0
      %437 = vmatprep.subr.bf16.mxu0 0
      %438 = vmatpush1.bf16.msra.mxu0 0
      %439 = vmatprep.subr.bf16.mxu0 0
      %440 = vmatpush1.bf16.msra.mxu0 0
      %441 = vmatprep.subr.bf16.mxu0 0
      %442 = vmatpush1.bf16.msra.mxu0 0
      %443 = vmatprep.subr.bf16.mxu0 0
      %444 = vmatpush1.bf16.msra.mxu0 0
      %445 = vmatprep.subr.bf16.mxu0 0
      %446 = vmatpush1.bf16.msra.mxu0 0
      %447 = vmatprep.subr.bf16.mxu0 0
      %448 = vmatpush1.bf16.msra.mxu0 0
      %449 = vmatprep.subr.bf16.mxu0 0
      %450 = vmatpush1.bf16.msra.mxu0 0
      %451 = vmatprep.subr.bf16.mxu0 0
      %452 = vmatpush1.bf16.msra.mxu0 0
      %453 = vmatprep.subr.bf16.mxu0 0
      %454 = vmatpush1.bf16.msra.mxu0 0
      %455 = vmatprep.mubr.bf16.mxu0 0
      %456 = vmatmul.mubr.bf16.gmra.mrb[0].mxu0 %v418
      %v457 = vpop.f32.mrb[0].mxu0
      %v458 = vadd.f32 %v387, %v457
      %v459 = vpop.f32.mrb[0].mxu0
      %v460 = vpop.f32.mrb[0].mxu0
      %v461 = vadd.f32 %v390, %v460
      %v462 = vpop.f32.mrb[0].mxu0
      %463 = vmatprep.mubr.bf16.mxu0 0
      %464 = vmatmul.mubr.bf16.gmra.mrb[0].mxu0 %v421
      %v465 = vpop.f32.mrb[0].mxu0
      %v466 = vadd.f32 %v395, %v465
      %v467 = vpop.f32.mrb[0].mxu0
      %v468 = vpop.f32.mrb[0].mxu0
      %v469 = vadd.f32 %v398, %v468
      %v470 = vpop.f32.mrb[0].mxu0
      %471 = vdwg.mxu0
      %s472 = scalar_lea.vmem %s1, 16
      %v473 = vld [vmem:[%s472] sm:$0xf]
      %v474 = vld [vmem:[%s472 + $0x4] sm:$0xf]
      %vm478 = vcmask 1046528
      %v479 = vrot.slane %v312, 1
      %v480 = vrot.slane %v313, 1
      %v481 = vsel %vm478, %v479, %v480
      %v482 = vrot.slane %v314, 1
      %v483 = vsel %vm478, %v480, %v482
      %v486 = vunpack.c.l.b16 %v473
      %v487 = vunpack.c.l.b16 %v474
      %v488 = vpack.c.b16 %v487, %v486
      %v491 = vsel %vm345, %v481, 0
      %v494 = vsel %vm345, %v483, 0
      %496 = vmatprep.subr.bf16.mxu0 0
      %497 = vmatpush1.bf16.msra.mxu0 %v488
      %498 = vmatprep.subr.bf16.mxu0 0
      %499 = vmatpush1.bf16.msra.mxu0 0
      %500 = vmatprep.subr.bf16.mxu0 0
      %501 = vmatpush1.bf16.msra.mxu0 0
      %502 = vmatprep.subr.bf16.mxu0 0
      %503 = vmatpush1.bf16.msra.mxu0 0
      %504 = vmatprep.subr.bf16.mxu0 0
      %505 = vmatpush1.bf16.msra.mxu0 0
      %506 = vmatprep.subr.bf16.mxu0 0
      %507 = vmatpush1.bf16.msra.mxu0 0
      %508 = vmatprep.subr.bf16.mxu0 0
      %509 = vmatpush1.bf16.msra.mxu0 0
      %510 = vmatprep.subr.bf16.mxu0 0
      %511 = vmatpush1.bf16.msra.mxu0 0
      %512 = vmatprep.subr.bf16.mxu0 0
      %513 = vmatpush1.bf16.msra.mxu0 0
      %514 = vmatprep.subr.bf16.mxu0 0
      %515 = vmatpush1.bf16.msra.mxu0 0
      %516 = vmatprep.subr.bf16.mxu0 0
      %517 = vmatpush1.bf16.msra.mxu0 0
      %518 = vmatprep.subr.bf16.mxu0 0
      %519 = vmatpush1.bf16.msra.mxu0 0
      %520 = vmatprep.subr.bf16.mxu0 0
      %521 = vmatpush1.bf16.msra.mxu0 0
      %522 = vmatprep.subr.bf16.mxu0 0
      %523 = vmatpush1.bf16.msra.mxu0 0
      %524 = vmatprep.subr.bf16.mxu0 0
      %525 = vmatpush1.bf16.msra.mxu0 0
      %526 = vmatprep.subr.bf16.mxu0 0
      %527 = vmatpush1.bf16.msra.mxu0 0
      %528 = vmatprep.mubr.bf16.mxu0 0
      %529 = vmatmul.mubr.bf16.gmra.mrb[0].mxu0 %v491
      %v530 = vpop.f32.mrb[0].mxu0
      %v531 = vadd.f32 0.0, %v530
      %v532 = vpop.f32.mrb[0].mxu0
      %v533 = vpop.f32.mrb[0].mxu0
      %v534 = vadd.f32 0.0, %v533
      %v535 = vpop.f32.mrb[0].mxu0
      %536 = vmatprep.mubr.bf16.mxu0 0
      %537 = vmatmul.mubr.bf16.gmra.mrb[0].mxu0 %v494
      %v538 = vpop.f32.mrb[0].mxu0
      %v539 = vadd.f32 0.0, %v538
      %v540 = vpop.f32.mrb[0].mxu0
      %v541 = vpop.f32.mrb[0].mxu0
      %v542 = vadd.f32 0.0, %v541
      %v543 = vpop.f32.mrb[0].mxu0
      %544 = vdwg.mxu0
      %v545 = vadd.f32 %v458, %v531
      %v546 = vadd.f32 %v461, %v534
      %v547 = vadd.f32 %v466, %v539
      %v548 = vadd.f32 %v469, %v542
      %v549 = vld [vmem:[%s278 + $0x4] sm:$0xf]
      %v550 = vld [vmem:[%s278 + $0x8] sm:$0xf]
      %v551 = vld [vmem:[%s278 + $0xc] sm:$0xf]
      %v552 = vld [vmem:[%s278 + $0x10] sm:$0xf]
      %v553 = vld [vmem:[%s278 + $0x14] sm:$0xf]
      %v554 = vunpack.c.l.bf16 %v549
      %v555 = vunpack.c.l.bf16 %v550
      %v556 = vunpack.c.l.bf16 %v551
      %v557 = vunpack.c.l.bf16 %v552
      %v558 = vunpack.c.l.bf16 %v553
      %s559 = scalar_lea.vmem %s1, 24
      %v560 = vld [vmem:[%s559] sm:$0xf]
      %v561 = vld [vmem:[%s559 + $0x4] sm:$0xf]
      %v566 = vunpack.c.l.b16 %v549
      %v567 = vunpack.c.l.b16 %v550
      %v568 = vunpack.c.l.b16 %v551
      %v569 = vunpack.c.l.b16 %v552
      %v570 = vpack.c.b16 %v567, %v566
      %v571 = vpack.c.b16 %v569, %v568
      %v574 = vunpack.c.l.b16 %v560
      %v575 = vunpack.c.l.b16 %v561
      %v576 = vpack.c.b16 %v575, %v574
      %v579 = vsel %vm345, %v570, 0
      %v582 = vsel %vm345, %v571, 0
      %584 = vmatprep.subr.bf16.mxu0 0
      %585 = vmatpush1.bf16.msra.mxu0 %v576
      %586 = vmatprep.subr.bf16.mxu0 0
      %587 = vmatpush1.bf16.msra.mxu0 0
      %588 = vmatprep.subr.bf16.mxu0 0
      %589 = vmatpush1.bf16.msra.mxu0 0
      %590 = vmatprep.subr.bf16.mxu0 0
      %591 = vmatpush1.bf16.msra.mxu0 0
      %592 = vmatprep.subr.bf16.mxu0 0
      %593 = vmatpush1.bf16.msra.mxu0 0
      %594 = vmatprep.subr.bf16.mxu0 0
      %595 = vmatpush1.bf16.msra.mxu0 0
      %596 = vmatprep.subr.bf16.mxu0 0
      %597 = vmatpush1.bf16.msra.mxu0 0
      %598 = vmatprep.subr.bf16.mxu0 0
      %599 = vmatpush1.bf16.msra.mxu0 0
      %600 = vmatprep.subr.bf16.mxu0 0
      %601 = vmatpush1.bf16.msra.mxu0 0
      %602 = vmatprep.subr.bf16.mxu0 0
      %603 = vmatpush1.bf16.msra.mxu0 0
      %604 = vmatprep.subr.bf16.mxu0 0
      %605 = vmatpush1.bf16.msra.mxu0 0
      %606 = vmatprep.subr.bf16.mxu0 0
      %607 = vmatpush1.bf16.msra.mxu0 0
      %608 = vmatprep.subr.bf16.mxu0 0
      %609 = vmatpush1.bf16.msra.mxu0 0
      %610 = vmatprep.subr.bf16.mxu0 0
      %611 = vmatpush1.bf16.msra.mxu0 0
      %612 = vmatprep.subr.bf16.mxu0 0
      %613 = vmatpush1.bf16.msra.mxu0 0
      %614 = vmatprep.subr.bf16.mxu0 0
      %615 = vmatpush1.bf16.msra.mxu0 0
      %616 = vmatprep.mubr.bf16.mxu0 0
      %617 = vmatmul.mubr.bf16.gmra.mrb[0].mxu0 %v579
      %v618 = vpop.f32.mrb[0].mxu0
      %v619 = vadd.f32 0.0, %v618
      %v620 = vpop.f32.mrb[0].mxu0
      %v621 = vpop.f32.mrb[0].mxu0
      %v622 = vadd.f32 0.0, %v621
      %v623 = vpop.f32.mrb[0].mxu0
      %624 = vmatprep.mubr.bf16.mxu0 0
      %625 = vmatmul.mubr.bf16.gmra.mrb[0].mxu0 %v582
      %v626 = vpop.f32.mrb[0].mxu0
      %v627 = vadd.f32 0.0, %v626
      %v628 = vpop.f32.mrb[0].mxu0
      %v629 = vpop.f32.mrb[0].mxu0
      %v630 = vadd.f32 0.0, %v629
      %v631 = vpop.f32.mrb[0].mxu0
      %632 = vdwg.mxu0
      %v633 = vadd.f32 %v545, %v619
      %v634 = vadd.f32 %v546, %v622
      %v635 = vadd.f32 %v547, %v627
      %v636 = vadd.f32 %v548, %v630
      %v637 = vpack.c.bf16 %v555, %v554
      %v638 = vpack.c.bf16 %v557, %v556
      %v639 = vpack.c.bf16 %v558, %v558
      %s640 = scalar_lea.vmem %s1, 32
      %v641 = vld [vmem:[%s640] sm:$0xf]
      %v642 = vld [vmem:[%s640 + $0x4] sm:$0xf]
      %v644 = vshrl.u32 %v637, 16
      %v646 = vshll.u32 %v637, 16
      %v648 = vrot.slane %v646, 1
      %v649 = vor.u32 %v644, %v648
      %v651 = vshll.u32 %v638, 16
      %v653 = vrot.slane %v651, 1
      %v654 = vsel %vm318, %v649, %v653
      %v655 = vshrl.u32 %v638, 16
      %v657 = vor.u32 %v655, %v653
      %v659 = vshll.u32 %v639, 16
      %v661 = vrot.slane %v659, 1
      %v662 = vsel %vm318, %v657, %v661
      %v665 = vunpack.c.l.b16 %v641
      %v666 = vunpack.c.l.b16 %v642
      %v667 = vpack.c.b16 %v666, %v665
      %v670 = vsel %vm345, %v654, 0
      %v673 = vsel %vm345, %v662, 0
      %675 = vmatprep.subr.bf16.mxu0 0
      %676 = vmatpush1.bf16.msra.mxu0 %v667
      %677 = vmatprep.subr.bf16.mxu0 0
      %678 = vmatpush1.bf16.msra.mxu0 0
      %679 = vmatprep.subr.bf16.mxu0 0
      %680 = vmatpush1.bf16.msra.mxu0 0
      %681 = vmatprep.subr.bf16.mxu0 0
      %682 = vmatpush1.bf16.msra.mxu0 0
      %683 = vmatprep.subr.bf16.mxu0 0
      %684 = vmatpush1.bf16.msra.mxu0 0
      %685 = vmatprep.subr.bf16.mxu0 0
      %686 = vmatpush1.bf16.msra.mxu0 0
      %687 = vmatprep.subr.bf16.mxu0 0
      %688 = vmatpush1.bf16.msra.mxu0 0
      %689 = vmatprep.subr.bf16.mxu0 0
      %690 = vmatpush1.bf16.msra.mxu0 0
      %691 = vmatprep.subr.bf16.mxu0 0
      %692 = vmatpush1.bf16.msra.mxu0 0
      %693 = vmatprep.subr.bf16.mxu0 0
      %694 = vmatpush1.bf16.msra.mxu0 0
      %695 = vmatprep.subr.bf16.mxu0 0
      %696 = vmatpush1.bf16.msra.mxu0 0
      %697 = vmatprep.subr.bf16.mxu0 0
      %698 = vmatpush1.bf16.msra.mxu0 0
      %699 = vmatprep.subr.bf16.mxu0 0
      %700 = vmatpush1.bf16.msra.mxu0 0
      %701 = vmatprep.subr.bf16.mxu0 0
      %702 = vmatpush1.bf16.msra.mxu0 0
      %703 = vmatprep.subr.bf16.mxu0 0
      %704 = vmatpush1.bf16.msra.mxu0 0
      %705 = vmatprep.subr.bf16.mxu0 0
      %706 = vmatpush1.bf16.msra.mxu0 0
      %707 = vmatprep.mubr.bf16.mxu0 0
      %708 = vmatmul.mubr.bf16.gmra.mrb[0].mxu0 %v670
      %v709 = vpop.f32.mrb[0].mxu0
      %v710 = vadd.f32 0.0, %v709
      %v711 = vpop.f32.mrb[0].mxu0
      %v712 = vpop.f32.mrb[0].mxu0
      %v713 = vadd.f32 0.0, %v712
      %v714 = vpop.f32.mrb[0].mxu0
      %715 = vmatprep.mubr.bf16.mxu0 0
      %716 = vmatmul.mubr.bf16.gmra.mrb[0].mxu0 %v673
      %v717 = vpop.f32.mrb[0].mxu0
      %v718 = vadd.f32 0.0, %v717
      %v719 = vpop.f32.mrb[0].mxu0
      %v720 = vpop.f32.mrb[0].mxu0
      %v721 = vadd.f32 0.0, %v720
      %v722 = vpop.f32.mrb[0].mxu0
      %723 = vdwg.mxu0
      %v724 = vadd.f32 %v633, %v710
      %v725 = vadd.f32 %v634, %v713
      %v726 = vadd.f32 %v635, %v718
      %v727 = vadd.f32 %v636, %v721
      %s728 = scalar_lea.vmem %s1, 40
      %v729 = vld [vmem:[%s728] sm:$0xf]
      %v730 = vld [vmem:[%s728 + $0x4] sm:$0xf]
      %v734 = vrot.slane %v637, 1
      %v735 = vrot.slane %v638, 1
      %v736 = vsel %vm478, %v734, %v735
      %v737 = vrot.slane %v639, 1
      %v738 = vsel %vm478, %v735, %v737
      %v741 = vunpack.c.l.b16 %v729
      %v742 = vunpack.c.l.b16 %v730
      %v743 = vpack.c.b16 %v742, %v741
      %v746 = vsel %vm345, %v736, 0
      %v749 = vsel %vm345, %v738, 0
      %751 = vmatprep.subr.bf16.mxu0 0
      %752 = vmatpush1.bf16.msra.mxu0 %v743
      %753 = vmatprep.subr.bf16.mxu0 0
      %754 = vmatpush1.bf16.msra.mxu0 0
      %755 = vmatprep.subr.bf16.mxu0 0
      %756 = vmatpush1.bf16.msra.mxu0 0
      %757 = vmatprep.subr.bf16.mxu0 0
      %758 = vmatpush1.bf16.msra.mxu0 0
      %759 = vmatprep.subr.bf16.mxu0 0
      %760 = vmatpush1.bf16.msra.mxu0 0
      %761 = vmatprep.subr.bf16.mxu0 0
      %762 = vmatpush1.bf16.msra.mxu0 0
      %763 = vmatprep.subr.bf16.mxu0 0
      %764 = vmatpush1.bf16.msra.mxu0 0
      %765 = vmatprep.subr.bf16.mxu0 0
      %766 = vmatpush1.bf16.msra.mxu0 0
      %767 = vmatprep.subr.bf16.mxu0 0
      %768 = vmatpush1.bf16.msra.mxu0 0
      %769 = vmatprep.subr.bf16.mxu0 0
      %770 = vmatpush1.bf16.msra.mxu0 0
      %771 = vmatprep.subr.bf16.mxu0 0
      %772 = vmatpush1.bf16.msra.mxu0 0
      %773 = vmatprep.subr.bf16.mxu0 0
      %774 = vmatpush1.bf16.msra.mxu0 0
      %775 = vmatprep.subr.bf16.mxu0 0
      %776 = vmatpush1.bf16.msra.mxu0 0
      %777 = vmatprep.subr.bf16.mxu0 0
      %778 = vmatpush1.bf16.msra.mxu0 0
      %779 = vmatprep.subr.bf16.mxu0 0
      %780 = vmatpush1.bf16.msra.mxu0 0
      %781 = vmatprep.subr.bf16.mxu0 0
      %782 = vmatpush1.bf16.msra.mxu0 0
      %783 = vmatprep.mubr.bf16.mxu0 0
      %784 = vmatmul.mubr.bf16.gmra.mrb[0].mxu0 %v746
      %v785 = vpop.f32.mrb[0].mxu0
      %v786 = vadd.f32 0.0, %v785
      %v787 = vpop.f32.mrb[0].mxu0
      %v788 = vpop.f32.mrb[0].mxu0
      %v789 = vadd.f32 0.0, %v788
      %v790 = vpop.f32.mrb[0].mxu0
      %791 = vmatprep.mubr.bf16.mxu0 0
      %792 = vmatmul.mubr.bf16.gmra.mrb[0].mxu0 %v749
      %v793 = vpop.f32.mrb[0].mxu0
      %v794 = vadd.f32 0.0, %v793
      %v795 = vpop.f32.mrb[0].mxu0
      %v796 = vpop.f32.mrb[0].mxu0
      %v797 = vadd.f32 0.0, %v796
      %v798 = vpop.f32.mrb[0].mxu0
      %799 = vdwg.mxu0
      %v800 = vadd.f32 %v724, %v786
      %v801 = vadd.f32 %v725, %v789
      %v802 = vadd.f32 %v726, %v794
      %v803 = vadd.f32 %v727, %v797
      %v804 = vld [vmem:[%s278 + $0x8] sm:$0xf]
      %v805 = vld [vmem:[%s278 + $0xc] sm:$0xf]
      %v806 = vld [vmem:[%s278 + $0x10] sm:$0xf]
      %v807 = vld [vmem:[%s278 + $0x14] sm:$0xf]
      %v808 = vld [vmem:[%s278 + $0x18] sm:$0xf]
      %v809 = vunpack.c.l.bf16 %v804
      %v810 = vunpack.c.l.bf16 %v805
      %v811 = vunpack.c.l.bf16 %v806
      %v812 = vunpack.c.l.bf16 %v807
      %v813 = vunpack.c.l.bf16 %v808
      %s814 = scalar_lea.vmem %s1, 48
      %v815 = vld [vmem:[%s814] sm:$0xf]
      %v816 = vld [vmem:[%s814 + $0x4] sm:$0xf]
      %v821 = vunpack.c.l.b16 %v804
      %v822 = vunpack.c.l.b16 %v805
      %v823 = vunpack.c.l.b16 %v806
      %v824 = vunpack.c.l.b16 %v807
      %v825 = vpack.c.b16 %v822, %v821
      %v826 = vpack.c.b16 %v824, %v823
      %v829 = vunpack.c.l.b16 %v815
      %v830 = vunpack.c.l.b16 %v816
      %v831 = vpack.c.b16 %v830, %v829
      %v834 = vsel %vm345, %v825, 0
      %v837 = vsel %vm345, %v826, 0
      %839 = vmatprep.subr.bf16.mxu0 0
      %840 = vmatpush1.bf16.msra.mxu0 %v831
      %841 = vmatprep.subr.bf16.mxu0 0
      %842 = vmatpush1.bf16.msra.mxu0 0
      %843 = vmatprep.subr.bf16.mxu0 0
      %844 = vmatpush1.bf16.msra.mxu0 0
      %845 = vmatprep.subr.bf16.mxu0 0
      %846 = vmatpush1.bf16.msra.mxu0 0
      %847 = vmatprep.subr.bf16.mxu0 0
      %848 = vmatpush1.bf16.msra.mxu0 0
      %849 = vmatprep.subr.bf16.mxu0 0
      %850 = vmatpush1.bf16.msra.mxu0 0
      %851 = vmatprep.subr.bf16.mxu0 0
      %852 = vmatpush1.bf16.msra.mxu0 0
      %853 = vmatprep.subr.bf16.mxu0 0
      %854 = vmatpush1.bf16.msra.mxu0 0
      %855 = vmatprep.subr.bf16.mxu0 0
      %856 = vmatpush1.bf16.msra.mxu0 0
      %857 = vmatprep.subr.bf16.mxu0 0
      %858 = vmatpush1.bf16.msra.mxu0 0
      %859 = vmatprep.subr.bf16.mxu0 0
      %860 = vmatpush1.bf16.msra.mxu0 0
      %861 = vmatprep.subr.bf16.mxu0 0
      %862 = vmatpush1.bf16.msra.mxu0 0
      %863 = vmatprep.subr.bf16.mxu0 0
      %864 = vmatpush1.bf16.msra.mxu0 0
      %865 = vmatprep.subr.bf16.mxu0 0
      %866 = vmatpush1.bf16.msra.mxu0 0
      %867 = vmatprep.subr.bf16.mxu0 0
      %868 = vmatpush1.bf16.msra.mxu0 0
      %869 = vmatprep.subr.bf16.mxu0 0
      %870 = vmatpush1.bf16.msra.mxu0 0
      %871 = vmatprep.mubr.bf16.mxu0 0
      %872 = vmatmul.mubr.bf16.gmra.mrb[0].mxu0 %v834
      %v873 = vpop.f32.mrb[0].mxu0
      %v874 = vadd.f32 0.0, %v873
      %v875 = vpop.f32.mrb[0].mxu0
      %v876 = vpop.f32.mrb[0].mxu0
      %v877 = vadd.f32 0.0, %v876
      %v878 = vpop.f32.mrb[0].mxu0
      %879 = vmatprep.mubr.bf16.mxu0 0
      %880 = vmatmul.mubr.bf16.gmra.mrb[0].mxu0 %v837
      %v881 = vpop.f32.mrb[0].mxu0
      %v882 = vadd.f32 0.0, %v881
      %v883 = vpop.f32.mrb[0].mxu0
      %v884 = vpop.f32.mrb[0].mxu0
      %v885 = vadd.f32 0.0, %v884
      %v886 = vpop.f32.mrb[0].mxu0
      %887 = vdwg.mxu0
      %v888 = vadd.f32 %v800, %v874
      %v889 = vadd.f32 %v801, %v877
      %v890 = vadd.f32 %v802, %v882
      %v891 = vadd.f32 %v803, %v885
      %v892 = vpack.c.bf16 %v810, %v809
      %v893 = vpack.c.bf16 %v812, %v811
      %v894 = vpack.c.bf16 %v813, %v813
      %s895 = scalar_lea.vmem %s1, 56
      %v896 = vld [vmem:[%s895] sm:$0xf]
      %v897 = vld [vmem:[%s895 + $0x4] sm:$0xf]
      %v899 = vshrl.u32 %v892, 16
      %v901 = vshll.u32 %v892, 16
      %v903 = vrot.slane %v901, 1
      %v904 = vor.u32 %v899, %v903
      %v906 = vshll.u32 %v893, 16
      %v908 = vrot.slane %v906, 1
      %v909 = vsel %vm318, %v904, %v908
      %v910 = vshrl.u32 %v893, 16
      %v912 = vor.u32 %v910, %v908
      %v914 = vshll.u32 %v894, 16
      %v916 = vrot.slane %v914, 1
      %v917 = vsel %vm318, %v912, %v916
      %v920 = vunpack.c.l.b16 %v896
      %v921 = vunpack.c.l.b16 %v897
      %v922 = vpack.c.b16 %v921, %v920
      %v925 = vsel %vm345, %v909, 0
      %v928 = vsel %vm345, %v917, 0
      %930 = vmatprep.subr.bf16.mxu0 0
      %931 = vmatpush1.bf16.msra.mxu0 %v922
      %932 = vmatprep.subr.bf16.mxu0 0
      %933 = vmatpush1.bf16.msra.mxu0 0
      %934 = vmatprep.subr.bf16.mxu0 0
      %935 = vmatpush1.bf16.msra.mxu0 0
      %936 = vmatprep.subr.bf16.mxu0 0
      %937 = vmatpush1.bf16.msra.mxu0 0
      %938 = vmatprep.subr.bf16.mxu0 0
      %939 = vmatpush1.bf16.msra.mxu0 0
      %940 = vmatprep.subr.bf16.mxu0 0
      %941 = vmatpush1.bf16.msra.mxu0 0
      %942 = vmatprep.subr.bf16.mxu0 0
      %943 = vmatpush1.bf16.msra.mxu0 0
      %944 = vmatprep.subr.bf16.mxu0 0
      %945 = vmatpush1.bf16.msra.mxu0 0
      %946 = vmatprep.subr.bf16.mxu0 0
      %947 = vmatpush1.bf16.msra.mxu0 0
      %948 = vmatprep.subr.bf16.mxu0 0
      %949 = vmatpush1.bf16.msra.mxu0 0
      %950 = vmatprep.subr.bf16.mxu0 0
      %951 = vmatpush1.bf16.msra.mxu0 0
      %952 = vmatprep.subr.bf16.mxu0 0
      %953 = vmatpush1.bf16.msra.mxu0 0
      %954 = vmatprep.subr.bf16.mxu0 0
      %955 = vmatpush1.bf16.msra.mxu0 0
      %956 = vmatprep.subr.bf16.mxu0 0
      %957 = vmatpush1.bf16.msra.mxu0 0
      %958 = vmatprep.subr.bf16.mxu0 0
      %959 = vmatpush1.bf16.msra.mxu0 0
      %960 = vmatprep.subr.bf16.mxu0 0
      %961 = vmatpush1.bf16.msra.mxu0 0
      %962 = vmatprep.mubr.bf16.mxu0 0
      %963 = vmatmul.mubr.bf16.gmra.mrb[0].mxu0 %v925
      %v964 = vpop.f32.mrb[0].mxu0
      %v965 = vadd.f32 0.0, %v964
      %v966 = vpop.f32.mrb[0].mxu0
      %v967 = vpop.f32.mrb[0].mxu0
      %v968 = vadd.f32 0.0, %v967
      %v969 = vpop.f32.mrb[0].mxu0
      %970 = vmatprep.mubr.bf16.mxu0 0
      %971 = vmatmul.mubr.bf16.gmra.mrb[0].mxu0 %v928
      %v972 = vpop.f32.mrb[0].mxu0
      %v973 = vadd.f32 0.0, %v972
      %v974 = vpop.f32.mrb[0].mxu0
      %v975 = vpop.f32.mrb[0].mxu0
      %v976 = vadd.f32 0.0, %v975
      %v977 = vpop.f32.mrb[0].mxu0
      %978 = vdwg.mxu0
      %v979 = vadd.f32 %v888, %v965
      %v980 = vadd.f32 %v889, %v968
      %v981 = vadd.f32 %v890, %v973
      %v982 = vadd.f32 %v891, %v976
      %s983 = scalar_lea.vmem %s1, 64
      %v984 = vld [vmem:[%s983] sm:$0xf]
      %v985 = vld [vmem:[%s983 + $0x4] sm:$0xf]
      %v989 = vrot.slane %v892, 1
      %v990 = vrot.slane %v893, 1
      %v991 = vsel %vm478, %v989, %v990
      %v992 = vrot.slane %v894, 1
      %v993 = vsel %vm478, %v990, %v992
      %v996 = vunpack.c.l.b16 %v984
      %v997 = vunpack.c.l.b16 %v985
      %v998 = vpack.c.b16 %v997, %v996
      %v1001 = vsel %vm345, %v991, 0
      %v1004 = vsel %vm345, %v993, 0
      %1006 = vmatprep.subr.bf16.mxu0 0
      %1007 = vmatpush1.bf16.msra.mxu0 %v998
      %1008 = vmatprep.subr.bf16.mxu0 0
      %1009 = vmatpush1.bf16.msra.mxu0 0
      %1010 = vmatprep.subr.bf16.mxu0 0
      %1011 = vmatpush1.bf16.msra.mxu0 0
      %1012 = vmatprep.subr.bf16.mxu0 0
      %1013 = vmatpush1.bf16.msra.mxu0 0
      %1014 = vmatprep.subr.bf16.mxu0 0
      %1015 = vmatpush1.bf16.msra.mxu0 0
      %1016 = vmatprep.subr.bf16.mxu0 0
      %1017 = vmatpush1.bf16.msra.mxu0 0
      %1018 = vmatprep.subr.bf16.mxu0 0
      %1019 = vmatpush1.bf16.msra.mxu0 0
      %1020 = vmatprep.subr.bf16.mxu0 0
      %1021 = vmatpush1.bf16.msra.mxu0 0
      %1022 = vmatprep.subr.bf16.mxu0 0
      %1023 = vmatpush1.bf16.msra.mxu0 0
      %1024 = vmatprep.subr.bf16.mxu0 0
      %1025 = vmatpush1.bf16.msra.mxu0 0
      %1026 = vmatprep.subr.bf16.mxu0 0
      %1027 = vmatpush1.bf16.msra.mxu0 0
      %1028 = vmatprep.subr.bf16.mxu0 0
      %1029 = vmatpush1.bf16.msra.mxu0 0
      %1030 = vmatprep.subr.bf16.mxu0 0
      %1031 = vmatpush1.bf16.msra.mxu0 0
      %1032 = vmatprep.subr.bf16.mxu0 0
      %1033 = vmatpush1.bf16.msra.mxu0 0
      %1034 = vmatprep.subr.bf16.mxu0 0
      %1035 = vmatpush1.bf16.msra.mxu0 0
      %1036 = vmatprep.subr.bf16.mxu0 0
      %1037 = vmatpush1.bf16.msra.mxu0 0
      %1038 = vmatprep.mubr.bf16.mxu0 0
      %1039 = vmatmul.mubr.bf16.gmra.mrb[0].mxu0 %v1001
      %v1040 = vpop.f32.mrb[0].mxu0
      %v1041 = vadd.f32 0.0, %v1040
      %v1042 = vpop.f32.mrb[0].mxu0
      %v1043 = vpop.f32.mrb[0].mxu0
      %v1044 = vadd.f32 0.0, %v1043
      %v1045 = vpop.f32.mrb[0].mxu0
      %1046 = vmatprep.mubr.bf16.mxu0 0
      %1047 = vmatmul.mubr.bf16.gmra.mrb[0].mxu0 %v1004
      %v1048 = vpop.f32.mrb[0].mxu0
      %v1049 = vadd.f32 0.0, %v1048
      %v1050 = vpop.f32.mrb[0].mxu0
      %v1051 = vpop.f32.mrb[0].mxu0
      %v1052 = vadd.f32 0.0, %v1051
      %v1053 = vpop.f32.mrb[0].mxu0
      %1054 = vdwg.mxu0
      %v1055 = vadd.f32 %v979, %v1041
      %v1056 = vadd.f32 %v980, %v1044
      %v1057 = vadd.f32 %v981, %v1049
      %v1058 = vadd.f32 %v982, %v1052
      %v1059 = vld [vmem:[%s2] sm:$0x1]
      %v1061 = vlaneseq
      %v1062 = vshrl.u32 %v1061, 7
      %v1063 = vsub.s32 0, %v1062
      %v1064 = vrot.slane %v1059, %v1063
      %v1066 = vadd.f32 %v1055, %v1064
      %v1067 = vadd.f32 %v1056, %v1064
      %v1068 = vadd.f32 %v1057, %v1064
      %v1069 = vadd.f32 %v1058, %v1064
      %v1070 = vmax.f32 %v1066, 0.0
      %v1071 = vmax.f32 %v1067, 0.0
      %v1072 = vmax.f32 %v1068, 0.0
      %v1073 = vmax.f32 %v1069, 0.0
      %v1074 = vpack.c.bf16 %v1071, %v1070
      %v1075 = vpack.c.bf16 %v1073, %v1072
      %v1078 = vunpack.c.l.b16 %v1074
      %v1079 = vunpack.c.h.b16 %v1074
      %v1080 = vunpack.c.l.b16 %v1075
      %v1081 = vunpack.c.h.b16 %v1075
      %v1082 = vpack.c.b16 %v1078, %v1078
      %v1083 = vpack.c.b16 %v1079, %v1079
      %v1084 = vpack.c.b16 %v1080, %v1080
      %v1085 = vpack.c.b16 %v1081, %v1081
      %vm1090 = vcmask 125952
      %1091 = vst.msk [vmem:[%s287] sm:$0xf] %vm1090, %v1082
      %1092 = vst.msk [vmem:[%s287 + $0x4] sm:$0xf] %vm1090, %v1083
      %1093 = vst.msk [vmem:[%s287 + $0x8] sm:$0xf] %vm1090, %v1084
      %1094 = vst.msk [vmem:[%s287 + $0xc] sm:$0xf] %vm1090, %v1085
      %v1095 = vld [vmem:[%s3] sm:$0xf]
      %v1096 = vld [vmem:[%s3 + $0x4] sm:$0xf]
      %v1097 = vld [vmem:[%s4] sm:$0x1]
      %v1099 = vlaneseq
      %v1100 = vshrl.u32 %v1099, 7
      %v1101 = vsub.s32 0, %v1100
      %v1102 = vrot.slane %v1097, %v1101
      %v1106 = vunpack.c.l.b16 %v1095
      %v1107 = vunpack.c.l.b16 %v1096
      %v1108 = vpack.c.b16 %v1107, %v1106
      %v1111 = vsel %vm345, %v1074, 0
      %v1114 = vsel %vm345, %v1075, 0
      %1116 = vmatprep.subr.bf16.mxu0 0
      %1117 = vmatpush1.bf16.msra.mxu0 %v1108
      %1118 = vmatprep.subr.bf16.mxu0 0
      %1119 = vmatpush1.bf16.msra.mxu0 0
      %1120 = vmatprep.subr.bf16.mxu0 0
      %1121 = vmatpush1.bf16.msra.mxu0 0
      %1122 = vmatprep.subr.bf16.mxu0 0
      %1123 = vmatpush1.bf16.msra.mxu0 0
      %1124 = vmatprep.subr.bf16.mxu0 0
      %1125 = vmatpush1.bf16.msra.mxu0 0
      %1126 = vmatprep.subr.bf16.mxu0 0
      %1127 = vmatpush1.bf16.msra.mxu0 0
      %1128 = vmatprep.subr.bf16.mxu0 0
      %1129 = vmatpush1.bf16.msra.mxu0 0
      %1130 = vmatprep.subr.bf16.mxu0 0
      %1131 = vmatpush1.bf16.msra.mxu0 0
      %1132 = vmatprep.subr.bf16.mxu0 0
      %1133 = vmatpush1.bf16.msra.mxu0 0
      %1134 = vmatprep.subr.bf16.mxu0 0
      %1135 = vmatpush1.bf16.msra.mxu0 0
      %1136 = vmatprep.subr.bf16.mxu0 0
      %1137 = vmatpush1.bf16.msra.mxu0 0
      %1138 = vmatprep.subr.bf16.mxu0 0
      %1139 = vmatpush1.bf16.msra.mxu0 0
      %1140 = vmatprep.subr.bf16.mxu0 0
      %1141 = vmatpush1.bf16.msra.mxu0 0
      %1142 = vmatprep.subr.bf16.mxu0 0
      %1143 = vmatpush1.bf16.msra.mxu0 0
      %1144 = vmatprep.subr.bf16.mxu0 0
      %1145 = vmatpush1.bf16.msra.mxu0 0
      %1146 = vmatprep.subr.bf16.mxu0 0
      %1147 = vmatpush1.bf16.msra.mxu0 0
      %1148 = vmatprep.mubr.bf16.mxu0 0
      %1149 = vmatmul.mubr.bf16.gmra.mrb[0].mxu0 %v1111
      %v1150 = vpop.f32.mrb[0].mxu0
      %v1151 = vadd.f32 %v1102, %v1150
      %v1152 = vpop.f32.mrb[0].mxu0
      %v1153 = vpop.f32.mrb[0].mxu0
      %v1154 = vadd.f32 %v1102, %v1153
      %v1155 = vpop.f32.mrb[0].mxu0
      %1156 = vmatprep.mubr.bf16.mxu0 0
      %1157 = vmatmul.mubr.bf16.gmra.mrb[0].mxu0 %v1114
      %v1158 = vpop.f32.mrb[0].mxu0
      %v1159 = vadd.f32 %v1102, %v1158
      %v1160 = vpop.f32.mrb[0].mxu0
      %v1161 = vpop.f32.mrb[0].mxu0
      %v1162 = vadd.f32 %v1102, %v1161
      %v1163 = vpop.f32.mrb[0].mxu0
      %1164 = vdwg.mxu0
      %v1165 = vmax.f32 %v1151, 0.0
      %v1166 = vmax.f32 %v1154, 0.0
      %v1167 = vmax.f32 %v1159, 0.0
      %v1168 = vmax.f32 %v1162, 0.0
      %v1169 = vpack.c.bf16 %v1166, %v1165
      %v1170 = vpack.c.bf16 %v1168, %v1167
      %v1173 = vunpack.c.l.b16 %v1169
      %v1174 = vunpack.c.h.b16 %v1169
      %v1175 = vunpack.c.l.b16 %v1170
      %v1176 = vunpack.c.h.b16 %v1170
      %v1177 = vpack.c.b16 %v1173, %v1173
      %v1178 = vpack.c.b16 %v1174, %v1174
      %v1179 = vpack.c.b16 %v1175, %v1175
      %v1180 = vpack.c.b16 %v1176, %v1176
      %1185 = vst.msk [vmem:[%s297] sm:$0xf] %vm1090, %v1177
      %1186 = vst.msk [vmem:[%s297 + $0x4] sm:$0xf] %vm1090, %v1178
      %1187 = vst.msk [vmem:[%s297 + $0x8] sm:$0xf] %vm1090, %v1179
      %1188 = vst.msk [vmem:[%s297 + $0xc] sm:$0xf] %vm1090, %v1180
      %s1189 = smul.u32 4, %s23
      %p1190 = scmp.lt.s32.totalorder %s22, 5
      %s1191 = scalar_select %p1190, %s22, 5
      %p1192 = scmp.lt.s32.totalorder %s1189, 3
      %s1193 = scalar_select %p1192, %s1189, 3
      %s1194 = smul.addr %s1191, 4
      %s1195 = sadd.s32 %s1193, %s1194
      %s1196 = smul.addr %s1195, 4
      %s1197 = scalar_lea.vmem %s5, %s1196
      %s1198 = smul.u32 4, %s23
      %p1199 = scmp.lt.s32.totalorder %s22, 5
      %s1200 = scalar_select %p1199, %s22, 5
      %p1201 = scmp.lt.s32.totalorder %s1198, 3
      %s1202 = scalar_select %p1201, %s1198, 3
      %s1203 = smul.addr %s1200, 4
      %s1204 = sadd.s32 %s1202, %s1203
      %s1205 = smul.addr %s1204, 4
      %s1206 = scalar_lea.vmem %s6, %s1205
      // Predicated region
      $region41: #{scene_net_forward.16} parent=39 // pred_check
        %p1207 = pneg %p160
      $region42: #{scene_net_forward.16} parent=39 // pred_check_branch
        %1209 = sbr.rel (%p1207) target = $region44
      $region43: #{scene_net_forward.16} parent=39 // pred_region
        %s1210 = smul.u32 4, %s23
      $region44: #{scene_net_forward.16} parent=39 // pred_fallthru
        _
      // Predicated region
      $region45: #{scene_net_forward.16} parent=39 // pred_check
        %p1211 = pneg %p188
      $region46: #{scene_net_forward.16} parent=39 // pred_check_branch
        %1213 = sbr.rel (%p1211) target = $region48
      $region47: #{scene_net_forward.16} parent=39 // pred_region
        %s1214 = smul.u32 4, %s23
      $region48: #{scene_net_forward.16} parent=39 // pred_fallthru
        _
    $region40: #{scene_net_forward.16} parent=5 // pred_fallthru
      _
    %p1215 = scmp.le.s32.totalorder 2, %s13
    // Predicated region
    $region49: #{scene_net_forward.16} parent=5 // pred_check
      %p1216 = pneg %p1215
    $region50: #{scene_net_forward.16} parent=5 // pred_check_branch
      %1218 = sbr.rel (%p1216) target = $region52
    $region51: #{scene_net_forward.16} parent=5 // pred_region
      %s1219 = ssub.s32 %s13, 2
      // Predicated region
      $region53: #{scene_net_forward.16} parent=51 // pred_check
        %p1220 = pneg %p166
      $region54: #{scene_net_forward.16} parent=51 // pred_check_branch
        %1222 = sbr.rel (%p1220) target = $region56
      $region55: #{scene_net_forward.16} parent=51 // pred_region
        %s1223 = smul.u32 4, %s25
        %p1224 = scmp.lt.s32.totalorder %s24, 5
        %s1225 = scalar_select %p1224, %s24, 5
        %p1226 = scmp.lt.s32.totalorder %s1223, 3
        %s1227 = scalar_select %p1226, %s1223, 3
        %s1228 = smul.addr %s1225, 4
        %s1229 = sadd.s32 %s1227, %s1228
        %s1230 = smul.addr %s1229, 4
        %s1231 = scalar_lea.vmem %s5, %s1230
      $region56: #{scene_net_forward.16} parent=51 // pred_fallthru
        _
      // Predicated region
      $region57: #{scene_net_forward.16} parent=51 // pred_check
        %p1232 = pneg %p194
      $region58: #{scene_net_forward.16} parent=51 // pred_check_branch
        %1234 = sbr.rel (%p1232) target = $region60
      $region59: #{scene_net_forward.16} parent=51 // pred_region
        %s1235 = smul.u32 4, %s25
        %p1236 = scmp.lt.s32.totalorder %s24, 5
        %s1237 = scalar_select %p1236, %s24, 5
        %p1238 = scmp.lt.s32.totalorder %s1235, 3
        %s1239 = scalar_select %p1238, %s1235, 3
        %s1240 = smul.addr %s1237, 4
        %s1241 = sadd.s32 %s1239, %s1240
        %s1242 = smul.addr %s1241, 4
        %s1243 = scalar_lea.vmem %s6, %s1242
      $region60: #{scene_net_forward.16} parent=51 // pred_fallthru
        _
    $region52: #{scene_net_forward.16} parent=5 // pred_fallthru
      _
  $region6: #{scene_net_forward.16} parent=0 // loop_footer
    %s17 = sadd.s32 1, %s13
  $region7: #{scene_net_forward.16} parent=0 // loop_footer_branch
    %12 = sbr.rel target = $region3
  $region8: #{scene_net_forward.16} parent=0 // loop_exit
    _

// kernel: scene_net_forward.19
$region0: #{scene_net_forward.19}
  #allocation0 [shape = 'u32[]', space=smem, size = 0x4, offset = 0x4, fixed_abs, tag = 'smem constant byte address 0x4 - core index']
  #allocation1 [shape = 'u32[144,128]{1,0:T(1,128)}', space=vmem, size = 0x12000, scoped, tag = 'internal scratch']
  %s0 = inlined_call_operand.vmem [shape: bf16[2,56,32], index: 0, kind: input, shape index: {}]
  %s1 = inlined_call_operand.vmem [shape: bf16[9,32,128], index: 1, kind: input, shape index: {}]
  %s2 = inlined_call_operand.vmem [shape: f32[1,128], index: 2, kind: input, shape index: {}]
  %s3 = inlined_call_operand.vmem [shape: f32[2,32,128], index: 3, kind: output, shape index: {}]
  %s4 = sld [smem:[#allocation0]]
  $region45: #{scene_net_forward.19} parent=0
    _
  %s6 = ssub.s32 1, %s4
  %s7 = scalar_select 0, %s6, %s4
  loop: start=0, step=1, limit=4
  $region2: #{scene_net_forward.19} parent=0 // loop_pre_header
    _
  $region3: #{scene_net_forward.19} parent=0 // loop_header
    %s9 = sphi 0, %s13
    %p10 = scmp.ge.s32.totalorder %s9, 4
    %s16 = sphi 0, %s28
    %s17 = sphi 0, %s24
    %s18 = sphi 0, %s16
    %s19 = sphi 0, %s17
    %s20 = sphi 0, %s18
    %s21 = sphi 0, %s19
    %s31 = sphi 0, %s33
    %s34 = sphi 0, %s31
    %s35 = sphi 0, %s34
    %s51 = sphi 0, %s35
    %s55 = sphi 0, %s55
    %s57 = sphi 0, %s55
    %s58 = sphi 0, %s57
    %s72 = sphi 0, %s58
    %s76 = sphi 0, %s76
    %s78 = sphi 0, %s76
    %s79 = sphi 0, %s78
    %s93 = sphi 0, %s79
    %s101 = sphi 0, %s103
    %s104 = sphi 0, %s101
    %s105 = sphi 0, %s104
    %s121 = sphi 0, %s105
  $region4: #{scene_net_forward.19} parent=0 // loop_header_branch
    %12 = sbr.rel (%p10) target = $region8
  $region5: #{scene_net_forward.19} parent=0 // loop_body
    %s14 = ssub.s32 %s9, 1
    %s15 = ssub.s32 %s9, 2
    %s22 = sadd.s32 1, %s17
    %p23 = scmp.ge.s32.totalorder %s22, 1
    %s24 = scalar_select %p23, 0, %s22
    %s25 = sadd.s32 1, %s16
    %s26 = scalar_select %p23, %s25, %s16
    %p27 = scmp.ge.s32.totalorder %s26, 2
    %s28 = scalar_select %p27, 0, %s26
    %s29 = ssub.s32 %s16, %s28
    %p30 = scmp.eq.s32.totalorder %s29, 0
    %s32 = sadd.s32 %s31, 1
    %s33 = scalar_select %p30, %s31, %s32
    %p36 = pneg %p30
    %p37 = scmp.eq.s32.totalorder %s9, 1
    %p38 = por %p36, %p37
    %p39 = scmp.ne.s32.totalorder %s31, %s34
    %p40 = scmp.eq.s32.totalorder %s9, 0
    %p41 = por %p39, %p40
    %p42 = scmp.ne.s32.totalorder %s31, %s34
    %p43 = scmp.eq.s32.totalorder %s14, 1
    %p44 = por %p42, %p43
    %p45 = scmp.ne.s32.totalorder %s34, %s35
    %p46 = scmp.eq.s32.totalorder %s14, 0
    %p47 = por %p45, %p46
    %p48 = scmp.ne.s32.totalorder %s34, %s35
    %p49 = scmp.eq.s32.totalorder %s15, 1
    %p50 = por %p48, %p49
    %p52 = scmp.ne.s32.totalorder %s35, %s51
    %p53 = scmp.eq.s32.totalorder %s15, 0
    %p54 = por %p52, %p53
    %s56 = sadd.s32 %s55, 1
    %p59 = scmp.eq.s32.totalorder %s9, 1
    %p60 = scmp.ne.s32.totalorder %s55, %s57
    %p61 = scmp.eq.s32.totalorder %s9, 0
    %p62 = por %p60, %p61
    %p63 = scmp.ne.s32.totalorder %s55, %s57
    %p64 = scmp.eq.s32.totalorder %s14, 1
    %p65 = por %p63, %p64
    %p66 = scmp.ne.s32.totalorder %s57, %s58
    %p67 = scmp.eq.s32.totalorder %s14, 0
    %p68 = por %p66, %p67
    %p69 = scmp.ne.s32.totalorder %s57, %s58
    %p70 = scmp.eq.s32.totalorder %s15, 1
    %p71 = por %p69, %p70
    %p73 = scmp.ne.s32.totalorder %s58, %s72
    %p74 = scmp.eq.s32.totalorder %s15, 0
    %p75 = por %p73, %p74
    %s77 = sadd.s32 %s76, 1
    %p80 = scmp.eq.s32.totalorder %s9, 1
    %p81 = scmp.ne.s32.totalorder %s76, %s78
    %p82 = scmp.eq.s32.totalorder %s9, 0
    %p83 = por %p81, %p82
    %p84 = scmp.ne.s32.totalorder %s76, %s78
    %p85 = scmp.eq.s32.totalorder %s14, 1
    %p86 = por %p84, %p85
    %p87 = scmp.ne.s32.totalorder %s78, %s79
    %p88 = scmp.eq.s32.totalorder %s14, 0
    %p89 = por %p87, %p88
    %p90 = scmp.ne.s32.totalorder %s78, %s79
    %p91 = scmp.eq.s32.totalorder %s15, 1
    %p92 = por %p90, %p91
    %p94 = scmp.ne.s32.totalorder %s79, %s93
    %p95 = scmp.eq.s32.totalorder %s15, 0
    %p96 = por %p94, %p95
    %s97 = ssub.s32 %s16, %s28
    %s98 = ssub.s32 %s17, %s24
    %s99 = sor.u32 %s97, %s98
    %p100 = scmp.eq.s32.totalorder %s99, 0
    %s102 = sadd.s32 %s101, 1
    %s103 = scalar_select %p100, %s101, %s102
    %p106 = pneg %p100
    %p107 = scmp.eq.s32.totalorder %s9, 1
    %p108 = por %p106, %p107
    %p109 = scmp.ne.s32.totalorder %s101, %s104
    %p110 = scmp.eq.s32.totalorder %s9, 0
    %p111 = por %p109, %p110
    %p112 = scmp.ne.s32.totalorder %s101, %s104
    %p113 = scmp.eq.s32.totalorder %s14, 1
    %p114 = por %p112, %p113
    %p115 = scmp.ne.s32.totalorder %s104, %s105
    %p116 = scmp.eq.s32.totalorder %s14, 0
    %p117 = por %p115, %p116
    %p118 = scmp.ne.s32.totalorder %s104, %s105
    %p119 = scmp.eq.s32.totalorder %s15, 1
    %p120 = por %p118, %p119
    %p122 = scmp.ne.s32.totalorder %s105, %s121
    %p123 = scmp.eq.s32.totalorder %s15, 0
    %p124 = por %p122, %p123
    %p125 = scmp.le.s32.totalorder 1, %s9
    %p126 = scmp.lt.s32.totalorder %s9, 3
    %p127 = pnand %p125, %p126
    %p128 = pneg %p127
    // Predicated region
    $region9: #{scene_net_forward.19} parent=5 // pred_check
      _
    $region10: #{scene_net_forward.19} parent=5 // pred_check_branch
      %130 = sbr.rel (%p127) target = $region12
    $region11: #{scene_net_forward.19} parent=5 // pred_region
      %s131 = ssub.s32 %s9, 1
      // Predicated region
      $region13: #{scene_net_forward.19} parent=11 // pred_check
        %p132 = pneg %p68
      $region14: #{scene_net_forward.19} parent=11 // pred_check_branch
        %134 = sbr.rel (%p132) target = $region16
      $region15: #{scene_net_forward.19} parent=11 // pred_region
        _
      $region16: #{scene_net_forward.19} parent=11 // pred_fallthru
        _
      // Predicated region
      $region17: #{scene_net_forward.19} parent=11 // pred_check
        %p135 = pneg %p89
      $region18: #{scene_net_forward.19} parent=11 // pred_check_branch
        %137 = sbr.rel (%p135) target = $region20
      $region19: #{scene_net_forward.19} parent=11 // pred_region
        _
      $region20: #{scene_net_forward.19} parent=11 // pred_fallthru
        _
    $region12: #{scene_net_forward.19} parent=5 // pred_fallthru
      _
    %p138 = scmp.lt.s32.totalorder %s9, 2
    // Predicated region
    $region21: #{scene_net_forward.19} parent=5 // pred_check
      %p139 = pneg %p138
    $region22: #{scene_net_forward.19} parent=5 // pred_check_branch
      %141 = sbr.rel (%p139) target = $region24
    $region23: #{scene_net_forward.19} parent=5 // pred_region
      // Predicated region
      $region25: #{scene_net_forward.19} parent=23 // pred_check
        %p142 = pneg %p41
      $region26: #{scene_net_forward.19} parent=23 // pred_check_branch
        %144 = sbr.rel (%p142) target = $region28
      $region27: #{scene_net_forward.19} parent=23 // pred_region
        %p145 = scmp.lt.s32.totalorder %s16, 1
        %s146 = scalar_select %p145, %s16, 1
        %s147 = smul.addr %s146, 7
        %s148 = smul.addr %s147, 4
        %s149 = scalar_lea.vmem %s0, %s148
      $region28: #{scene_net_forward.19} parent=23 // pred_fallthru
        _
    $region24: #{scene_net_forward.19} parent=5 // pred_fallthru
      _
    %p150 = scmp.le.s32.totalorder 1, %s9
    %p151 = scmp.lt.s32.totalorder %s9, 3
    %p152 = pnand %p150, %p151
    %p153 = pneg %p152
    // Predicated region
    $region29: #{scene_net_forward.19} parent=5 // pred_check
      _
    $region30: #{scene_net_forward.19} parent=5 // pred_check_branch
      %155 = sbr.rel (%p152) target = $region32
    $region31: #{scene_net_forward.19} parent=5 // pred_region
      %s156 = ssub.s32 %s9, 1
      %p157 = scmp.lt.s32.totalorder %s18, 1
      %s158 = scalar_select %p157, %s18, 1
      %s159 = smul.addr %s158, 7
      %s160 = smul.addr %s159, 4
      %s161 = scalar_lea.vmem %s0, %s160
      %p162 = pneg %p47
      %p163 = pneg %p44
      %p164 = pneg %p68
      %p165 = pneg %p65
      %p166 = pneg %p89
      %p167 = pneg %p86
      %p168 = pneg %p117
      %p169 = pneg %p114
      %s170 = smul.u32 4, %s19
      %p171 = scmp.lt.s32.totalorder %s18, 1
      %s172 = scalar_select %p171, %s18, 1
      %p173 = scmp.lt.s32.totalorder %s170, 3
      %s174 = scalar_select %p173, %s170, 3
      %s175 = smul.addr %s172, 4
      %s176 = sadd.s32 %s174, %s175
      %s177 = smul.addr %s176, 8
      %s178 = scalar_lea.vmem %s3, %s177
      %p179 = scmp.lt.s32.totalorder %s18, 1
      %s180 = scalar_select %p179, %s18, 1
      %s181 = smul.addr %s180, 7
      %s182 = smul.addr %s181, 4
      %s183 = scalar_lea.vmem %s0, %s182
      %s184 = smul.u32 4, %s19
      %p185 = scmp.lt.s32.totalorder %s18, 1
      %s186 = scalar_select %p185, %s18, 1
      %p187 = scmp.lt.s32.totalorder %s184, 3
      %s188 = scalar_select %p187, %s184, 3
      %s189 = smul.addr %s186, 4
      %s190 = sadd.s32 %s188, %s189
      %s191 = smul.addr %s190, 8
      %s192 = scalar_lea.vmem %s3, %s191
      %s193 = smul.u32 4, %s19
      %v195 = vld [vmem:[%s183] sm:$0xf]
      %v196 = vld [vmem:[%s183 + $0x4] sm:$0xf]
      %v197 = vld [vmem:[%s183 + $0x8] sm:$0xf]
      %v198 = vld [vmem:[%s183 + $0xc] sm:$0xf]
      %v199 = vld [vmem:[%s183 + $0x10] sm:$0xf]
      %v200 = vunpack.c.l.bf16 %v195
      %v201 = vunpack.c.l.bf16 %v196
      %v202 = vunpack.c.l.bf16 %v197
      %v203 = vunpack.c.l.bf16 %v198
      %v204 = vunpack.c.l.bf16 %v199
      %v205 = vld [vmem:[%s1] sm:$0xf]
      %v206 = vld [vmem:[%s1 + $0x4] sm:$0xf]
      %v207 = vld [vmem:[%s1 + $0x8] sm:$0xf]
      %v208 = vld [vmem:[%s1 + $0xc] sm:$0xf]
      %v209 = vpack.c.bf16 %v201, %v200
      %v210 = vpack.c.bf16 %v203, %v202
      %v211 = vpack.c.bf16 %v204, %v204
      %s212 = scalar_lea.vmem %s1, 16
      %v213 = vld [vmem:[%s212] sm:$0xf]
      %v214 = vld [vmem:[%s212 + $0x4] sm:$0xf]
      %v215 = vld [vmem:[%s212 + $0x8] sm:$0xf]
      %v216 = vld [vmem:[%s212 + $0xc] sm:$0xf]
      %vm217 = vsmask.f32 7424
      %v219 = vshrl.u32 %v209, 16
      %v221 = vshll.u32 %v209, 16
      %v223 = vrot.slane %v221, 1
      %v224 = vor.u32 %v219, %v223
      %v226 = vshll.u32 %v210, 16
      %v228 = vrot.slane %v226, 1
      %v229 = vsel %vm217, %v224, %v228
      %v230 = vshrl.u32 %v210, 16
      %v232 = vor.u32 %v230, %v228
      %v234 = vshll.u32 %v211, 16
      %v236 = vrot.slane %v234, 1
      %v237 = vsel %vm217, %v232, %v236
      %v242 = vunpack.c.l.b16 %v213
      %v243 = vunpack.c.l.b16 %v214
      %v244 = vunpack.c.l.b16 %v215
      %v245 = vunpack.c.l.b16 %v216
      %v246 = vpack.c.b16 %v243, %v242
      %v247 = vpack.c.b16 %v245, %v244
      %vm250 = vcmask 261120
      %v252 = vsel %vm250, %v229, 0
      %v255 = vsel %vm250, %v237, 0
      %257 = vmatprep.subr.bf16.mxu0 0
      %258 = vmatpush1.bf16.msra.mxu0 %v246
      %259 = vmatprep.subr.bf16.mxu0 0
      %260 = vmatpush1.bf16.msra.mxu0 %v247
      %261 = vmatprep.subr.bf16.mxu0 0
      %262 = vmatpush1.bf16.msra.mxu0 0
      %263 = vmatprep.subr.bf16.mxu0 0
      %264 = vmatpush1.bf16.msra.mxu0 0
      %265 = vmatprep.subr.bf16.mxu0 0
      %266 = vmatpush1.bf16.msra.mxu0 0
      %267 = vmatprep.subr.bf16.mxu0 0
      %268 = vmatpush1.bf16.msra.mxu0 0
      %269 = vmatprep.subr.bf16.mxu0 0
      %270 = vmatpush1.bf16.msra.mxu0 0
      %271 = vmatprep.subr.bf16.mxu0 0
      %272 = vmatpush1.bf16.msra.mxu0 0
      %273 = vmatprep.subr.bf16.mxu0 0
      %274 = vmatpush1.bf16.msra.mxu0 0
      %275 = vmatprep.subr.bf16.mxu0 0
      %276 = vmatpush1.bf16.msra.mxu0 0
      %277 = vmatprep.subr.bf16.mxu0 0
      %278 = vmatpush1.bf16.msra.mxu0 0
      %279 = vmatprep.subr.bf16.mxu0 0
      %280 = vmatpush1.bf16.msra.mxu0 0
      %281 = vmatprep.subr.bf16.mxu0 0
      %282 = vmatpush1.bf16.msra.mxu0 0
      %283 = vmatprep.subr.bf16.mxu0 0
      %284 = vmatpush1.bf16.msra.mxu0 0
      %285 = vmatprep.subr.bf16.mxu0 0
      %286 = vmatpush1.bf16.msra.mxu0 0
      %287 = vmatprep.subr.bf16.mxu0 0
      %288 = vmatpush1.bf16.msra.mxu0 0
      %289 = vmatprep.mubr.bf16.mxu0 0
      %290 = vmatmul.mubr.bf16.gmra.mrb[0].mxu0 %v252
      %v291 = vpop.f32.mrb[0].mxu0
      %v292 = vadd.f32 0.0, %v291
      %v293 = vpop.f32.mrb[0].mxu0
      %v294 = vpop.f32.mrb[0].mxu0
      %v295 = vadd.f32 0.0, %v294
      %v296 = vpop.f32.mrb[0].mxu0
      %297 = vmatprep.mubr.bf16.mxu0 0
      %298 = vmatmul.mubr.bf16.gmra.mrb[0].mxu0 %v255
      %v299 = vpop.f32.mrb[0].mxu0
      %v300 = vadd.f32 0.0, %v299
      %v301 = vpop.f32.mrb[0].mxu0
      %v302 = vpop.f32.mrb[0].mxu0
      %v303 = vadd.f32 0.0, %v302
      %v304 = vpop.f32.mrb[0].mxu0
      %305 = vdwg.mxu0
      %v310 = vunpack.c.l.b16 %v195
      %v311 = vunpack.c.l.b16 %v196
      %v312 = vunpack.c.l.b16 %v197
      %v313 = vunpack.c.l.b16 %v198
      %v314 = vpack.c.b16 %v311, %v310
      %v315 = vpack.c.b16 %v313, %v312
      %v320 = vunpack.c.l.b16 %v205
      %v321 = vunpack.c.l.b16 %v206
      %v322 = vunpack.c.l.b16 %v207
      %v323 = vunpack.c.l.b16 %v208
      %v324 = vpack.c.b16 %v321, %v320
      %v325 = vpack.c.b16 %v323, %v322
      %v329 = vsel %vm250, %v314, 0
      %v332 = vsel %vm250, %v315, 0
      %334 = vmatprep.subr.bf16.mxu0 0
      %335 = vmatpush1.bf16.msra.mxu0 %v324
      %336 = vmatprep.subr.bf16.mxu0 0
      %337 = vmatpush1.bf16.msra.mxu0 %v325
      %338 = vmatprep.subr.bf16.mxu0 0
      %339 = vmatpush1.bf16.msra.mxu0 0
      %340 = vmatprep.subr.bf16.mxu0 0
      %341 = vmatpush1.bf16.msra.mxu0 0
      %342 = vmatprep.subr.bf16.mxu0 0
      %343 = vmatpush1.bf16.msra.mxu0 0
      %344 = vmatprep.subr.bf16.mxu0 0
      %345 = vmatpush1.bf16.msra.mxu0 0
      %346 = vmatprep.subr.bf16.mxu0 0
      %347 = vmatpush1.bf16.msra.mxu0 0
      %348 = vmatprep.subr.bf16.mxu0 0
      %349 = vmatpush1.bf16.msra.mxu0 0
      %350 = vmatprep.subr.bf16.mxu0 0
      %351 = vmatpush1.bf16.msra.mxu0 0
      %352 = vmatprep.subr.bf16.mxu0 0
      %353 = vmatpush1.bf16.msra.mxu0 0
      %354 = vmatprep.subr.bf16.mxu0 0
      %355 = vmatpush1.bf16.msra.mxu0 0
      %356 = vmatprep.subr.bf16.mxu0 0
      %357 = vmatpush1.bf16.msra.mxu0 0
      %358 = vmatprep.subr.bf16.mxu0 0
      %359 = vmatpush1.bf16.msra.mxu0 0
      %360 = vmatprep.subr.bf16.mxu0 0
      %361 = vmatpush1.bf16.msra.mxu0 0
      %362 = vmatprep.subr.bf16.mxu0 0
      %363 = vmatpush1.bf16.msra.mxu0 0
      %364 = vmatprep.subr.bf16.mxu0 0
      %365 = vmatpush1.bf16.msra.mxu0 0
      %366 = vmatprep.mubr.bf16.mxu0 0
      %367 = vmatmul.mubr.bf16.gmra.mrb[0].mxu0 %v329
      %v368 = vpop.f32.mrb[0].mxu0
      %v369 = vadd.f32 %v292, %v368
      %v370 = vpop.f32.mrb[0].mxu0
      %v371 = vpop.f32.mrb[0].mxu0
      %v372 = vadd.f32 %v295, %v371
      %v373 = vpop.f32.mrb[0].mxu0
      %374 = vmatprep.mubr.bf16.mxu0 0
      %375 = vmatmul.mubr.bf16.gmra.mrb[0].mxu0 %v332
      %v376 = vpop.f32.mrb[0].mxu0
      %v377 = vadd.f32 %v300, %v376
      %v378 = vpop.f32.mrb[0].mxu0
      %v379 = vpop.f32.mrb[0].mxu0
      %v380 = vadd.f32 %v303, %v379
      %v381 = vpop.f32.mrb[0].mxu0
      %382 = vdwg.mxu0
      %s383 = scalar_lea.vmem %s1, 32
      %v384 = vld [vmem:[%s383] sm:$0xf]
      %v385 = vld [vmem:[%s383 + $0x4] sm:$0xf]
      %v386 = vld [vmem:[%s383 + $0x8] sm:$0xf]
      %v387 = vld [vmem:[%s383 + $0xc] sm:$0xf]
      %vm391 = vcmask 1046528
      %v392 = vrot.slane %v209, 1
      %v393 = vrot.slane %v210, 1
      %v394 = vsel %vm391, %v392, %v393
      %v395 = vrot.slane %v211, 1
      %v396 = vsel %vm391, %v393, %v395
      %v401 = vunpack.c.l.b16 %v384
      %v402 = vunpack.c.l.b16 %v385
      %v403 = vunpack.c.l.b16 %v386
      %v404 = vunpack.c.l.b16 %v387
      %v405 = vpack.c.b16 %v402, %v401
      %v406 = vpack.c.b16 %v404, %v403
      %v410 = vsel %vm250, %v394, 0
      %v413 = vsel %vm250, %v396, 0
      %415 = vmatprep.subr.bf16.mxu0 0
      %416 = vmatpush1.bf16.msra.mxu0 %v405
      %417 = vmatprep.subr.bf16.mxu0 0
      %418 = vmatpush1.bf16.msra.mxu0 %v406
      %419 = vmatprep.subr.bf16.mxu0 0
      %420 = vmatpush1.bf16.msra.mxu0 0
      %421 = vmatprep.subr.bf16.mxu0 0
      %422 = vmatpush1.bf16.msra.mxu0 0
      %423 = vmatprep.subr.bf16.mxu0 0
      %424 = vmatpush1.bf16.msra.mxu0 0
      %425 = vmatprep.subr.bf16.mxu0 0
      %426 = vmatpush1.bf16.msra.mxu0 0
      %427 = vmatprep.subr.bf16.mxu0 0
      %428 = vmatpush1.bf16.msra.mxu0 0
      %429 = vmatprep.subr.bf16.mxu0 0
      %430 = vmatpush1.bf16.msra.mxu0 0
      %431 = vmatprep.subr.bf16.mxu0 0
      %432 = vmatpush1.bf16.msra.mxu0 0
      %433 = vmatprep.subr.bf16.mxu0 0
      %434 = vmatpush1.bf16.msra.mxu0 0
      %435 = vmatprep.subr.bf16.mxu0 0
      %436 = vmatpush1.bf16.msra.mxu0 0
      %437 = vmatprep.subr.bf16.mxu0 0
      %438 = vmatpush1.bf16.msra.mxu0 0
      %439 = vmatprep.subr.bf16.mxu0 0
      %440 = vmatpush1.bf16.msra.mxu0 0
      %441 = vmatprep.subr.bf16.mxu0 0
      %442 = vmatpush1.bf16.msra.mxu0 0
      %443 = vmatprep.subr.bf16.mxu0 0
      %444 = vmatpush1.bf16.msra.mxu0 0
      %445 = vmatprep.subr.bf16.mxu0 0
      %446 = vmatpush1.bf16.msra.mxu0 0
      %447 = vmatprep.mubr.bf16.mxu0 0
      %448 = vmatmul.mubr.bf16.gmra.mrb[0].mxu0 %v410
      %v449 = vpop.f32.mrb[0].mxu0
      %v450 = vadd.f32 0.0, %v449
      %v451 = vpop.f32.mrb[0].mxu0
      %v452 = vpop.f32.mrb[0].mxu0
      %v453 = vadd.f32 0.0, %v452
      %v454 = vpop.f32.mrb[0].mxu0
      %455 = vmatprep.mubr.bf16.mxu0 0
      %456 = vmatmul.mubr.bf16.gmra.mrb[0].mxu0 %v413
      %v457 = vpop.f32.mrb[0].mxu0
      %v458 = vadd.f32 0.0, %v457
      %v459 = vpop.f32.mrb[0].mxu0
      %v460 = vpop.f32.mrb[0].mxu0
      %v461 = vadd.f32 0.0, %v460
      %v462 = vpop.f32.mrb[0].mxu0
      %463 = vdwg.mxu0
      %v464 = vadd.f32 %v369, %v450
      %v465 = vadd.f32 %v372, %v453
      %v466 = vadd.f32 %v377, %v458
      %v467 = vadd.f32 %v380, %v461
      %v468 = vld [vmem:[%s183 + $0x4] sm:$0xf]
      %v469 = vld [vmem:[%s183 + $0x8] sm:$0xf]
      %v470 = vld [vmem:[%s183 + $0xc] sm:$0xf]
      %v471 = vld [vmem:[%s183 + $0x10] sm:$0xf]
      %v472 = vld [vmem:[%s183 + $0x14] sm:$0xf]
      %v473 = vunpack.c.l.bf16 %v468
      %v474 = vunpack.c.l.bf16 %v469
      %v475 = vunpack.c.l.bf16 %v470
      %v476 = vunpack.c.l.bf16 %v471
      %v477 = vunpack.c.l.bf16 %v472
      %s478 = scalar_lea.vmem %s1, 48
      %v479 = vld [vmem:[%s478] sm:$0xf]
      %v480 = vld [vmem:[%s478 + $0x4] sm:$0xf]
      %v481 = vld [vmem:[%s478 + $0x8] sm:$0xf]
      %v482 = vld [vmem:[%s478 + $0xc] sm:$0xf]
      %v487 = vunpack.c.l.b16 %v468
      %v488 = vunpack.c.l.b16 %v469
      %v489 = vunpack.c.l.b16 %v470
      %v490 = vunpack.c.l.b16 %v471
      %v491 = vpack.c.b16 %v488, %v487
      %v492 = vpack.c.b16 %v490, %v489
      %v497 = vunpack.c.l.b16 %v479
      %v498 = vunpack.c.l.b16 %v480
      %v499 = vunpack.c.l.b16 %v481
      %v500 = vunpack.c.l.b16 %v482
      %v501 = vpack.c.b16 %v498, %v497
      %v502 = vpack.c.b16 %v500, %v499
      %v506 = vsel %vm250, %v491, 0
      %v509 = vsel %vm250, %v492, 0
      %511 = vmatprep.subr.bf16.mxu0 0
      %512 = vmatpush1.bf16.msra.mxu0 %v501
      %513 = vmatprep.subr.bf16.mxu0 0
      %514 = vmatpush1.bf16.msra.mxu0 %v502
      %515 = vmatprep.subr.bf16.mxu0 0
      %516 = vmatpush1.bf16.msra.mxu0 0
      %517 = vmatprep.subr.bf16.mxu0 0
      %518 = vmatpush1.bf16.msra.mxu0 0
      %519 = vmatprep.subr.bf16.mxu0 0
      %520 = vmatpush1.bf16.msra.mxu0 0
      %521 = vmatprep.subr.bf16.mxu0 0
      %522 = vmatpush1.bf16.msra.mxu0 0
      %523 = vmatprep.subr.bf16.mxu0 0
      %524 = vmatpush1.bf16.msra.mxu0 0
      %525 = vmatprep.subr.bf16.mxu0 0
      %526 = vmatpush1.bf16.msra.mxu0 0
      %527 = vmatprep.subr.bf16.mxu0 0
      %528 = vmatpush1.bf16.msra.mxu0 0
      %529 = vmatprep.subr.bf16.mxu0 0
      %530 = vmatpush1.bf16.msra.mxu0 0
      %531 = vmatprep.subr.bf16.mxu0 0
      %532 = vmatpush1.bf16.msra.mxu0 0
      %533 = vmatprep.subr.bf16.mxu0 0
      %534 = vmatpush1.bf16.msra.mxu0 0
      %535 = vmatprep.subr.bf16.mxu0 0
      %536 = vmatpush1.bf16.msra.mxu0 0
      %537 = vmatprep.subr.bf16.mxu0 0
      %538 = vmatpush1.bf16.msra.mxu0 0
      %539 = vmatprep.subr.bf16.mxu0 0
      %540 = vmatpush1.bf16.msra.mxu0 0
      %541 = vmatprep.subr.bf16.mxu0 0
      %542 = vmatpush1.bf16.msra.mxu0 0
      %543 = vmatprep.mubr.bf16.mxu0 0
      %544 = vmatmul.mubr.bf16.gmra.mrb[0].mxu0 %v506
      %v545 = vpop.f32.mrb[0].mxu0
      %v546 = vadd.f32 0.0, %v545
      %v547 = vpop.f32.mrb[0].mxu0
      %v548 = vpop.f32.mrb[0].mxu0
      %v549 = vadd.f32 0.0, %v548
      %v550 = vpop.f32.mrb[0].mxu0
      %551 = vmatprep.mubr.bf16.mxu0 0
      %552 = vmatmul.mubr.bf16.gmra.mrb[0].mxu0 %v509
      %v553 = vpop.f32.mrb[0].mxu0
      %v554 = vadd.f32 0.0, %v553
      %v555 = vpop.f32.mrb[0].mxu0
      %v556 = vpop.f32.mrb[0].mxu0
      %v557 = vadd.f32 0.0, %v556
      %v558 = vpop.f32.mrb[0].mxu0
      %559 = vdwg.mxu0
      %v560 = vadd.f32 %v464, %v546
      %v561 = vadd.f32 %v465, %v549
      %v562 = vadd.f32 %v466, %v554
      %v563 = vadd.f32 %v467, %v557
      %v564 = vpack.c.bf16 %v474, %v473
      %v565 = vpack.c.bf16 %v476, %v475
      %v566 = vpack.c.bf16 %v477, %v477
      %s567 = scalar_lea.vmem %s1, 64
      %v568 = vld [vmem:[%s567] sm:$0xf]
      %v569 = vld [vmem:[%s567 + $0x4] sm:$0xf]
      %v570 = vld [vmem:[%s567 + $0x8] sm:$0xf]
      %v571 = vld [vmem:[%s567 + $0xc] sm:$0xf]
      %v573 = vshrl.u32 %v564, 16
      %v575 = vshll.u32 %v564, 16
      %v577 = vrot.slane %v575, 1
      %v578 = vor.u32 %v573, %v577
      %v580 = vshll.u32 %v565, 16
      %v582 = vrot.slane %v580, 1
      %v583 = vsel %vm217, %v578, %v582
      %v584 = vshrl.u32 %v565, 16
      %v586 = vor.u32 %v584, %v582
      %v588 = vshll.u32 %v566, 16
      %v590 = vrot.slane %v588, 1
      %v591 = vsel %vm217, %v586, %v590
      %v596 = vunpack.c.l.b16 %v568
      %v597 = vunpack.c.l.b16 %v569
      %v598 = vunpack.c.l.b16 %v570
      %v599 = vunpack.c.l.b16 %v571
      %v600 = vpack.c.b16 %v597, %v596
      %v601 = vpack.c.b16 %v599, %v598
      %v605 = vsel %vm250, %v583, 0
      %v608 = vsel %vm250, %v591, 0
      %610 = vmatprep.subr.bf16.mxu0 0
      %611 = vmatpush1.bf16.msra.mxu0 %v600
      %612 = vmatprep.subr.bf16.mxu0 0
      %613 = vmatpush1.bf16.msra.mxu0 %v601
      %614 = vmatprep.subr.bf16.mxu0 0
      %615 = vmatpush1.bf16.msra.mxu0 0
      %616 = vmatprep.subr.bf16.mxu0 0
      %617 = vmatpush1.bf16.msra.mxu0 0
      %618 = vmatprep.subr.bf16.mxu0 0
      %619 = vmatpush1.bf16.msra.mxu0 0
      %620 = vmatprep.subr.bf16.mxu0 0
      %621 = vmatpush1.bf16.msra.mxu0 0
      %622 = vmatprep.subr.bf16.mxu0 0
      %623 = vmatpush1.bf16.msra.mxu0 0
      %624 = vmatprep.subr.bf16.mxu0 0
      %625 = vmatpush1.bf16.msra.mxu0 0
      %626 = vmatprep.subr.bf16.mxu0 0
      %627 = vmatpush1.bf16.msra.mxu0 0
      %628 = vmatprep.subr.bf16.mxu0 0
      %629 = vmatpush1.bf16.msra.mxu0 0
      %630 = vmatprep.subr.bf16.mxu0 0
      %631 = vmatpush1.bf16.msra.mxu0 0
      %632 = vmatprep.subr.bf16.mxu0 0
      %633 = vmatpush1.bf16.msra.mxu0 0
      %634 = vmatprep.subr.bf16.mxu0 0
      %635 = vmatpush1.bf16.msra.mxu0 0
      %636 = vmatprep.subr.bf16.mxu0 0
      %637 = vmatpush1.bf16.msra.mxu0 0
      %638 = vmatprep.subr.bf16.mxu0 0
      %639 = vmatpush1.bf16.msra.mxu0 0
      %640 = vmatprep.subr.bf16.mxu0 0
      %641 = vmatpush1.bf16.msra.mxu0 0
      %642 = vmatprep.mubr.bf16.mxu0 0
      %643 = vmatmul.mubr.bf16.gmra.mrb[0].mxu0 %v605
      %v644 = vpop.f32.mrb[0].mxu0
      %v645 = vadd.f32 0.0, %v644
      %v646 = vpop.f32.mrb[0].mxu0
      %v647 = vpop.f32.mrb[0].mxu0
      %v648 = vadd.f32 0.0, %v647
      %v649 = vpop.f32.mrb[0].mxu0
      %650 = vmatprep.mubr.bf16.mxu0 0
      %651 = vmatmul.mubr.bf16.gmra.mrb[0].mxu0 %v608
      %v652 = vpop.f32.mrb[0].mxu0
      %v653 = vadd.f32 0.0, %v652
      %v654 = vpop.f32.mrb[0].mxu0
      %v655 = vpop.f32.mrb[0].mxu0
      %v656 = vadd.f32 0.0, %v655
      %v657 = vpop.f32.mrb[0].mxu0
      %658 = vdwg.mxu0
      %v659 = vadd.f32 %v560, %v645
      %v660 = vadd.f32 %v561, %v648
      %v661 = vadd.f32 %v562, %v653
      %v662 = vadd.f32 %v563, %v656
      %s663 = scalar_lea.vmem %s1, 80
      %v664 = vld [vmem:[%s663] sm:$0xf]
      %v665 = vld [vmem:[%s663 + $0x4] sm:$0xf]
      %v666 = vld [vmem:[%s663 + $0x8] sm:$0xf]
      %v667 = vld [vmem:[%s663 + $0xc] sm:$0xf]
      %v671 = vrot.slane %v564, 1
      %v672 = vrot.slane %v565, 1
      %v673 = vsel %vm391, %v671, %v672
      %v674 = vrot.slane %v566, 1
      %v675 = vsel %vm391, %v672, %v674
      %v680 = vunpack.c.l.b16 %v664
      %v681 = vunpack.c.l.b16 %v665
      %v682 = vunpack.c.l.b16 %v666
      %v683 = vunpack.c.l.b16 %v667
      %v684 = vpack.c.b16 %v681, %v680
      %v685 = vpack.c.b16 %v683, %v682
      %v689 = vsel %vm250, %v673, 0
      %v692 = vsel %vm250, %v675, 0
      %694 = vmatprep.subr.bf16.mxu0 0
      %695 = vmatpush1.bf16.msra.mxu0 %v684
      %696 = vmatprep.subr.bf16.mxu0 0
      %697 = vmatpush1.bf16.msra.mxu0 %v685
      %698 = vmatprep.subr.bf16.mxu0 0
      %699 = vmatpush1.bf16.msra.mxu0 0
      %700 = vmatprep.subr.bf16.mxu0 0
      %701 = vmatpush1.bf16.msra.mxu0 0
      %702 = vmatprep.subr.bf16.mxu0 0
      %703 = vmatpush1.bf16.msra.mxu0 0
      %704 = vmatprep.subr.bf16.mxu0 0
      %705 = vmatpush1.bf16.msra.mxu0 0
      %706 = vmatprep.subr.bf16.mxu0 0
      %707 = vmatpush1.bf16.msra.mxu0 0
      %708 = vmatprep.subr.bf16.mxu0 0
      %709 = vmatpush1.bf16.msra.mxu0 0
      %710 = vmatprep.subr.bf16.mxu0 0
      %711 = vmatpush1.bf16.msra.mxu0 0
      %712 = vmatprep.subr.bf16.mxu0 0
      %713 = vmatpush1.bf16.msra.mxu0 0
      %714 = vmatprep.subr.bf16.mxu0 0
      %715 = vmatpush1.bf16.msra.mxu0 0
      %716 = vmatprep.subr.bf16.mxu0 0
      %717 = vmatpush1.bf16.msra.mxu0 0
      %718 = vmatprep.subr.bf16.mxu0 0
      %719 = vmatpush1.bf16.msra.mxu0 0
      %720 = vmatprep.subr.bf16.mxu0 0
      %721 = vmatpush1.bf16.msra.mxu0 0
      %722 = vmatprep.subr.bf16.mxu0 0
      %723 = vmatpush1.bf16.msra.mxu0 0
      %724 = vmatprep.subr.bf16.mxu0 0
      %725 = vmatpush1.bf16.msra.mxu0 0
      %726 = vmatprep.mubr.bf16.mxu0 0
      %727 = vmatmul.mubr.bf16.gmra.mrb[0].mxu0 %v689
      %v728 = vpop.f32.mrb[0].mxu0
      %v729 = vadd.f32 0.0, %v728
      %v730 = vpop.f32.mrb[0].mxu0
      %v731 = vpop.f32.mrb[0].mxu0
      %v732 = vadd.f32 0.0, %v731
      %v733 = vpop.f32.mrb[0].mxu0
      %734 = vmatprep.mubr.bf16.mxu0 0
      %735 = vmatmul.mubr.bf16.gmra.mrb[0].mxu0 %v692
      %v736 = vpop.f32.mrb[0].mxu0
      %v737 = vadd.f32 0.0, %v736
      %v738 = vpop.f32.mrb[0].mxu0
      %v739 = vpop.f32.mrb[0].mxu0
      %v740 = vadd.f32 0.0, %v739
      %v741 = vpop.f32.mrb[0].mxu0
      %742 = vdwg.mxu0
      %v743 = vadd.f32 %v659, %v729
      %v744 = vadd.f32 %v660, %v732
      %v745 = vadd.f32 %v661, %v737
      %v746 = vadd.f32 %v662, %v740
      %v747 = vld [vmem:[%s183 + $0x8] sm:$0xf]
      %v748 = vld [vmem:[%s183 + $0xc] sm:$0xf]
      %v749 = vld [vmem:[%s183 + $0x10] sm:$0xf]
      %v750 = vld [vmem:[%s183 + $0x14] sm:$0xf]
      %v751 = vld [vmem:[%s183 + $0x18] sm:$0xf]
      %v752 = vunpack.c.l.bf16 %v747
      %v753 = vunpack.c.l.bf16 %v748
      %v754 = vunpack.c.l.bf16 %v749
      %v755 = vunpack.c.l.bf16 %v750
      %v756 = vunpack.c.l.bf16 %v751
      %s757 = scalar_lea.vmem %s1, 96
      %v758 = vld [vmem:[%s757] sm:$0xf]
      %v759 = vld [vmem:[%s757 + $0x4] sm:$0xf]
      %v760 = vld [vmem:[%s757 + $0x8] sm:$0xf]
      %v761 = vld [vmem:[%s757 + $0xc] sm:$0xf]
      %v766 = vunpack.c.l.b16 %v747
      %v767 = vunpack.c.l.b16 %v748
      %v768 = vunpack.c.l.b16 %v749
      %v769 = vunpack.c.l.b16 %v750
      %v770 = vpack.c.b16 %v767, %v766
      %v771 = vpack.c.b16 %v769, %v768
      %v776 = vunpack.c.l.b16 %v758
      %v777 = vunpack.c.l.b16 %v759
      %v778 = vunpack.c.l.b16 %v760
      %v779 = vunpack.c.l.b16 %v761
      %v780 = vpack.c.b16 %v777, %v776
      %v781 = vpack.c.b16 %v779, %v778
      %v785 = vsel %vm250, %v770, 0
      %v788 = vsel %vm250, %v771, 0
      %790 = vmatprep.subr.bf16.mxu0 0
      %791 = vmatpush1.bf16.msra.mxu0 %v780
      %792 = vmatprep.subr.bf16.mxu0 0
      %793 = vmatpush1.bf16.msra.mxu0 %v781
      %794 = vmatprep.subr.bf16.mxu0 0
      %795 = vmatpush1.bf16.msra.mxu0 0
      %796 = vmatprep.subr.bf16.mxu0 0
      %797 = vmatpush1.bf16.msra.mxu0 0
      %798 = vmatprep.subr.bf16.mxu0 0
      %799 = vmatpush1.bf16.msra.mxu0 0
      %800 = vmatprep.subr.bf16.mxu0 0
      %801 = vmatpush1.bf16.msra.mxu0 0
      %802 = vmatprep.subr.bf16.mxu0 0
      %803 = vmatpush1.bf16.msra.mxu0 0
      %804 = vmatprep.subr.bf16.mxu0 0
      %805 = vmatpush1.bf16.msra.mxu0 0
      %806 = vmatprep.subr.bf16.mxu0 0
      %807 = vmatpush1.bf16.msra.mxu0 0
      %808 = vmatprep.subr.bf16.mxu0 0
      %809 = vmatpush1.bf16.msra.mxu0 0
      %810 = vmatprep.subr.bf16.mxu0 0
      %811 = vmatpush1.bf16.msra.mxu0 0
      %812 = vmatprep.subr.bf16.mxu0 0
      %813 = vmatpush1.bf16.msra.mxu0 0
      %814 = vmatprep.subr.bf16.mxu0 0
      %815 = vmatpush1.bf16.msra.mxu0 0
      %816 = vmatprep.subr.bf16.mxu0 0
      %817 = vmatpush1.bf16.msra.mxu0 0
      %818 = vmatprep.subr.bf16.mxu0 0
      %819 = vmatpush1.bf16.msra.mxu0 0
      %820 = vmatprep.subr.bf16.mxu0 0
      %821 = vmatpush1.bf16.msra.mxu0 0
      %822 = vmatprep.mubr.bf16.mxu0 0
      %823 = vmatmul.mubr.bf16.gmra.mrb[0].mxu0 %v785
      %v824 = vpop.f32.mrb[0].mxu0
      %v825 = vadd.f32 0.0, %v824
      %v826 = vpop.f32.mrb[0].mxu0
      %v827 = vpop.f32.mrb[0].mxu0
      %v828 = vadd.f32 0.0, %v827
      %v829 = vpop.f32.mrb[0].mxu0
      %830 = vmatprep.mubr.bf16.mxu0 0
      %831 = vmatmul.mubr.bf16.gmra.mrb[0].mxu0 %v788
      %v832 = vpop.f32.mrb[0].mxu0
      %v833 = vadd.f32 0.0, %v832
      %v834 = vpop.f32.mrb[0].mxu0
      %v835 = vpop.f32.mrb[0].mxu0
      %v836 = vadd.f32 0.0, %v835
      %v837 = vpop.f32.mrb[0].mxu0
      %838 = vdwg.mxu0
      %v839 = vadd.f32 %v743, %v825
      %v840 = vadd.f32 %v744, %v828
      %v841 = vadd.f32 %v745, %v833
      %v842 = vadd.f32 %v746, %v836
      %v843 = vpack.c.bf16 %v753, %v752
      %v844 = vpack.c.bf16 %v755, %v754
      %v845 = vpack.c.bf16 %v756, %v756
      %s846 = scalar_lea.vmem %s1, 112
      %v847 = vld [vmem:[%s846] sm:$0xf]
      %v848 = vld [vmem:[%s846 + $0x4] sm:$0xf]
      %v849 = vld [vmem:[%s846 + $0x8] sm:$0xf]
      %v850 = vld [vmem:[%s846 + $0xc] sm:$0xf]
      %v852 = vshrl.u32 %v843, 16
      %v854 = vshll.u32 %v843, 16
      %v856 = vrot.slane %v854, 1
      %v857 = vor.u32 %v852, %v856
      %v859 = vshll.u32 %v844, 16
      %v861 = vrot.slane %v859, 1
      %v862 = vsel %vm217, %v857, %v861
      %v863 = vshrl.u32 %v844, 16
      %v865 = vor.u32 %v863, %v861
      %v867 = vshll.u32 %v845, 16
      %v869 = vrot.slane %v867, 1
      %v870 = vsel %vm217, %v865, %v869
      %v875 = vunpack.c.l.b16 %v847
      %v876 = vunpack.c.l.b16 %v848
      %v877 = vunpack.c.l.b16 %v849
      %v878 = vunpack.c.l.b16 %v850
      %v879 = vpack.c.b16 %v876, %v875
      %v880 = vpack.c.b16 %v878, %v877
      %v884 = vsel %vm250, %v862, 0
      %v887 = vsel %vm250, %v870, 0
      %889 = vmatprep.subr.bf16.mxu0 0
      %890 = vmatpush1.bf16.msra.mxu0 %v879
      %891 = vmatprep.subr.bf16.mxu0 0
      %892 = vmatpush1.bf16.msra.mxu0 %v880
      %893 = vmatprep.subr.bf16.mxu0 0
      %894 = vmatpush1.bf16.msra.mxu0 0
      %895 = vmatprep.subr.bf16.mxu0 0
      %896 = vmatpush1.bf16.msra.mxu0 0
      %897 = vmatprep.subr.bf16.mxu0 0
      %898 = vmatpush1.bf16.msra.mxu0 0
      %899 = vmatprep.subr.bf16.mxu0 0
      %900 = vmatpush1.bf16.msra.mxu0 0
      %901 = vmatprep.subr.bf16.mxu0 0
      %902 = vmatpush1.bf16.msra.mxu0 0
      %903 = vmatprep.subr.bf16.mxu0 0
      %904 = vmatpush1.bf16.msra.mxu0 0
      %905 = vmatprep.subr.bf16.mxu0 0
      %906 = vmatpush1.bf16.msra.mxu0 0
      %907 = vmatprep.subr.bf16.mxu0 0
      %908 = vmatpush1.bf16.msra.mxu0 0
      %909 = vmatprep.subr.bf16.mxu0 0
      %910 = vmatpush1.bf16.msra.mxu0 0
      %911 = vmatprep.subr.bf16.mxu0 0
      %912 = vmatpush1.bf16.msra.mxu0 0
      %913 = vmatprep.subr.bf16.mxu0 0
      %914 = vmatpush1.bf16.msra.mxu0 0
      %915 = vmatprep.subr.bf16.mxu0 0
      %916 = vmatpush1.bf16.msra.mxu0 0
      %917 = vmatprep.subr.bf16.mxu0 0
      %918 = vmatpush1.bf16.msra.mxu0 0
      %919 = vmatprep.subr.bf16.mxu0 0
      %920 = vmatpush1.bf16.msra.mxu0 0
      %921 = vmatprep.mubr.bf16.mxu0 0
      %922 = vmatmul.mubr.bf16.gmra.mrb[0].mxu0 %v884
      %v923 = vpop.f32.mrb[0].mxu0
      %v924 = vadd.f32 0.0, %v923
      %v925 = vpop.f32.mrb[0].mxu0
      %v926 = vpop.f32.mrb[0].mxu0
      %v927 = vadd.f32 0.0, %v926
      %v928 = vpop.f32.mrb[0].mxu0
      %929 = vmatprep.mubr.bf16.mxu0 0
      %930 = vmatmul.mubr.bf16.gmra.mrb[0].mxu0 %v887
      %v931 = vpop.f32.mrb[0].mxu0
      %v932 = vadd.f32 0.0, %v931
      %v933 = vpop.f32.mrb[0].mxu0
      %v934 = vpop.f32.mrb[0].mxu0
      %v935 = vadd.f32 0.0, %v934
      %v936 = vpop.f32.mrb[0].mxu0
      %937 = vdwg.mxu0
      %v938 = vadd.f32 %v839, %v924
      %v939 = vadd.f32 %v840, %v927
      %v940 = vadd.f32 %v841, %v932
      %v941 = vadd.f32 %v842, %v935
      %s942 = scalar_lea.vmem %s1, 128
      %v943 = vld [vmem:[%s942] sm:$0xf]
      %v944 = vld [vmem:[%s942 + $0x4] sm:$0xf]
      %v945 = vld [vmem:[%s942 + $0x8] sm:$0xf]
      %v946 = vld [vmem:[%s942 + $0xc] sm:$0xf]
      %v950 = vrot.slane %v843, 1
      %v951 = vrot.slane %v844, 1
      %v952 = vsel %vm391, %v950, %v951
      %v953 = vrot.slane %v845, 1
      %v954 = vsel %vm391, %v951, %v953
      %v959 = vunpack.c.l.b16 %v943
      %v960 = vunpack.c.l.b16 %v944
      %v961 = vunpack.c.l.b16 %v945
      %v962 = vunpack.c.l.b16 %v946
      %v963 = vpack.c.b16 %v960, %v959
      %v964 = vpack.c.b16 %v962, %v961
      %v968 = vsel %vm250, %v952, 0
      %v971 = vsel %vm250, %v954, 0
      %973 = vmatprep.subr.bf16.mxu0 0
      %974 = vmatpush1.bf16.msra.mxu0 %v963
      %975 = vmatprep.subr.bf16.mxu0 0
      %976 = vmatpush1.bf16.msra.mxu0 %v964
      %977 = vmatprep.subr.bf16.mxu0 0
      %978 = vmatpush1.bf16.msra.mxu0 0
      %979 = vmatprep.subr.bf16.mxu0 0
      %980 = vmatpush1.bf16.msra.mxu0 0
      %981 = vmatprep.subr.bf16.mxu0 0
      %982 = vmatpush1.bf16.msra.mxu0 0
      %983 = vmatprep.subr.bf16.mxu0 0
      %984 = vmatpush1.bf16.msra.mxu0 0
      %985 = vmatprep.subr.bf16.mxu0 0
      %986 = vmatpush1.bf16.msra.mxu0 0
      %987 = vmatprep.subr.bf16.mxu0 0
      %988 = vmatpush1.bf16.msra.mxu0 0
      %989 = vmatprep.subr.bf16.mxu0 0
      %990 = vmatpush1.bf16.msra.mxu0 0
      %991 = vmatprep.subr.bf16.mxu0 0
      %992 = vmatpush1.bf16.msra.mxu0 0
      %993 = vmatprep.subr.bf16.mxu0 0
      %994 = vmatpush1.bf16.msra.mxu0 0
      %995 = vmatprep.subr.bf16.mxu0 0
      %996 = vmatpush1.bf16.msra.mxu0 0
      %997 = vmatprep.subr.bf16.mxu0 0
      %998 = vmatpush1.bf16.msra.mxu0 0
      %999 = vmatprep.subr.bf16.mxu0 0
      %1000 = vmatpush1.bf16.msra.mxu0 0
      %1001 = vmatprep.subr.bf16.mxu0 0
      %1002 = vmatpush1.bf16.msra.mxu0 0
      %1003 = vmatprep.subr.bf16.mxu0 0
      %1004 = vmatpush1.bf16.msra.mxu0 0
      %1005 = vmatprep.mubr.bf16.mxu0 0
      %1006 = vmatmul.mubr.bf16.gmra.mrb[0].mxu0 %v968
      %v1007 = vpop.f32.mrb[0].mxu0
      %v1008 = vadd.f32 0.0, %v1007
      %v1009 = vpop.f32.mrb[0].mxu0
      %v1010 = vpop.f32.mrb[0].mxu0
      %v1011 = vadd.f32 0.0, %v1010
      %v1012 = vpop.f32.mrb[0].mxu0
      %1013 = vmatprep.mubr.bf16.mxu0 0
      %1014 = vmatmul.mubr.bf16.gmra.mrb[0].mxu0 %v971
      %v1015 = vpop.f32.mrb[0].mxu0
      %v1016 = vadd.f32 0.0, %v1015
      %v1017 = vpop.f32.mrb[0].mxu0
      %v1018 = vpop.f32.mrb[0].mxu0
      %v1019 = vadd.f32 0.0, %v1018
      %v1020 = vpop.f32.mrb[0].mxu0
      %1021 = vdwg.mxu0
      %v1022 = vadd.f32 %v938, %v1008
      %v1023 = vadd.f32 %v939, %v1011
      %v1024 = vadd.f32 %v940, %v1016
      %v1025 = vadd.f32 %v941, %v1019
      %v1026 = vld [vmem:[%s2] sm:$0x1]
      %v1028 = vlaneseq
      %v1029 = vshrl.u32 %v1028, 7
      %v1030 = vsub.s32 0, %v1029
      %v1031 = vrot.slane %v1026, %v1030
      %v1033 = vadd.f32 %v1022, %v1031
      %v1034 = vadd.f32 %v1023, %v1031
      %v1035 = vadd.f32 %v1024, %v1031
      %v1036 = vadd.f32 %v1025, %v1031
      %1037 = vst [vmem:[%s192] sm:$0xff] %v1033
      %1038 = vst [vmem:[%s192 + $0x8] sm:$0xff] %v1034
      %1039 = vst [vmem:[%s192 + $0x10] sm:$0xff] %v1035
      %1040 = vst [vmem:[%s192 + $0x18] sm:$0xff] %v1036
      %s1041 = smul.u32 4, %s19
      %p1042 = scmp.lt.s32.totalorder %s18, 1
      %s1043 = scalar_select %p1042, %s18, 1
      %p1044 = scmp.lt.s32.totalorder %s1041, 3
      %s1045 = scalar_select %p1044, %s1041, 3
      %s1046 = smul.addr %s1043, 4
      %s1047 = sadd.s32 %s1045, %s1046
      %s1048 = smul.addr %s1047, 8
      %s1049 = scalar_lea.vmem %s3, %s1048
      // Predicated region
      $region33: #{scene_net_forward.19} parent=31 // pred_check
        %p1050 = pneg %p114
      $region34: #{scene_net_forward.19} parent=31 // pred_check_branch
        %1052 = sbr.rel (%p1050) target = $region36
      $region35: #{scene_net_forward.19} parent=31 // pred_region
        %s1053 = smul.u32 4, %s19
      $region36: #{scene_net_forward.19} parent=31 // pred_fallthru
        _
    $region32: #{scene_net_forward.19} parent=5 // pred_fallthru
      _
    %p1054 = scmp.le.s32.totalorder 2, %s9
    // Predicated region
    $region37: #{scene_net_forward.19} parent=5 // pred_check
      %p1055 = pneg %p1054
    $region38: #{scene_net_forward.19} parent=5 // pred_check_branch
      %1057 = sbr.rel (%p1055) target = $region40
    $region39: #{scene_net_forward.19} parent=5 // pred_region
      %s1058 = ssub.s32 %s9, 2
      // Predicated region
      $region41: #{scene_net_forward.19} parent=39 // pred_check
        %p1059 = pneg %p120
      $region42: #{scene_net_forward.19} parent=39 // pred_check_branch
        %1061 = sbr.rel (%p1059) target = $region44
      $region43: #{scene_net_forward.19} parent=39 // pred_region
        %s1062 = smul.u32 4, %s21
        %p1063 = scmp.lt.s32.totalorder %s20, 1
        %s1064 = scalar_select %p1063, %s20, 1
        %p1065 = scmp.lt.s32.totalorder %s1062, 3
        %s1066 = scalar_select %p1065, %s1062, 3
        %s1067 = smul.addr %s1064, 4
        %s1068 = sadd.s32 %s1066, %s1067
        %s1069 = smul.addr %s1068, 8
        %s1070 = scalar_lea.vmem %s3, %s1069
      $region44: #{scene_net_forward.19} parent=39 // pred_fallthru
        _
    $region40: #{scene_net_forward.19} parent=5 // pred_fallthru
      _
  $region6: #{scene_net_forward.19} parent=0 // loop_footer
    %s13 = sadd.s32 1, %s9
  $region7: #{scene_net_forward.19} parent=0 // loop_footer_branch
    %8 = sbr.rel target = $region3
  $region8: #{scene_net_forward.19} parent=0 // loop_exit
    _

// kernel: scene_net_forward.23
$region0: #{scene_net_forward.23}
  #allocation0 [shape = 'u32[]', space=smem, size = 0x4, offset = 0x4, fixed_abs, tag = 'smem constant byte address 0x4 - core index']
  #allocation1 [shape = 'u32[144,128]{1,0:T(1,128)}', space=vmem, size = 0x12000, scoped, tag = 'internal scratch']
  %s0 = inlined_call_operand.vmem [shape: bf16[2,40,16], index: 0, kind: input, shape index: {}]
  %s1 = inlined_call_operand.vmem [shape: bf16[1,16,128], index: 1, kind: input, shape index: {}]
  %s2 = inlined_call_operand.vmem [shape: f32[1,128], index: 2, kind: input, shape index: {}]
  %s3 = inlined_call_operand.vmem [shape: f32[2,32,128], index: 3, kind: output, shape index: {}]
  %s4 = sld [smem:[#allocation0]]
  $region45: #{scene_net_forward.23} parent=0
    _
  %s6 = ssub.s32 1, %s4
  %s7 = scalar_select 0, %s6, %s4
  loop: start=0, step=1, limit=4
  $region2: #{scene_net_forward.23} parent=0 // loop_pre_header
    _
  $region3: #{scene_net_forward.23} parent=0 // loop_header
    %s9 = sphi 0, %s13
    %p10 = scmp.ge.s32.totalorder %s9, 4
    %s16 = sphi 0, %s28
    %s17 = sphi 0, %s24
    %s18 = sphi 0, %s16
    %s19 = sphi 0, %s17
    %s20 = sphi 0, %s18
    %s21 = sphi 0, %s19
    %s31 = sphi 0, %s33
    %s34 = sphi 0, %s31
    %s35 = sphi 0, %s34
    %s51 = sphi 0, %s35
    %s55 = sphi 0, %s55
    %s57 = sphi 0, %s55
    %s58 = sphi 0, %s57
    %s72 = sphi 0, %s58
    %s76 = sphi 0, %s76
    %s78 = sphi 0, %s76
    %s79 = sphi 0, %s78
    %s93 = sphi 0, %s79
    %s101 = sphi 0, %s103
    %s104 = sphi 0, %s101
    %s105 = sphi 0, %s104
    %s121 = sphi 0, %s105
  $region4: #{scene_net_forward.23} parent=0 // loop_header_branch
    %12 = sbr.rel (%p10) target = $region8
  $region5: #{scene_net_forward.23} parent=0 // loop_body
    %s14 = ssub.s32 %s9, 1
    %s15 = ssub.s32 %s9, 2
    %s22 = sadd.s32 1, %s17
    %p23 = scmp.ge.s32.totalorder %s22, 1
    %s24 = scalar_select %p23, 0, %s22
    %s25 = sadd.s32 1, %s16
    %s26 = scalar_select %p23, %s25, %s16
    %p27 = scmp.ge.s32.totalorder %s26, 2
    %s28 = scalar_select %p27, 0, %s26
    %s29 = ssub.s32 %s16, %s28
    %p30 = scmp.eq.s32.totalorder %s29, 0
    %s32 = sadd.s32 %s31, 1
    %s33 = scalar_select %p30, %s31, %s32
    %p36 = pneg %p30
    %p37 = scmp.eq.s32.totalorder %s9, 1
    %p38 = por %p36, %p37
    %p39 = scmp.ne.s32.totalorder %s31, %s34
    %p40 = scmp.eq.s32.totalorder %s9, 0
    %p41 = por %p39, %p40
    %p42 = scmp.ne.s32.totalorder %s31, %s34
    %p43 = scmp.eq.s32.totalorder %s14, 1
    %p44 = por %p42, %p43
    %p45 = scmp.ne.s32.totalorder %s34, %s35
    %p46 = scmp.eq.s32.totalorder %s14, 0
    %p47 = por %p45, %p46
    %p48 = scmp.ne.s32.totalorder %s34, %s35
    %p49 = scmp.eq.s32.totalorder %s15, 1
    %p50 = por %p48, %p49
    %p52 = scmp.ne.s32.totalorder %s35, %s51
    %p53 = scmp.eq.s32.totalorder %s15, 0
    %p54 = por %p52, %p53
    %s56 = sadd.s32 %s55, 1
    %p59 = scmp.eq.s32.totalorder %s9, 1
    %p60 = scmp.ne.s32.totalorder %s55, %s57
    %p61 = scmp.eq.s32.totalorder %s9, 0
    %p62 = por %p60, %p61
    %p63 = scmp.ne.s32.totalorder %s55, %s57
    %p64 = scmp.eq.s32.totalorder %s14, 1
    %p65 = por %p63, %p64
    %p66 = scmp.ne.s32.totalorder %s57, %s58
    %p67 = scmp.eq.s32.totalorder %s14, 0
    %p68 = por %p66, %p67
    %p69 = scmp.ne.s32.totalorder %s57, %s58
    %p70 = scmp.eq.s32.totalorder %s15, 1
    %p71 = por %p69, %p70
    %p73 = scmp.ne.s32.totalorder %s58, %s72
    %p74 = scmp.eq.s32.totalorder %s15, 0
    %p75 = por %p73, %p74
    %s77 = sadd.s32 %s76, 1
    %p80 = scmp.eq.s32.totalorder %s9, 1
    %p81 = scmp.ne.s32.totalorder %s76, %s78
    %p82 = scmp.eq.s32.totalorder %s9, 0
    %p83 = por %p81, %p82
    %p84 = scmp.ne.s32.totalorder %s76, %s78
    %p85 = scmp.eq.s32.totalorder %s14, 1
    %p86 = por %p84, %p85
    %p87 = scmp.ne.s32.totalorder %s78, %s79
    %p88 = scmp.eq.s32.totalorder %s14, 0
    %p89 = por %p87, %p88
    %p90 = scmp.ne.s32.totalorder %s78, %s79
    %p91 = scmp.eq.s32.totalorder %s15, 1
    %p92 = por %p90, %p91
    %p94 = scmp.ne.s32.totalorder %s79, %s93
    %p95 = scmp.eq.s32.totalorder %s15, 0
    %p96 = por %p94, %p95
    %s97 = ssub.s32 %s16, %s28
    %s98 = ssub.s32 %s17, %s24
    %s99 = sor.u32 %s97, %s98
    %p100 = scmp.eq.s32.totalorder %s99, 0
    %s102 = sadd.s32 %s101, 1
    %s103 = scalar_select %p100, %s101, %s102
    %p106 = pneg %p100
    %p107 = scmp.eq.s32.totalorder %s9, 1
    %p108 = por %p106, %p107
    %p109 = scmp.ne.s32.totalorder %s101, %s104
    %p110 = scmp.eq.s32.totalorder %s9, 0
    %p111 = por %p109, %p110
    %p112 = scmp.ne.s32.totalorder %s101, %s104
    %p113 = scmp.eq.s32.totalorder %s14, 1
    %p114 = por %p112, %p113
    %p115 = scmp.ne.s32.totalorder %s104, %s105
    %p116 = scmp.eq.s32.totalorder %s14, 0
    %p117 = por %p115, %p116
    %p118 = scmp.ne.s32.totalorder %s104, %s105
    %p119 = scmp.eq.s32.totalorder %s15, 1
    %p120 = por %p118, %p119
    %p122 = scmp.ne.s32.totalorder %s105, %s121
    %p123 = scmp.eq.s32.totalorder %s15, 0
    %p124 = por %p122, %p123
    %p125 = scmp.le.s32.totalorder 1, %s9
    %p126 = scmp.lt.s32.totalorder %s9, 3
    %p127 = pnand %p125, %p126
    %p128 = pneg %p127
    // Predicated region
    $region9: #{scene_net_forward.23} parent=5 // pred_check
      _
    $region10: #{scene_net_forward.23} parent=5 // pred_check_branch
      %130 = sbr.rel (%p127) target = $region12
    $region11: #{scene_net_forward.23} parent=5 // pred_region
      %s131 = ssub.s32 %s9, 1
      // Predicated region
      $region13: #{scene_net_forward.23} parent=11 // pred_check
        %p132 = pneg %p68
      $region14: #{scene_net_forward.23} parent=11 // pred_check_branch
        %134 = sbr.rel (%p132) target = $region16
      $region15: #{scene_net_forward.23} parent=11 // pred_region
        _
      $region16: #{scene_net_forward.23} parent=11 // pred_fallthru
        _
      // Predicated region
      $region17: #{scene_net_forward.23} parent=11 // pred_check
        %p135 = pneg %p89
      $region18: #{scene_net_forward.23} parent=11 // pred_check_branch
        %137 = sbr.rel (%p135) target = $region20
      $region19: #{scene_net_forward.23} parent=11 // pred_region
        _
      $region20: #{scene_net_forward.23} parent=11 // pred_fallthru
        _
    $region12: #{scene_net_forward.23} parent=5 // pred_fallthru
      _
    %p138 = scmp.lt.s32.totalorder %s9, 2
    // Predicated region
    $region21: #{scene_net_forward.23} parent=5 // pred_check
      %p139 = pneg %p138
    $region22: #{scene_net_forward.23} parent=5 // pred_check_branch
      %141 = sbr.rel (%p139) target = $region24
    $region23: #{scene_net_forward.23} parent=5 // pred_region
      // Predicated region
      $region25: #{scene_net_forward.23} parent=23 // pred_check
        %p142 = pneg %p41
      $region26: #{scene_net_forward.23} parent=23 // pred_check_branch
        %144 = sbr.rel (%p142) target = $region28
      $region27: #{scene_net_forward.23} parent=23 // pred_region
        %p145 = scmp.lt.s32.totalorder %s16, 1
        %s146 = scalar_select %p145, %s16, 1
        %s147 = smul.addr %s146, 5
        %s148 = smul.addr %s147, 4
        %s149 = scalar_lea.vmem %s0, %s148
      $region28: #{scene_net_forward.23} parent=23 // pred_fallthru
        _
    $region24: #{scene_net_forward.23} parent=5 // pred_fallthru
      _
    %p150 = scmp.le.s32.totalorder 1, %s9
    %p151 = scmp.lt.s32.totalorder %s9, 3
    %p152 = pnand %p150, %p151
    %p153 = pneg %p152
    // Predicated region
    $region29: #{scene_net_forward.23} parent=5 // pred_check
      _
    $region30: #{scene_net_forward.23} parent=5 // pred_check_branch
      %155 = sbr.rel (%p152) target = $region32
    $region31: #{scene_net_forward.23} parent=5 // pred_region
      %s156 = ssub.s32 %s9, 1
      %p157 = scmp.lt.s32.totalorder %s18, 1
      %s158 = scalar_select %p157, %s18, 1
      %s159 = smul.addr %s158, 5
      %s160 = smul.addr %s159, 4
      %s161 = scalar_lea.vmem %s0, %s160
      %p162 = pneg %p47
      %p163 = pneg %p44
      %p164 = pneg %p68
      %p165 = pneg %p65
      %p166 = pneg %p89
      %p167 = pneg %p86
      %p168 = pneg %p117
      %p169 = pneg %p114
      %s170 = smul.u32 4, %s19
      %p171 = scmp.lt.s32.totalorder %s18, 1
      %s172 = scalar_select %p171, %s18, 1
      %p173 = scmp.lt.s32.totalorder %s170, 3
      %s174 = scalar_select %p173, %s170, 3
      %s175 = smul.addr %s172, 4
      %s176 = sadd.s32 %s174, %s175
      %s177 = smul.addr %s176, 8
      %s178 = scalar_lea.vmem %s3, %s177
      %p179 = scmp.lt.s32.totalorder %s18, 1
      %s180 = scalar_select %p179, %s18, 1
      %s181 = smul.addr %s180, 5
      %s182 = smul.addr %s181, 4
      %s183 = scalar_lea.vmem %s0, %s182
      %s184 = smul.u32 4, %s19
      %p185 = scmp.lt.s32.totalorder %s18, 1
      %s186 = scalar_select %p185, %s18, 1
      %p187 = scmp.lt.s32.totalorder %s184, 3
      %s188 = scalar_select %p187, %s184, 3
      %s189 = smul.addr %s186, 4
      %s190 = sadd.s32 %s188, %s189
      %s191 = smul.addr %s190, 8
      %s192 = scalar_lea.vmem %s3, %s191
      %s193 = smul.u32 4, %s19
      %v195 = vld [vmem:[%s183] sm:$0xf]
      %v196 = vld [vmem:[%s183 + $0x4] sm:$0xf]
      %v197 = vld [vmem:[%s183 + $0x8] sm:$0xf]
      %v198 = vld [vmem:[%s183 + $0xc] sm:$0xf]
      %v199 = vld [vmem:[%s1] sm:$0xf]
      %v200 = vld [vmem:[%s1 + $0x4] sm:$0xf]
      %v201 = vld [vmem:[%s2] sm:$0x1]
      %v203 = vlaneseq
      %v204 = vshrl.u32 %v203, 7
      %v205 = vsub.s32 0, %v204
      %v206 = vrot.slane %v201, %v205
      %v212 = vunpack.c.l.b16 %v195
      %v213 = vunpack.c.l.b16 %v196
      %v214 = vunpack.c.l.b16 %v197
      %v215 = vunpack.c.l.b16 %v198
      %v216 = vpack.c.b16 %v213, %v212
      %v217 = vpack.c.b16 %v215, %v214
      %v220 = vunpack.c.l.b16 %v199
      %v221 = vunpack.c.l.b16 %v200
      %v222 = vpack.c.b16 %v221, %v220
      %vm224 = vcmask 130048
      %v226 = vsel %vm224, %v216, 0
      %v229 = vsel %vm224, %v217, 0
      %231 = vmatprep.subr.bf16.mxu0 0
      %232 = vmatpush1.bf16.msra.mxu0 %v222
      %233 = vmatprep.subr.bf16.mxu0 0
      %234 = vmatpush1.bf16.msra.mxu0 0
      %235 = vmatprep.subr.bf16.mxu0 0
      %236 = vmatpush1.bf16.msra.mxu0 0
      %237 = vmatprep.subr.bf16.mxu0 0
      %238 = vmatpush1.bf16.msra.mxu0 0
      %239 = vmatprep.subr.bf16.mxu0 0
      %240 = vmatpush1.bf16.msra.mxu0 0
      %241 = vmatprep.subr.bf16.mxu0 0
      %242 = vmatpush1.bf16.msra.mxu0 0
      %243 = vmatprep.subr.bf16.mxu0 0
      %244 = vmatpush1.bf16.msra.mxu0 0
      %245 = vmatprep.subr.bf16.mxu0 0
      %246 = vmatpush1.bf16.msra.mxu0 0
      %247 = vmatprep.subr.bf16.mxu0 0
      %248 = vmatpush1.bf16.msra.mxu0 0
      %249 = vmatprep.subr.bf16.mxu0 0
      %250 = vmatpush1.bf16.msra.mxu0 0
      %251 = vmatprep.subr.bf16.mxu0 0
      %252 = vmatpush1.bf16.msra.mxu0 0
      %253 = vmatprep.subr.bf16.mxu0 0
      %254 = vmatpush1.bf16.msra.mxu0 0
      %255 = vmatprep.subr.bf16.mxu0 0
      %256 = vmatpush1.bf16.msra.mxu0 0
      %257 = vmatprep.subr.bf16.mxu0 0
      %258 = vmatpush1.bf16.msra.mxu0 0
      %259 = vmatprep.subr.bf16.mxu0 0
      %260 = vmatpush1.bf16.msra.mxu0 0
      %261 = vmatprep.subr.bf16.mxu0 0
      %262 = vmatpush1.bf16.msra.mxu0 0
      %263 = vmatprep.mubr.bf16.mxu0 0
      %264 = vmatmul.mubr.bf16.gmra.mrb[0].mxu0 %v226
      %v265 = vpop.f32.mrb[0].mxu0
      %v266 = vadd.f32 %v206, %v265
      %v267 = vpop.f32.mrb[0].mxu0
      %v268 = vpop.f32.mrb[0].mxu0
      %v269 = vadd.f32 %v206, %v268
      %v270 = vpop.f32.mrb[0].mxu0
      %271 = vmatprep.mubr.bf16.mxu0 0
      %272 = vmatmul.mubr.bf16.gmra.mrb[0].mxu0 %v229
      %v273 = vpop.f32.mrb[0].mxu0
      %v274 = vadd.f32 %v206, %v273
      %v275 = vpop.f32.mrb[0].mxu0
      %v276 = vpop.f32.mrb[0].mxu0
      %v277 = vadd.f32 %v206, %v276
      %v278 = vpop.f32.mrb[0].mxu0
      %279 = vdwg.mxu0
      %v280 = vlaneseq
      %v281 = vand.u32 %v280, 127
      %vm282 = vcmp.lt.s32.totalorder %v281, 5
      %v283 = vsel %vm282, %v266, -1e+30
      %v284 = vsel %vm282, %v269, -1e+30
      %v285 = vsel %vm282, %v274, -1e+30
      %v286 = vsel %vm282, %v277, -1e+30
      %287 = vmax.xlane.f32.xlu0 %v283
      %v288 = vpop.xlane.xlu0 %287
      %289 = vmax.xlane.f32.xlu0 %v284
      %v290 = vpop.xlane.xlu0 %289
      %291 = vmax.xlane.f32.xlu0 %v285
      %v292 = vpop.xlane.xlu0 %291
      %293 = vmax.xlane.f32.xlu0 %v286
      %v294 = vpop.xlane.xlu0 %293
      %v295 = vsub.f32 %v283, %v288
      %v296 = vsub.f32 %v284, %v290
      %v297 = vsub.f32 %v285, %v292
      %v298 = vsub.f32 %v286, %v294
      %v299 = vmul.f32 %v295, 1.442695
      %v300 = vpow.pop %v299
      %v301 = vmul.f32 %v296, 1.442695
      %v302 = vpow.pop %v301
      %v303 = vmul.f32 %v297, 1.442695
      %v304 = vpow.pop %v303
      %v305 = vmul.f32 %v298, 1.442695
      %v306 = vpow.pop %v305
      %v307 = vsel %vm282, %v300, 0.0
      %v308 = vsel %vm282, %v302, 0.0
      %v309 = vsel %vm282, %v304, 0.0
      %v310 = vsel %vm282, %v306, 0.0
      %311 = vadd.xlane.f32.xlu0 %v307
      %v312 = vpop.xlane.xlu0 %311
      %313 = vadd.xlane.f32.xlu0 %v308
      %v314 = vpop.xlane.xlu0 %313
      %315 = vadd.xlane.f32.xlu0 %v309
      %v316 = vpop.xlane.xlu0 %315
      %317 = vadd.xlane.f32.xlu0 %v310
      %v318 = vpop.xlane.xlu0 %317
      %v319 = vlog2.pop %v312
      %v320 = vmul.f32 %v319, 0.6931472
      %v321 = vlog2.pop %v314
      %v322 = vmul.f32 %v321, 0.6931472
      %v323 = vlog2.pop %v316
      %v324 = vmul.f32 %v323, 0.6931472
      %v325 = vlog2.pop %v318
      %v326 = vmul.f32 %v325, 0.6931472
      %v327 = vsub.f32 %v295, %v320
      %v328 = vsub.f32 %v296, %v322
      %v329 = vsub.f32 %v297, %v324
      %v330 = vsub.f32 %v298, %v326
      %v331 = vsel %vm282, %v327, 0.0
      %v332 = vsel %vm282, %v328, 0.0
      %v333 = vsel %vm282, %v329, 0.0
      %v334 = vsel %vm282, %v330, 0.0
      %335 = vst [vmem:[%s192] sm:$0xff] %v331
      %336 = vst [vmem:[%s192 + $0x8] sm:$0xff] %v332
      %337 = vst [vmem:[%s192 + $0x10] sm:$0xff] %v333
      %338 = vst [vmem:[%s192 + $0x18] sm:$0xff] %v334
      %s339 = smul.u32 4, %s19
      %p340 = scmp.lt.s32.totalorder %s18, 1
      %s341 = scalar_select %p340, %s18, 1
      %p342 = scmp.lt.s32.totalorder %s339, 3
      %s343 = scalar_select %p342, %s339, 3
      %s344 = smul.addr %s341, 4
      %s345 = sadd.s32 %s343, %s344
      %s346 = smul.addr %s345, 8
      %s347 = scalar_lea.vmem %s3, %s346
      // Predicated region
      $region33: #{scene_net_forward.23} parent=31 // pred_check
        %p348 = pneg %p114
      $region34: #{scene_net_forward.23} parent=31 // pred_check_branch
        %350 = sbr.rel (%p348) target = $region36
      $region35: #{scene_net_forward.23} parent=31 // pred_region
        %s351 = smul.u32 4, %s19
      $region36: #{scene_net_forward.23} parent=31 // pred_fallthru
        _
    $region32: #{scene_net_forward.23} parent=5 // pred_fallthru
      _
    %p352 = scmp.le.s32.totalorder 2, %s9
    // Predicated region
    $region37: #{scene_net_forward.23} parent=5 // pred_check
      %p353 = pneg %p352
    $region38: #{scene_net_forward.23} parent=5 // pred_check_branch
      %355 = sbr.rel (%p353) target = $region40
    $region39: #{scene_net_forward.23} parent=5 // pred_region
      %s356 = ssub.s32 %s9, 2
      // Predicated region
      $region41: #{scene_net_forward.23} parent=39 // pred_check
        %p357 = pneg %p120
      $region42: #{scene_net_forward.23} parent=39 // pred_check_branch
        %359 = sbr.rel (%p357) target = $region44
      $region43: #{scene_net_forward.23} parent=39 // pred_region
        %s360 = smul.u32 4, %s21
        %p361 = scmp.lt.s32.totalorder %s20, 1
        %s362 = scalar_select %p361, %s20, 1
        %p363 = scmp.lt.s32.totalorder %s360, 3
        %s364 = scalar_select %p363, %s360, 3
        %s365 = smul.addr %s362, 4
        %s366 = sadd.s32 %s364, %s365
        %s367 = smul.addr %s366, 8
        %s368 = scalar_lea.vmem %s3, %s367
      $region44: #{scene_net_forward.23} parent=39 // pred_fallthru
        _
    $region40: #{scene_net_forward.23} parent=5 // pred_fallthru
      _
  $region6: #{scene_net_forward.23} parent=0 // loop_footer
    %s13 = sadd.s32 1, %s9
  $region7: #{scene_net_forward.23} parent=0 // loop_footer_branch
    %8 = sbr.rel target = $region3
  $region8: #{scene_net_forward.23} parent=0 // loop_exit
    _

</llo_original>
